<compile_context>
chip_gen: v6e
topology: v6e:2x2x1
jax: 0.10.0
libtpu: 0.0.40
codegen_flags: <defaults>
</compile_context>

<pallas_src>
import functools

import jax
import jax.numpy as jnp
from jax.experimental import pallas as pl
from jax.experimental.pallas import tpu as pltpu


def _round_up(x, m):
    return ((x + m - 1) // m) * m


# --------------------------------------------------------------------------
# Fused per-layer GRU kernel: input projection + sequential recurrence
# --------------------------------------------------------------------------
def _gru_layer_kernel(x_ref, wih_ref, whh_ref, bias_ref, bhhn_ref, h0_ref,
                      out_ref, hn_ref, gates_scr, h_scr, *, t_blk, b_pad):
    """One GRU layer over a block of t_blk timesteps (time-major, flattened rows).

    x_ref:     (t_blk*b_pad, D)  bf16  input rows for this time block
    wih_ref:   (D, 3H)           bf16  W_ih^T (resident)
    whh_ref:   (H, 3H)           bf16  W_hh^T (resident)
    bias_ref:  (1, 3H)           f32   b_ih + [b_hh_r | b_hh_z | 0]
    bhhn_ref:  (1, H)            f32   b_hh_n (must stay inside r*(.))
    h0_ref:    (b_pad, H)        f32   initial hidden state
    out_ref:   (t_blk*b_pad, H)        per-step hidden states (layer output)
    hn_ref:    (b_pad, H)        f32   final hidden state
    gates_scr: (t_blk*b_pad, 3H) f32   x-gates scratch
    h_scr:     (b_pad, H)        f32   hidden-state carry across grid steps
    """
    i = pl.program_id(0)
    H = h_scr.shape[1]

    @pl.when(i == 0)
    def _():
        h_scr[...] = h0_ref[...]

    # Input projection for every timestep of this block in one MXU pass.
    gates_scr[...] = (
        jnp.dot(x_ref[...], wih_ref[...], preferred_element_type=jnp.float32)
        + bias_ref[...])

    whh = whh_ref[...]
    b_n = jnp.broadcast_to(bhhn_ref[...], (b_pad, H))   # hoisted out of the loop

    # Sequential recurrence, fully unrolled (t_blk is a small static int),
    # so every slice offset below is static and 8-sublane aligned.
    for t in range(t_blk):
        h_prev = h_scr[...]
        hg = jnp.dot(h_prev.astype(whh.dtype), whh,
                     preferred_element_type=jnp.float32)
        xg = gates_scr[pl.ds(t * b_pad, b_pad), :]
        # PyTorch GRU gate order: [r | z | n]
        r = jax.nn.sigmoid(xg[:, 0:H] + hg[:, 0:H])
        z = jax.nn.sigmoid(xg[:, H:2 * H] + hg[:, H:2 * H])
        n = jnp.tanh(xg[:, 2 * H:3 * H] + r * (hg[:, 2 * H:3 * H] + b_n))
        h_new = (1.0 - z) * n + z * h_prev
        h_scr[...] = h_new
        out_ref[pl.ds(t * b_pad, b_pad), :] = h_new.astype(out_ref.dtype)

    @pl.when(i == pl.num_programs(0) - 1)
    def _():
        hn_ref[...] = h_scr[...]


def _gru_layer(x_flat, w_ih_t, w_hh_t, bias_proj, b_hh_n, h0, *, seq_len,
               b_pad, t_blk=None, out_dtype=jnp.bfloat16):
    """x_flat: (T*b_pad, D) time-major rows. Returns ((T*b_pad, H), (b_pad, H))."""
    M, D = x_flat.shape
    H = h0.shape[1]
    G = 3 * H
    if t_blk is None:
        t_blk = seq_len            # whole sequence in one grid step at this size
    assert seq_len % t_blk == 0, "seq_len must be divisible by t_blk"
    rows = t_blk * b_pad
    grid = (seq_len // t_blk,)
    kernel = functools.partial(_gru_layer_kernel, t_blk=t_blk, b_pad=b_pad)
    out_flat, h_n = pl.pallas_call(
        kernel,
        out_shape=(jax.ShapeDtypeStruct((M, H), out_dtype),
                   jax.ShapeDtypeStruct((b_pad, H), jnp.float32)),
        grid_spec=pltpu.PrefetchScalarGridSpec(
            num_scalar_prefetch=0,
            grid=grid,
            in_specs=[
                pl.BlockSpec((rows, D), lambda i: (i, 0)),     # x rows of time block i
                pl.BlockSpec((D, G), lambda i: (0, 0)),        # W_ih^T resident
                pl.BlockSpec((H, G), lambda i: (0, 0)),        # W_hh^T resident
                pl.BlockSpec((1, G), lambda i: (0, 0)),        # fused bias
                pl.BlockSpec((1, H), lambda i: (0, 0)),        # b_hh_n
                pl.BlockSpec((b_pad, H), lambda i: (0, 0)),    # h0
            ],
            out_specs=(
                pl.BlockSpec((rows, H), lambda i: (i, 0)),     # out rows of block i
                pl.BlockSpec((b_pad, H), lambda i: (0, 0)),    # h_n (resident)
            ),
            scratch_shapes=[
                pltpu.VMEM((rows, G), jnp.float32),            # x-gates scratch
                pltpu.VMEM((b_pad, H), jnp.float32),           # hidden-state carry
            ],
        ),
        compiler_params=pltpu.CompilerParams(
            dimension_semantics=("arbitrary",)),               # time is sequential
    )(x_flat, w_ih_t, w_hh_t, bias_proj, b_hh_n, h0)
    return out_flat, h_n


# --------------------------------------------------------------------------
# Full Temporal.forward
# --------------------------------------------------------------------------
def temporal_forward(x, params, h_state=None):
    """x: (B, T, C); params: list of dicts(w_ih_t (D,3H), w_hh_t (H,3H),
    b_ih (1,3H), b_hh (1,3H)). Returns (out (B,T,H), h_n (L,B,H))."""
    B, T, C = x.shape
    L = len(params)
    H = params[0]["w_hh_t"].shape[0]
    if h_state is None:
        h_state = jnp.zeros((L, B, H), dtype=jnp.float32)

    b_pad = _round_up(max(B, 1), 8)
    pad_b = b_pad - B

    # Time-major once on the way in; bf16 MXU operands, f32 gate math / carry.
    x_tm = jnp.transpose(x, (1, 0, 2)).astype(jnp.bfloat16)      # (T, B, C)
    if pad_b:
        x_tm = jnp.pad(x_tm, ((0, 0), (0, pad_b), (0, 0)))
    layer_in = x_tm.reshape(T * b_pad, C)                        # free view

    h_n_list = []
    out_flat = layer_in
    for layer_idx, p in enumerate(params):
        w_ih_bf = p["w_ih_t"].astype(jnp.bfloat16)
        w_hh_bf = p["w_hh_t"].astype(jnp.bfloat16)
        b_ih = p["b_ih"].astype(jnp.float32)
        b_hh = p["b_hh"].astype(jnp.float32)
        # Fold b_hh[r|z] into the projection bias; b_hh[n] stays inside r*(.)
        bias_proj = b_ih + jnp.concatenate(
            [b_hh[:, :2 * H], jnp.zeros((1, H), jnp.float32)], axis=1)
        b_hh_n = b_hh[:, 2 * H:]

        h0 = h_state[layer_idx].astype(jnp.float32)
        if pad_b:
            h0 = jnp.pad(h0, ((0, pad_b), (0, 0)))

        last = (layer_idx == L - 1)
        out_flat, h_n = _gru_layer(
            layer_in, w_ih_bf, w_hh_bf, bias_proj, b_hh_n, h0,
            seq_len=T, b_pad=b_pad,
            out_dtype=(x.dtype if last else jnp.bfloat16))
        layer_in = out_flat                                      # (T*b_pad, H), still time-major
        h_n_list.append(h_n[:B])
        # TODO(synk): inter-layer dropout(p=0.15) is training-only; inference skips it.

    out = (out_flat.reshape(T, b_pad, H)[:, :B, :]
           .transpose(1, 0, 2).astype(x.dtype))                  # (B, T, H)
    h_n = jnp.stack(h_n_list, axis=0).astype(x.dtype)            # (L, B, H)
    return out, h_n


# --------------------------------------------------------------------------
# Pure-JAX f32 reference (same PyTorch GRU semantics) for validation
# --------------------------------------------------------------------------
def gru_reference(x, params, h_state=None):
    B, T, _ = x.shape
    H = params[0]["w_hh_t"].shape[0]
    L = len(params)
    if h_state is None:
        h_state = jnp.zeros((L, B, H), dtype=jnp.float32)
    layer_in = x.astype(jnp.float32)
    hns = []
    for layer_idx, p in enumerate(params):
        h = h_state[layer_idx]
        outs = []
        for t in range(T):
            xt = layer_in[:, t, :]
            xg = xt @ p["w_ih_t"] + p["b_ih"]
            hg = h @ p["w_hh_t"] + p["b_hh"]
            r = jax.nn.sigmoid(xg[:, :H] + hg[:, :H])
            z = jax.nn.sigmoid(xg[:, H:2 * H] + hg[:, H:2 * H])
            n = jnp.tanh(xg[:, 2 * H:] + r * hg[:, 2 * H:])
            h = (1.0 - z) * n + z * h
            outs.append(h)
        layer_in = jnp.stack(outs, axis=1)
        hns.append(h)
    return layer_in, jnp.stack(hns, axis=0)


if __name__ == "__main__":
    # Module config: input_size = total_ch = 288, hidden_size = 512, num_layers = 2.
    # Small spatial grid: h=2, w=4 -> seq_len = h*w = 8; batch = 2.
    batch, h_sp, w_sp = 2, 2, 4
    seq_len = h_sp * w_sp            # 8
    total_ch = 288                   # module default input_size
    hidden = 512
    num_layers = 2

    key = jax.random.PRNGKey(0)
    keys = jax.random.split(key, 1 + 4 * num_layers)
    x = jax.random.normal(keys[0], (batch, seq_len, total_ch), dtype=jnp.float32)

    # PyTorch stores weight_ih_l{k} as (3H, D) and weight_hh_l{k} as (3H, H)
    # with gate order [r, z, n]; we store the transposes (D, 3H) / (H, 3H).
    params = []
    in_dim = total_ch
    ki = 1
    lim = 1.0 / jnp.sqrt(hidden)
    for _ in range(num_layers):
        w_ih_t = jax.random.uniform(keys[ki], (in_dim, 3 * hidden),
                                    minval=-lim, maxval=lim, dtype=jnp.float32); ki += 1
        w_hh_t = jax.random.uniform(keys[ki], (hidden, 3 * hidden),
                                    minval=-lim, maxval=lim, dtype=jnp.float32); ki += 1
        b_ih = jax.random.uniform(keys[ki], (1, 3 * hidden),
                                  minval=-lim, maxval=lim, dtype=jnp.float32); ki += 1
        b_hh = jax.random.uniform(keys[ki], (1, 3 * hidden),
                                  minval=-lim, maxval=lim, dtype=jnp.float32); ki += 1
        params.append(dict(w_ih_t=w_ih_t, w_hh_t=w_hh_t, b_ih=b_ih, b_hh=b_hh))
        in_dim = hidden

    out, h_n = temporal_forward(x, params)
    out, h_n = jax.block_until_ready((out, h_n))

    ref_out, ref_hn = gru_reference(x, params)
    assert out.shape == (batch, seq_len, hidden)
    assert h_n.shape == (num_layers, batch, hidden)
    # bf16 MXU operands / inter-layer activations -> looser tolerance than pure f32.
    assert jnp.allclose(out, ref_out, atol=3e-2, rtol=3e-2)
    assert jnp.allclose(h_n, ref_hn, atol=3e-2, rtol=3e-2)

    print("KERNEL_OK")
</pallas_src>

<mosaic_0001>
module attributes {stable_mosaic.version = 11 : i64} {
  func.func @_gru_layer_kernel(%arg0: i32, %arg1: memref<64x288xbf16, #tpu.memory_space<vmem>>, %arg2: memref<288x1536xbf16, #tpu.memory_space<vmem>>, %arg3: memref<512x1536xbf16, #tpu.memory_space<vmem>>, %arg4: memref<1x1536xf32, #tpu.memory_space<vmem>>, %arg5: memref<1x512xf32, #tpu.memory_space<vmem>>, %arg6: memref<8x512xf32, #tpu.memory_space<vmem>>, %arg7: memref<64x512xbf16, #tpu.memory_space<vmem>>, %arg8: memref<8x512xf32, #tpu.memory_space<vmem>>, %arg9: memref<64x1536xf32, #tpu.memory_space<vmem>>, %arg10: memref<8x512xf32, #tpu.memory_space<vmem>>) attributes {dimension_semantics = [#tpu.dimension_semantics<arbitrary>], iteration_bounds = array<i64: 1>, scalar_prefetch = 0 : i64, scratch_operands = 2 : i64, tpu.core_type = #tpu.core_type<tc>, window_params = [{transform_indices = @transform_0, window_bounds = array<i64: 64, 288>}, {pipeline_mode = #tpu.pipeline_mode<synchronous>, transform_indices = @transform_1, window_bounds = array<i64: 288, 1536>}, {pipeline_mode = #tpu.pipeline_mode<synchronous>, transform_indices = @transform_2, window_bounds = array<i64: 512, 1536>}, {pipeline_mode = #tpu.pipeline_mode<synchronous>, transform_indices = @transform_3, window_bounds = array<i64: 1, 1536>}, {pipeline_mode = #tpu.pipeline_mode<synchronous>, transform_indices = @transform_4, window_bounds = array<i64: 1, 512>}, {pipeline_mode = #tpu.pipeline_mode<synchronous>, transform_indices = @transform_5, window_bounds = array<i64: 8, 512>}, {transform_indices = @transform_6, window_bounds = array<i64: 64, 512>}, {pipeline_mode = #tpu.pipeline_mode<synchronous>, transform_indices = @transform_7, window_bounds = array<i64: 8, 512>}]} {
    %c0_i32 = arith.constant 0 : i32
    %0 = arith.cmpi eq, %arg0, %c0_i32 : i32
    %1 = arith.extui %0 : i1 to i32
    %c0_i32_0 = arith.constant 0 : i32
    %2 = arith.cmpi ne, %1, %c0_i32_0 : i32
    scf.if %2 {
      %c0_103 = arith.constant 0 : index
      %c0_104 = arith.constant 0 : index
      %289 = vector.load %arg6[%c0_103, %c0_104] : memref<8x512xf32, #tpu.memory_space<vmem>>, vector<8x512xf32>
      %c0_105 = arith.constant 0 : index
      %c0_106 = arith.constant 0 : index
      %290 = vector.load %arg10[%c0_105, %c0_106] : memref<8x512xf32, #tpu.memory_space<vmem>>, vector<8x512xf32>
      tpu.vector_store %arg10[%c0_105, %c0_106], %289 {strides = array<i32>} : memref<8x512xf32, #tpu.memory_space<vmem>>, vector<8x512xf32>,
    } else {
    }
    %c0 = arith.constant 0 : index
    %c0_1 = arith.constant 0 : index
    %3 = vector.load %arg1[%c0, %c0_1] : memref<64x288xbf16, #tpu.memory_space<vmem>>, vector<64x288xbf16>
    %c0_2 = arith.constant 0 : index
    %c0_3 = arith.constant 0 : index
    %4 = vector.load %arg2[%c0_2, %c0_3] : memref<288x1536xbf16, #tpu.memory_space<vmem>>, vector<288x1536xbf16>
    %cst = arith.constant dense<0.000000e+00> : vector<64x1536xf32>
    %5 = tpu.matmul %3, %4, %cst {dimension_numbers = #tpu.dot_dimension_numbers<[1], [0], [0], [1], [0, 0, 1, 1], [], []>} : vector<64x288xbf16>, vector<288x1536xbf16>, vector<64x1536xf32> -> vector<64x1536xf32>
    %c0_4 = arith.constant 0 : index
    %c0_5 = arith.constant 0 : index
    %6 = vector.load %arg4[%c0_4, %c0_5] : memref<1x1536xf32, #tpu.memory_space<vmem>>, vector<1x1536xf32>
    %7 = vector.broadcast %6 : vector<1x1536xf32> to vector<64x1536xf32>
    %8 = arith.addf %5, %7 : vector<64x1536xf32>
    %c0_6 = arith.constant 0 : index
    %c0_7 = arith.constant 0 : index
    %9 = vector.load %arg9[%c0_6, %c0_7] : memref<64x1536xf32, #tpu.memory_space<vmem>>, vector<64x1536xf32>
    tpu.vector_store %arg9[%c0_6, %c0_7], %8 {strides = array<i32>} : memref<64x1536xf32, #tpu.memory_space<vmem>>, vector<64x1536xf32>,
    %c0_8 = arith.constant 0 : index
    %c0_9 = arith.constant 0 : index
    %10 = vector.load %arg3[%c0_8, %c0_9] : memref<512x1536xbf16, #tpu.memory_space<vmem>>, vector<512x1536xbf16>
    %c0_10 = arith.constant 0 : index
    %c0_11 = arith.constant 0 : index
    %11 = vector.load %arg5[%c0_10, %c0_11] : memref<1x512xf32, #tpu.memory_space<vmem>>, vector<1x512xf32>
    %12 = vector.shape_cast %11 : vector<1x512xf32> to vector<1x512xf32>
    %13 = vector.broadcast %12 : vector<1x512xf32> to vector<8x512xf32>
    %c0_12 = arith.constant 0 : index
    %c0_13 = arith.constant 0 : index
    %14 = vector.load %arg10[%c0_12, %c0_13] : memref<8x512xf32, #tpu.memory_space<vmem>>, vector<8x512xf32>
    %15 = arith.truncf %14 : vector<8x512xf32> to vector<8x512xbf16>
    %cst_14 = arith.constant dense<0.000000e+00> : vector<8x1536xf32>
    %16 = tpu.matmul %15, %10, %cst_14 {dimension_numbers = #tpu.dot_dimension_numbers<[1], [0], [0], [1], [0, 0, 1, 1], [], []>} : vector<8x512xbf16>, vector<512x1536xbf16>, vector<8x1536xf32> -> vector<8x1536xf32>
    %c0_15 = arith.constant 0 : index
    %c0_16 = arith.constant 0 : index
    %17 = vector.load %arg9[%c0_15, %c0_16] : memref<64x1536xf32, #tpu.memory_space<vmem>>, vector<8x1536xf32>
    %18 = vector.extract_strided_slice %17 {offsets = [0, 0], sizes = [8, 512], strides = [1, 1]} : vector<8x1536xf32> to vector<8x512xf32>
    %19 = vector.extract_strided_slice %16 {offsets = [0, 0], sizes = [8, 512], strides = [1, 1]} : vector<8x1536xf32> to vector<8x512xf32>
    %20 = arith.addf %18, %19 : vector<8x512xf32>
    %21 = arith.negf %20 : vector<8x512xf32>
    %22 = math.exp %21 : vector<8x512xf32>
    %cst_17 = arith.constant 1.000000e+00 : f32
    %23 = vector.broadcast %cst_17 : f32 to vector<8x512xf32>
    %24 = arith.addf %23, %22 : vector<8x512xf32>
    %25 = arith.divf %23, %24 : vector<8x512xf32>
    %26 = vector.extract_strided_slice %17 {offsets = [0, 512], sizes = [8, 512], strides = [1, 1]} : vector<8x1536xf32> to vector<8x512xf32>
    %27 = vector.extract_strided_slice %16 {offsets = [0, 512], sizes = [8, 512], strides = [1, 1]} : vector<8x1536xf32> to vector<8x512xf32>
    %28 = arith.addf %26, %27 : vector<8x512xf32>
    %29 = arith.negf %28 : vector<8x512xf32>
    %30 = math.exp %29 : vector<8x512xf32>
    %cst_18 = arith.constant 1.000000e+00 : f32
    %31 = vector.broadcast %cst_18 : f32 to vector<8x512xf32>
    %32 = arith.addf %31, %30 : vector<8x512xf32>
    %33 = arith.divf %31, %32 : vector<8x512xf32>
    %34 = vector.extract_strided_slice %17 {offsets = [0, 1024], sizes = [8, 512], strides = [1, 1]} : vector<8x1536xf32> to vector<8x512xf32>
    %35 = vector.extract_strided_slice %16 {offsets = [0, 1024], sizes = [8, 512], strides = [1, 1]} : vector<8x1536xf32> to vector<8x512xf32>
    %36 = arith.addf %35, %13 : vector<8x512xf32>
    %37 = arith.mulf %25, %36 : vector<8x512xf32>
    %38 = arith.addf %34, %37 : vector<8x512xf32>
    %39 = math.tanh %38 : vector<8x512xf32>
    %cst_19 = arith.constant 1.000000e+00 : f32
    %40 = vector.broadcast %cst_19 : f32 to vector<8x512xf32>
    %41 = arith.subf %40, %33 : vector<8x512xf32>
    %42 = arith.mulf %41, %39 : vector<8x512xf32>
    %43 = arith.mulf %33, %14 : vector<8x512xf32>
    %44 = arith.addf %42, %43 : vector<8x512xf32>
    %c0_20 = arith.constant 0 : index
    %c0_21 = arith.constant 0 : index
    %45 = vector.load %arg10[%c0_20, %c0_21] : memref<8x512xf32, #tpu.memory_space<vmem>>, vector<8x512xf32>
    tpu.vector_store %arg10[%c0_20, %c0_21], %44 {strides = array<i32>} : memref<8x512xf32, #tpu.memory_space<vmem>>, vector<8x512xf32>,
    %46 = arith.truncf %44 : vector<8x512xf32> to vector<8x512xbf16>
    %c0_22 = arith.constant 0 : index
    %c0_23 = arith.constant 0 : index
    %47 = vector.load %arg7[%c0_22, %c0_23] : memref<64x512xbf16, #tpu.memory_space<vmem>>, vector<8x512xbf16>
    tpu.vector_store %arg7[%c0_22, %c0_23], %46 {strides = array<i32>} : memref<64x512xbf16, #tpu.memory_space<vmem>>, vector<8x512xbf16>,
    %c0_24 = arith.constant 0 : index
    %c0_25 = arith.constant 0 : index
    %48 = vector.load %arg10[%c0_24, %c0_25] : memref<8x512xf32, #tpu.memory_space<vmem>>, vector<8x512xf32>
    %49 = arith.truncf %48 : vector<8x512xf32> to vector<8x512xbf16>
    %cst_26 = arith.constant dense<0.000000e+00> : vector<8x1536xf32>
    %50 = tpu.matmul %49, %10, %cst_26 {dimension_numbers = #tpu.dot_dimension_numbers<[1], [0], [0], [1], [0, 0, 1, 1], [], []>} : vector<8x512xbf16>, vector<512x1536xbf16>, vector<8x1536xf32> -> vector<8x1536xf32>
    %c8 = arith.constant 8 : index
    %c0_27 = arith.constant 0 : index
    %51 = vector.load %arg9[%c8, %c0_27] : memref<64x1536xf32, #tpu.memory_space<vmem>>, vector<8x1536xf32>
    %52 = vector.extract_strided_slice %51 {offsets = [0, 0], sizes = [8, 512], strides = [1, 1]} : vector<8x1536xf32> to vector<8x512xf32>
    %53 = vector.extract_strided_slice %50 {offsets = [0, 0], sizes = [8, 512], strides = [1, 1]} : vector<8x1536xf32> to vector<8x512xf32>
    %54 = arith.addf %52, %53 : vector<8x512xf32>
    %55 = arith.negf %54 : vector<8x512xf32>
    %56 = math.exp %55 : vector<8x512xf32>
    %cst_28 = arith.constant 1.000000e+00 : f32
    %57 = vector.broadcast %cst_28 : f32 to vector<8x512xf32>
    %58 = arith.addf %57, %56 : vector<8x512xf32>
    %59 = arith.divf %57, %58 : vector<8x512xf32>
    %60 = vector.extract_strided_slice %51 {offsets = [0, 512], sizes = [8, 512], strides = [1, 1]} : vector<8x1536xf32> to vector<8x512xf32>
    %61 = vector.extract_strided_slice %50 {offsets = [0, 512], sizes = [8, 512], strides = [1, 1]} : vector<8x1536xf32> to vector<8x512xf32>
    %62 = arith.addf %60, %61 : vector<8x512xf32>
    %63 = arith.negf %62 : vector<8x512xf32>
    %64 = math.exp %63 : vector<8x512xf32>
    %cst_29 = arith.constant 1.000000e+00 : f32
    %65 = vector.broadcast %cst_29 : f32 to vector<8x512xf32>
    %66 = arith.addf %65, %64 : vector<8x512xf32>
    %67 = arith.divf %65, %66 : vector<8x512xf32>
    %68 = vector.extract_strided_slice %51 {offsets = [0, 1024], sizes = [8, 512], strides = [1, 1]} : vector<8x1536xf32> to vector<8x512xf32>
    %69 = vector.extract_strided_slice %50 {offsets = [0, 1024], sizes = [8, 512], strides = [1, 1]} : vector<8x1536xf32> to vector<8x512xf32>
    %70 = arith.addf %69, %13 : vector<8x512xf32>
    %71 = arith.mulf %59, %70 : vector<8x512xf32>
    %72 = arith.addf %68, %71 : vector<8x512xf32>
    %73 = math.tanh %72 : vector<8x512xf32>
    %cst_30 = arith.constant 1.000000e+00 : f32
    %74 = vector.broadcast %cst_30 : f32 to vector<8x512xf32>
    %75 = arith.subf %74, %67 : vector<8x512xf32>
    %76 = arith.mulf %75, %73 : vector<8x512xf32>
    %77 = arith.mulf %67, %48 : vector<8x512xf32>
    %78 = arith.addf %76, %77 : vector<8x512xf32>
    %c0_31 = arith.constant 0 : index
    %c0_32 = arith.constant 0 : index
    %79 = vector.load %arg10[%c0_31, %c0_32] : memref<8x512xf32, #tpu.memory_space<vmem>>, vector<8x512xf32>
    tpu.vector_store %arg10[%c0_31, %c0_32], %78 {strides = array<i32>} : memref<8x512xf32, #tpu.memory_space<vmem>>, vector<8x512xf32>,
    %80 = arith.truncf %78 : vector<8x512xf32> to vector<8x512xbf16>
    %c8_33 = arith.constant 8 : index
    %c0_34 = arith.constant 0 : index
    %81 = vector.load %arg7[%c8_33, %c0_34] : memref<64x512xbf16, #tpu.memory_space<vmem>>, vector<8x512xbf16>
    tpu.vector_store %arg7[%c8_33, %c0_34], %80 {strides = array<i32>} : memref<64x512xbf16, #tpu.memory_space<vmem>>, vector<8x512xbf16>,
    %c0_35 = arith.constant 0 : index
    %c0_36 = arith.constant 0 : index
    %82 = vector.load %arg10[%c0_35, %c0_36] : memref<8x512xf32, #tpu.memory_space<vmem>>, vector<8x512xf32>
    %83 = arith.truncf %82 : vector<8x512xf32> to vector<8x512xbf16>
    %cst_37 = arith.constant dense<0.000000e+00> : vector<8x1536xf32>
    %84 = tpu.matmul %83, %10, %cst_37 {dimension_numbers = #tpu.dot_dimension_numbers<[1], [0], [0], [1], [0, 0, 1, 1], [], []>} : vector<8x512xbf16>, vector<512x1536xbf16>, vector<8x1536xf32> -> vector<8x1536xf32>
    %c16 = arith.constant 16 : index
    %c0_38 = arith.constant 0 : index
    %85 = vector.load %arg9[%c16, %c0_38] : memref<64x1536xf32, #tpu.memory_space<vmem>>, vector<8x1536xf32>
    %86 = vector.extract_strided_slice %85 {offsets = [0, 0], sizes = [8, 512], strides = [1, 1]} : vector<8x1536xf32> to vector<8x512xf32>
    %87 = vector.extract_strided_slice %84 {offsets = [0, 0], sizes = [8, 512], strides = [1, 1]} : vector<8x1536xf32> to vector<8x512xf32>
    %88 = arith.addf %86, %87 : vector<8x512xf32>
    %89 = arith.negf %88 : vector<8x512xf32>
    %90 = math.exp %89 : vector<8x512xf32>
    %cst_39 = arith.constant 1.000000e+00 : f32
    %91 = vector.broadcast %cst_39 : f32 to vector<8x512xf32>
    %92 = arith.addf %91, %90 : vector<8x512xf32>
    %93 = arith.divf %91, %92 : vector<8x512xf32>
    %94 = vector.extract_strided_slice %85 {offsets = [0, 512], sizes = [8, 512], strides = [1, 1]} : vector<8x1536xf32> to vector<8x512xf32>
    %95 = vector.extract_strided_slice %84 {offsets = [0, 512], sizes = [8, 512], strides = [1, 1]} : vector<8x1536xf32> to vector<8x512xf32>
    %96 = arith.addf %94, %95 : vector<8x512xf32>
    %97 = arith.negf %96 : vector<8x512xf32>
    %98 = math.exp %97 : vector<8x512xf32>
    %cst_40 = arith.constant 1.000000e+00 : f32
    %99 = vector.broadcast %cst_40 : f32 to vector<8x512xf32>
    %100 = arith.addf %99, %98 : vector<8x512xf32>
    %101 = arith.divf %99, %100 : vector<8x512xf32>
    %102 = vector.extract_strided_slice %85 {offsets = [0, 1024], sizes = [8, 512], strides = [1, 1]} : vector<8x1536xf32> to vector<8x512xf32>
    %103 = vector.extract_strided_slice %84 {offsets = [0, 1024], sizes = [8, 512], strides = [1, 1]} : vector<8x1536xf32> to vector<8x512xf32>
    %104 = arith.addf %103, %13 : vector<8x512xf32>
    %105 = arith.mulf %93, %104 : vector<8x512xf32>
    %106 = arith.addf %102, %105 : vector<8x512xf32>
    %107 = math.tanh %106 : vector<8x512xf32>
    %cst_41 = arith.constant 1.000000e+00 : f32
    %108 = vector.broadcast %cst_41 : f32 to vector<8x512xf32>
    %109 = arith.subf %108, %101 : vector<8x512xf32>
    %110 = arith.mulf %109, %107 : vector<8x512xf32>
    %111 = arith.mulf %101, %82 : vector<8x512xf32>
    %112 = arith.addf %110, %111 : vector<8x512xf32>
    %c0_42 = arith.constant 0 : index
    %c0_43 = arith.constant 0 : index
    %113 = vector.load %arg10[%c0_42, %c0_43] : memref<8x512xf32, #tpu.memory_space<vmem>>, vector<8x512xf32>
    tpu.vector_store %arg10[%c0_42, %c0_43], %112 {strides = array<i32>} : memref<8x512xf32, #tpu.memory_space<vmem>>, vector<8x512xf32>,
    %114 = arith.truncf %112 : vector<8x512xf32> to vector<8x512xbf16>
    %c16_44 = arith.constant 16 : index
    %c0_45 = arith.constant 0 : index
    %115 = vector.load %arg7[%c16_44, %c0_45] : memref<64x512xbf16, #tpu.memory_space<vmem>>, vector<8x512xbf16>
    tpu.vector_store %arg7[%c16_44, %c0_45], %114 {strides = array<i32>} : memref<64x512xbf16, #tpu.memory_space<vmem>>, vector<8x512xbf16>,
    %c0_46 = arith.constant 0 : index
    %c0_47 = arith.constant 0 : index
    %116 = vector.load %arg10[%c0_46, %c0_47] : memref<8x512xf32, #tpu.memory_space<vmem>>, vector<8x512xf32>
    %117 = arith.truncf %116 : vector<8x512xf32> to vector<8x512xbf16>
    %cst_48 = arith.constant dense<0.000000e+00> : vector<8x1536xf32>
    %118 = tpu.matmul %117, %10, %cst_48 {dimension_numbers = #tpu.dot_dimension_numbers<[1], [0], [0], [1], [0, 0, 1, 1], [], []>} : vector<8x512xbf16>, vector<512x1536xbf16>, vector<8x1536xf32> -> vector<8x1536xf32>
    %c24 = arith.constant 24 : index
    %c0_49 = arith.constant 0 : index
    %119 = vector.load %arg9[%c24, %c0_49] : memref<64x1536xf32, #tpu.memory_space<vmem>>, vector<8x1536xf32>
    %120 = vector.extract_strided_slice %119 {offsets = [0, 0], sizes = [8, 512], strides = [1, 1]} : vector<8x1536xf32> to vector<8x512xf32>
    %121 = vector.extract_strided_slice %118 {offsets = [0, 0], sizes = [8, 512], strides = [1, 1]} : vector<8x1536xf32> to vector<8x512xf32>
    %122 = arith.addf %120, %121 : vector<8x512xf32>
    %123 = arith.negf %122 : vector<8x512xf32>
    %124 = math.exp %123 : vector<8x512xf32>
    %cst_50 = arith.constant 1.000000e+00 : f32
    %125 = vector.broadcast %cst_50 : f32 to vector<8x512xf32>
    %126 = arith.addf %125, %124 : vector<8x512xf32>
    %127 = arith.divf %125, %126 : vector<8x512xf32>
    %128 = vector.extract_strided_slice %119 {offsets = [0, 512], sizes = [8, 512], strides = [1, 1]} : vector<8x1536xf32> to vector<8x512xf32>
    %129 = vector.extract_strided_slice %118 {offsets = [0, 512], sizes = [8, 512], strides = [1, 1]} : vector<8x1536xf32> to vector<8x512xf32>
    %130 = arith.addf %128, %129 : vector<8x512xf32>
    %131 = arith.negf %130 : vector<8x512xf32>
    %132 = math.exp %131 : vector<8x512xf32>
    %cst_51 = arith.constant 1.000000e+00 : f32
    %133 = vector.broadcast %cst_51 : f32 to vector<8x512xf32>
    %134 = arith.addf %133, %132 : vector<8x512xf32>
    %135 = arith.divf %133, %134 : vector<8x512xf32>
    %136 = vector.extract_strided_slice %119 {offsets = [0, 1024], sizes = [8, 512], strides = [1, 1]} : vector<8x1536xf32> to vector<8x512xf32>
    %137 = vector.extract_strided_slice %118 {offsets = [0, 1024], sizes = [8, 512], strides = [1, 1]} : vector<8x1536xf32> to vector<8x512xf32>
    %138 = arith.addf %137, %13 : vector<8x512xf32>
    %139 = arith.mulf %127, %138 : vector<8x512xf32>
    %140 = arith.addf %136, %139 : vector<8x512xf32>
    %141 = math.tanh %140 : vector<8x512xf32>
    %cst_52 = arith.constant 1.000000e+00 : f32
    %142 = vector.broadcast %cst_52 : f32 to vector<8x512xf32>
    %143 = arith.subf %142, %135 : vector<8x512xf32>
    %144 = arith.mulf %143, %141 : vector<8x512xf32>
    %145 = arith.mulf %135, %116 : vector<8x512xf32>
    %146 = arith.addf %144, %145 : vector<8x512xf32>
    %c0_53 = arith.constant 0 : index
    %c0_54 = arith.constant 0 : index
    %147 = vector.load %arg10[%c0_53, %c0_54] : memref<8x512xf32, #tpu.memory_space<vmem>>, vector<8x512xf32>
    tpu.vector_store %arg10[%c0_53, %c0_54], %146 {strides = array<i32>} : memref<8x512xf32, #tpu.memory_space<vmem>>, vector<8x512xf32>,
    %148 = arith.truncf %146 : vector<8x512xf32> to vector<8x512xbf16>
    %c24_55 = arith.constant 24 : index
    %c0_56 = arith.constant 0 : index
    %149 = vector.load %arg7[%c24_55, %c0_56] : memref<64x512xbf16, #tpu.memory_space<vmem>>, vector<8x512xbf16>
    tpu.vector_store %arg7[%c24_55, %c0_56], %148 {strides = array<i32>} : memref<64x512xbf16, #tpu.memory_space<vmem>>, vector<8x512xbf16>,
    %c0_57 = arith.constant 0 : index
    %c0_58 = arith.constant 0 : index
    %150 = vector.load %arg10[%c0_57, %c0_58] : memref<8x512xf32, #tpu.memory_space<vmem>>, vector<8x512xf32>
    %151 = arith.truncf %150 : vector<8x512xf32> to vector<8x512xbf16>
    %cst_59 = arith.constant dense<0.000000e+00> : vector<8x1536xf32>
    %152 = tpu.matmul %151, %10, %cst_59 {dimension_numbers = #tpu.dot_dimension_numbers<[1], [0], [0], [1], [0, 0, 1, 1], [], []>} : vector<8x512xbf16>, vector<512x1536xbf16>, vector<8x1536xf32> -> vector<8x1536xf32>
    %c32 = arith.constant 32 : index
    %c0_60 = arith.constant 0 : index
    %153 = vector.load %arg9[%c32, %c0_60] : memref<64x1536xf32, #tpu.memory_space<vmem>>, vector<8x1536xf32>
    %154 = vector.extract_strided_slice %153 {offsets = [0, 0], sizes = [8, 512], strides = [1, 1]} : vector<8x1536xf32> to vector<8x512xf32>
    %155 = vector.extract_strided_slice %152 {offsets = [0, 0], sizes = [8, 512], strides = [1, 1]} : vector<8x1536xf32> to vector<8x512xf32>
    %156 = arith.addf %154, %155 : vector<8x512xf32>
    %157 = arith.negf %156 : vector<8x512xf32>
    %158 = math.exp %157 : vector<8x512xf32>
    %cst_61 = arith.constant 1.000000e+00 : f32
    %159 = vector.broadcast %cst_61 : f32 to vector<8x512xf32>
    %160 = arith.addf %159, %158 : vector<8x512xf32>
    %161 = arith.divf %159, %160 : vector<8x512xf32>
    %162 = vector.extract_strided_slice %153 {offsets = [0, 512], sizes = [8, 512], strides = [1, 1]} : vector<8x1536xf32> to vector<8x512xf32>
    %163 = vector.extract_strided_slice %152 {offsets = [0, 512], sizes = [8, 512], strides = [1, 1]} : vector<8x1536xf32> to vector<8x512xf32>
    %164 = arith.addf %162, %163 : vector<8x512xf32>
    %165 = arith.negf %164 : vector<8x512xf32>
    %166 = math.exp %165 : vector<8x512xf32>
    %cst_62 = arith.constant 1.000000e+00 : f32
    %167 = vector.broadcast %cst_62 : f32 to vector<8x512xf32>
    %168 = arith.addf %167, %166 : vector<8x512xf32>
    %169 = arith.divf %167, %168 : vector<8x512xf32>
    %170 = vector.extract_strided_slice %153 {offsets = [0, 1024], sizes = [8, 512], strides = [1, 1]} : vector<8x1536xf32> to vector<8x512xf32>
    %171 = vector.extract_strided_slice %152 {offsets = [0, 1024], sizes = [8, 512], strides = [1, 1]} : vector<8x1536xf32> to vector<8x512xf32>
    %172 = arith.addf %171, %13 : vector<8x512xf32>
    %173 = arith.mulf %161, %172 : vector<8x512xf32>
    %174 = arith.addf %170, %173 : vector<8x512xf32>
    %175 = math.tanh %174 : vector<8x512xf32>
    %cst_63 = arith.constant 1.000000e+00 : f32
    %176 = vector.broadcast %cst_63 : f32 to vector<8x512xf32>
    %177 = arith.subf %176, %169 : vector<8x512xf32>
    %178 = arith.mulf %177, %175 : vector<8x512xf32>
    %179 = arith.mulf %169, %150 : vector<8x512xf32>
    %180 = arith.addf %178, %179 : vector<8x512xf32>
    %c0_64 = arith.constant 0 : index
    %c0_65 = arith.constant 0 : index
    %181 = vector.load %arg10[%c0_64, %c0_65] : memref<8x512xf32, #tpu.memory_space<vmem>>, vector<8x512xf32>
    tpu.vector_store %arg10[%c0_64, %c0_65], %180 {strides = array<i32>} : memref<8x512xf32, #tpu.memory_space<vmem>>, vector<8x512xf32>,
    %182 = arith.truncf %180 : vector<8x512xf32> to vector<8x512xbf16>
    %c32_66 = arith.constant 32 : index
    %c0_67 = arith.constant 0 : index
    %183 = vector.load %arg7[%c32_66, %c0_67] : memref<64x512xbf16, #tpu.memory_space<vmem>>, vector<8x512xbf16>
    tpu.vector_store %arg7[%c32_66, %c0_67], %182 {strides = array<i32>} : memref<64x512xbf16, #tpu.memory_space<vmem>>, vector<8x512xbf16>,
    %c0_68 = arith.constant 0 : index
    %c0_69 = arith.constant 0 : index
    %184 = vector.load %arg10[%c0_68, %c0_69] : memref<8x512xf32, #tpu.memory_space<vmem>>, vector<8x512xf32>
    %185 = arith.truncf %184 : vector<8x512xf32> to vector<8x512xbf16>
    %cst_70 = arith.constant dense<0.000000e+00> : vector<8x1536xf32>
    %186 = tpu.matmul %185, %10, %cst_70 {dimension_numbers = #tpu.dot_dimension_numbers<[1], [0], [0], [1], [0, 0, 1, 1], [], []>} : vector<8x512xbf16>, vector<512x1536xbf16>, vector<8x1536xf32> -> vector<8x1536xf32>
    %c40 = arith.constant 40 : index
    %c0_71 = arith.constant 0 : index
    %187 = vector.load %arg9[%c40, %c0_71] : memref<64x1536xf32, #tpu.memory_space<vmem>>, vector<8x1536xf32>
    %188 = vector.extract_strided_slice %187 {offsets = [0, 0], sizes = [8, 512], strides = [1, 1]} : vector<8x1536xf32> to vector<8x512xf32>
    %189 = vector.extract_strided_slice %186 {offsets = [0, 0], sizes = [8, 512], strides = [1, 1]} : vector<8x1536xf32> to vector<8x512xf32>
    %190 = arith.addf %188, %189 : vector<8x512xf32>
    %191 = arith.negf %190 : vector<8x512xf32>
    %192 = math.exp %191 : vector<8x512xf32>
    %cst_72 = arith.constant 1.000000e+00 : f32
    %193 = vector.broadcast %cst_72 : f32 to vector<8x512xf32>
    %194 = arith.addf %193, %192 : vector<8x512xf32>
    %195 = arith.divf %193, %194 : vector<8x512xf32>
    %196 = vector.extract_strided_slice %187 {offsets = [0, 512], sizes = [8, 512], strides = [1, 1]} : vector<8x1536xf32> to vector<8x512xf32>
    %197 = vector.extract_strided_slice %186 {offsets = [0, 512], sizes = [8, 512], strides = [1, 1]} : vector<8x1536xf32> to vector<8x512xf32>
    %198 = arith.addf %196, %197 : vector<8x512xf32>
    %199 = arith.negf %198 : vector<8x512xf32>
    %200 = math.exp %199 : vector<8x512xf32>
    %cst_73 = arith.constant 1.000000e+00 : f32
    %201 = vector.broadcast %cst_73 : f32 to vector<8x512xf32>
    %202 = arith.addf %201, %200 : vector<8x512xf32>
    %203 = arith.divf %201, %202 : vector<8x512xf32>
    %204 = vector.extract_strided_slice %187 {offsets = [0, 1024], sizes = [8, 512], strides = [1, 1]} : vector<8x1536xf32> to vector<8x512xf32>
    %205 = vector.extract_strided_slice %186 {offsets = [0, 1024], sizes = [8, 512], strides = [1, 1]} : vector<8x1536xf32> to vector<8x512xf32>
    %206 = arith.addf %205, %13 : vector<8x512xf32>
    %207 = arith.mulf %195, %206 : vector<8x512xf32>
    %208 = arith.addf %204, %207 : vector<8x512xf32>
    %209 = math.tanh %208 : vector<8x512xf32>
    %cst_74 = arith.constant 1.000000e+00 : f32
    %210 = vector.broadcast %cst_74 : f32 to vector<8x512xf32>
    %211 = arith.subf %210, %203 : vector<8x512xf32>
    %212 = arith.mulf %211, %209 : vector<8x512xf32>
    %213 = arith.mulf %203, %184 : vector<8x512xf32>
    %214 = arith.addf %212, %213 : vector<8x512xf32>
    %c0_75 = arith.constant 0 : index
    %c0_76 = arith.constant 0 : index
    %215 = vector.load %arg10[%c0_75, %c0_76] : memref<8x512xf32, #tpu.memory_space<vmem>>, vector<8x512xf32>
    tpu.vector_store %arg10[%c0_75, %c0_76], %214 {strides = array<i32>} : memref<8x512xf32, #tpu.memory_space<vmem>>, vector<8x512xf32>,
    %216 = arith.truncf %214 : vector<8x512xf32> to vector<8x512xbf16>
    %c40_77 = arith.constant 40 : index
    %c0_78 = arith.constant 0 : index
    %217 = vector.load %arg7[%c40_77, %c0_78] : memref<64x512xbf16, #tpu.memory_space<vmem>>, vector<8x512xbf16>
    tpu.vector_store %arg7[%c40_77, %c0_78], %216 {strides = array<i32>} : memref<64x512xbf16, #tpu.memory_space<vmem>>, vector<8x512xbf16>,
    %c0_79 = arith.constant 0 : index
    %c0_80 = arith.constant 0 : index
    %218 = vector.load %arg10[%c0_79, %c0_80] : memref<8x512xf32, #tpu.memory_space<vmem>>, vector<8x512xf32>
    %219 = arith.truncf %218 : vector<8x512xf32> to vector<8x512xbf16>
    %cst_81 = arith.constant dense<0.000000e+00> : vector<8x1536xf32>
    %220 = tpu.matmul %219, %10, %cst_81 {dimension_numbers = #tpu.dot_dimension_numbers<[1], [0], [0], [1], [0, 0, 1, 1], [], []>} : vector<8x512xbf16>, vector<512x1536xbf16>, vector<8x1536xf32> -> vector<8x1536xf32>
    %c48 = arith.constant 48 : index
    %c0_82 = arith.constant 0 : index
    %221 = vector.load %arg9[%c48, %c0_82] : memref<64x1536xf32, #tpu.memory_space<vmem>>, vector<8x1536xf32>
    %222 = vector.extract_strided_slice %221 {offsets = [0, 0], sizes = [8, 512], strides = [1, 1]} : vector<8x1536xf32> to vector<8x512xf32>
    %223 = vector.extract_strided_slice %220 {offsets = [0, 0], sizes = [8, 512], strides = [1, 1]} : vector<8x1536xf32> to vector<8x512xf32>
    %224 = arith.addf %222, %223 : vector<8x512xf32>
    %225 = arith.negf %224 : vector<8x512xf32>
    %226 = math.exp %225 : vector<8x512xf32>
    %cst_83 = arith.constant 1.000000e+00 : f32
    %227 = vector.broadcast %cst_83 : f32 to vector<8x512xf32>
    %228 = arith.addf %227, %226 : vector<8x512xf32>
    %229 = arith.divf %227, %228 : vector<8x512xf32>
    %230 = vector.extract_strided_slice %221 {offsets = [0, 512], sizes = [8, 512], strides = [1, 1]} : vector<8x1536xf32> to vector<8x512xf32>
    %231 = vector.extract_strided_slice %220 {offsets = [0, 512], sizes = [8, 512], strides = [1, 1]} : vector<8x1536xf32> to vector<8x512xf32>
    %232 = arith.addf %230, %231 : vector<8x512xf32>
    %233 = arith.negf %232 : vector<8x512xf32>
    %234 = math.exp %233 : vector<8x512xf32>
    %cst_84 = arith.constant 1.000000e+00 : f32
    %235 = vector.broadcast %cst_84 : f32 to vector<8x512xf32>
    %236 = arith.addf %235, %234 : vector<8x512xf32>
    %237 = arith.divf %235, %236 : vector<8x512xf32>
    %238 = vector.extract_strided_slice %221 {offsets = [0, 1024], sizes = [8, 512], strides = [1, 1]} : vector<8x1536xf32> to vector<8x512xf32>
    %239 = vector.extract_strided_slice %220 {offsets = [0, 1024], sizes = [8, 512], strides = [1, 1]} : vector<8x1536xf32> to vector<8x512xf32>
    %240 = arith.addf %239, %13 : vector<8x512xf32>
    %241 = arith.mulf %229, %240 : vector<8x512xf32>
    %242 = arith.addf %238, %241 : vector<8x512xf32>
    %243 = math.tanh %242 : vector<8x512xf32>
    %cst_85 = arith.constant 1.000000e+00 : f32
    %244 = vector.broadcast %cst_85 : f32 to vector<8x512xf32>
    %245 = arith.subf %244, %237 : vector<8x512xf32>
    %246 = arith.mulf %245, %243 : vector<8x512xf32>
    %247 = arith.mulf %237, %218 : vector<8x512xf32>
    %248 = arith.addf %246, %247 : vector<8x512xf32>
    %c0_86 = arith.constant 0 : index
    %c0_87 = arith.constant 0 : index
    %249 = vector.load %arg10[%c0_86, %c0_87] : memref<8x512xf32, #tpu.memory_space<vmem>>, vector<8x512xf32>
    tpu.vector_store %arg10[%c0_86, %c0_87], %248 {strides = array<i32>} : memref<8x512xf32, #tpu.memory_space<vmem>>, vector<8x512xf32>,
    %250 = arith.truncf %248 : vector<8x512xf32> to vector<8x512xbf16>
    %c48_88 = arith.constant 48 : index
    %c0_89 = arith.constant 0 : index
    %251 = vector.load %arg7[%c48_88, %c0_89] : memref<64x512xbf16, #tpu.memory_space<vmem>>, vector<8x512xbf16>
    tpu.vector_store %arg7[%c48_88, %c0_89], %250 {strides = array<i32>} : memref<64x512xbf16, #tpu.memory_space<vmem>>, vector<8x512xbf16>,
    %c0_90 = arith.constant 0 : index
    %c0_91 = arith.constant 0 : index
    %252 = vector.load %arg10[%c0_90, %c0_91] : memref<8x512xf32, #tpu.memory_space<vmem>>, vector<8x512xf32>
    %253 = arith.truncf %252 : vector<8x512xf32> to vector<8x512xbf16>
    %cst_92 = arith.constant dense<0.000000e+00> : vector<8x1536xf32>
    %254 = tpu.matmul %253, %10, %cst_92 {dimension_numbers = #tpu.dot_dimension_numbers<[1], [0], [0], [1], [0, 0, 1, 1], [], []>} : vector<8x512xbf16>, vector<512x1536xbf16>, vector<8x1536xf32> -> vector<8x1536xf32>
    %c56 = arith.constant 56 : index
    %c0_93 = arith.constant 0 : index
    %255 = vector.load %arg9[%c56, %c0_93] : memref<64x1536xf32, #tpu.memory_space<vmem>>, vector<8x1536xf32>
    %256 = vector.extract_strided_slice %255 {offsets = [0, 0], sizes = [8, 512], strides = [1, 1]} : vector<8x1536xf32> to vector<8x512xf32>
    %257 = vector.extract_strided_slice %254 {offsets = [0, 0], sizes = [8, 512], strides = [1, 1]} : vector<8x1536xf32> to vector<8x512xf32>
    %258 = arith.addf %256, %257 : vector<8x512xf32>
    %259 = arith.negf %258 : vector<8x512xf32>
    %260 = math.exp %259 : vector<8x512xf32>
    %cst_94 = arith.constant 1.000000e+00 : f32
    %261 = vector.broadcast %cst_94 : f32 to vector<8x512xf32>
    %262 = arith.addf %261, %260 : vector<8x512xf32>
    %263 = arith.divf %261, %262 : vector<8x512xf32>
    %264 = vector.extract_strided_slice %255 {offsets = [0, 512], sizes = [8, 512], strides = [1, 1]} : vector<8x1536xf32> to vector<8x512xf32>
    %265 = vector.extract_strided_slice %254 {offsets = [0, 512], sizes = [8, 512], strides = [1, 1]} : vector<8x1536xf32> to vector<8x512xf32>
    %266 = arith.addf %264, %265 : vector<8x512xf32>
    %267 = arith.negf %266 : vector<8x512xf32>
    %268 = math.exp %267 : vector<8x512xf32>
    %cst_95 = arith.constant 1.000000e+00 : f32
    %269 = vector.broadcast %cst_95 : f32 to vector<8x512xf32>
    %270 = arith.addf %269, %268 : vector<8x512xf32>
    %271 = arith.divf %269, %270 : vector<8x512xf32>
    %272 = vector.extract_strided_slice %255 {offsets = [0, 1024], sizes = [8, 512], strides = [1, 1]} : vector<8x1536xf32> to vector<8x512xf32>
    %273 = vector.extract_strided_slice %254 {offsets = [0, 1024], sizes = [8, 512], strides = [1, 1]} : vector<8x1536xf32> to vector<8x512xf32>
    %274 = arith.addf %273, %13 : vector<8x512xf32>
    %275 = arith.mulf %263, %274 : vector<8x512xf32>
    %276 = arith.addf %272, %275 : vector<8x512xf32>
    %277 = math.tanh %276 : vector<8x512xf32>
    %cst_96 = arith.constant 1.000000e+00 : f32
    %278 = vector.broadcast %cst_96 : f32 to vector<8x512xf32>
    %279 = arith.subf %278, %271 : vector<8x512xf32>
    %280 = arith.mulf %279, %277 : vector<8x512xf32>
    %281 = arith.mulf %271, %252 : vector<8x512xf32>
    %282 = arith.addf %280, %281 : vector<8x512xf32>
    %c0_97 = arith.constant 0 : index
    %c0_98 = arith.constant 0 : index
    %283 = vector.load %arg10[%c0_97, %c0_98] : memref<8x512xf32, #tpu.memory_space<vmem>>, vector<8x512xf32>
    tpu.vector_store %arg10[%c0_97, %c0_98], %282 {strides = array<i32>} : memref<8x512xf32, #tpu.memory_space<vmem>>, vector<8x512xf32>,
    %284 = arith.truncf %282 : vector<8x512xf32> to vector<8x512xbf16>
    %c56_99 = arith.constant 56 : index
    %c0_100 = arith.constant 0 : index
    %285 = vector.load %arg7[%c56_99, %c0_100] : memref<64x512xbf16, #tpu.memory_space<vmem>>, vector<8x512xbf16>
    tpu.vector_store %arg7[%c56_99, %c0_100], %284 {strides = array<i32>} : memref<64x512xbf16, #tpu.memory_space<vmem>>, vector<8x512xbf16>,
    %c0_i32_101 = arith.constant 0 : i32
    %286 = arith.cmpi eq, %arg0, %c0_i32_101 : i32
    %287 = arith.extui %286 : i1 to i32
    %c0_i32_102 = arith.constant 0 : i32
    %288 = arith.cmpi ne, %287, %c0_i32_102 : i32
    scf.if %288 {
      %c0_103 = arith.constant 0 : index
      %c0_104 = arith.constant 0 : index
      %289 = vector.load %arg10[%c0_103, %c0_104] : memref<8x512xf32, #tpu.memory_space<vmem>>, vector<8x512xf32>
      %c0_105 = arith.constant 0 : index
      %c0_106 = arith.constant 0 : index
      %290 = vector.load %arg8[%c0_105, %c0_106] : memref<8x512xf32, #tpu.memory_space<vmem>>, vector<8x512xf32>
      tpu.vector_store %arg8[%c0_105, %c0_106], %289 {strides = array<i32>} : memref<8x512xf32, #tpu.memory_space<vmem>>, vector<8x512xf32>,
    } else {
    }
    return
  }
  func.func @transform_0(%arg0: i32) -> (i32, i32) {
    %c0_i32 = arith.constant 0 : i32
    %c0_i32_0 = arith.constant 0 : i32
    return %arg0, %c0_i32 : i32, i32
  }
  func.func @transform_1(%arg0: i32) -> (i32, i32) {
    %c0_i32 = arith.constant 0 : i32
    %c0_i32_0 = arith.constant 0 : i32
    %c0_i32_1 = arith.constant 0 : i32
    return %c0_i32, %c0_i32_0 : i32, i32
  }
  func.func @transform_2(%arg0: i32) -> (i32, i32) {
    %c0_i32 = arith.constant 0 : i32
    %c0_i32_0 = arith.constant 0 : i32
    %c0_i32_1 = arith.constant 0 : i32
    return %c0_i32, %c0_i32_0 : i32, i32
  }
  func.func @transform_3(%arg0: i32) -> (i32, i32) {
    %c0_i32 = arith.constant 0 : i32
    %c0_i32_0 = arith.constant 0 : i32
    %c0_i32_1 = arith.constant 0 : i32
    return %c0_i32, %c0_i32_0 : i32, i32
  }
  func.func @transform_4(%arg0: i32) -> (i32, i32) {
    %c0_i32 = arith.constant 0 : i32
    %c0_i32_0 = arith.constant 0 : i32
    %c0_i32_1 = arith.constant 0 : i32
    return %c0_i32, %c0_i32_0 : i32, i32
  }
  func.func @transform_5(%arg0: i32) -> (i32, i32) {
    %c0_i32 = arith.constant 0 : i32
    %c0_i32_0 = arith.constant 0 : i32
    %c0_i32_1 = arith.constant 0 : i32
    return %c0_i32, %c0_i32_0 : i32, i32
  }
  func.func @transform_6(%arg0: i32) -> (i32, i32) {
    %c0_i32 = arith.constant 0 : i32
    %c0_i32_0 = arith.constant 0 : i32
    return %arg0, %c0_i32 : i32, i32
  }
  func.func @transform_7(%arg0: i32) -> (i32, i32) {
    %c0_i32 = arith.constant 0 : i32
    %c0_i32_0 = arith.constant 0 : i32
    %c0_i32_1 = arith.constant 0 : i32
    return %c0_i32, %c0_i32_0 : i32, i32
  }
}

</mosaic_0001>

<llo_original>
// kernel: tpu_custom_call.1
$region0: #{tpu_custom_call.1}
  #allocation0 [shape = 'u32[]', space=smem, size = 0x4, offset = 0x4, fixed_abs, tag = 'smem constant byte address 0x4 - core index']
  #allocation1 [shape = 'u32[144,128]{1,0:T(1,128)}', space=vmem, size = 0x12000, scoped, tag = 'internal scratch']
  #allocation2 [shape = 'f32[64,1536]{1,0:T(8,128)}', space=vmem, size = 0x60000, scoped, tag = 'scratch operand']
  #allocation3 [shape = 'f32[8,512]{1,0:T(8,128)}', space=vmem, size = 0x4000, scoped, tag = 'scratch operand']
  %s0 = inlined_call_operand.hbm [shape: bf16[64,288], index: 0, kind: input, shape index: {}]
  %s1 = inlined_call_operand.hbm [shape: bf16[288,1536], index: 1, kind: input, shape index: {}]
  %s2 = inlined_call_operand.hbm [shape: bf16[512,1536], index: 2, kind: input, shape index: {}]
  %s3 = inlined_call_operand.hbm [shape: f32[1,1536], index: 3, kind: input, shape index: {}]
  %s4 = inlined_call_operand.hbm [shape: f32[1,512], index: 4, kind: input, shape index: {}]
  %s5 = inlined_call_operand.hbm [shape: f32[8,512], index: 5, kind: input, shape index: {}]
  %s6 = inlined_call_operand.hbm [shape: bf16[64,512], index: 6, kind: output, shape index: {0}]
  %s7 = inlined_call_operand.hbm [shape: f32[8,512], index: 7, kind: output, shape index: {1}]
  %8 = xla_tuple %s6, %s7
  %s9 = sld [smem:[#allocation0]]
  $region74: #{tpu_custom_call.1} parent=0
    _
  %s11 = ssub.s32 1, %s9
  %s12 = scalar_select 0, %s11, %s9
  $region1: #{tpu_custom_call.1} parent=0
    #allocation4 [shape = 'u8[49152]{0}', space=vmem, size = 0xc000, scoped, tag = 'input window, operand 0, single buffered']
    #allocation5 [shape = 's32[1]{0}', space=sflag, size = 0x4, scoped, tag = 'scoped memory for tpu_custom_call.1']
    #allocation6 [shape = 's32[1]{0}', space=sflag, size = 0x4, scoped, tag = 'scoped memory for tpu_custom_call.1']
    #allocation7 [shape = 'u8[884736]{0}', space=vmem, size = 0xd8000, scoped, tag = 'input window, operand 1, single buffered']
    #allocation8 [shape = 's32[1]{0}', space=sflag, size = 0x4, scoped, tag = 'scoped memory for tpu_custom_call.1']
    #allocation9 [shape = 'u8[1572864]{0}', space=vmem, size = 0x180000, scoped, tag = 'input window, operand 2, single buffered']
    #allocation10 [shape = 'u8[6144]{0}', space=vmem, size = 0x1800, scoped, tag = 'input window, operand 3, single buffered']
    #allocation11 [shape = 's32[1]{0}', space=sflag, size = 0x4, scoped, tag = 'scoped memory for tpu_custom_call.1']
    #allocation12 [shape = 'u8[2048]{0}', space=vmem, size = 0x800, scoped, tag = 'input window, operand 4, single buffered']
    #allocation13 [shape = 'u8[16384]{0}', space=vmem, size = 0x4000, scoped, tag = 'input window, operand 5, single buffered']
    #allocation14 [shape = 's32[1]{0}', space=sflag, size = 0x4, scoped, tag = 'scoped memory for tpu_custom_call.1']
    #allocation15 [shape = 'u8[65536]{0}', space=vmem, size = 0x10000, scoped, tag = 'output window, operand 0, single buffered']
    #allocation16 [shape = 'u8[16384]{0}', space=vmem, size = 0x4000, scoped, tag = 'output window, operand 1, single buffered']
    #allocation17 [shape = 's32[1]{0}', space=sflag, size = 0x4, scoped, tag = 'scoped memory for tpu_custom_call.1']
    %13 = vsyncpa [#allocation5], 0
    %14 = vsyncpa [#allocation8], 0
    %15 = vsyncpa [#allocation11], 0
    %16 = vsyncpa [#allocation14], 0
    %17 = vsyncpa [#allocation6], 0
    %18 = vsyncpa [#allocation17], 0
    // Predicated region
    $region2: #{tpu_custom_call.1} parent=1 // pred_check
      _
    $region3: #{tpu_custom_call.1} parent=1 // pred_check_branch
      %20 = sbr.rel (0) target = $region5
    $region4: #{tpu_custom_call.1} parent=1 // pred_region
      %s22 = ssub.s32 1536, 1536
      %23 = vsyncadd [#allocation5], %s22
      %s24 = sshll.u32 [#allocation4], 4
      %s25 = int_to_ptr.vmem [resolvable:$true] %s24
      %30 = dma.hbm_to_vmem [thread:$0]  %s0, 1536, %s25, [#allocation5], 192, 192, 12
    $region5: #{tpu_custom_call.1} parent=1 // pred_fallthru
      _
    // Predicated region
    $region6: #{tpu_custom_call.1} parent=1 // pred_check
      _
    $region7: #{tpu_custom_call.1} parent=1 // pred_check_branch
      %32 = sbr.rel (0) target = $region9
    $region8: #{tpu_custom_call.1} parent=1 // pred_region
      %s34 = ssub.s32 27648, 27648
      %35 = vsyncadd [#allocation8], %s34
      %s36 = sshll.u32 [#allocation7], 4
      %s37 = int_to_ptr.vmem [resolvable:$true] %s36
      %42 = dma.hbm_to_vmem [thread:$0]  %s1, 27648, %s37, [#allocation8], 768, 768, 48
    $region9: #{tpu_custom_call.1} parent=1 // pred_fallthru
      _
    // Predicated region
    $region10: #{tpu_custom_call.1} parent=1 // pred_check
      _
    $region11: #{tpu_custom_call.1} parent=1 // pred_check_branch
      %44 = sbr.rel (0) target = $region13
    $region12: #{tpu_custom_call.1} parent=1 // pred_region
      %s46 = ssub.s32 49152, 49152
      %47 = vsyncadd [#allocation8], %s46
      %s48 = sshll.u32 [#allocation9], 4
      %s49 = int_to_ptr.vmem [resolvable:$true] %s48
      %54 = dma.hbm_to_vmem [thread:$0]  %s2, 49152, %s49, [#allocation8], 768, 768, 48
    $region13: #{tpu_custom_call.1} parent=1 // pred_fallthru
      _
    // Predicated region
    $region14: #{tpu_custom_call.1} parent=1 // pred_check
      _
    $region15: #{tpu_custom_call.1} parent=1 // pred_check_branch
      %56 = sbr.rel (0) target = $region17
    $region16: #{tpu_custom_call.1} parent=1 // pred_region
      %s58 = ssub.s32 192, 192
      %59 = vsyncadd [#allocation11], %s58
      %s61 = sshll.u32 [#allocation10], 4
      %s62 = int_to_ptr.vmem [resolvable:$true] %s61
      %64 = dma.hbm_to_vmem [thread:$0]  %s3, 192, %s62, [#allocation11]
    $region17: #{tpu_custom_call.1} parent=1 // pred_fallthru
      _
    // Predicated region
    $region18: #{tpu_custom_call.1} parent=1 // pred_check
      _
    $region19: #{tpu_custom_call.1} parent=1 // pred_check_branch
      %66 = sbr.rel (0) target = $region21
    $region20: #{tpu_custom_call.1} parent=1 // pred_region
      %s68 = ssub.s32 64, 64
      %69 = vsyncadd [#allocation11], %s68
      %s71 = sshll.u32 [#allocation12], 4
      %s72 = int_to_ptr.vmem [resolvable:$true] %s71
      %74 = dma.hbm_to_vmem [thread:$0]  %s4, 64, %s72, [#allocation11]
    $region21: #{tpu_custom_call.1} parent=1 // pred_fallthru
      _
    // Predicated region
    $region22: #{tpu_custom_call.1} parent=1 // pred_check
      _
    $region23: #{tpu_custom_call.1} parent=1 // pred_check_branch
      %76 = sbr.rel (0) target = $region25
    $region24: #{tpu_custom_call.1} parent=1 // pred_region
      %s78 = ssub.s32 512, 512
      %79 = vsyncadd [#allocation14], %s78
      %s81 = sshll.u32 [#allocation13], 4
      %s82 = int_to_ptr.vmem [resolvable:$true] %s81
      %84 = dma.hbm_to_vmem [thread:$0]  %s5, 512, %s82, [#allocation14]
    $region25: #{tpu_custom_call.1} parent=1 // pred_fallthru
      _
    // Predicated region
    $region26: #{tpu_custom_call.1} parent=1 // pred_check
      _
    $region27: #{tpu_custom_call.1} parent=1 // pred_check_branch
      %86 = sbr.rel (0) target = $region29
    $region28: #{tpu_custom_call.1} parent=1 // pred_region
      %87 = dma.done [#allocation5], 1536
    $region29: #{tpu_custom_call.1} parent=1 // pred_fallthru
      _
    // Predicated region
    $region30: #{tpu_custom_call.1} parent=1 // pred_check
      _
    $region31: #{tpu_custom_call.1} parent=1 // pred_check_branch
      %89 = sbr.rel (0) target = $region33
    $region32: #{tpu_custom_call.1} parent=1 // pred_region
      %90 = dma.done [#allocation8], 27648
    $region33: #{tpu_custom_call.1} parent=1 // pred_fallthru
      _
    // Predicated region
    $region34: #{tpu_custom_call.1} parent=1 // pred_check
      _
    $region35: #{tpu_custom_call.1} parent=1 // pred_check_branch
      %92 = sbr.rel (0) target = $region37
    $region36: #{tpu_custom_call.1} parent=1 // pred_region
      %93 = dma.done [#allocation8], 49152
    $region37: #{tpu_custom_call.1} parent=1 // pred_fallthru
      _
    // Predicated region
    $region38: #{tpu_custom_call.1} parent=1 // pred_check
      _
    $region39: #{tpu_custom_call.1} parent=1 // pred_check_branch
      %95 = sbr.rel (0) target = $region41
    $region40: #{tpu_custom_call.1} parent=1 // pred_region
      %96 = dma.done [#allocation11], 192
    $region41: #{tpu_custom_call.1} parent=1 // pred_fallthru
      _
    // Predicated region
    $region42: #{tpu_custom_call.1} parent=1 // pred_check
      _
    $region43: #{tpu_custom_call.1} parent=1 // pred_check_branch
      %98 = sbr.rel (0) target = $region45
    $region44: #{tpu_custom_call.1} parent=1 // pred_region
      %99 = dma.done [#allocation11], 64
    $region45: #{tpu_custom_call.1} parent=1 // pred_fallthru
      _
    // Predicated region
    $region46: #{tpu_custom_call.1} parent=1 // pred_check
      _
    $region47: #{tpu_custom_call.1} parent=1 // pred_check_branch
      %101 = sbr.rel (0) target = $region49
    $region48: #{tpu_custom_call.1} parent=1 // pred_region
      %102 = dma.done [#allocation14], 512
    $region49: #{tpu_custom_call.1} parent=1 // pred_fallthru
      _
    %p104 = scmp.eq.s32.totalorder 0, 0
    // Predicated region
    $region50: #{tpu_custom_call.1} parent=1 // pred_check
      %p105 = pneg %p104
    $region51: #{tpu_custom_call.1} parent=1 // pred_check_branch
      %107 = sbr.rel (%p105) target = $region53
    $region52: #{tpu_custom_call.1} parent=1 // pred_region
      %v108 = vld [vmem:[#allocation13] sm:$0xff]
      %v109 = vld [vmem:[#allocation13 + $0x8] sm:$0xff]
      %v110 = vld [vmem:[#allocation13 + $0x10] sm:$0xff]
      %v111 = vld [vmem:[#allocation13 + $0x18] sm:$0xff]
      %112 = vst [vmem:[#allocation3] sm:$0xff] %v108
      %113 = vst [vmem:[#allocation3 + $0x8] sm:$0xff] %v109
      %114 = vst [vmem:[#allocation3 + $0x10] sm:$0xff] %v110
      %115 = vst [vmem:[#allocation3 + $0x18] sm:$0xff] %v111
    $region53: #{tpu_custom_call.1} parent=1 // pred_fallthru
      _
    %v116 = vld [vmem:[#allocation4] sm:$0xff]
    %v117 = vld [vmem:[#allocation4 + $0x8] sm:$0xf]
    %v118 = vld [vmem:[#allocation4 + $0xc] sm:$0xff]
    %v119 = vld [vmem:[#allocation4 + $0x14] sm:$0xf]
    %v120 = vld [vmem:[#allocation4 + $0x18] sm:$0xff]
    %v121 = vld [vmem:[#allocation4 + $0x20] sm:$0xf]
    %v122 = vld [vmem:[#allocation4 + $0x24] sm:$0xff]
    %v123 = vld [vmem:[#allocation4 + $0x2c] sm:$0xf]
    %v124 = vld [vmem:[#allocation4 + $0x30] sm:$0xff]
    %v125 = vld [vmem:[#allocation4 + $0x38] sm:$0xf]
    %v126 = vld [vmem:[#allocation4 + $0x3c] sm:$0xff]
    %v127 = vld [vmem:[#allocation4 + $0x44] sm:$0xf]
    %v128 = vld [vmem:[#allocation4 + $0x48] sm:$0xff]
    %v129 = vld [vmem:[#allocation4 + $0x50] sm:$0xf]
    %v130 = vld [vmem:[#allocation4 + $0x54] sm:$0xff]
    %v131 = vld [vmem:[#allocation4 + $0x5c] sm:$0xf]
    %v132 = vld [vmem:[#allocation7] sm:$0xff]
    %v133 = vld [vmem:[#allocation7 + $0x8] sm:$0xff]
    %v134 = vld [vmem:[#allocation7 + $0x10] sm:$0xff]
    %v135 = vld [vmem:[#allocation7 + $0x18] sm:$0xff]
    %v136 = vld [vmem:[#allocation7 + $0x20] sm:$0xff]
    %v137 = vld [vmem:[#allocation7 + $0x28] sm:$0xff]
    %v138 = vld [vmem:[#allocation7 + $0x30] sm:$0xff]
    %v139 = vld [vmem:[#allocation7 + $0x38] sm:$0xff]
    %v140 = vld [vmem:[#allocation7 + $0x40] sm:$0xff]
    %v141 = vld [vmem:[#allocation7 + $0x48] sm:$0xff]
    %v142 = vld [vmem:[#allocation7 + $0x50] sm:$0xff]
    %v143 = vld [vmem:[#allocation7 + $0x58] sm:$0xff]
    %v144 = vld [vmem:[#allocation7 + $0x60] sm:$0xff]
    %v145 = vld [vmem:[#allocation7 + $0x68] sm:$0xff]
    %v146 = vld [vmem:[#allocation7 + $0x70] sm:$0xff]
    %v147 = vld [vmem:[#allocation7 + $0x78] sm:$0xff]
    %v148 = vld [vmem:[#allocation7 + $0x80] sm:$0xff]
    %v149 = vld [vmem:[#allocation7 + $0x88] sm:$0xff]
    %v150 = vld [vmem:[#allocation7 + $0x90] sm:$0xff]
    %v151 = vld [vmem:[#allocation7 + $0x98] sm:$0xff]
    %v152 = vld [vmem:[#allocation7 + $0xa0] sm:$0xff]
    %v153 = vld [vmem:[#allocation7 + $0xa8] sm:$0xff]
    %v154 = vld [vmem:[#allocation7 + $0xb0] sm:$0xff]
    %v155 = vld [vmem:[#allocation7 + $0xb8] sm:$0xff]
    %v156 = vld [vmem:[#allocation7 + $0xc0] sm:$0xff]
    %v157 = vld [vmem:[#allocation7 + $0xc8] sm:$0xff]
    %v158 = vld [vmem:[#allocation7 + $0xd0] sm:$0xff]
    %v159 = vld [vmem:[#allocation7 + $0xd8] sm:$0xff]
    %v160 = vld [vmem:[#allocation7 + $0xe0] sm:$0xff]
    %v161 = vld [vmem:[#allocation7 + $0xe8] sm:$0xff]
    %v162 = vld [vmem:[#allocation7 + $0xf0] sm:$0xff]
    %v163 = vld [vmem:[#allocation7 + $0xf8] sm:$0xff]
    %v164 = vld [vmem:[#allocation7 + $0x100] sm:$0xff]
    %v165 = vld [vmem:[#allocation7 + $0x108] sm:$0xff]
    %v166 = vld [vmem:[#allocation7 + $0x110] sm:$0xff]
    %v167 = vld [vmem:[#allocation7 + $0x118] sm:$0xff]
    %v168 = vld [vmem:[#allocation7 + $0x120] sm:$0xff]
    %v169 = vld [vmem:[#allocation7 + $0x128] sm:$0xff]
    %v170 = vld [vmem:[#allocation7 + $0x130] sm:$0xff]
    %v171 = vld [vmem:[#allocation7 + $0x138] sm:$0xff]
    %v172 = vld [vmem:[#allocation7 + $0x140] sm:$0xff]
    %v173 = vld [vmem:[#allocation7 + $0x148] sm:$0xff]
    %v174 = vld [vmem:[#allocation7 + $0x150] sm:$0xff]
    %v175 = vld [vmem:[#allocation7 + $0x158] sm:$0xff]
    %v176 = vld [vmem:[#allocation7 + $0x160] sm:$0xff]
    %v177 = vld [vmem:[#allocation7 + $0x168] sm:$0xff]
    %v178 = vld [vmem:[#allocation7 + $0x170] sm:$0xff]
    %v179 = vld [vmem:[#allocation7 + $0x178] sm:$0xff]
    %v180 = vld [vmem:[#allocation7 + $0x180] sm:$0xff]
    %v181 = vld [vmem:[#allocation7 + $0x188] sm:$0xff]
    %v182 = vld [vmem:[#allocation7 + $0x190] sm:$0xff]
    %v183 = vld [vmem:[#allocation7 + $0x198] sm:$0xff]
    %v184 = vld [vmem:[#allocation7 + $0x1a0] sm:$0xff]
    %v185 = vld [vmem:[#allocation7 + $0x1a8] sm:$0xff]
    %v186 = vld [vmem:[#allocation7 + $0x1b0] sm:$0xff]
    %v187 = vld [vmem:[#allocation7 + $0x1b8] sm:$0xff]
    %v188 = vld [vmem:[#allocation7 + $0x1c0] sm:$0xff]
    %v189 = vld [vmem:[#allocation7 + $0x1c8] sm:$0xff]
    %v190 = vld [vmem:[#allocation7 + $0x1d0] sm:$0xff]
    %v191 = vld [vmem:[#allocation7 + $0x1d8] sm:$0xff]
    %v192 = vld [vmem:[#allocation7 + $0x1e0] sm:$0xff]
    %v193 = vld [vmem:[#allocation7 + $0x1e8] sm:$0xff]
    %v194 = vld [vmem:[#allocation7 + $0x1f0] sm:$0xff]
    %v195 = vld [vmem:[#allocation7 + $0x1f8] sm:$0xff]
    %v196 = vld [vmem:[#allocation7 + $0x200] sm:$0xff]
    %v197 = vld [vmem:[#allocation7 + $0x208] sm:$0xff]
    %v198 = vld [vmem:[#allocation7 + $0x210] sm:$0xff]
    %v199 = vld [vmem:[#allocation7 + $0x218] sm:$0xff]
    %v200 = vld [vmem:[#allocation7 + $0x220] sm:$0xff]
    %v201 = vld [vmem:[#allocation7 + $0x228] sm:$0xff]
    %v202 = vld [vmem:[#allocation7 + $0x230] sm:$0xff]
    %v203 = vld [vmem:[#allocation7 + $0x238] sm:$0xff]
    %v204 = vld [vmem:[#allocation7 + $0x240] sm:$0xff]
    %v205 = vld [vmem:[#allocation7 + $0x248] sm:$0xff]
    %v206 = vld [vmem:[#allocation7 + $0x250] sm:$0xff]
    %v207 = vld [vmem:[#allocation7 + $0x258] sm:$0xff]
    %v208 = vld [vmem:[#allocation7 + $0x260] sm:$0xff]
    %v209 = vld [vmem:[#allocation7 + $0x268] sm:$0xff]
    %v210 = vld [vmem:[#allocation7 + $0x270] sm:$0xff]
    %v211 = vld [vmem:[#allocation7 + $0x278] sm:$0xff]
    %v212 = vld [vmem:[#allocation7 + $0x280] sm:$0xff]
    %v213 = vld [vmem:[#allocation7 + $0x288] sm:$0xff]
    %v214 = vld [vmem:[#allocation7 + $0x290] sm:$0xff]
    %v215 = vld [vmem:[#allocation7 + $0x298] sm:$0xff]
    %v216 = vld [vmem:[#allocation7 + $0x2a0] sm:$0xff]
    %v217 = vld [vmem:[#allocation7 + $0x2a8] sm:$0xff]
    %v218 = vld [vmem:[#allocation7 + $0x2b0] sm:$0xff]
    %v219 = vld [vmem:[#allocation7 + $0x2b8] sm:$0xff]
    %v220 = vld [vmem:[#allocation7 + $0x2c0] sm:$0xff]
    %v221 = vld [vmem:[#allocation7 + $0x2c8] sm:$0xff]
    %v222 = vld [vmem:[#allocation7 + $0x2d0] sm:$0xff]
    %v223 = vld [vmem:[#allocation7 + $0x2d8] sm:$0xff]
    %v224 = vld [vmem:[#allocation7 + $0x2e0] sm:$0xff]
    %v225 = vld [vmem:[#allocation7 + $0x2e8] sm:$0xff]
    %v226 = vld [vmem:[#allocation7 + $0x2f0] sm:$0xff]
    %v227 = vld [vmem:[#allocation7 + $0x2f8] sm:$0xff]
    %v228 = vld [vmem:[#allocation7 + $0x300] sm:$0xff]
    %v229 = vld [vmem:[#allocation7 + $0x308] sm:$0xff]
    %v230 = vld [vmem:[#allocation7 + $0x310] sm:$0xff]
    %v231 = vld [vmem:[#allocation7 + $0x318] sm:$0xff]
    %v232 = vld [vmem:[#allocation7 + $0x320] sm:$0xff]
    %v233 = vld [vmem:[#allocation7 + $0x328] sm:$0xff]
    %v234 = vld [vmem:[#allocation7 + $0x330] sm:$0xff]
    %v235 = vld [vmem:[#allocation7 + $0x338] sm:$0xff]
    %v236 = vld [vmem:[#allocation7 + $0x340] sm:$0xff]
    %v237 = vld [vmem:[#allocation7 + $0x348] sm:$0xff]
    %v238 = vld [vmem:[#allocation7 + $0x350] sm:$0xff]
    %v239 = vld [vmem:[#allocation7 + $0x358] sm:$0xff]
    %v240 = vld [vmem:[#allocation7 + $0x360] sm:$0xff]
    %v241 = vld [vmem:[#allocation7 + $0x368] sm:$0xff]
    %v242 = vld [vmem:[#allocation7 + $0x370] sm:$0xff]
    %v243 = vld [vmem:[#allocation7 + $0x378] sm:$0xff]
    %v244 = vld [vmem:[#allocation7 + $0x380] sm:$0xff]
    %v245 = vld [vmem:[#allocation7 + $0x388] sm:$0xff]
    %v246 = vld [vmem:[#allocation7 + $0x390] sm:$0xff]
    %v247 = vld [vmem:[#allocation7 + $0x398] sm:$0xff]
    %v248 = vld [vmem:[#allocation7 + $0x3a0] sm:$0xff]
    %v249 = vld [vmem:[#allocation7 + $0x3a8] sm:$0xff]
    %v250 = vld [vmem:[#allocation7 + $0x3b0] sm:$0xff]
    %v251 = vld [vmem:[#allocation7 + $0x3b8] sm:$0xff]
    %v252 = vld [vmem:[#allocation7 + $0x3c0] sm:$0xff]
    %v253 = vld [vmem:[#allocation7 + $0x3c8] sm:$0xff]
    %v254 = vld [vmem:[#allocation7 + $0x3d0] sm:$0xff]
    %v255 = vld [vmem:[#allocation7 + $0x3d8] sm:$0xff]
    %v256 = vld [vmem:[#allocation7 + $0x3e0] sm:$0xff]
    %v257 = vld [vmem:[#allocation7 + $0x3e8] sm:$0xff]
    %v258 = vld [vmem:[#allocation7 + $0x3f0] sm:$0xff]
    %v259 = vld [vmem:[#allocation7 + $0x3f8] sm:$0xff]
    %v260 = vld [vmem:[#allocation7 + $0x400] sm:$0xff]
    %v261 = vld [vmem:[#allocation7 + $0x408] sm:$0xff]
    %v262 = vld [vmem:[#allocation7 + $0x410] sm:$0xff]
    %v263 = vld [vmem:[#allocation7 + $0x418] sm:$0xff]
    %v264 = vld [vmem:[#allocation7 + $0x420] sm:$0xff]
    %v265 = vld [vmem:[#allocation7 + $0x428] sm:$0xff]
    %v266 = vld [vmem:[#allocation7 + $0x430] sm:$0xff]
    %v267 = vld [vmem:[#allocation7 + $0x438] sm:$0xff]
    %v268 = vld [vmem:[#allocation7 + $0x440] sm:$0xff]
    %v269 = vld [vmem:[#allocation7 + $0x448] sm:$0xff]
    %v270 = vld [vmem:[#allocation7 + $0x450] sm:$0xff]
    %v271 = vld [vmem:[#allocation7 + $0x458] sm:$0xff]
    %v272 = vld [vmem:[#allocation7 + $0x460] sm:$0xff]
    %v273 = vld [vmem:[#allocation7 + $0x468] sm:$0xff]
    %v274 = vld [vmem:[#allocation7 + $0x470] sm:$0xff]
    %v275 = vld [vmem:[#allocation7 + $0x478] sm:$0xff]
    %v276 = vld [vmem:[#allocation7 + $0x480] sm:$0xff]
    %v277 = vld [vmem:[#allocation7 + $0x488] sm:$0xff]
    %v278 = vld [vmem:[#allocation7 + $0x490] sm:$0xff]
    %v279 = vld [vmem:[#allocation7 + $0x498] sm:$0xff]
    %v280 = vld [vmem:[#allocation7 + $0x4a0] sm:$0xff]
    %v281 = vld [vmem:[#allocation7 + $0x4a8] sm:$0xff]
    %v282 = vld [vmem:[#allocation7 + $0x4b0] sm:$0xff]
    %v283 = vld [vmem:[#allocation7 + $0x4b8] sm:$0xff]
    %v284 = vld [vmem:[#allocation7 + $0x4c0] sm:$0xff]
    %v285 = vld [vmem:[#allocation7 + $0x4c8] sm:$0xff]
    %v286 = vld [vmem:[#allocation7 + $0x4d0] sm:$0xff]
    %v287 = vld [vmem:[#allocation7 + $0x4d8] sm:$0xff]
    %v288 = vld [vmem:[#allocation7 + $0x4e0] sm:$0xff]
    %v289 = vld [vmem:[#allocation7 + $0x4e8] sm:$0xff]
    %v290 = vld [vmem:[#allocation7 + $0x4f0] sm:$0xff]
    %v291 = vld [vmem:[#allocation7 + $0x4f8] sm:$0xff]
    %v292 = vld [vmem:[#allocation7 + $0x500] sm:$0xff]
    %v293 = vld [vmem:[#allocation7 + $0x508] sm:$0xff]
    %v294 = vld [vmem:[#allocation7 + $0x510] sm:$0xff]
    %v295 = vld [vmem:[#allocation7 + $0x518] sm:$0xff]
    %v296 = vld [vmem:[#allocation7 + $0x520] sm:$0xff]
    %v297 = vld [vmem:[#allocation7 + $0x528] sm:$0xff]
    %v298 = vld [vmem:[#allocation7 + $0x530] sm:$0xff]
    %v299 = vld [vmem:[#allocation7 + $0x538] sm:$0xff]
    %v300 = vld [vmem:[#allocation7 + $0x540] sm:$0xff]
    %v301 = vld [vmem:[#allocation7 + $0x548] sm:$0xff]
    %v302 = vld [vmem:[#allocation7 + $0x550] sm:$0xff]
    %v303 = vld [vmem:[#allocation7 + $0x558] sm:$0xff]
    %v304 = vld [vmem:[#allocation7 + $0x560] sm:$0xff]
    %v305 = vld [vmem:[#allocation7 + $0x568] sm:$0xff]
    %v306 = vld [vmem:[#allocation7 + $0x570] sm:$0xff]
    %v307 = vld [vmem:[#allocation7 + $0x578] sm:$0xff]
    %v308 = vld [vmem:[#allocation7 + $0x580] sm:$0xff]
    %v309 = vld [vmem:[#allocation7 + $0x588] sm:$0xff]
    %v310 = vld [vmem:[#allocation7 + $0x590] sm:$0xff]
    %v311 = vld [vmem:[#allocation7 + $0x598] sm:$0xff]
    %v312 = vld [vmem:[#allocation7 + $0x5a0] sm:$0xff]
    %v313 = vld [vmem:[#allocation7 + $0x5a8] sm:$0xff]
    %v314 = vld [vmem:[#allocation7 + $0x5b0] sm:$0xff]
    %v315 = vld [vmem:[#allocation7 + $0x5b8] sm:$0xff]
    %v316 = vld [vmem:[#allocation7 + $0x5c0] sm:$0xff]
    %v317 = vld [vmem:[#allocation7 + $0x5c8] sm:$0xff]
    %v318 = vld [vmem:[#allocation7 + $0x5d0] sm:$0xff]
    %v319 = vld [vmem:[#allocation7 + $0x5d8] sm:$0xff]
    %v320 = vld [vmem:[#allocation7 + $0x5e0] sm:$0xff]
    %v321 = vld [vmem:[#allocation7 + $0x5e8] sm:$0xff]
    %v322 = vld [vmem:[#allocation7 + $0x5f0] sm:$0xff]
    %v323 = vld [vmem:[#allocation7 + $0x5f8] sm:$0xff]
    %v324 = vld [vmem:[#allocation7 + $0x600] sm:$0xff]
    %v325 = vld [vmem:[#allocation7 + $0x608] sm:$0xff]
    %v326 = vld [vmem:[#allocation7 + $0x610] sm:$0xff]
    %v327 = vld [vmem:[#allocation7 + $0x618] sm:$0xff]
    %v328 = vld [vmem:[#allocation7 + $0x620] sm:$0xff]
    %v329 = vld [vmem:[#allocation7 + $0x628] sm:$0xff]
    %v330 = vld [vmem:[#allocation7 + $0x630] sm:$0xff]
    %v331 = vld [vmem:[#allocation7 + $0x638] sm:$0xff]
    %v332 = vld [vmem:[#allocation7 + $0x640] sm:$0xff]
    %v333 = vld [vmem:[#allocation7 + $0x648] sm:$0xff]
    %v334 = vld [vmem:[#allocation7 + $0x650] sm:$0xff]
    %v335 = vld [vmem:[#allocation7 + $0x658] sm:$0xff]
    %v336 = vld [vmem:[#allocation7 + $0x660] sm:$0xff]
    %v337 = vld [vmem:[#allocation7 + $0x668] sm:$0xff]
    %v338 = vld [vmem:[#allocation7 + $0x670] sm:$0xff]
    %v339 = vld [vmem:[#allocation7 + $0x678] sm:$0xff]
    %v340 = vld [vmem:[#allocation7 + $0x680] sm:$0xff]
    %v341 = vld [vmem:[#allocation7 + $0x688] sm:$0xff]
    %v342 = vld [vmem:[#allocation7 + $0x690] sm:$0xff]
    %v343 = vld [vmem:[#allocation7 + $0x698] sm:$0xff]
    %v344 = vld [vmem:[#allocation7 + $0x6a0] sm:$0xff]
    %v345 = vld [vmem:[#allocation7 + $0x6a8] sm:$0xff]
    %v346 = vld [vmem:[#allocation7 + $0x6b0] sm:$0xff]
    %v347 = vld [vmem:[#allocation7 + $0x6b8] sm:$0xff]
    %v348 = vld [vmem:[#allocation10] sm:$0xff]
    %v349 = vld [vmem:[#allocation10 + $0x8] sm:$0xf]
    %v352 = vlaneseq
    %v353 = vshrl.u32 %v352, 7
    %v354 = vsub.s32 0, %v353
    %v355 = vrot.slane %v348, %v354
    %v356 = vlaneseq
    %v357 = vshrl.u32 %v356, 7
    %v358 = vsub.s32 1, %v357
    %v359 = vrot.slane %v348, %v358
    %v360 = vlaneseq
    %v361 = vshrl.u32 %v360, 7
    %v362 = vsub.s32 2, %v361
    %v363 = vrot.slane %v348, %v362
    %v364 = vlaneseq
    %v365 = vshrl.u32 %v364, 7
    %v366 = vsub.s32 3, %v365
    %v367 = vrot.slane %v348, %v366
    %v368 = vlaneseq
    %v369 = vshrl.u32 %v368, 7
    %v370 = vsub.s32 4, %v369
    %v371 = vrot.slane %v348, %v370
    %v372 = vlaneseq
    %v373 = vshrl.u32 %v372, 7
    %v374 = vsub.s32 5, %v373
    %v375 = vrot.slane %v348, %v374
    %v376 = vlaneseq
    %v377 = vshrl.u32 %v376, 7
    %v378 = vsub.s32 6, %v377
    %v379 = vrot.slane %v348, %v378
    %v380 = vlaneseq
    %v381 = vshrl.u32 %v380, 7
    %v382 = vsub.s32 7, %v381
    %v383 = vrot.slane %v348, %v382
    %v384 = vlaneseq
    %v385 = vshrl.u32 %v384, 7
    %v386 = vsub.s32 0, %v385
    %v387 = vrot.slane %v349, %v386
    %v388 = vlaneseq
    %v389 = vshrl.u32 %v388, 7
    %v390 = vsub.s32 1, %v389
    %v391 = vrot.slane %v349, %v390
    %v392 = vlaneseq
    %v393 = vshrl.u32 %v392, 7
    %v394 = vsub.s32 2, %v393
    %v395 = vrot.slane %v349, %v394
    %v396 = vlaneseq
    %v397 = vshrl.u32 %v396, 7
    %v398 = vsub.s32 3, %v397
    %v399 = vrot.slane %v349, %v398
    %v428 = vunpack.c.l.b16 %v116
    %v429 = vunpack.c.h.b16 %v116
    %v430 = vunpack.c.l.b16 %v117
    %v431 = vunpack.c.l.b16 %v118
    %v432 = vunpack.c.h.b16 %v118
    %v433 = vunpack.c.l.b16 %v119
    %v434 = vunpack.c.l.b16 %v120
    %v435 = vunpack.c.h.b16 %v120
    %v436 = vunpack.c.l.b16 %v121
    %v437 = vunpack.c.l.b16 %v122
    %v438 = vunpack.c.h.b16 %v122
    %v439 = vunpack.c.l.b16 %v123
    %v440 = vunpack.c.l.b16 %v124
    %v441 = vunpack.c.h.b16 %v124
    %v442 = vunpack.c.l.b16 %v125
    %v443 = vunpack.c.l.b16 %v126
    %v444 = vunpack.c.h.b16 %v126
    %v445 = vunpack.c.l.b16 %v127
    %v446 = vunpack.c.l.b16 %v128
    %v447 = vunpack.c.h.b16 %v128
    %v448 = vunpack.c.l.b16 %v129
    %v449 = vunpack.c.l.b16 %v130
    %v450 = vunpack.c.h.b16 %v130
    %v451 = vunpack.c.l.b16 %v131
    %v452 = vpack.c.b16 %v431, %v428
    %v453 = vpack.c.b16 %v432, %v429
    %v454 = vpack.c.b16 %v433, %v430
    %v455 = vpack.c.b16 %v437, %v434
    %v456 = vpack.c.b16 %v438, %v435
    %v457 = vpack.c.b16 %v439, %v436
    %v458 = vpack.c.b16 %v443, %v440
    %v459 = vpack.c.b16 %v444, %v441
    %v460 = vpack.c.b16 %v445, %v442
    %v461 = vpack.c.b16 %v449, %v446
    %v462 = vpack.c.b16 %v450, %v447
    %v463 = vpack.c.b16 %v451, %v448
    %v688 = vunpack.c.l.b16 %v132
    %v689 = vunpack.c.h.b16 %v132
    %v690 = vunpack.c.l.b16 %v133
    %v691 = vunpack.c.h.b16 %v133
    %v692 = vunpack.c.l.b16 %v134
    %v693 = vunpack.c.h.b16 %v134
    %v694 = vunpack.c.l.b16 %v135
    %v695 = vunpack.c.h.b16 %v135
    %v696 = vunpack.c.l.b16 %v136
    %v697 = vunpack.c.h.b16 %v136
    %v698 = vunpack.c.l.b16 %v137
    %v699 = vunpack.c.h.b16 %v137
    %v700 = vunpack.c.l.b16 %v138
    %v701 = vunpack.c.h.b16 %v138
    %v702 = vunpack.c.l.b16 %v139
    %v703 = vunpack.c.h.b16 %v139
    %v704 = vunpack.c.l.b16 %v140
    %v705 = vunpack.c.h.b16 %v140
    %v706 = vunpack.c.l.b16 %v141
    %v707 = vunpack.c.h.b16 %v141
    %v708 = vunpack.c.l.b16 %v142
    %v709 = vunpack.c.h.b16 %v142
    %v710 = vunpack.c.l.b16 %v143
    %v711 = vunpack.c.h.b16 %v143
    %v712 = vunpack.c.l.b16 %v144
    %v713 = vunpack.c.h.b16 %v144
    %v714 = vunpack.c.l.b16 %v145
    %v715 = vunpack.c.h.b16 %v145
    %v716 = vunpack.c.l.b16 %v146
    %v717 = vunpack.c.h.b16 %v146
    %v718 = vunpack.c.l.b16 %v147
    %v719 = vunpack.c.h.b16 %v147
    %v720 = vunpack.c.l.b16 %v148
    %v721 = vunpack.c.h.b16 %v148
    %v722 = vunpack.c.l.b16 %v149
    %v723 = vunpack.c.h.b16 %v149
    %v724 = vunpack.c.l.b16 %v150
    %v725 = vunpack.c.h.b16 %v150
    %v726 = vunpack.c.l.b16 %v151
    %v727 = vunpack.c.h.b16 %v151
    %v728 = vunpack.c.l.b16 %v152
    %v729 = vunpack.c.h.b16 %v152
    %v730 = vunpack.c.l.b16 %v153
    %v731 = vunpack.c.h.b16 %v153
    %v732 = vunpack.c.l.b16 %v154
    %v733 = vunpack.c.h.b16 %v154
    %v734 = vunpack.c.l.b16 %v155
    %v735 = vunpack.c.h.b16 %v155
    %v736 = vunpack.c.l.b16 %v156
    %v737 = vunpack.c.h.b16 %v156
    %v738 = vunpack.c.l.b16 %v157
    %v739 = vunpack.c.h.b16 %v157
    %v740 = vunpack.c.l.b16 %v158
    %v741 = vunpack.c.h.b16 %v158
    %v742 = vunpack.c.l.b16 %v159
    %v743 = vunpack.c.h.b16 %v159
    %v744 = vunpack.c.l.b16 %v160
    %v745 = vunpack.c.h.b16 %v160
    %v746 = vunpack.c.l.b16 %v161
    %v747 = vunpack.c.h.b16 %v161
    %v748 = vunpack.c.l.b16 %v162
    %v749 = vunpack.c.h.b16 %v162
    %v750 = vunpack.c.l.b16 %v163
    %v751 = vunpack.c.h.b16 %v163
    %v752 = vunpack.c.l.b16 %v164
    %v753 = vunpack.c.h.b16 %v164
    %v754 = vunpack.c.l.b16 %v165
    %v755 = vunpack.c.h.b16 %v165
    %v756 = vunpack.c.l.b16 %v166
    %v757 = vunpack.c.h.b16 %v166
    %v758 = vunpack.c.l.b16 %v167
    %v759 = vunpack.c.h.b16 %v167
    %v760 = vunpack.c.l.b16 %v168
    %v761 = vunpack.c.h.b16 %v168
    %v762 = vunpack.c.l.b16 %v169
    %v763 = vunpack.c.h.b16 %v169
    %v764 = vunpack.c.l.b16 %v170
    %v765 = vunpack.c.h.b16 %v170
    %v766 = vunpack.c.l.b16 %v171
    %v767 = vunpack.c.h.b16 %v171
    %v768 = vunpack.c.l.b16 %v172
    %v769 = vunpack.c.h.b16 %v172
    %v770 = vunpack.c.l.b16 %v173
    %v771 = vunpack.c.h.b16 %v173
    %v772 = vunpack.c.l.b16 %v174
    %v773 = vunpack.c.h.b16 %v174
    %v774 = vunpack.c.l.b16 %v175
    %v775 = vunpack.c.h.b16 %v175
    %v776 = vunpack.c.l.b16 %v176
    %v777 = vunpack.c.h.b16 %v176
    %v778 = vunpack.c.l.b16 %v177
    %v779 = vunpack.c.h.b16 %v177
    %v780 = vunpack.c.l.b16 %v178
    %v781 = vunpack.c.h.b16 %v178
    %v782 = vunpack.c.l.b16 %v179
    %v783 = vunpack.c.h.b16 %v179
    %v784 = vunpack.c.l.b16 %v180
    %v785 = vunpack.c.h.b16 %v180
    %v786 = vunpack.c.l.b16 %v181
    %v787 = vunpack.c.h.b16 %v181
    %v788 = vunpack.c.l.b16 %v182
    %v789 = vunpack.c.h.b16 %v182
    %v790 = vunpack.c.l.b16 %v183
    %v791 = vunpack.c.h.b16 %v183
    %v792 = vunpack.c.l.b16 %v184
    %v793 = vunpack.c.h.b16 %v184
    %v794 = vunpack.c.l.b16 %v185
    %v795 = vunpack.c.h.b16 %v185
    %v796 = vunpack.c.l.b16 %v186
    %v797 = vunpack.c.h.b16 %v186
    %v798 = vunpack.c.l.b16 %v187
    %v799 = vunpack.c.h.b16 %v187
    %v800 = vunpack.c.l.b16 %v188
    %v801 = vunpack.c.h.b16 %v188
    %v802 = vunpack.c.l.b16 %v189
    %v803 = vunpack.c.h.b16 %v189
    %v804 = vunpack.c.l.b16 %v190
    %v805 = vunpack.c.h.b16 %v190
    %v806 = vunpack.c.l.b16 %v191
    %v807 = vunpack.c.h.b16 %v191
    %v808 = vunpack.c.l.b16 %v192
    %v809 = vunpack.c.h.b16 %v192
    %v810 = vunpack.c.l.b16 %v193
    %v811 = vunpack.c.h.b16 %v193
    %v812 = vunpack.c.l.b16 %v194
    %v813 = vunpack.c.h.b16 %v194
    %v814 = vunpack.c.l.b16 %v195
    %v815 = vunpack.c.h.b16 %v195
    %v816 = vunpack.c.l.b16 %v196
    %v817 = vunpack.c.h.b16 %v196
    %v818 = vunpack.c.l.b16 %v197
    %v819 = vunpack.c.h.b16 %v197
    %v820 = vunpack.c.l.b16 %v198
    %v821 = vunpack.c.h.b16 %v198
    %v822 = vunpack.c.l.b16 %v199
    %v823 = vunpack.c.h.b16 %v199
    %v824 = vunpack.c.l.b16 %v200
    %v825 = vunpack.c.h.b16 %v200
    %v826 = vunpack.c.l.b16 %v201
    %v827 = vunpack.c.h.b16 %v201
    %v828 = vunpack.c.l.b16 %v202
    %v829 = vunpack.c.h.b16 %v202
    %v830 = vunpack.c.l.b16 %v203
    %v831 = vunpack.c.h.b16 %v203
    %v832 = vunpack.c.l.b16 %v204
    %v833 = vunpack.c.h.b16 %v204
    %v834 = vunpack.c.l.b16 %v205
    %v835 = vunpack.c.h.b16 %v205
    %v836 = vunpack.c.l.b16 %v206
    %v837 = vunpack.c.h.b16 %v206
    %v838 = vunpack.c.l.b16 %v207
    %v839 = vunpack.c.h.b16 %v207
    %v840 = vunpack.c.l.b16 %v208
    %v841 = vunpack.c.h.b16 %v208
    %v842 = vunpack.c.l.b16 %v209
    %v843 = vunpack.c.h.b16 %v209
    %v844 = vunpack.c.l.b16 %v210
    %v845 = vunpack.c.h.b16 %v210
    %v846 = vunpack.c.l.b16 %v211
    %v847 = vunpack.c.h.b16 %v211
    %v848 = vunpack.c.l.b16 %v212
    %v849 = vunpack.c.h.b16 %v212
    %v850 = vunpack.c.l.b16 %v213
    %v851 = vunpack.c.h.b16 %v213
    %v852 = vunpack.c.l.b16 %v214
    %v853 = vunpack.c.h.b16 %v214
    %v854 = vunpack.c.l.b16 %v215
    %v855 = vunpack.c.h.b16 %v215
    %v856 = vunpack.c.l.b16 %v216
    %v857 = vunpack.c.h.b16 %v216
    %v858 = vunpack.c.l.b16 %v217
    %v859 = vunpack.c.h.b16 %v217
    %v860 = vunpack.c.l.b16 %v218
    %v861 = vunpack.c.h.b16 %v218
    %v862 = vunpack.c.l.b16 %v219
    %v863 = vunpack.c.h.b16 %v219
    %v864 = vunpack.c.l.b16 %v220
    %v865 = vunpack.c.h.b16 %v220
    %v866 = vunpack.c.l.b16 %v221
    %v867 = vunpack.c.h.b16 %v221
    %v868 = vunpack.c.l.b16 %v222
    %v869 = vunpack.c.h.b16 %v222
    %v870 = vunpack.c.l.b16 %v223
    %v871 = vunpack.c.h.b16 %v223
    %v872 = vunpack.c.l.b16 %v224
    %v873 = vunpack.c.h.b16 %v224
    %v874 = vunpack.c.l.b16 %v225
    %v875 = vunpack.c.h.b16 %v225
    %v876 = vunpack.c.l.b16 %v226
    %v877 = vunpack.c.h.b16 %v226
    %v878 = vunpack.c.l.b16 %v227
    %v879 = vunpack.c.h.b16 %v227
    %v880 = vunpack.c.l.b16 %v228
    %v881 = vunpack.c.h.b16 %v228
    %v882 = vunpack.c.l.b16 %v229
    %v883 = vunpack.c.h.b16 %v229
    %v884 = vunpack.c.l.b16 %v230
    %v885 = vunpack.c.h.b16 %v230
    %v886 = vunpack.c.l.b16 %v231
    %v887 = vunpack.c.h.b16 %v231
    %v888 = vunpack.c.l.b16 %v232
    %v889 = vunpack.c.h.b16 %v232
    %v890 = vunpack.c.l.b16 %v233
    %v891 = vunpack.c.h.b16 %v233
    %v892 = vunpack.c.l.b16 %v234
    %v893 = vunpack.c.h.b16 %v234
    %v894 = vunpack.c.l.b16 %v235
    %v895 = vunpack.c.h.b16 %v235
    %v896 = vunpack.c.l.b16 %v236
    %v897 = vunpack.c.h.b16 %v236
    %v898 = vunpack.c.l.b16 %v237
    %v899 = vunpack.c.h.b16 %v237
    %v900 = vunpack.c.l.b16 %v238
    %v901 = vunpack.c.h.b16 %v238
    %v902 = vunpack.c.l.b16 %v239
    %v903 = vunpack.c.h.b16 %v239
    %v904 = vunpack.c.l.b16 %v240
    %v905 = vunpack.c.h.b16 %v240
    %v906 = vunpack.c.l.b16 %v241
    %v907 = vunpack.c.h.b16 %v241
    %v908 = vunpack.c.l.b16 %v242
    %v909 = vunpack.c.h.b16 %v242
    %v910 = vunpack.c.l.b16 %v243
    %v911 = vunpack.c.h.b16 %v243
    %v912 = vunpack.c.l.b16 %v244
    %v913 = vunpack.c.h.b16 %v244
    %v914 = vunpack.c.l.b16 %v245
    %v915 = vunpack.c.h.b16 %v245
    %v916 = vunpack.c.l.b16 %v246
    %v917 = vunpack.c.h.b16 %v246
    %v918 = vunpack.c.l.b16 %v247
    %v919 = vunpack.c.h.b16 %v247
    %v920 = vunpack.c.l.b16 %v248
    %v921 = vunpack.c.h.b16 %v248
    %v922 = vunpack.c.l.b16 %v249
    %v923 = vunpack.c.h.b16 %v249
    %v924 = vunpack.c.l.b16 %v250
    %v925 = vunpack.c.h.b16 %v250
    %v926 = vunpack.c.l.b16 %v251
    %v927 = vunpack.c.h.b16 %v251
    %v928 = vunpack.c.l.b16 %v252
    %v929 = vunpack.c.h.b16 %v252
    %v930 = vunpack.c.l.b16 %v253
    %v931 = vunpack.c.h.b16 %v253
    %v932 = vunpack.c.l.b16 %v254
    %v933 = vunpack.c.h.b16 %v254
    %v934 = vunpack.c.l.b16 %v255
    %v935 = vunpack.c.h.b16 %v255
    %v936 = vunpack.c.l.b16 %v256
    %v937 = vunpack.c.h.b16 %v256
    %v938 = vunpack.c.l.b16 %v257
    %v939 = vunpack.c.h.b16 %v257
    %v940 = vunpack.c.l.b16 %v258
    %v941 = vunpack.c.h.b16 %v258
    %v942 = vunpack.c.l.b16 %v259
    %v943 = vunpack.c.h.b16 %v259
    %v944 = vunpack.c.l.b16 %v260
    %v945 = vunpack.c.h.b16 %v260
    %v946 = vunpack.c.l.b16 %v261
    %v947 = vunpack.c.h.b16 %v261
    %v948 = vunpack.c.l.b16 %v262
    %v949 = vunpack.c.h.b16 %v262
    %v950 = vunpack.c.l.b16 %v263
    %v951 = vunpack.c.h.b16 %v263
    %v952 = vunpack.c.l.b16 %v264
    %v953 = vunpack.c.h.b16 %v264
    %v954 = vunpack.c.l.b16 %v265
    %v955 = vunpack.c.h.b16 %v265
    %v956 = vunpack.c.l.b16 %v266
    %v957 = vunpack.c.h.b16 %v266
    %v958 = vunpack.c.l.b16 %v267
    %v959 = vunpack.c.h.b16 %v267
    %v960 = vunpack.c.l.b16 %v268
    %v961 = vunpack.c.h.b16 %v268
    %v962 = vunpack.c.l.b16 %v269
    %v963 = vunpack.c.h.b16 %v269
    %v964 = vunpack.c.l.b16 %v270
    %v965 = vunpack.c.h.b16 %v270
    %v966 = vunpack.c.l.b16 %v271
    %v967 = vunpack.c.h.b16 %v271
    %v968 = vunpack.c.l.b16 %v272
    %v969 = vunpack.c.h.b16 %v272
    %v970 = vunpack.c.l.b16 %v273
    %v971 = vunpack.c.h.b16 %v273
    %v972 = vunpack.c.l.b16 %v274
    %v973 = vunpack.c.h.b16 %v274
    %v974 = vunpack.c.l.b16 %v275
    %v975 = vunpack.c.h.b16 %v275
    %v976 = vunpack.c.l.b16 %v276
    %v977 = vunpack.c.h.b16 %v276
    %v978 = vunpack.c.l.b16 %v277
    %v979 = vunpack.c.h.b16 %v277
    %v980 = vunpack.c.l.b16 %v278
    %v981 = vunpack.c.h.b16 %v278
    %v982 = vunpack.c.l.b16 %v279
    %v983 = vunpack.c.h.b16 %v279
    %v984 = vunpack.c.l.b16 %v280
    %v985 = vunpack.c.h.b16 %v280
    %v986 = vunpack.c.l.b16 %v281
    %v987 = vunpack.c.h.b16 %v281
    %v988 = vunpack.c.l.b16 %v282
    %v989 = vunpack.c.h.b16 %v282
    %v990 = vunpack.c.l.b16 %v283
    %v991 = vunpack.c.h.b16 %v283
    %v992 = vunpack.c.l.b16 %v284
    %v993 = vunpack.c.h.b16 %v284
    %v994 = vunpack.c.l.b16 %v285
    %v995 = vunpack.c.h.b16 %v285
    %v996 = vunpack.c.l.b16 %v286
    %v997 = vunpack.c.h.b16 %v286
    %v998 = vunpack.c.l.b16 %v287
    %v999 = vunpack.c.h.b16 %v287
    %v1000 = vunpack.c.l.b16 %v288
    %v1001 = vunpack.c.h.b16 %v288
    %v1002 = vunpack.c.l.b16 %v289
    %v1003 = vunpack.c.h.b16 %v289
    %v1004 = vunpack.c.l.b16 %v290
    %v1005 = vunpack.c.h.b16 %v290
    %v1006 = vunpack.c.l.b16 %v291
    %v1007 = vunpack.c.h.b16 %v291
    %v1008 = vunpack.c.l.b16 %v292
    %v1009 = vunpack.c.h.b16 %v292
    %v1010 = vunpack.c.l.b16 %v293
    %v1011 = vunpack.c.h.b16 %v293
    %v1012 = vunpack.c.l.b16 %v294
    %v1013 = vunpack.c.h.b16 %v294
    %v1014 = vunpack.c.l.b16 %v295
    %v1015 = vunpack.c.h.b16 %v295
    %v1016 = vunpack.c.l.b16 %v296
    %v1017 = vunpack.c.h.b16 %v296
    %v1018 = vunpack.c.l.b16 %v297
    %v1019 = vunpack.c.h.b16 %v297
    %v1020 = vunpack.c.l.b16 %v298
    %v1021 = vunpack.c.h.b16 %v298
    %v1022 = vunpack.c.l.b16 %v299
    %v1023 = vunpack.c.h.b16 %v299
    %v1024 = vunpack.c.l.b16 %v300
    %v1025 = vunpack.c.h.b16 %v300
    %v1026 = vunpack.c.l.b16 %v301
    %v1027 = vunpack.c.h.b16 %v301
    %v1028 = vunpack.c.l.b16 %v302
    %v1029 = vunpack.c.h.b16 %v302
    %v1030 = vunpack.c.l.b16 %v303
    %v1031 = vunpack.c.h.b16 %v303
    %v1032 = vunpack.c.l.b16 %v304
    %v1033 = vunpack.c.h.b16 %v304
    %v1034 = vunpack.c.l.b16 %v305
    %v1035 = vunpack.c.h.b16 %v305
    %v1036 = vunpack.c.l.b16 %v306
    %v1037 = vunpack.c.h.b16 %v306
    %v1038 = vunpack.c.l.b16 %v307
    %v1039 = vunpack.c.h.b16 %v307
    %v1040 = vunpack.c.l.b16 %v308
    %v1041 = vunpack.c.h.b16 %v308
    %v1042 = vunpack.c.l.b16 %v309
    %v1043 = vunpack.c.h.b16 %v309
    %v1044 = vunpack.c.l.b16 %v310
    %v1045 = vunpack.c.h.b16 %v310
    %v1046 = vunpack.c.l.b16 %v311
    %v1047 = vunpack.c.h.b16 %v311
    %v1048 = vunpack.c.l.b16 %v312
    %v1049 = vunpack.c.h.b16 %v312
    %v1050 = vunpack.c.l.b16 %v313
    %v1051 = vunpack.c.h.b16 %v313
    %v1052 = vunpack.c.l.b16 %v314
    %v1053 = vunpack.c.h.b16 %v314
    %v1054 = vunpack.c.l.b16 %v315
    %v1055 = vunpack.c.h.b16 %v315
    %v1056 = vunpack.c.l.b16 %v316
    %v1057 = vunpack.c.h.b16 %v316
    %v1058 = vunpack.c.l.b16 %v317
    %v1059 = vunpack.c.h.b16 %v317
    %v1060 = vunpack.c.l.b16 %v318
    %v1061 = vunpack.c.h.b16 %v318
    %v1062 = vunpack.c.l.b16 %v319
    %v1063 = vunpack.c.h.b16 %v319
    %v1064 = vunpack.c.l.b16 %v320
    %v1065 = vunpack.c.h.b16 %v320
    %v1066 = vunpack.c.l.b16 %v321
    %v1067 = vunpack.c.h.b16 %v321
    %v1068 = vunpack.c.l.b16 %v322
    %v1069 = vunpack.c.h.b16 %v322
    %v1070 = vunpack.c.l.b16 %v323
    %v1071 = vunpack.c.h.b16 %v323
    %v1072 = vunpack.c.l.b16 %v324
    %v1073 = vunpack.c.h.b16 %v324
    %v1074 = vunpack.c.l.b16 %v325
    %v1075 = vunpack.c.h.b16 %v325
    %v1076 = vunpack.c.l.b16 %v326
    %v1077 = vunpack.c.h.b16 %v326
    %v1078 = vunpack.c.l.b16 %v327
    %v1079 = vunpack.c.h.b16 %v327
    %v1080 = vunpack.c.l.b16 %v328
    %v1081 = vunpack.c.h.b16 %v328
    %v1082 = vunpack.c.l.b16 %v329
    %v1083 = vunpack.c.h.b16 %v329
    %v1084 = vunpack.c.l.b16 %v330
    %v1085 = vunpack.c.h.b16 %v330
    %v1086 = vunpack.c.l.b16 %v331
    %v1087 = vunpack.c.h.b16 %v331
    %v1088 = vunpack.c.l.b16 %v332
    %v1089 = vunpack.c.h.b16 %v332
    %v1090 = vunpack.c.l.b16 %v333
    %v1091 = vunpack.c.h.b16 %v333
    %v1092 = vunpack.c.l.b16 %v334
    %v1093 = vunpack.c.h.b16 %v334
    %v1094 = vunpack.c.l.b16 %v335
    %v1095 = vunpack.c.h.b16 %v335
    %v1096 = vunpack.c.l.b16 %v336
    %v1097 = vunpack.c.h.b16 %v336
    %v1098 = vunpack.c.l.b16 %v337
    %v1099 = vunpack.c.h.b16 %v337
    %v1100 = vunpack.c.l.b16 %v338
    %v1101 = vunpack.c.h.b16 %v338
    %v1102 = vunpack.c.l.b16 %v339
    %v1103 = vunpack.c.h.b16 %v339
    %v1104 = vunpack.c.l.b16 %v340
    %v1105 = vunpack.c.h.b16 %v340
    %v1106 = vunpack.c.l.b16 %v341
    %v1107 = vunpack.c.h.b16 %v341
    %v1108 = vunpack.c.l.b16 %v342
    %v1109 = vunpack.c.h.b16 %v342
    %v1110 = vunpack.c.l.b16 %v343
    %v1111 = vunpack.c.h.b16 %v343
    %v1112 = vunpack.c.l.b16 %v344
    %v1113 = vunpack.c.h.b16 %v344
    %v1114 = vunpack.c.l.b16 %v345
    %v1115 = vunpack.c.h.b16 %v345
    %v1116 = vunpack.c.l.b16 %v346
    %v1117 = vunpack.c.h.b16 %v346
    %v1118 = vunpack.c.l.b16 %v347
    %v1119 = vunpack.c.h.b16 %v347
    %v1120 = vpack.c.b16 %v700, %v688
    %v1121 = vpack.c.b16 %v701, %v689
    %v1122 = vpack.c.b16 %v702, %v690
    %v1123 = vpack.c.b16 %v703, %v691
    %v1124 = vpack.c.b16 %v704, %v692
    %v1125 = vpack.c.b16 %v705, %v693
    %v1126 = vpack.c.b16 %v706, %v694
    %v1127 = vpack.c.b16 %v707, %v695
    %v1128 = vpack.c.b16 %v708, %v696
    %v1129 = vpack.c.b16 %v709, %v697
    %v1130 = vpack.c.b16 %v710, %v698
    %v1131 = vpack.c.b16 %v711, %v699
    %v1132 = vpack.c.b16 %v724, %v712
    %v1133 = vpack.c.b16 %v725, %v713
    %v1134 = vpack.c.b16 %v726, %v714
    %v1135 = vpack.c.b16 %v727, %v715
    %v1136 = vpack.c.b16 %v728, %v716
    %v1137 = vpack.c.b16 %v729, %v717
    %v1138 = vpack.c.b16 %v730, %v718
    %v1139 = vpack.c.b16 %v731, %v719
    %v1140 = vpack.c.b16 %v732, %v720
    %v1141 = vpack.c.b16 %v733, %v721
    %v1142 = vpack.c.b16 %v734, %v722
    %v1143 = vpack.c.b16 %v735, %v723
    %v1144 = vpack.c.b16 %v748, %v736
    %v1145 = vpack.c.b16 %v749, %v737
    %v1146 = vpack.c.b16 %v750, %v738
    %v1147 = vpack.c.b16 %v751, %v739
    %v1148 = vpack.c.b16 %v752, %v740
    %v1149 = vpack.c.b16 %v753, %v741
    %v1150 = vpack.c.b16 %v754, %v742
    %v1151 = vpack.c.b16 %v755, %v743
    %v1152 = vpack.c.b16 %v756, %v744
    %v1153 = vpack.c.b16 %v757, %v745
    %v1154 = vpack.c.b16 %v758, %v746
    %v1155 = vpack.c.b16 %v759, %v747
    %v1156 = vpack.c.b16 %v772, %v760
    %v1157 = vpack.c.b16 %v773, %v761
    %v1158 = vpack.c.b16 %v774, %v762
    %v1159 = vpack.c.b16 %v775, %v763
    %v1160 = vpack.c.b16 %v776, %v764
    %v1161 = vpack.c.b16 %v777, %v765
    %v1162 = vpack.c.b16 %v778, %v766
    %v1163 = vpack.c.b16 %v779, %v767
    %v1164 = vpack.c.b16 %v780, %v768
    %v1165 = vpack.c.b16 %v781, %v769
    %v1166 = vpack.c.b16 %v782, %v770
    %v1167 = vpack.c.b16 %v783, %v771
    %v1168 = vpack.c.b16 %v796, %v784
    %v1169 = vpack.c.b16 %v797, %v785
    %v1170 = vpack.c.b16 %v798, %v786
    %v1171 = vpack.c.b16 %v799, %v787
    %v1172 = vpack.c.b16 %v800, %v788
    %v1173 = vpack.c.b16 %v801, %v789
    %v1174 = vpack.c.b16 %v802, %v790
    %v1175 = vpack.c.b16 %v803, %v791
    %v1176 = vpack.c.b16 %v804, %v792
    %v1177 = vpack.c.b16 %v805, %v793
    %v1178 = vpack.c.b16 %v806, %v794
    %v1179 = vpack.c.b16 %v807, %v795
    %v1180 = vpack.c.b16 %v820, %v808
    %v1181 = vpack.c.b16 %v821, %v809
    %v1182 = vpack.c.b16 %v822, %v810
    %v1183 = vpack.c.b16 %v823, %v811
    %v1184 = vpack.c.b16 %v824, %v812
    %v1185 = vpack.c.b16 %v825, %v813
    %v1186 = vpack.c.b16 %v826, %v814
    %v1187 = vpack.c.b16 %v827, %v815
    %v1188 = vpack.c.b16 %v828, %v816
    %v1189 = vpack.c.b16 %v829, %v817
    %v1190 = vpack.c.b16 %v830, %v818
    %v1191 = vpack.c.b16 %v831, %v819
    %v1192 = vpack.c.b16 %v844, %v832
    %v1193 = vpack.c.b16 %v845, %v833
    %v1194 = vpack.c.b16 %v846, %v834
    %v1195 = vpack.c.b16 %v847, %v835
    %v1196 = vpack.c.b16 %v848, %v836
    %v1197 = vpack.c.b16 %v849, %v837
    %v1198 = vpack.c.b16 %v850, %v838
    %v1199 = vpack.c.b16 %v851, %v839
    %v1200 = vpack.c.b16 %v852, %v840
    %v1201 = vpack.c.b16 %v853, %v841
    %v1202 = vpack.c.b16 %v854, %v842
    %v1203 = vpack.c.b16 %v855, %v843
    %v1204 = vpack.c.b16 %v868, %v856
    %v1205 = vpack.c.b16 %v869, %v857
    %v1206 = vpack.c.b16 %v870, %v858
    %v1207 = vpack.c.b16 %v871, %v859
    %v1208 = vpack.c.b16 %v872, %v860
    %v1209 = vpack.c.b16 %v873, %v861
    %v1210 = vpack.c.b16 %v874, %v862
    %v1211 = vpack.c.b16 %v875, %v863
    %v1212 = vpack.c.b16 %v876, %v864
    %v1213 = vpack.c.b16 %v877, %v865
    %v1214 = vpack.c.b16 %v878, %v866
    %v1215 = vpack.c.b16 %v879, %v867
    %v1216 = vpack.c.b16 %v892, %v880
    %v1217 = vpack.c.b16 %v893, %v881
    %v1218 = vpack.c.b16 %v894, %v882
    %v1219 = vpack.c.b16 %v895, %v883
    %v1220 = vpack.c.b16 %v896, %v884
    %v1221 = vpack.c.b16 %v897, %v885
    %v1222 = vpack.c.b16 %v898, %v886
    %v1223 = vpack.c.b16 %v899, %v887
    %v1224 = vpack.c.b16 %v900, %v888
    %v1225 = vpack.c.b16 %v901, %v889
    %v1226 = vpack.c.b16 %v902, %v890
    %v1227 = vpack.c.b16 %v903, %v891
    %v1228 = vpack.c.b16 %v916, %v904
    %v1229 = vpack.c.b16 %v917, %v905
    %v1230 = vpack.c.b16 %v918, %v906
    %v1231 = vpack.c.b16 %v919, %v907
    %v1232 = vpack.c.b16 %v920, %v908
    %v1233 = vpack.c.b16 %v921, %v909
    %v1234 = vpack.c.b16 %v922, %v910
    %v1235 = vpack.c.b16 %v923, %v911
    %v1236 = vpack.c.b16 %v924, %v912
    %v1237 = vpack.c.b16 %v925, %v913
    %v1238 = vpack.c.b16 %v926, %v914
    %v1239 = vpack.c.b16 %v927, %v915
    %v1240 = vpack.c.b16 %v940, %v928
    %v1241 = vpack.c.b16 %v941, %v929
    %v1242 = vpack.c.b16 %v942, %v930
    %v1243 = vpack.c.b16 %v943, %v931
    %v1244 = vpack.c.b16 %v944, %v932
    %v1245 = vpack.c.b16 %v945, %v933
    %v1246 = vpack.c.b16 %v946, %v934
    %v1247 = vpack.c.b16 %v947, %v935
    %v1248 = vpack.c.b16 %v948, %v936
    %v1249 = vpack.c.b16 %v949, %v937
    %v1250 = vpack.c.b16 %v950, %v938
    %v1251 = vpack.c.b16 %v951, %v939
    %v1252 = vpack.c.b16 %v964, %v952
    %v1253 = vpack.c.b16 %v965, %v953
    %v1254 = vpack.c.b16 %v966, %v954
    %v1255 = vpack.c.b16 %v967, %v955
    %v1256 = vpack.c.b16 %v968, %v956
    %v1257 = vpack.c.b16 %v969, %v957
    %v1258 = vpack.c.b16 %v970, %v958
    %v1259 = vpack.c.b16 %v971, %v959
    %v1260 = vpack.c.b16 %v972, %v960
    %v1261 = vpack.c.b16 %v973, %v961
    %v1262 = vpack.c.b16 %v974, %v962
    %v1263 = vpack.c.b16 %v975, %v963
    %v1264 = vpack.c.b16 %v988, %v976
    %v1265 = vpack.c.b16 %v989, %v977
    %v1266 = vpack.c.b16 %v990, %v978
    %v1267 = vpack.c.b16 %v991, %v979
    %v1268 = vpack.c.b16 %v992, %v980
    %v1269 = vpack.c.b16 %v993, %v981
    %v1270 = vpack.c.b16 %v994, %v982
    %v1271 = vpack.c.b16 %v995, %v983
    %v1272 = vpack.c.b16 %v996, %v984
    %v1273 = vpack.c.b16 %v997, %v985
    %v1274 = vpack.c.b16 %v998, %v986
    %v1275 = vpack.c.b16 %v999, %v987
    %v1276 = vpack.c.b16 %v1012, %v1000
    %v1277 = vpack.c.b16 %v1013, %v1001
    %v1278 = vpack.c.b16 %v1014, %v1002
    %v1279 = vpack.c.b16 %v1015, %v1003
    %v1280 = vpack.c.b16 %v1016, %v1004
    %v1281 = vpack.c.b16 %v1017, %v1005
    %v1282 = vpack.c.b16 %v1018, %v1006
    %v1283 = vpack.c.b16 %v1019, %v1007
    %v1284 = vpack.c.b16 %v1020, %v1008
    %v1285 = vpack.c.b16 %v1021, %v1009
    %v1286 = vpack.c.b16 %v1022, %v1010
    %v1287 = vpack.c.b16 %v1023, %v1011
    %v1288 = vpack.c.b16 %v1036, %v1024
    %v1289 = vpack.c.b16 %v1037, %v1025
    %v1290 = vpack.c.b16 %v1038, %v1026
    %v1291 = vpack.c.b16 %v1039, %v1027
    %v1292 = vpack.c.b16 %v1040, %v1028
    %v1293 = vpack.c.b16 %v1041, %v1029
    %v1294 = vpack.c.b16 %v1042, %v1030
    %v1295 = vpack.c.b16 %v1043, %v1031
    %v1296 = vpack.c.b16 %v1044, %v1032
    %v1297 = vpack.c.b16 %v1045, %v1033
    %v1298 = vpack.c.b16 %v1046, %v1034
    %v1299 = vpack.c.b16 %v1047, %v1035
    %v1300 = vpack.c.b16 %v1060, %v1048
    %v1301 = vpack.c.b16 %v1061, %v1049
    %v1302 = vpack.c.b16 %v1062, %v1050
    %v1303 = vpack.c.b16 %v1063, %v1051
    %v1304 = vpack.c.b16 %v1064, %v1052
    %v1305 = vpack.c.b16 %v1065, %v1053
    %v1306 = vpack.c.b16 %v1066, %v1054
    %v1307 = vpack.c.b16 %v1067, %v1055
    %v1308 = vpack.c.b16 %v1068, %v1056
    %v1309 = vpack.c.b16 %v1069, %v1057
    %v1310 = vpack.c.b16 %v1070, %v1058
    %v1311 = vpack.c.b16 %v1071, %v1059
    %v1312 = vpack.c.b16 %v1084, %v1072
    %v1313 = vpack.c.b16 %v1085, %v1073
    %v1314 = vpack.c.b16 %v1086, %v1074
    %v1315 = vpack.c.b16 %v1087, %v1075
    %v1316 = vpack.c.b16 %v1088, %v1076
    %v1317 = vpack.c.b16 %v1089, %v1077
    %v1318 = vpack.c.b16 %v1090, %v1078
    %v1319 = vpack.c.b16 %v1091, %v1079
    %v1320 = vpack.c.b16 %v1092, %v1080
    %v1321 = vpack.c.b16 %v1093, %v1081
    %v1322 = vpack.c.b16 %v1094, %v1082
    %v1323 = vpack.c.b16 %v1095, %v1083
    %v1324 = vpack.c.b16 %v1108, %v1096
    %v1325 = vpack.c.b16 %v1109, %v1097
    %v1326 = vpack.c.b16 %v1110, %v1098
    %v1327 = vpack.c.b16 %v1111, %v1099
    %v1328 = vpack.c.b16 %v1112, %v1100
    %v1329 = vpack.c.b16 %v1113, %v1101
    %v1330 = vpack.c.b16 %v1114, %v1102
    %v1331 = vpack.c.b16 %v1115, %v1103
    %v1332 = vpack.c.b16 %v1116, %v1104
    %v1333 = vpack.c.b16 %v1117, %v1105
    %v1334 = vpack.c.b16 %v1118, %v1106
    %v1335 = vpack.c.b16 %v1119, %v1107
    %vm1552 = vcmask 261120
    %v1554 = vsel %vm1552, %v454, 0
    %v1557 = vsel %vm1552, %v457, 0
    %v1560 = vsel %vm1552, %v460, 0
    %v1563 = vsel %vm1552, %v463, 0
    %1565 = vmatprep.subr.bf16.mxu0 %v1205
    %1566 = vmatpush1.bf16.msra.mxu0 %v1204
    %1567 = vmatprep.subr.bf16.mxu0 %v1193
    %1568 = vmatpush1.bf16.msra.mxu0 %v1192
    %1569 = vmatprep.subr.bf16.mxu0 %v1181
    %1570 = vmatpush1.bf16.msra.mxu0 %v1180
    %1571 = vmatprep.subr.bf16.mxu0 %v1169
    %1572 = vmatpush1.bf16.msra.mxu0 %v1168
    %1573 = vmatprep.subr.bf16.mxu0 %v1157
    %1574 = vmatpush1.bf16.msra.mxu0 %v1156
    %1575 = vmatprep.subr.bf16.mxu0 %v1145
    %1576 = vmatpush1.bf16.msra.mxu0 %v1144
    %1577 = vmatprep.subr.bf16.mxu0 %v1133
    %1578 = vmatpush1.bf16.msra.mxu0 %v1132
    %1579 = vmatprep.subr.bf16.mxu0 %v1121
    %1580 = vmatpush1.bf16.msra.mxu0 %v1120
    %1581 = vmatprep.subr.bf16.mxu0 %v1301
    %1582 = vmatpush2.bf16.msra.mxu0 %v1300
    %1583 = vmatprep.subr.bf16.mxu0 %v1289
    %1584 = vmatpush2.bf16.msra.mxu0 %v1288
    %1585 = vmatprep.subr.bf16.mxu0 %v1277
    %1586 = vmatpush2.bf16.msra.mxu0 %v1276
    %1587 = vmatprep.subr.bf16.mxu0 %v1265
    %1588 = vmatpush2.bf16.msra.mxu0 %v1264
    %1589 = vmatprep.subr.bf16.mxu0 %v1253
    %1590 = vmatpush2.bf16.msra.mxu0 %v1252
    %1591 = vmatprep.subr.bf16.mxu0 %v1241
    %1592 = vmatpush2.bf16.msra.mxu0 %v1240
    %1593 = vmatprep.subr.bf16.mxu0 %v1229
    %1594 = vmatpush2.bf16.msra.mxu0 %v1228
    %1595 = vmatprep.subr.bf16.mxu0 %v1217
    %1596 = vmatpush2.bf16.msra.mxu0 %v1216
    %1597 = vmatprep.mubr.bf16.mxu0 %v453
    %1598 = vmatmul.mubr.bf16.gmra.mxu0 %v452
    %v1599 = vpop.f32.mrf.mxu0
    %v1600 = vadd.f32 %v355, %v1599
    %v1601 = vpop.f32.mrf.mxu0
    %v1602 = vadd.f32 %v359, %v1601
    %v1603 = vpop.f32.mrf.mxu0
    %v1604 = vadd.f32 %v355, %v1603
    %v1605 = vpop.f32.mrf.mxu0
    %v1606 = vadd.f32 %v359, %v1605
    %1607 = vmatprep.mubr.bf16.mxu0 %v456
    %1608 = vmatmul.mubr.bf16.gmra.mxu0 %v455
    %v1609 = vpop.f32.mrf.mxu0
    %v1610 = vadd.f32 %v355, %v1609
    %v1611 = vpop.f32.mrf.mxu0
    %v1612 = vadd.f32 %v359, %v1611
    %v1613 = vpop.f32.mrf.mxu0
    %v1614 = vadd.f32 %v355, %v1613
    %v1615 = vpop.f32.mrf.mxu0
    %v1616 = vadd.f32 %v359, %v1615
    %1617 = vmatprep.mubr.bf16.mxu0 %v459
    %1618 = vmatmul.mubr.bf16.gmra.mxu0 %v458
    %v1619 = vpop.f32.mrf.mxu0
    %v1620 = vadd.f32 %v355, %v1619
    %v1621 = vpop.f32.mrf.mxu0
    %v1622 = vadd.f32 %v359, %v1621
    %v1623 = vpop.f32.mrf.mxu0
    %v1624 = vadd.f32 %v355, %v1623
    %v1625 = vpop.f32.mrf.mxu0
    %v1626 = vadd.f32 %v359, %v1625
    %1627 = vmatprep.mubr.bf16.mxu0 %v462
    %1628 = vmatmul.mubr.bf16.gmra.mxu0 %v461
    %v1629 = vpop.f32.mrf.mxu0
    %v1630 = vadd.f32 %v355, %v1629
    %v1631 = vpop.f32.mrf.mxu0
    %v1632 = vadd.f32 %v359, %v1631
    %v1633 = vpop.f32.mrf.mxu0
    %v1634 = vadd.f32 %v355, %v1633
    %v1635 = vpop.f32.mrf.mxu0
    %v1636 = vadd.f32 %v359, %v1635
    %1637 = vdwg.mxu0
    %1638 = vmatprep.subr.bf16.mxu0 0
    %1639 = vmatpush1.bf16.msra.mxu0 0
    %1640 = vmatprep.subr.bf16.mxu0 0
    %1641 = vmatpush1.bf16.msra.mxu0 0
    %1642 = vmatprep.subr.bf16.mxu0 0
    %1643 = vmatpush1.bf16.msra.mxu0 0
    %1644 = vmatprep.subr.bf16.mxu0 0
    %1645 = vmatpush1.bf16.msra.mxu0 0
    %1646 = vmatprep.subr.bf16.mxu0 0
    %1647 = vmatpush1.bf16.msra.mxu0 0
    %1648 = vmatprep.subr.bf16.mxu0 0
    %1649 = vmatpush1.bf16.msra.mxu0 0
    %1650 = vmatprep.subr.bf16.mxu0 %v1325
    %1651 = vmatpush1.bf16.msra.mxu0 %v1324
    %1652 = vmatprep.subr.bf16.mxu0 %v1313
    %1653 = vmatpush1.bf16.msra.mxu0 %v1312
    %1654 = vmatprep.subr.bf16.mxu0 0
    %1655 = vmatpush2.bf16.msra.mxu0 0
    %1656 = vmatprep.subr.bf16.mxu0 0
    %1657 = vmatpush2.bf16.msra.mxu0 0
    %1658 = vmatprep.subr.bf16.mxu0 0
    %1659 = vmatpush2.bf16.msra.mxu0 0
    %1660 = vmatprep.subr.bf16.mxu0 0
    %1661 = vmatpush2.bf16.msra.mxu0 0
    %1662 = vmatprep.subr.bf16.mxu0 0
    %1663 = vmatpush2.bf16.msra.mxu0 0
    %1664 = vmatprep.subr.bf16.mxu0 0
    %1665 = vmatpush2.bf16.msra.mxu0 0
    %1666 = vmatprep.subr.bf16.mxu0 0
    %1667 = vmatpush2.bf16.msra.mxu0 0
    %1668 = vmatprep.subr.bf16.mxu0 0
    %1669 = vmatpush2.bf16.msra.mxu0 0
    %1670 = vmatprep.mubr.bf16.mxu0 0
    %1671 = vmatmul.mubr.bf16.gmra.mxu0 %v1554
    %v1672 = vpop.f32.mrf.mxu0
    %v1673 = vadd.f32 %v1600, %v1672
    %v1674 = vpop.f32.mrf.mxu0
    %v1675 = vadd.f32 %v1602, %v1674
    %v1676 = vpop.f32.mrf.mxu0
    %v1677 = vadd.f32 %v1604, %v1676
    %v1678 = vpop.f32.mrf.mxu0
    %v1679 = vadd.f32 %v1606, %v1678
    %1680 = vmatprep.mubr.bf16.mxu0 0
    %1681 = vmatmul.mubr.bf16.gmra.mxu0 %v1557
    %v1682 = vpop.f32.mrf.mxu0
    %v1683 = vadd.f32 %v1610, %v1682
    %v1684 = vpop.f32.mrf.mxu0
    %v1685 = vadd.f32 %v1612, %v1684
    %v1686 = vpop.f32.mrf.mxu0
    %v1687 = vadd.f32 %v1614, %v1686
    %v1688 = vpop.f32.mrf.mxu0
    %v1689 = vadd.f32 %v1616, %v1688
    %1690 = vmatprep.mubr.bf16.mxu0 0
    %1691 = vmatmul.mubr.bf16.gmra.mxu0 %v1560
    %v1692 = vpop.f32.mrf.mxu0
    %v1693 = vadd.f32 %v1620, %v1692
    %v1694 = vpop.f32.mrf.mxu0
    %v1695 = vadd.f32 %v1622, %v1694
    %v1696 = vpop.f32.mrf.mxu0
    %v1697 = vadd.f32 %v1624, %v1696
    %v1698 = vpop.f32.mrf.mxu0
    %v1699 = vadd.f32 %v1626, %v1698
    %1700 = vmatprep.mubr.bf16.mxu0 0
    %1701 = vmatmul.mubr.bf16.gmra.mxu0 %v1563
    %v1702 = vpop.f32.mrf.mxu0
    %v1703 = vadd.f32 %v1630, %v1702
    %v1704 = vpop.f32.mrf.mxu0
    %v1705 = vadd.f32 %v1632, %v1704
    %v1706 = vpop.f32.mrf.mxu0
    %v1707 = vadd.f32 %v1634, %v1706
    %v1708 = vpop.f32.mrf.mxu0
    %v1709 = vadd.f32 %v1636, %v1708
    %1710 = vdwg.mxu0
    %1711 = vmatprep.subr.bf16.mxu0 %v1207
    %1712 = vmatpush1.bf16.msra.mxu0 %v1206
    %1713 = vmatprep.subr.bf16.mxu0 %v1195
    %1714 = vmatpush1.bf16.msra.mxu0 %v1194
    %1715 = vmatprep.subr.bf16.mxu0 %v1183
    %1716 = vmatpush1.bf16.msra.mxu0 %v1182
    %1717 = vmatprep.subr.bf16.mxu0 %v1171
    %1718 = vmatpush1.bf16.msra.mxu0 %v1170
    %1719 = vmatprep.subr.bf16.mxu0 %v1159
    %1720 = vmatpush1.bf16.msra.mxu0 %v1158
    %1721 = vmatprep.subr.bf16.mxu0 %v1147
    %1722 = vmatpush1.bf16.msra.mxu0 %v1146
    %1723 = vmatprep.subr.bf16.mxu0 %v1135
    %1724 = vmatpush1.bf16.msra.mxu0 %v1134
    %1725 = vmatprep.subr.bf16.mxu0 %v1123
    %1726 = vmatpush1.bf16.msra.mxu0 %v1122
    %1727 = vmatprep.subr.bf16.mxu0 %v1303
    %1728 = vmatpush2.bf16.msra.mxu0 %v1302
    %1729 = vmatprep.subr.bf16.mxu0 %v1291
    %1730 = vmatpush2.bf16.msra.mxu0 %v1290
    %1731 = vmatprep.subr.bf16.mxu0 %v1279
    %1732 = vmatpush2.bf16.msra.mxu0 %v1278
    %1733 = vmatprep.subr.bf16.mxu0 %v1267
    %1734 = vmatpush2.bf16.msra.mxu0 %v1266
    %1735 = vmatprep.subr.bf16.mxu0 %v1255
    %1736 = vmatpush2.bf16.msra.mxu0 %v1254
    %1737 = vmatprep.subr.bf16.mxu0 %v1243
    %1738 = vmatpush2.bf16.msra.mxu0 %v1242
    %1739 = vmatprep.subr.bf16.mxu0 %v1231
    %1740 = vmatpush2.bf16.msra.mxu0 %v1230
    %1741 = vmatprep.subr.bf16.mxu0 %v1219
    %1742 = vmatpush2.bf16.msra.mxu0 %v1218
    %1743 = vmatprep.mubr.bf16.mxu0 %v453
    %1744 = vmatmul.mubr.bf16.gmra.mxu0 %v452
    %v1745 = vpop.f32.mrf.mxu0
    %v1746 = vadd.f32 %v363, %v1745
    %v1747 = vpop.f32.mrf.mxu0
    %v1748 = vadd.f32 %v367, %v1747
    %v1749 = vpop.f32.mrf.mxu0
    %v1750 = vadd.f32 %v363, %v1749
    %v1751 = vpop.f32.mrf.mxu0
    %v1752 = vadd.f32 %v367, %v1751
    %1753 = vmatprep.mubr.bf16.mxu0 %v456
    %1754 = vmatmul.mubr.bf16.gmra.mxu0 %v455
    %v1755 = vpop.f32.mrf.mxu0
    %v1756 = vadd.f32 %v363, %v1755
    %v1757 = vpop.f32.mrf.mxu0
    %v1758 = vadd.f32 %v367, %v1757
    %v1759 = vpop.f32.mrf.mxu0
    %v1760 = vadd.f32 %v363, %v1759
    %v1761 = vpop.f32.mrf.mxu0
    %v1762 = vadd.f32 %v367, %v1761
    %1763 = vmatprep.mubr.bf16.mxu0 %v459
    %1764 = vmatmul.mubr.bf16.gmra.mxu0 %v458
    %v1765 = vpop.f32.mrf.mxu0
    %v1766 = vadd.f32 %v363, %v1765
    %v1767 = vpop.f32.mrf.mxu0
    %v1768 = vadd.f32 %v367, %v1767
    %v1769 = vpop.f32.mrf.mxu0
    %v1770 = vadd.f32 %v363, %v1769
    %v1771 = vpop.f32.mrf.mxu0
    %v1772 = vadd.f32 %v367, %v1771
    %1773 = vmatprep.mubr.bf16.mxu0 %v462
    %1774 = vmatmul.mubr.bf16.gmra.mxu0 %v461
    %v1775 = vpop.f32.mrf.mxu0
    %v1776 = vadd.f32 %v363, %v1775
    %v1777 = vpop.f32.mrf.mxu0
    %v1778 = vadd.f32 %v367, %v1777
    %v1779 = vpop.f32.mrf.mxu0
    %v1780 = vadd.f32 %v363, %v1779
    %v1781 = vpop.f32.mrf.mxu0
    %v1782 = vadd.f32 %v367, %v1781
    %1783 = vdwg.mxu0
    %1784 = vmatprep.subr.bf16.mxu0 0
    %1785 = vmatpush1.bf16.msra.mxu0 0
    %1786 = vmatprep.subr.bf16.mxu0 0
    %1787 = vmatpush1.bf16.msra.mxu0 0
    %1788 = vmatprep.subr.bf16.mxu0 0
    %1789 = vmatpush1.bf16.msra.mxu0 0
    %1790 = vmatprep.subr.bf16.mxu0 0
    %1791 = vmatpush1.bf16.msra.mxu0 0
    %1792 = vmatprep.subr.bf16.mxu0 0
    %1793 = vmatpush1.bf16.msra.mxu0 0
    %1794 = vmatprep.subr.bf16.mxu0 0
    %1795 = vmatpush1.bf16.msra.mxu0 0
    %1796 = vmatprep.subr.bf16.mxu0 %v1327
    %1797 = vmatpush1.bf16.msra.mxu0 %v1326
    %1798 = vmatprep.subr.bf16.mxu0 %v1315
    %1799 = vmatpush1.bf16.msra.mxu0 %v1314
    %1800 = vmatprep.subr.bf16.mxu0 0
    %1801 = vmatpush2.bf16.msra.mxu0 0
    %1802 = vmatprep.subr.bf16.mxu0 0
    %1803 = vmatpush2.bf16.msra.mxu0 0
    %1804 = vmatprep.subr.bf16.mxu0 0
    %1805 = vmatpush2.bf16.msra.mxu0 0
    %1806 = vmatprep.subr.bf16.mxu0 0
    %1807 = vmatpush2.bf16.msra.mxu0 0
    %1808 = vmatprep.subr.bf16.mxu0 0
    %1809 = vmatpush2.bf16.msra.mxu0 0
    %1810 = vmatprep.subr.bf16.mxu0 0
    %1811 = vmatpush2.bf16.msra.mxu0 0
    %1812 = vmatprep.subr.bf16.mxu0 0
    %1813 = vmatpush2.bf16.msra.mxu0 0
    %1814 = vmatprep.subr.bf16.mxu0 0
    %1815 = vmatpush2.bf16.msra.mxu0 0
    %1816 = vmatprep.mubr.bf16.mxu0 0
    %1817 = vmatmul.mubr.bf16.gmra.mxu0 %v1554
    %v1818 = vpop.f32.mrf.mxu0
    %v1819 = vadd.f32 %v1746, %v1818
    %v1820 = vpop.f32.mrf.mxu0
    %v1821 = vadd.f32 %v1748, %v1820
    %v1822 = vpop.f32.mrf.mxu0
    %v1823 = vadd.f32 %v1750, %v1822
    %v1824 = vpop.f32.mrf.mxu0
    %v1825 = vadd.f32 %v1752, %v1824
    %1826 = vmatprep.mubr.bf16.mxu0 0
    %1827 = vmatmul.mubr.bf16.gmra.mxu0 %v1557
    %v1828 = vpop.f32.mrf.mxu0
    %v1829 = vadd.f32 %v1756, %v1828
    %v1830 = vpop.f32.mrf.mxu0
    %v1831 = vadd.f32 %v1758, %v1830
    %v1832 = vpop.f32.mrf.mxu0
    %v1833 = vadd.f32 %v1760, %v1832
    %v1834 = vpop.f32.mrf.mxu0
    %v1835 = vadd.f32 %v1762, %v1834
    %1836 = vmatprep.mubr.bf16.mxu0 0
    %1837 = vmatmul.mubr.bf16.gmra.mxu0 %v1560
    %v1838 = vpop.f32.mrf.mxu0
    %v1839 = vadd.f32 %v1766, %v1838
    %v1840 = vpop.f32.mrf.mxu0
    %v1841 = vadd.f32 %v1768, %v1840
    %v1842 = vpop.f32.mrf.mxu0
    %v1843 = vadd.f32 %v1770, %v1842
    %v1844 = vpop.f32.mrf.mxu0
    %v1845 = vadd.f32 %v1772, %v1844
    %1846 = vmatprep.mubr.bf16.mxu0 0
    %1847 = vmatmul.mubr.bf16.gmra.mxu0 %v1563
    %v1848 = vpop.f32.mrf.mxu0
    %v1849 = vadd.f32 %v1776, %v1848
    %v1850 = vpop.f32.mrf.mxu0
    %v1851 = vadd.f32 %v1778, %v1850
    %v1852 = vpop.f32.mrf.mxu0
    %v1853 = vadd.f32 %v1780, %v1852
    %v1854 = vpop.f32.mrf.mxu0
    %v1855 = vadd.f32 %v1782, %v1854
    %1856 = vdwg.mxu0
    %1857 = vmatprep.subr.bf16.mxu0 %v1209
    %1858 = vmatpush1.bf16.msra.mxu0 %v1208
    %1859 = vmatprep.subr.bf16.mxu0 %v1197
    %1860 = vmatpush1.bf16.msra.mxu0 %v1196
    %1861 = vmatprep.subr.bf16.mxu0 %v1185
    %1862 = vmatpush1.bf16.msra.mxu0 %v1184
    %1863 = vmatprep.subr.bf16.mxu0 %v1173
    %1864 = vmatpush1.bf16.msra.mxu0 %v1172
    %1865 = vmatprep.subr.bf16.mxu0 %v1161
    %1866 = vmatpush1.bf16.msra.mxu0 %v1160
    %1867 = vmatprep.subr.bf16.mxu0 %v1149
    %1868 = vmatpush1.bf16.msra.mxu0 %v1148
    %1869 = vmatprep.subr.bf16.mxu0 %v1137
    %1870 = vmatpush1.bf16.msra.mxu0 %v1136
    %1871 = vmatprep.subr.bf16.mxu0 %v1125
    %1872 = vmatpush1.bf16.msra.mxu0 %v1124
    %1873 = vmatprep.subr.bf16.mxu0 %v1305
    %1874 = vmatpush2.bf16.msra.mxu0 %v1304
    %1875 = vmatprep.subr.bf16.mxu0 %v1293
    %1876 = vmatpush2.bf16.msra.mxu0 %v1292
    %1877 = vmatprep.subr.bf16.mxu0 %v1281
    %1878 = vmatpush2.bf16.msra.mxu0 %v1280
    %1879 = vmatprep.subr.bf16.mxu0 %v1269
    %1880 = vmatpush2.bf16.msra.mxu0 %v1268
    %1881 = vmatprep.subr.bf16.mxu0 %v1257
    %1882 = vmatpush2.bf16.msra.mxu0 %v1256
    %1883 = vmatprep.subr.bf16.mxu0 %v1245
    %1884 = vmatpush2.bf16.msra.mxu0 %v1244
    %1885 = vmatprep.subr.bf16.mxu0 %v1233
    %1886 = vmatpush2.bf16.msra.mxu0 %v1232
    %1887 = vmatprep.subr.bf16.mxu0 %v1221
    %1888 = vmatpush2.bf16.msra.mxu0 %v1220
    %1889 = vmatprep.mubr.bf16.mxu0 %v453
    %1890 = vmatmul.mubr.bf16.gmra.mxu0 %v452
    %v1891 = vpop.f32.mrf.mxu0
    %v1892 = vadd.f32 %v371, %v1891
    %v1893 = vpop.f32.mrf.mxu0
    %v1894 = vadd.f32 %v375, %v1893
    %v1895 = vpop.f32.mrf.mxu0
    %v1896 = vadd.f32 %v371, %v1895
    %v1897 = vpop.f32.mrf.mxu0
    %v1898 = vadd.f32 %v375, %v1897
    %1899 = vmatprep.mubr.bf16.mxu0 %v456
    %1900 = vmatmul.mubr.bf16.gmra.mxu0 %v455
    %v1901 = vpop.f32.mrf.mxu0
    %v1902 = vadd.f32 %v371, %v1901
    %v1903 = vpop.f32.mrf.mxu0
    %v1904 = vadd.f32 %v375, %v1903
    %v1905 = vpop.f32.mrf.mxu0
    %v1906 = vadd.f32 %v371, %v1905
    %v1907 = vpop.f32.mrf.mxu0
    %v1908 = vadd.f32 %v375, %v1907
    %1909 = vmatprep.mubr.bf16.mxu0 %v459
    %1910 = vmatmul.mubr.bf16.gmra.mxu0 %v458
    %v1911 = vpop.f32.mrf.mxu0
    %v1912 = vadd.f32 %v371, %v1911
    %v1913 = vpop.f32.mrf.mxu0
    %v1914 = vadd.f32 %v375, %v1913
    %v1915 = vpop.f32.mrf.mxu0
    %v1916 = vadd.f32 %v371, %v1915
    %v1917 = vpop.f32.mrf.mxu0
    %v1918 = vadd.f32 %v375, %v1917
    %1919 = vmatprep.mubr.bf16.mxu0 %v462
    %1920 = vmatmul.mubr.bf16.gmra.mxu0 %v461
    %v1921 = vpop.f32.mrf.mxu0
    %v1922 = vadd.f32 %v371, %v1921
    %v1923 = vpop.f32.mrf.mxu0
    %v1924 = vadd.f32 %v375, %v1923
    %v1925 = vpop.f32.mrf.mxu0
    %v1926 = vadd.f32 %v371, %v1925
    %v1927 = vpop.f32.mrf.mxu0
    %v1928 = vadd.f32 %v375, %v1927
    %1929 = vdwg.mxu0
    %1930 = vmatprep.subr.bf16.mxu0 0
    %1931 = vmatpush1.bf16.msra.mxu0 0
    %1932 = vmatprep.subr.bf16.mxu0 0
    %1933 = vmatpush1.bf16.msra.mxu0 0
    %1934 = vmatprep.subr.bf16.mxu0 0
    %1935 = vmatpush1.bf16.msra.mxu0 0
    %1936 = vmatprep.subr.bf16.mxu0 0
    %1937 = vmatpush1.bf16.msra.mxu0 0
    %1938 = vmatprep.subr.bf16.mxu0 0
    %1939 = vmatpush1.bf16.msra.mxu0 0
    %1940 = vmatprep.subr.bf16.mxu0 0
    %1941 = vmatpush1.bf16.msra.mxu0 0
    %1942 = vmatprep.subr.bf16.mxu0 %v1329
    %1943 = vmatpush1.bf16.msra.mxu0 %v1328
    %1944 = vmatprep.subr.bf16.mxu0 %v1317
    %1945 = vmatpush1.bf16.msra.mxu0 %v1316
    %1946 = vmatprep.subr.bf16.mxu0 0
    %1947 = vmatpush2.bf16.msra.mxu0 0
    %1948 = vmatprep.subr.bf16.mxu0 0
    %1949 = vmatpush2.bf16.msra.mxu0 0
    %1950 = vmatprep.subr.bf16.mxu0 0
    %1951 = vmatpush2.bf16.msra.mxu0 0
    %1952 = vmatprep.subr.bf16.mxu0 0
    %1953 = vmatpush2.bf16.msra.mxu0 0
    %1954 = vmatprep.subr.bf16.mxu0 0
    %1955 = vmatpush2.bf16.msra.mxu0 0
    %1956 = vmatprep.subr.bf16.mxu0 0
    %1957 = vmatpush2.bf16.msra.mxu0 0
    %1958 = vmatprep.subr.bf16.mxu0 0
    %1959 = vmatpush2.bf16.msra.mxu0 0
    %1960 = vmatprep.subr.bf16.mxu0 0
    %1961 = vmatpush2.bf16.msra.mxu0 0
    %1962 = vmatprep.mubr.bf16.mxu0 0
    %1963 = vmatmul.mubr.bf16.gmra.mxu0 %v1554
    %v1964 = vpop.f32.mrf.mxu0
    %v1965 = vadd.f32 %v1892, %v1964
    %v1966 = vpop.f32.mrf.mxu0
    %v1967 = vadd.f32 %v1894, %v1966
    %v1968 = vpop.f32.mrf.mxu0
    %v1969 = vadd.f32 %v1896, %v1968
    %v1970 = vpop.f32.mrf.mxu0
    %v1971 = vadd.f32 %v1898, %v1970
    %1972 = vmatprep.mubr.bf16.mxu0 0
    %1973 = vmatmul.mubr.bf16.gmra.mxu0 %v1557
    %v1974 = vpop.f32.mrf.mxu0
    %v1975 = vadd.f32 %v1902, %v1974
    %v1976 = vpop.f32.mrf.mxu0
    %v1977 = vadd.f32 %v1904, %v1976
    %v1978 = vpop.f32.mrf.mxu0
    %v1979 = vadd.f32 %v1906, %v1978
    %v1980 = vpop.f32.mrf.mxu0
    %v1981 = vadd.f32 %v1908, %v1980
    %1982 = vmatprep.mubr.bf16.mxu0 0
    %1983 = vmatmul.mubr.bf16.gmra.mxu0 %v1560
    %v1984 = vpop.f32.mrf.mxu0
    %v1985 = vadd.f32 %v1912, %v1984
    %v1986 = vpop.f32.mrf.mxu0
    %v1987 = vadd.f32 %v1914, %v1986
    %v1988 = vpop.f32.mrf.mxu0
    %v1989 = vadd.f32 %v1916, %v1988
    %v1990 = vpop.f32.mrf.mxu0
    %v1991 = vadd.f32 %v1918, %v1990
    %1992 = vmatprep.mubr.bf16.mxu0 0
    %1993 = vmatmul.mubr.bf16.gmra.mxu0 %v1563
    %v1994 = vpop.f32.mrf.mxu0
    %v1995 = vadd.f32 %v1922, %v1994
    %v1996 = vpop.f32.mrf.mxu0
    %v1997 = vadd.f32 %v1924, %v1996
    %v1998 = vpop.f32.mrf.mxu0
    %v1999 = vadd.f32 %v1926, %v1998
    %v2000 = vpop.f32.mrf.mxu0
    %v2001 = vadd.f32 %v1928, %v2000
    %2002 = vdwg.mxu0
    %2003 = vmatprep.subr.bf16.mxu0 %v1211
    %2004 = vmatpush1.bf16.msra.mxu0 %v1210
    %2005 = vmatprep.subr.bf16.mxu0 %v1199
    %2006 = vmatpush1.bf16.msra.mxu0 %v1198
    %2007 = vmatprep.subr.bf16.mxu0 %v1187
    %2008 = vmatpush1.bf16.msra.mxu0 %v1186
    %2009 = vmatprep.subr.bf16.mxu0 %v1175
    %2010 = vmatpush1.bf16.msra.mxu0 %v1174
    %2011 = vmatprep.subr.bf16.mxu0 %v1163
    %2012 = vmatpush1.bf16.msra.mxu0 %v1162
    %2013 = vmatprep.subr.bf16.mxu0 %v1151
    %2014 = vmatpush1.bf16.msra.mxu0 %v1150
    %2015 = vmatprep.subr.bf16.mxu0 %v1139
    %2016 = vmatpush1.bf16.msra.mxu0 %v1138
    %2017 = vmatprep.subr.bf16.mxu0 %v1127
    %2018 = vmatpush1.bf16.msra.mxu0 %v1126
    %2019 = vmatprep.subr.bf16.mxu0 %v1307
    %2020 = vmatpush2.bf16.msra.mxu0 %v1306
    %2021 = vmatprep.subr.bf16.mxu0 %v1295
    %2022 = vmatpush2.bf16.msra.mxu0 %v1294
    %2023 = vmatprep.subr.bf16.mxu0 %v1283
    %2024 = vmatpush2.bf16.msra.mxu0 %v1282
    %2025 = vmatprep.subr.bf16.mxu0 %v1271
    %2026 = vmatpush2.bf16.msra.mxu0 %v1270
    %2027 = vmatprep.subr.bf16.mxu0 %v1259
    %2028 = vmatpush2.bf16.msra.mxu0 %v1258
    %2029 = vmatprep.subr.bf16.mxu0 %v1247
    %2030 = vmatpush2.bf16.msra.mxu0 %v1246
    %2031 = vmatprep.subr.bf16.mxu0 %v1235
    %2032 = vmatpush2.bf16.msra.mxu0 %v1234
    %2033 = vmatprep.subr.bf16.mxu0 %v1223
    %2034 = vmatpush2.bf16.msra.mxu0 %v1222
    %2035 = vmatprep.mubr.bf16.mxu0 %v453
    %2036 = vmatmul.mubr.bf16.gmra.mxu0 %v452
    %v2037 = vpop.f32.mrf.mxu0
    %v2038 = vadd.f32 %v379, %v2037
    %v2039 = vpop.f32.mrf.mxu0
    %v2040 = vadd.f32 %v383, %v2039
    %v2041 = vpop.f32.mrf.mxu0
    %v2042 = vadd.f32 %v379, %v2041
    %v2043 = vpop.f32.mrf.mxu0
    %v2044 = vadd.f32 %v383, %v2043
    %2045 = vmatprep.mubr.bf16.mxu0 %v456
    %2046 = vmatmul.mubr.bf16.gmra.mxu0 %v455
    %v2047 = vpop.f32.mrf.mxu0
    %v2048 = vadd.f32 %v379, %v2047
    %v2049 = vpop.f32.mrf.mxu0
    %v2050 = vadd.f32 %v383, %v2049
    %v2051 = vpop.f32.mrf.mxu0
    %v2052 = vadd.f32 %v379, %v2051
    %v2053 = vpop.f32.mrf.mxu0
    %v2054 = vadd.f32 %v383, %v2053
    %2055 = vmatprep.mubr.bf16.mxu0 %v459
    %2056 = vmatmul.mubr.bf16.gmra.mxu0 %v458
    %v2057 = vpop.f32.mrf.mxu0
    %v2058 = vadd.f32 %v379, %v2057
    %v2059 = vpop.f32.mrf.mxu0
    %v2060 = vadd.f32 %v383, %v2059
    %v2061 = vpop.f32.mrf.mxu0
    %v2062 = vadd.f32 %v379, %v2061
    %v2063 = vpop.f32.mrf.mxu0
    %v2064 = vadd.f32 %v383, %v2063
    %2065 = vmatprep.mubr.bf16.mxu0 %v462
    %2066 = vmatmul.mubr.bf16.gmra.mxu0 %v461
    %v2067 = vpop.f32.mrf.mxu0
    %v2068 = vadd.f32 %v379, %v2067
    %v2069 = vpop.f32.mrf.mxu0
    %v2070 = vadd.f32 %v383, %v2069
    %v2071 = vpop.f32.mrf.mxu0
    %v2072 = vadd.f32 %v379, %v2071
    %v2073 = vpop.f32.mrf.mxu0
    %v2074 = vadd.f32 %v383, %v2073
    %2075 = vdwg.mxu0
    %2076 = vmatprep.subr.bf16.mxu0 0
    %2077 = vmatpush1.bf16.msra.mxu0 0
    %2078 = vmatprep.subr.bf16.mxu0 0
    %2079 = vmatpush1.bf16.msra.mxu0 0
    %2080 = vmatprep.subr.bf16.mxu0 0
    %2081 = vmatpush1.bf16.msra.mxu0 0
    %2082 = vmatprep.subr.bf16.mxu0 0
    %2083 = vmatpush1.bf16.msra.mxu0 0
    %2084 = vmatprep.subr.bf16.mxu0 0
    %2085 = vmatpush1.bf16.msra.mxu0 0
    %2086 = vmatprep.subr.bf16.mxu0 0
    %2087 = vmatpush1.bf16.msra.mxu0 0
    %2088 = vmatprep.subr.bf16.mxu0 %v1331
    %2089 = vmatpush1.bf16.msra.mxu0 %v1330
    %2090 = vmatprep.subr.bf16.mxu0 %v1319
    %2091 = vmatpush1.bf16.msra.mxu0 %v1318
    %2092 = vmatprep.subr.bf16.mxu0 0
    %2093 = vmatpush2.bf16.msra.mxu0 0
    %2094 = vmatprep.subr.bf16.mxu0 0
    %2095 = vmatpush2.bf16.msra.mxu0 0
    %2096 = vmatprep.subr.bf16.mxu0 0
    %2097 = vmatpush2.bf16.msra.mxu0 0
    %2098 = vmatprep.subr.bf16.mxu0 0
    %2099 = vmatpush2.bf16.msra.mxu0 0
    %2100 = vmatprep.subr.bf16.mxu0 0
    %2101 = vmatpush2.bf16.msra.mxu0 0
    %2102 = vmatprep.subr.bf16.mxu0 0
    %2103 = vmatpush2.bf16.msra.mxu0 0
    %2104 = vmatprep.subr.bf16.mxu0 0
    %2105 = vmatpush2.bf16.msra.mxu0 0
    %2106 = vmatprep.subr.bf16.mxu0 0
    %2107 = vmatpush2.bf16.msra.mxu0 0
    %2108 = vmatprep.mubr.bf16.mxu0 0
    %2109 = vmatmul.mubr.bf16.gmra.mxu0 %v1554
    %v2110 = vpop.f32.mrf.mxu0
    %v2111 = vadd.f32 %v2038, %v2110
    %v2112 = vpop.f32.mrf.mxu0
    %v2113 = vadd.f32 %v2040, %v2112
    %v2114 = vpop.f32.mrf.mxu0
    %v2115 = vadd.f32 %v2042, %v2114
    %v2116 = vpop.f32.mrf.mxu0
    %v2117 = vadd.f32 %v2044, %v2116
    %2118 = vmatprep.mubr.bf16.mxu0 0
    %2119 = vmatmul.mubr.bf16.gmra.mxu0 %v1557
    %v2120 = vpop.f32.mrf.mxu0
    %v2121 = vadd.f32 %v2048, %v2120
    %v2122 = vpop.f32.mrf.mxu0
    %v2123 = vadd.f32 %v2050, %v2122
    %v2124 = vpop.f32.mrf.mxu0
    %v2125 = vadd.f32 %v2052, %v2124
    %v2126 = vpop.f32.mrf.mxu0
    %v2127 = vadd.f32 %v2054, %v2126
    %2128 = vmatprep.mubr.bf16.mxu0 0
    %2129 = vmatmul.mubr.bf16.gmra.mxu0 %v1560
    %v2130 = vpop.f32.mrf.mxu0
    %v2131 = vadd.f32 %v2058, %v2130
    %v2132 = vpop.f32.mrf.mxu0
    %v2133 = vadd.f32 %v2060, %v2132
    %v2134 = vpop.f32.mrf.mxu0
    %v2135 = vadd.f32 %v2062, %v2134
    %v2136 = vpop.f32.mrf.mxu0
    %v2137 = vadd.f32 %v2064, %v2136
    %2138 = vmatprep.mubr.bf16.mxu0 0
    %2139 = vmatmul.mubr.bf16.gmra.mxu0 %v1563
    %v2140 = vpop.f32.mrf.mxu0
    %v2141 = vadd.f32 %v2068, %v2140
    %v2142 = vpop.f32.mrf.mxu0
    %v2143 = vadd.f32 %v2070, %v2142
    %v2144 = vpop.f32.mrf.mxu0
    %v2145 = vadd.f32 %v2072, %v2144
    %v2146 = vpop.f32.mrf.mxu0
    %v2147 = vadd.f32 %v2074, %v2146
    %2148 = vdwg.mxu0
    %2149 = vmatprep.subr.bf16.mxu0 %v1213
    %2150 = vmatpush1.bf16.msra.mxu0 %v1212
    %2151 = vmatprep.subr.bf16.mxu0 %v1201
    %2152 = vmatpush1.bf16.msra.mxu0 %v1200
    %2153 = vmatprep.subr.bf16.mxu0 %v1189
    %2154 = vmatpush1.bf16.msra.mxu0 %v1188
    %2155 = vmatprep.subr.bf16.mxu0 %v1177
    %2156 = vmatpush1.bf16.msra.mxu0 %v1176
    %2157 = vmatprep.subr.bf16.mxu0 %v1165
    %2158 = vmatpush1.bf16.msra.mxu0 %v1164
    %2159 = vmatprep.subr.bf16.mxu0 %v1153
    %2160 = vmatpush1.bf16.msra.mxu0 %v1152
    %2161 = vmatprep.subr.bf16.mxu0 %v1141
    %2162 = vmatpush1.bf16.msra.mxu0 %v1140
    %2163 = vmatprep.subr.bf16.mxu0 %v1129
    %2164 = vmatpush1.bf16.msra.mxu0 %v1128
    %2165 = vmatprep.subr.bf16.mxu0 %v1309
    %2166 = vmatpush2.bf16.msra.mxu0 %v1308
    %2167 = vmatprep.subr.bf16.mxu0 %v1297
    %2168 = vmatpush2.bf16.msra.mxu0 %v1296
    %2169 = vmatprep.subr.bf16.mxu0 %v1285
    %2170 = vmatpush2.bf16.msra.mxu0 %v1284
    %2171 = vmatprep.subr.bf16.mxu0 %v1273
    %2172 = vmatpush2.bf16.msra.mxu0 %v1272
    %2173 = vmatprep.subr.bf16.mxu0 %v1261
    %2174 = vmatpush2.bf16.msra.mxu0 %v1260
    %2175 = vmatprep.subr.bf16.mxu0 %v1249
    %2176 = vmatpush2.bf16.msra.mxu0 %v1248
    %2177 = vmatprep.subr.bf16.mxu0 %v1237
    %2178 = vmatpush2.bf16.msra.mxu0 %v1236
    %2179 = vmatprep.subr.bf16.mxu0 %v1225
    %2180 = vmatpush2.bf16.msra.mxu0 %v1224
    %2181 = vmatprep.mubr.bf16.mxu0 %v453
    %2182 = vmatmul.mubr.bf16.gmra.mxu0 %v452
    %v2183 = vpop.f32.mrf.mxu0
    %v2184 = vadd.f32 %v387, %v2183
    %v2185 = vpop.f32.mrf.mxu0
    %v2186 = vadd.f32 %v391, %v2185
    %v2187 = vpop.f32.mrf.mxu0
    %v2188 = vadd.f32 %v387, %v2187
    %v2189 = vpop.f32.mrf.mxu0
    %v2190 = vadd.f32 %v391, %v2189
    %2191 = vmatprep.mubr.bf16.mxu0 %v456
    %2192 = vmatmul.mubr.bf16.gmra.mxu0 %v455
    %v2193 = vpop.f32.mrf.mxu0
    %v2194 = vadd.f32 %v387, %v2193
    %v2195 = vpop.f32.mrf.mxu0
    %v2196 = vadd.f32 %v391, %v2195
    %v2197 = vpop.f32.mrf.mxu0
    %v2198 = vadd.f32 %v387, %v2197
    %v2199 = vpop.f32.mrf.mxu0
    %v2200 = vadd.f32 %v391, %v2199
    %2201 = vmatprep.mubr.bf16.mxu0 %v459
    %2202 = vmatmul.mubr.bf16.gmra.mxu0 %v458
    %v2203 = vpop.f32.mrf.mxu0
    %v2204 = vadd.f32 %v387, %v2203
    %v2205 = vpop.f32.mrf.mxu0
    %v2206 = vadd.f32 %v391, %v2205
    %v2207 = vpop.f32.mrf.mxu0
    %v2208 = vadd.f32 %v387, %v2207
    %v2209 = vpop.f32.mrf.mxu0
    %v2210 = vadd.f32 %v391, %v2209
    %2211 = vmatprep.mubr.bf16.mxu0 %v462
    %2212 = vmatmul.mubr.bf16.gmra.mxu0 %v461
    %v2213 = vpop.f32.mrf.mxu0
    %v2214 = vadd.f32 %v387, %v2213
    %v2215 = vpop.f32.mrf.mxu0
    %v2216 = vadd.f32 %v391, %v2215
    %v2217 = vpop.f32.mrf.mxu0
    %v2218 = vadd.f32 %v387, %v2217
    %v2219 = vpop.f32.mrf.mxu0
    %v2220 = vadd.f32 %v391, %v2219
    %2221 = vdwg.mxu0
    %2222 = vmatprep.subr.bf16.mxu0 0
    %2223 = vmatpush1.bf16.msra.mxu0 0
    %2224 = vmatprep.subr.bf16.mxu0 0
    %2225 = vmatpush1.bf16.msra.mxu0 0
    %2226 = vmatprep.subr.bf16.mxu0 0
    %2227 = vmatpush1.bf16.msra.mxu0 0
    %2228 = vmatprep.subr.bf16.mxu0 0
    %2229 = vmatpush1.bf16.msra.mxu0 0
    %2230 = vmatprep.subr.bf16.mxu0 0
    %2231 = vmatpush1.bf16.msra.mxu0 0
    %2232 = vmatprep.subr.bf16.mxu0 0
    %2233 = vmatpush1.bf16.msra.mxu0 0
    %2234 = vmatprep.subr.bf16.mxu0 %v1333
    %2235 = vmatpush1.bf16.msra.mxu0 %v1332
    %2236 = vmatprep.subr.bf16.mxu0 %v1321
    %2237 = vmatpush1.bf16.msra.mxu0 %v1320
    %2238 = vmatprep.subr.bf16.mxu0 0
    %2239 = vmatpush2.bf16.msra.mxu0 0
    %2240 = vmatprep.subr.bf16.mxu0 0
    %2241 = vmatpush2.bf16.msra.mxu0 0
    %2242 = vmatprep.subr.bf16.mxu0 0
    %2243 = vmatpush2.bf16.msra.mxu0 0
    %2244 = vmatprep.subr.bf16.mxu0 0
    %2245 = vmatpush2.bf16.msra.mxu0 0
    %2246 = vmatprep.subr.bf16.mxu0 0
    %2247 = vmatpush2.bf16.msra.mxu0 0
    %2248 = vmatprep.subr.bf16.mxu0 0
    %2249 = vmatpush2.bf16.msra.mxu0 0
    %2250 = vmatprep.subr.bf16.mxu0 0
    %2251 = vmatpush2.bf16.msra.mxu0 0
    %2252 = vmatprep.subr.bf16.mxu0 0
    %2253 = vmatpush2.bf16.msra.mxu0 0
    %2254 = vmatprep.mubr.bf16.mxu0 0
    %2255 = vmatmul.mubr.bf16.gmra.mxu0 %v1554
    %v2256 = vpop.f32.mrf.mxu0
    %v2257 = vadd.f32 %v2184, %v2256
    %v2258 = vpop.f32.mrf.mxu0
    %v2259 = vadd.f32 %v2186, %v2258
    %v2260 = vpop.f32.mrf.mxu0
    %v2261 = vadd.f32 %v2188, %v2260
    %v2262 = vpop.f32.mrf.mxu0
    %v2263 = vadd.f32 %v2190, %v2262
    %2264 = vmatprep.mubr.bf16.mxu0 0
    %2265 = vmatmul.mubr.bf16.gmra.mxu0 %v1557
    %v2266 = vpop.f32.mrf.mxu0
    %v2267 = vadd.f32 %v2194, %v2266
    %v2268 = vpop.f32.mrf.mxu0
    %v2269 = vadd.f32 %v2196, %v2268
    %v2270 = vpop.f32.mrf.mxu0
    %v2271 = vadd.f32 %v2198, %v2270
    %v2272 = vpop.f32.mrf.mxu0
    %v2273 = vadd.f32 %v2200, %v2272
    %2274 = vmatprep.mubr.bf16.mxu0 0
    %2275 = vmatmul.mubr.bf16.gmra.mxu0 %v1560
    %v2276 = vpop.f32.mrf.mxu0
    %v2277 = vadd.f32 %v2204, %v2276
    %v2278 = vpop.f32.mrf.mxu0
    %v2279 = vadd.f32 %v2206, %v2278
    %v2280 = vpop.f32.mrf.mxu0
    %v2281 = vadd.f32 %v2208, %v2280
    %v2282 = vpop.f32.mrf.mxu0
    %v2283 = vadd.f32 %v2210, %v2282
    %2284 = vmatprep.mubr.bf16.mxu0 0
    %2285 = vmatmul.mubr.bf16.gmra.mxu0 %v1563
    %v2286 = vpop.f32.mrf.mxu0
    %v2287 = vadd.f32 %v2214, %v2286
    %v2288 = vpop.f32.mrf.mxu0
    %v2289 = vadd.f32 %v2216, %v2288
    %v2290 = vpop.f32.mrf.mxu0
    %v2291 = vadd.f32 %v2218, %v2290
    %v2292 = vpop.f32.mrf.mxu0
    %v2293 = vadd.f32 %v2220, %v2292
    %2294 = vdwg.mxu0
    %2295 = vmatprep.subr.bf16.mxu0 %v1215
    %2296 = vmatpush1.bf16.msra.mxu0 %v1214
    %2297 = vmatprep.subr.bf16.mxu0 %v1203
    %2298 = vmatpush1.bf16.msra.mxu0 %v1202
    %2299 = vmatprep.subr.bf16.mxu0 %v1191
    %2300 = vmatpush1.bf16.msra.mxu0 %v1190
    %2301 = vmatprep.subr.bf16.mxu0 %v1179
    %2302 = vmatpush1.bf16.msra.mxu0 %v1178
    %2303 = vmatprep.subr.bf16.mxu0 %v1167
    %2304 = vmatpush1.bf16.msra.mxu0 %v1166
    %2305 = vmatprep.subr.bf16.mxu0 %v1155
    %2306 = vmatpush1.bf16.msra.mxu0 %v1154
    %2307 = vmatprep.subr.bf16.mxu0 %v1143
    %2308 = vmatpush1.bf16.msra.mxu0 %v1142
    %2309 = vmatprep.subr.bf16.mxu0 %v1131
    %2310 = vmatpush1.bf16.msra.mxu0 %v1130
    %2311 = vmatprep.subr.bf16.mxu0 %v1311
    %2312 = vmatpush2.bf16.msra.mxu0 %v1310
    %2313 = vmatprep.subr.bf16.mxu0 %v1299
    %2314 = vmatpush2.bf16.msra.mxu0 %v1298
    %2315 = vmatprep.subr.bf16.mxu0 %v1287
    %2316 = vmatpush2.bf16.msra.mxu0 %v1286
    %2317 = vmatprep.subr.bf16.mxu0 %v1275
    %2318 = vmatpush2.bf16.msra.mxu0 %v1274
    %2319 = vmatprep.subr.bf16.mxu0 %v1263
    %2320 = vmatpush2.bf16.msra.mxu0 %v1262
    %2321 = vmatprep.subr.bf16.mxu0 %v1251
    %2322 = vmatpush2.bf16.msra.mxu0 %v1250
    %2323 = vmatprep.subr.bf16.mxu0 %v1239
    %2324 = vmatpush2.bf16.msra.mxu0 %v1238
    %2325 = vmatprep.subr.bf16.mxu0 %v1227
    %2326 = vmatpush2.bf16.msra.mxu0 %v1226
    %2327 = vmatprep.mubr.bf16.mxu0 %v453
    %2328 = vmatmul.mubr.bf16.gmra.mxu0 %v452
    %v2329 = vpop.f32.mrf.mxu0
    %v2330 = vadd.f32 %v395, %v2329
    %v2331 = vpop.f32.mrf.mxu0
    %v2332 = vadd.f32 %v399, %v2331
    %v2333 = vpop.f32.mrf.mxu0
    %v2334 = vadd.f32 %v395, %v2333
    %v2335 = vpop.f32.mrf.mxu0
    %v2336 = vadd.f32 %v399, %v2335
    %2337 = vmatprep.mubr.bf16.mxu0 %v456
    %2338 = vmatmul.mubr.bf16.gmra.mxu0 %v455
    %v2339 = vpop.f32.mrf.mxu0
    %v2340 = vadd.f32 %v395, %v2339
    %v2341 = vpop.f32.mrf.mxu0
    %v2342 = vadd.f32 %v399, %v2341
    %v2343 = vpop.f32.mrf.mxu0
    %v2344 = vadd.f32 %v395, %v2343
    %v2345 = vpop.f32.mrf.mxu0
    %v2346 = vadd.f32 %v399, %v2345
    %2347 = vmatprep.mubr.bf16.mxu0 %v459
    %2348 = vmatmul.mubr.bf16.gmra.mxu0 %v458
    %v2349 = vpop.f32.mrf.mxu0
    %v2350 = vadd.f32 %v395, %v2349
    %v2351 = vpop.f32.mrf.mxu0
    %v2352 = vadd.f32 %v399, %v2351
    %v2353 = vpop.f32.mrf.mxu0
    %v2354 = vadd.f32 %v395, %v2353
    %v2355 = vpop.f32.mrf.mxu0
    %v2356 = vadd.f32 %v399, %v2355
    %2357 = vmatprep.mubr.bf16.mxu0 %v462
    %2358 = vmatmul.mubr.bf16.gmra.mxu0 %v461
    %v2359 = vpop.f32.mrf.mxu0
    %v2360 = vadd.f32 %v395, %v2359
    %v2361 = vpop.f32.mrf.mxu0
    %v2362 = vadd.f32 %v399, %v2361
    %v2363 = vpop.f32.mrf.mxu0
    %v2364 = vadd.f32 %v395, %v2363
    %v2365 = vpop.f32.mrf.mxu0
    %v2366 = vadd.f32 %v399, %v2365
    %2367 = vdwg.mxu0
    %2368 = vmatprep.subr.bf16.mxu0 0
    %2369 = vmatpush1.bf16.msra.mxu0 0
    %2370 = vmatprep.subr.bf16.mxu0 0
    %2371 = vmatpush1.bf16.msra.mxu0 0
    %2372 = vmatprep.subr.bf16.mxu0 0
    %2373 = vmatpush1.bf16.msra.mxu0 0
    %2374 = vmatprep.subr.bf16.mxu0 0
    %2375 = vmatpush1.bf16.msra.mxu0 0
    %2376 = vmatprep.subr.bf16.mxu0 0
    %2377 = vmatpush1.bf16.msra.mxu0 0
    %2378 = vmatprep.subr.bf16.mxu0 0
    %2379 = vmatpush1.bf16.msra.mxu0 0
    %2380 = vmatprep.subr.bf16.mxu0 %v1335
    %2381 = vmatpush1.bf16.msra.mxu0 %v1334
    %2382 = vmatprep.subr.bf16.mxu0 %v1323
    %2383 = vmatpush1.bf16.msra.mxu0 %v1322
    %2384 = vmatprep.subr.bf16.mxu0 0
    %2385 = vmatpush2.bf16.msra.mxu0 0
    %2386 = vmatprep.subr.bf16.mxu0 0
    %2387 = vmatpush2.bf16.msra.mxu0 0
    %2388 = vmatprep.subr.bf16.mxu0 0
    %2389 = vmatpush2.bf16.msra.mxu0 0
    %2390 = vmatprep.subr.bf16.mxu0 0
    %2391 = vmatpush2.bf16.msra.mxu0 0
    %2392 = vmatprep.subr.bf16.mxu0 0
    %2393 = vmatpush2.bf16.msra.mxu0 0
    %2394 = vmatprep.subr.bf16.mxu0 0
    %2395 = vmatpush2.bf16.msra.mxu0 0
    %2396 = vmatprep.subr.bf16.mxu0 0
    %2397 = vmatpush2.bf16.msra.mxu0 0
    %2398 = vmatprep.subr.bf16.mxu0 0
    %2399 = vmatpush2.bf16.msra.mxu0 0
    %2400 = vmatprep.mubr.bf16.mxu0 0
    %2401 = vmatmul.mubr.bf16.gmra.mxu0 %v1554
    %v2402 = vpop.f32.mrf.mxu0
    %v2403 = vadd.f32 %v2330, %v2402
    %v2404 = vpop.f32.mrf.mxu0
    %v2405 = vadd.f32 %v2332, %v2404
    %v2406 = vpop.f32.mrf.mxu0
    %v2407 = vadd.f32 %v2334, %v2406
    %v2408 = vpop.f32.mrf.mxu0
    %v2409 = vadd.f32 %v2336, %v2408
    %2410 = vmatprep.mubr.bf16.mxu0 0
    %2411 = vmatmul.mubr.bf16.gmra.mxu0 %v1557
    %v2412 = vpop.f32.mrf.mxu0
    %v2413 = vadd.f32 %v2340, %v2412
    %v2414 = vpop.f32.mrf.mxu0
    %v2415 = vadd.f32 %v2342, %v2414
    %v2416 = vpop.f32.mrf.mxu0
    %v2417 = vadd.f32 %v2344, %v2416
    %v2418 = vpop.f32.mrf.mxu0
    %v2419 = vadd.f32 %v2346, %v2418
    %2420 = vmatprep.mubr.bf16.mxu0 0
    %2421 = vmatmul.mubr.bf16.gmra.mxu0 %v1560
    %v2422 = vpop.f32.mrf.mxu0
    %v2423 = vadd.f32 %v2350, %v2422
    %v2424 = vpop.f32.mrf.mxu0
    %v2425 = vadd.f32 %v2352, %v2424
    %v2426 = vpop.f32.mrf.mxu0
    %v2427 = vadd.f32 %v2354, %v2426
    %v2428 = vpop.f32.mrf.mxu0
    %v2429 = vadd.f32 %v2356, %v2428
    %2430 = vmatprep.mubr.bf16.mxu0 0
    %2431 = vmatmul.mubr.bf16.gmra.mxu0 %v1563
    %v2432 = vpop.f32.mrf.mxu0
    %v2433 = vadd.f32 %v2360, %v2432
    %v2434 = vpop.f32.mrf.mxu0
    %v2435 = vadd.f32 %v2362, %v2434
    %v2436 = vpop.f32.mrf.mxu0
    %v2437 = vadd.f32 %v2364, %v2436
    %v2438 = vpop.f32.mrf.mxu0
    %v2439 = vadd.f32 %v2366, %v2438
    %2440 = vdwg.mxu0
    %2441 = vst [vmem:[#allocation2] sm:$0xff] %v1673
    %2442 = vst [vmem:[#allocation2 + $0x8] sm:$0xff] %v1675
    %2443 = vst [vmem:[#allocation2 + $0x10] sm:$0xff] %v1819
    %2444 = vst [vmem:[#allocation2 + $0x18] sm:$0xff] %v1821
    %2445 = vst [vmem:[#allocation2 + $0x20] sm:$0xff] %v1965
    %2446 = vst [vmem:[#allocation2 + $0x28] sm:$0xff] %v1967
    %2447 = vst [vmem:[#allocation2 + $0x30] sm:$0xff] %v2111
    %2448 = vst [vmem:[#allocation2 + $0x38] sm:$0xff] %v2113
    %2449 = vst [vmem:[#allocation2 + $0x40] sm:$0xff] %v2257
    %2450 = vst [vmem:[#allocation2 + $0x48] sm:$0xff] %v2259
    %2451 = vst [vmem:[#allocation2 + $0x50] sm:$0xff] %v2403
    %2452 = vst [vmem:[#allocation2 + $0x58] sm:$0xff] %v2405
    %2453 = vst [vmem:[#allocation2 + $0x60] sm:$0xff] %v1677
    %2454 = vst [vmem:[#allocation2 + $0x68] sm:$0xff] %v1679
    %2455 = vst [vmem:[#allocation2 + $0x70] sm:$0xff] %v1823
    %2456 = vst [vmem:[#allocation2 + $0x78] sm:$0xff] %v1825
    %2457 = vst [vmem:[#allocation2 + $0x80] sm:$0xff] %v1969
    %2458 = vst [vmem:[#allocation2 + $0x88] sm:$0xff] %v1971
    %2459 = vst [vmem:[#allocation2 + $0x90] sm:$0xff] %v2115
    %2460 = vst [vmem:[#allocation2 + $0x98] sm:$0xff] %v2117
    %2461 = vst [vmem:[#allocation2 + $0xa0] sm:$0xff] %v2261
    %2462 = vst [vmem:[#allocation2 + $0xa8] sm:$0xff] %v2263
    %2463 = vst [vmem:[#allocation2 + $0xb0] sm:$0xff] %v2407
    %2464 = vst [vmem:[#allocation2 + $0xb8] sm:$0xff] %v2409
    %2465 = vst [vmem:[#allocation2 + $0xc0] sm:$0xff] %v1683
    %2466 = vst [vmem:[#allocation2 + $0xc8] sm:$0xff] %v1685
    %2467 = vst [vmem:[#allocation2 + $0xd0] sm:$0xff] %v1829
    %2468 = vst [vmem:[#allocation2 + $0xd8] sm:$0xff] %v1831
    %2469 = vst [vmem:[#allocation2 + $0xe0] sm:$0xff] %v1975
    %2470 = vst [vmem:[#allocation2 + $0xe8] sm:$0xff] %v1977
    %2471 = vst [vmem:[#allocation2 + $0xf0] sm:$0xff] %v2121
    %2472 = vst [vmem:[#allocation2 + $0xf8] sm:$0xff] %v2123
    %2473 = vst [vmem:[#allocation2 + $0x100] sm:$0xff] %v2267
    %2474 = vst [vmem:[#allocation2 + $0x108] sm:$0xff] %v2269
    %2475 = vst [vmem:[#allocation2 + $0x110] sm:$0xff] %v2413
    %2476 = vst [vmem:[#allocation2 + $0x118] sm:$0xff] %v2415
    %2477 = vst [vmem:[#allocation2 + $0x120] sm:$0xff] %v1687
    %2478 = vst [vmem:[#allocation2 + $0x128] sm:$0xff] %v1689
    %2479 = vst [vmem:[#allocation2 + $0x130] sm:$0xff] %v1833
    %2480 = vst [vmem:[#allocation2 + $0x138] sm:$0xff] %v1835
    %2481 = vst [vmem:[#allocation2 + $0x140] sm:$0xff] %v1979
    %2482 = vst [vmem:[#allocation2 + $0x148] sm:$0xff] %v1981
    %2483 = vst [vmem:[#allocation2 + $0x150] sm:$0xff] %v2125
    %2484 = vst [vmem:[#allocation2 + $0x158] sm:$0xff] %v2127
    %2485 = vst [vmem:[#allocation2 + $0x160] sm:$0xff] %v2271
    %2486 = vst [vmem:[#allocation2 + $0x168] sm:$0xff] %v2273
    %2487 = vst [vmem:[#allocation2 + $0x170] sm:$0xff] %v2417
    %2488 = vst [vmem:[#allocation2 + $0x178] sm:$0xff] %v2419
    %2489 = vst [vmem:[#allocation2 + $0x180] sm:$0xff] %v1693
    %2490 = vst [vmem:[#allocation2 + $0x188] sm:$0xff] %v1695
    %2491 = vst [vmem:[#allocation2 + $0x190] sm:$0xff] %v1839
    %2492 = vst [vmem:[#allocation2 + $0x198] sm:$0xff] %v1841
    %2493 = vst [vmem:[#allocation2 + $0x1a0] sm:$0xff] %v1985
    %2494 = vst [vmem:[#allocation2 + $0x1a8] sm:$0xff] %v1987
    %2495 = vst [vmem:[#allocation2 + $0x1b0] sm:$0xff] %v2131
    %2496 = vst [vmem:[#allocation2 + $0x1b8] sm:$0xff] %v2133
    %2497 = vst [vmem:[#allocation2 + $0x1c0] sm:$0xff] %v2277
    %2498 = vst [vmem:[#allocation2 + $0x1c8] sm:$0xff] %v2279
    %2499 = vst [vmem:[#allocation2 + $0x1d0] sm:$0xff] %v2423
    %2500 = vst [vmem:[#allocation2 + $0x1d8] sm:$0xff] %v2425
    %2501 = vst [vmem:[#allocation2 + $0x1e0] sm:$0xff] %v1697
    %2502 = vst [vmem:[#allocation2 + $0x1e8] sm:$0xff] %v1699
    %2503 = vst [vmem:[#allocation2 + $0x1f0] sm:$0xff] %v1843
    %2504 = vst [vmem:[#allocation2 + $0x1f8] sm:$0xff] %v1845
    %2505 = vst [vmem:[#allocation2 + $0x200] sm:$0xff] %v1989
    %2506 = vst [vmem:[#allocation2 + $0x208] sm:$0xff] %v1991
    %2507 = vst [vmem:[#allocation2 + $0x210] sm:$0xff] %v2135
    %2508 = vst [vmem:[#allocation2 + $0x218] sm:$0xff] %v2137
    %2509 = vst [vmem:[#allocation2 + $0x220] sm:$0xff] %v2281
    %2510 = vst [vmem:[#allocation2 + $0x228] sm:$0xff] %v2283
    %2511 = vst [vmem:[#allocation2 + $0x230] sm:$0xff] %v2427
    %2512 = vst [vmem:[#allocation2 + $0x238] sm:$0xff] %v2429
    %2513 = vst [vmem:[#allocation2 + $0x240] sm:$0xff] %v1703
    %2514 = vst [vmem:[#allocation2 + $0x248] sm:$0xff] %v1705
    %2515 = vst [vmem:[#allocation2 + $0x250] sm:$0xff] %v1849
    %2516 = vst [vmem:[#allocation2 + $0x258] sm:$0xff] %v1851
    %2517 = vst [vmem:[#allocation2 + $0x260] sm:$0xff] %v1995
    %2518 = vst [vmem:[#allocation2 + $0x268] sm:$0xff] %v1997
    %2519 = vst [vmem:[#allocation2 + $0x270] sm:$0xff] %v2141
    %2520 = vst [vmem:[#allocation2 + $0x278] sm:$0xff] %v2143
    %2521 = vst [vmem:[#allocation2 + $0x280] sm:$0xff] %v2287
    %2522 = vst [vmem:[#allocation2 + $0x288] sm:$0xff] %v2289
    %2523 = vst [vmem:[#allocation2 + $0x290] sm:$0xff] %v2433
    %2524 = vst [vmem:[#allocation2 + $0x298] sm:$0xff] %v2435
    %2525 = vst [vmem:[#allocation2 + $0x2a0] sm:$0xff] %v1707
    %2526 = vst [vmem:[#allocation2 + $0x2a8] sm:$0xff] %v1709
    %2527 = vst [vmem:[#allocation2 + $0x2b0] sm:$0xff] %v1853
    %2528 = vst [vmem:[#allocation2 + $0x2b8] sm:$0xff] %v1855
    %2529 = vst [vmem:[#allocation2 + $0x2c0] sm:$0xff] %v1999
    %2530 = vst [vmem:[#allocation2 + $0x2c8] sm:$0xff] %v2001
    %2531 = vst [vmem:[#allocation2 + $0x2d0] sm:$0xff] %v2145
    %2532 = vst [vmem:[#allocation2 + $0x2d8] sm:$0xff] %v2147
    %2533 = vst [vmem:[#allocation2 + $0x2e0] sm:$0xff] %v2291
    %2534 = vst [vmem:[#allocation2 + $0x2e8] sm:$0xff] %v2293
    %2535 = vst [vmem:[#allocation2 + $0x2f0] sm:$0xff] %v2437
    %2536 = vst [vmem:[#allocation2 + $0x2f8] sm:$0xff] %v2439
    %v2537 = vld [vmem:[#allocation9] sm:$0xff]
    %v2538 = vld [vmem:[#allocation9 + $0x8] sm:$0xff]
    %v2539 = vld [vmem:[#allocation9 + $0x10] sm:$0xff]
    %v2540 = vld [vmem:[#allocation9 + $0x18] sm:$0xff]
    %v2541 = vld [vmem:[#allocation9 + $0x20] sm:$0xff]
    %v2542 = vld [vmem:[#allocation9 + $0x28] sm:$0xff]
    %v2543 = vld [vmem:[#allocation9 + $0x30] sm:$0xff]
    %v2544 = vld [vmem:[#allocation9 + $0x38] sm:$0xff]
    %v2545 = vld [vmem:[#allocation9 + $0x40] sm:$0xff]
    %v2546 = vld [vmem:[#allocation9 + $0x48] sm:$0xff]
    %v2547 = vld [vmem:[#allocation9 + $0x50] sm:$0xff]
    %v2548 = vld [vmem:[#allocation9 + $0x58] sm:$0xff]
    %v2549 = vld [vmem:[#allocation9 + $0x60] sm:$0xff]
    %v2550 = vld [vmem:[#allocation9 + $0x68] sm:$0xff]
    %v2551 = vld [vmem:[#allocation9 + $0x70] sm:$0xff]
    %v2552 = vld [vmem:[#allocation9 + $0x78] sm:$0xff]
    %v2553 = vld [vmem:[#allocation9 + $0x80] sm:$0xff]
    %v2554 = vld [vmem:[#allocation9 + $0x88] sm:$0xff]
    %v2555 = vld [vmem:[#allocation9 + $0x90] sm:$0xff]
    %v2556 = vld [vmem:[#allocation9 + $0x98] sm:$0xff]
    %v2557 = vld [vmem:[#allocation9 + $0xa0] sm:$0xff]
    %v2558 = vld [vmem:[#allocation9 + $0xa8] sm:$0xff]
    %v2559 = vld [vmem:[#allocation9 + $0xb0] sm:$0xff]
    %v2560 = vld [vmem:[#allocation9 + $0xb8] sm:$0xff]
    %v2561 = vld [vmem:[#allocation9 + $0xc0] sm:$0xff]
    %v2562 = vld [vmem:[#allocation9 + $0xc8] sm:$0xff]
    %v2563 = vld [vmem:[#allocation9 + $0xd0] sm:$0xff]
    %v2564 = vld [vmem:[#allocation9 + $0xd8] sm:$0xff]
    %v2565 = vld [vmem:[#allocation9 + $0xe0] sm:$0xff]
    %v2566 = vld [vmem:[#allocation9 + $0xe8] sm:$0xff]
    %v2567 = vld [vmem:[#allocation9 + $0xf0] sm:$0xff]
    %v2568 = vld [vmem:[#allocation9 + $0xf8] sm:$0xff]
    %v2569 = vld [vmem:[#allocation9 + $0x100] sm:$0xff]
    %v2570 = vld [vmem:[#allocation9 + $0x108] sm:$0xff]
    %v2571 = vld [vmem:[#allocation9 + $0x110] sm:$0xff]
    %v2572 = vld [vmem:[#allocation9 + $0x118] sm:$0xff]
    %v2573 = vld [vmem:[#allocation9 + $0x120] sm:$0xff]
    %v2574 = vld [vmem:[#allocation9 + $0x128] sm:$0xff]
    %v2575 = vld [vmem:[#allocation9 + $0x130] sm:$0xff]
    %v2576 = vld [vmem:[#allocation9 + $0x138] sm:$0xff]
    %v2577 = vld [vmem:[#allocation9 + $0x140] sm:$0xff]
    %v2578 = vld [vmem:[#allocation9 + $0x148] sm:$0xff]
    %v2579 = vld [vmem:[#allocation9 + $0x150] sm:$0xff]
    %v2580 = vld [vmem:[#allocation9 + $0x158] sm:$0xff]
    %v2581 = vld [vmem:[#allocation9 + $0x160] sm:$0xff]
    %v2582 = vld [vmem:[#allocation9 + $0x168] sm:$0xff]
    %v2583 = vld [vmem:[#allocation9 + $0x170] sm:$0xff]
    %v2584 = vld [vmem:[#allocation9 + $0x178] sm:$0xff]
    %v2585 = vld [vmem:[#allocation9 + $0x180] sm:$0xff]
    %v2586 = vld [vmem:[#allocation9 + $0x188] sm:$0xff]
    %v2587 = vld [vmem:[#allocation9 + $0x190] sm:$0xff]
    %v2588 = vld [vmem:[#allocation9 + $0x198] sm:$0xff]
    %v2589 = vld [vmem:[#allocation9 + $0x1a0] sm:$0xff]
    %v2590 = vld [vmem:[#allocation9 + $0x1a8] sm:$0xff]
    %v2591 = vld [vmem:[#allocation9 + $0x1b0] sm:$0xff]
    %v2592 = vld [vmem:[#allocation9 + $0x1b8] sm:$0xff]
    %v2593 = vld [vmem:[#allocation9 + $0x1c0] sm:$0xff]
    %v2594 = vld [vmem:[#allocation9 + $0x1c8] sm:$0xff]
    %v2595 = vld [vmem:[#allocation9 + $0x1d0] sm:$0xff]
    %v2596 = vld [vmem:[#allocation9 + $0x1d8] sm:$0xff]
    %v2597 = vld [vmem:[#allocation9 + $0x1e0] sm:$0xff]
    %v2598 = vld [vmem:[#allocation9 + $0x1e8] sm:$0xff]
    %v2599 = vld [vmem:[#allocation9 + $0x1f0] sm:$0xff]
    %v2600 = vld [vmem:[#allocation9 + $0x1f8] sm:$0xff]
    %v2601 = vld [vmem:[#allocation9 + $0x200] sm:$0xff]
    %v2602 = vld [vmem:[#allocation9 + $0x208] sm:$0xff]
    %v2603 = vld [vmem:[#allocation9 + $0x210] sm:$0xff]
    %v2604 = vld [vmem:[#allocation9 + $0x218] sm:$0xff]
    %v2605 = vld [vmem:[#allocation9 + $0x220] sm:$0xff]
    %v2606 = vld [vmem:[#allocation9 + $0x228] sm:$0xff]
    %v2607 = vld [vmem:[#allocation9 + $0x230] sm:$0xff]
    %v2608 = vld [vmem:[#allocation9 + $0x238] sm:$0xff]
    %v2609 = vld [vmem:[#allocation9 + $0x240] sm:$0xff]
    %v2610 = vld [vmem:[#allocation9 + $0x248] sm:$0xff]
    %v2611 = vld [vmem:[#allocation9 + $0x250] sm:$0xff]
    %v2612 = vld [vmem:[#allocation9 + $0x258] sm:$0xff]
    %v2613 = vld [vmem:[#allocation9 + $0x260] sm:$0xff]
    %v2614 = vld [vmem:[#allocation9 + $0x268] sm:$0xff]
    %v2615 = vld [vmem:[#allocation9 + $0x270] sm:$0xff]
    %v2616 = vld [vmem:[#allocation9 + $0x278] sm:$0xff]
    %v2617 = vld [vmem:[#allocation9 + $0x280] sm:$0xff]
    %v2618 = vld [vmem:[#allocation9 + $0x288] sm:$0xff]
    %v2619 = vld [vmem:[#allocation9 + $0x290] sm:$0xff]
    %v2620 = vld [vmem:[#allocation9 + $0x298] sm:$0xff]
    %v2621 = vld [vmem:[#allocation9 + $0x2a0] sm:$0xff]
    %v2622 = vld [vmem:[#allocation9 + $0x2a8] sm:$0xff]
    %v2623 = vld [vmem:[#allocation9 + $0x2b0] sm:$0xff]
    %v2624 = vld [vmem:[#allocation9 + $0x2b8] sm:$0xff]
    %v2625 = vld [vmem:[#allocation9 + $0x2c0] sm:$0xff]
    %v2626 = vld [vmem:[#allocation9 + $0x2c8] sm:$0xff]
    %v2627 = vld [vmem:[#allocation9 + $0x2d0] sm:$0xff]
    %v2628 = vld [vmem:[#allocation9 + $0x2d8] sm:$0xff]
    %v2629 = vld [vmem:[#allocation9 + $0x2e0] sm:$0xff]
    %v2630 = vld [vmem:[#allocation9 + $0x2e8] sm:$0xff]
    %v2631 = vld [vmem:[#allocation9 + $0x2f0] sm:$0xff]
    %v2632 = vld [vmem:[#allocation9 + $0x2f8] sm:$0xff]
    %v2633 = vld [vmem:[#allocation9 + $0x300] sm:$0xff]
    %v2634 = vld [vmem:[#allocation9 + $0x308] sm:$0xff]
    %v2635 = vld [vmem:[#allocation9 + $0x310] sm:$0xff]
    %v2636 = vld [vmem:[#allocation9 + $0x318] sm:$0xff]
    %v2637 = vld [vmem:[#allocation9 + $0x320] sm:$0xff]
    %v2638 = vld [vmem:[#allocation9 + $0x328] sm:$0xff]
    %v2639 = vld [vmem:[#allocation9 + $0x330] sm:$0xff]
    %v2640 = vld [vmem:[#allocation9 + $0x338] sm:$0xff]
    %v2641 = vld [vmem:[#allocation9 + $0x340] sm:$0xff]
    %v2642 = vld [vmem:[#allocation9 + $0x348] sm:$0xff]
    %v2643 = vld [vmem:[#allocation9 + $0x350] sm:$0xff]
    %v2644 = vld [vmem:[#allocation9 + $0x358] sm:$0xff]
    %v2645 = vld [vmem:[#allocation9 + $0x360] sm:$0xff]
    %v2646 = vld [vmem:[#allocation9 + $0x368] sm:$0xff]
    %v2647 = vld [vmem:[#allocation9 + $0x370] sm:$0xff]
    %v2648 = vld [vmem:[#allocation9 + $0x378] sm:$0xff]
    %v2649 = vld [vmem:[#allocation9 + $0x380] sm:$0xff]
    %v2650 = vld [vmem:[#allocation9 + $0x388] sm:$0xff]
    %v2651 = vld [vmem:[#allocation9 + $0x390] sm:$0xff]
    %v2652 = vld [vmem:[#allocation9 + $0x398] sm:$0xff]
    %v2653 = vld [vmem:[#allocation9 + $0x3a0] sm:$0xff]
    %v2654 = vld [vmem:[#allocation9 + $0x3a8] sm:$0xff]
    %v2655 = vld [vmem:[#allocation9 + $0x3b0] sm:$0xff]
    %v2656 = vld [vmem:[#allocation9 + $0x3b8] sm:$0xff]
    %v2657 = vld [vmem:[#allocation9 + $0x3c0] sm:$0xff]
    %v2658 = vld [vmem:[#allocation9 + $0x3c8] sm:$0xff]
    %v2659 = vld [vmem:[#allocation9 + $0x3d0] sm:$0xff]
    %v2660 = vld [vmem:[#allocation9 + $0x3d8] sm:$0xff]
    %v2661 = vld [vmem:[#allocation9 + $0x3e0] sm:$0xff]
    %v2662 = vld [vmem:[#allocation9 + $0x3e8] sm:$0xff]
    %v2663 = vld [vmem:[#allocation9 + $0x3f0] sm:$0xff]
    %v2664 = vld [vmem:[#allocation9 + $0x3f8] sm:$0xff]
    %v2665 = vld [vmem:[#allocation9 + $0x400] sm:$0xff]
    %v2666 = vld [vmem:[#allocation9 + $0x408] sm:$0xff]
    %v2667 = vld [vmem:[#allocation9 + $0x410] sm:$0xff]
    %v2668 = vld [vmem:[#allocation9 + $0x418] sm:$0xff]
    %v2669 = vld [vmem:[#allocation9 + $0x420] sm:$0xff]
    %v2670 = vld [vmem:[#allocation9 + $0x428] sm:$0xff]
    %v2671 = vld [vmem:[#allocation9 + $0x430] sm:$0xff]
    %v2672 = vld [vmem:[#allocation9 + $0x438] sm:$0xff]
    %v2673 = vld [vmem:[#allocation9 + $0x440] sm:$0xff]
    %v2674 = vld [vmem:[#allocation9 + $0x448] sm:$0xff]
    %v2675 = vld [vmem:[#allocation9 + $0x450] sm:$0xff]
    %v2676 = vld [vmem:[#allocation9 + $0x458] sm:$0xff]
    %v2677 = vld [vmem:[#allocation9 + $0x460] sm:$0xff]
    %v2678 = vld [vmem:[#allocation9 + $0x468] sm:$0xff]
    %v2679 = vld [vmem:[#allocation9 + $0x470] sm:$0xff]
    %v2680 = vld [vmem:[#allocation9 + $0x478] sm:$0xff]
    %v2681 = vld [vmem:[#allocation9 + $0x480] sm:$0xff]
    %v2682 = vld [vmem:[#allocation9 + $0x488] sm:$0xff]
    %v2683 = vld [vmem:[#allocation9 + $0x490] sm:$0xff]
    %v2684 = vld [vmem:[#allocation9 + $0x498] sm:$0xff]
    %v2685 = vld [vmem:[#allocation9 + $0x4a0] sm:$0xff]
    %v2686 = vld [vmem:[#allocation9 + $0x4a8] sm:$0xff]
    %v2687 = vld [vmem:[#allocation9 + $0x4b0] sm:$0xff]
    %v2688 = vld [vmem:[#allocation9 + $0x4b8] sm:$0xff]
    %v2689 = vld [vmem:[#allocation9 + $0x4c0] sm:$0xff]
    %v2690 = vld [vmem:[#allocation9 + $0x4c8] sm:$0xff]
    %v2691 = vld [vmem:[#allocation9 + $0x4d0] sm:$0xff]
    %v2692 = vld [vmem:[#allocation9 + $0x4d8] sm:$0xff]
    %v2693 = vld [vmem:[#allocation9 + $0x4e0] sm:$0xff]
    %v2694 = vld [vmem:[#allocation9 + $0x4e8] sm:$0xff]
    %v2695 = vld [vmem:[#allocation9 + $0x4f0] sm:$0xff]
    %v2696 = vld [vmem:[#allocation9 + $0x4f8] sm:$0xff]
    %v2697 = vld [vmem:[#allocation9 + $0x500] sm:$0xff]
    %v2698 = vld [vmem:[#allocation9 + $0x508] sm:$0xff]
    %v2699 = vld [vmem:[#allocation9 + $0x510] sm:$0xff]
    %v2700 = vld [vmem:[#allocation9 + $0x518] sm:$0xff]
    %v2701 = vld [vmem:[#allocation9 + $0x520] sm:$0xff]
    %v2702 = vld [vmem:[#allocation9 + $0x528] sm:$0xff]
    %v2703 = vld [vmem:[#allocation9 + $0x530] sm:$0xff]
    %v2704 = vld [vmem:[#allocation9 + $0x538] sm:$0xff]
    %v2705 = vld [vmem:[#allocation9 + $0x540] sm:$0xff]
    %v2706 = vld [vmem:[#allocation9 + $0x548] sm:$0xff]
    %v2707 = vld [vmem:[#allocation9 + $0x550] sm:$0xff]
    %v2708 = vld [vmem:[#allocation9 + $0x558] sm:$0xff]
    %v2709 = vld [vmem:[#allocation9 + $0x560] sm:$0xff]
    %v2710 = vld [vmem:[#allocation9 + $0x568] sm:$0xff]
    %v2711 = vld [vmem:[#allocation9 + $0x570] sm:$0xff]
    %v2712 = vld [vmem:[#allocation9 + $0x578] sm:$0xff]
    %v2713 = vld [vmem:[#allocation9 + $0x580] sm:$0xff]
    %v2714 = vld [vmem:[#allocation9 + $0x588] sm:$0xff]
    %v2715 = vld [vmem:[#allocation9 + $0x590] sm:$0xff]
    %v2716 = vld [vmem:[#allocation9 + $0x598] sm:$0xff]
    %v2717 = vld [vmem:[#allocation9 + $0x5a0] sm:$0xff]
    %v2718 = vld [vmem:[#allocation9 + $0x5a8] sm:$0xff]
    %v2719 = vld [vmem:[#allocation9 + $0x5b0] sm:$0xff]
    %v2720 = vld [vmem:[#allocation9 + $0x5b8] sm:$0xff]
    %v2721 = vld [vmem:[#allocation9 + $0x5c0] sm:$0xff]
    %v2722 = vld [vmem:[#allocation9 + $0x5c8] sm:$0xff]
    %v2723 = vld [vmem:[#allocation9 + $0x5d0] sm:$0xff]
    %v2724 = vld [vmem:[#allocation9 + $0x5d8] sm:$0xff]
    %v2725 = vld [vmem:[#allocation9 + $0x5e0] sm:$0xff]
    %v2726 = vld [vmem:[#allocation9 + $0x5e8] sm:$0xff]
    %v2727 = vld [vmem:[#allocation9 + $0x5f0] sm:$0xff]
    %v2728 = vld [vmem:[#allocation9 + $0x5f8] sm:$0xff]
    %v2729 = vld [vmem:[#allocation9 + $0x600] sm:$0xff]
    %v2730 = vld [vmem:[#allocation9 + $0x608] sm:$0xff]
    %v2731 = vld [vmem:[#allocation9 + $0x610] sm:$0xff]
    %v2732 = vld [vmem:[#allocation9 + $0x618] sm:$0xff]
    %v2733 = vld [vmem:[#allocation9 + $0x620] sm:$0xff]
    %v2734 = vld [vmem:[#allocation9 + $0x628] sm:$0xff]
    %v2735 = vld [vmem:[#allocation9 + $0x630] sm:$0xff]
    %v2736 = vld [vmem:[#allocation9 + $0x638] sm:$0xff]
    %v2737 = vld [vmem:[#allocation9 + $0x640] sm:$0xff]
    %v2738 = vld [vmem:[#allocation9 + $0x648] sm:$0xff]
    %v2739 = vld [vmem:[#allocation9 + $0x650] sm:$0xff]
    %v2740 = vld [vmem:[#allocation9 + $0x658] sm:$0xff]
    %v2741 = vld [vmem:[#allocation9 + $0x660] sm:$0xff]
    %v2742 = vld [vmem:[#allocation9 + $0x668] sm:$0xff]
    %v2743 = vld [vmem:[#allocation9 + $0x670] sm:$0xff]
    %v2744 = vld [vmem:[#allocation9 + $0x678] sm:$0xff]
    %v2745 = vld [vmem:[#allocation9 + $0x680] sm:$0xff]
    %v2746 = vld [vmem:[#allocation9 + $0x688] sm:$0xff]
    %v2747 = vld [vmem:[#allocation9 + $0x690] sm:$0xff]
    %v2748 = vld [vmem:[#allocation9 + $0x698] sm:$0xff]
    %v2749 = vld [vmem:[#allocation9 + $0x6a0] sm:$0xff]
    %v2750 = vld [vmem:[#allocation9 + $0x6a8] sm:$0xff]
    %v2751 = vld [vmem:[#allocation9 + $0x6b0] sm:$0xff]
    %v2752 = vld [vmem:[#allocation9 + $0x6b8] sm:$0xff]
    %v2753 = vld [vmem:[#allocation9 + $0x6c0] sm:$0xff]
    %v2754 = vld [vmem:[#allocation9 + $0x6c8] sm:$0xff]
    %v2755 = vld [vmem:[#allocation9 + $0x6d0] sm:$0xff]
    %v2756 = vld [vmem:[#allocation9 + $0x6d8] sm:$0xff]
    %v2757 = vld [vmem:[#allocation9 + $0x6e0] sm:$0xff]
    %v2758 = vld [vmem:[#allocation9 + $0x6e8] sm:$0xff]
    %v2759 = vld [vmem:[#allocation9 + $0x6f0] sm:$0xff]
    %v2760 = vld [vmem:[#allocation9 + $0x6f8] sm:$0xff]
    %v2761 = vld [vmem:[#allocation9 + $0x700] sm:$0xff]
    %v2762 = vld [vmem:[#allocation9 + $0x708] sm:$0xff]
    %v2763 = vld [vmem:[#allocation9 + $0x710] sm:$0xff]
    %v2764 = vld [vmem:[#allocation9 + $0x718] sm:$0xff]
    %v2765 = vld [vmem:[#allocation9 + $0x720] sm:$0xff]
    %v2766 = vld [vmem:[#allocation9 + $0x728] sm:$0xff]
    %v2767 = vld [vmem:[#allocation9 + $0x730] sm:$0xff]
    %v2768 = vld [vmem:[#allocation9 + $0x738] sm:$0xff]
    %v2769 = vld [vmem:[#allocation9 + $0x740] sm:$0xff]
    %v2770 = vld [vmem:[#allocation9 + $0x748] sm:$0xff]
    %v2771 = vld [vmem:[#allocation9 + $0x750] sm:$0xff]
    %v2772 = vld [vmem:[#allocation9 + $0x758] sm:$0xff]
    %v2773 = vld [vmem:[#allocation9 + $0x760] sm:$0xff]
    %v2774 = vld [vmem:[#allocation9 + $0x768] sm:$0xff]
    %v2775 = vld [vmem:[#allocation9 + $0x770] sm:$0xff]
    %v2776 = vld [vmem:[#allocation9 + $0x778] sm:$0xff]
    %v2777 = vld [vmem:[#allocation9 + $0x780] sm:$0xff]
    %v2778 = vld [vmem:[#allocation9 + $0x788] sm:$0xff]
    %v2779 = vld [vmem:[#allocation9 + $0x790] sm:$0xff]
    %v2780 = vld [vmem:[#allocation9 + $0x798] sm:$0xff]
    %v2781 = vld [vmem:[#allocation9 + $0x7a0] sm:$0xff]
    %v2782 = vld [vmem:[#allocation9 + $0x7a8] sm:$0xff]
    %v2783 = vld [vmem:[#allocation9 + $0x7b0] sm:$0xff]
    %v2784 = vld [vmem:[#allocation9 + $0x7b8] sm:$0xff]
    %v2785 = vld [vmem:[#allocation9 + $0x7c0] sm:$0xff]
    %v2786 = vld [vmem:[#allocation9 + $0x7c8] sm:$0xff]
    %v2787 = vld [vmem:[#allocation9 + $0x7d0] sm:$0xff]
    %v2788 = vld [vmem:[#allocation9 + $0x7d8] sm:$0xff]
    %v2789 = vld [vmem:[#allocation9 + $0x7e0] sm:$0xff]
    %v2790 = vld [vmem:[#allocation9 + $0x7e8] sm:$0xff]
    %v2791 = vld [vmem:[#allocation9 + $0x7f0] sm:$0xff]
    %v2792 = vld [vmem:[#allocation9 + $0x7f8] sm:$0xff]
    %v2793 = vld [vmem:[#allocation9 + $0x800] sm:$0xff]
    %v2794 = vld [vmem:[#allocation9 + $0x808] sm:$0xff]
    %v2795 = vld [vmem:[#allocation9 + $0x810] sm:$0xff]
    %v2796 = vld [vmem:[#allocation9 + $0x818] sm:$0xff]
    %v2797 = vld [vmem:[#allocation9 + $0x820] sm:$0xff]
    %v2798 = vld [vmem:[#allocation9 + $0x828] sm:$0xff]
    %v2799 = vld [vmem:[#allocation9 + $0x830] sm:$0xff]
    %v2800 = vld [vmem:[#allocation9 + $0x838] sm:$0xff]
    %v2801 = vld [vmem:[#allocation9 + $0x840] sm:$0xff]
    %v2802 = vld [vmem:[#allocation9 + $0x848] sm:$0xff]
    %v2803 = vld [vmem:[#allocation9 + $0x850] sm:$0xff]
    %v2804 = vld [vmem:[#allocation9 + $0x858] sm:$0xff]
    %v2805 = vld [vmem:[#allocation9 + $0x860] sm:$0xff]
    %v2806 = vld [vmem:[#allocation9 + $0x868] sm:$0xff]
    %v2807 = vld [vmem:[#allocation9 + $0x870] sm:$0xff]
    %v2808 = vld [vmem:[#allocation9 + $0x878] sm:$0xff]
    %v2809 = vld [vmem:[#allocation9 + $0x880] sm:$0xff]
    %v2810 = vld [vmem:[#allocation9 + $0x888] sm:$0xff]
    %v2811 = vld [vmem:[#allocation9 + $0x890] sm:$0xff]
    %v2812 = vld [vmem:[#allocation9 + $0x898] sm:$0xff]
    %v2813 = vld [vmem:[#allocation9 + $0x8a0] sm:$0xff]
    %v2814 = vld [vmem:[#allocation9 + $0x8a8] sm:$0xff]
    %v2815 = vld [vmem:[#allocation9 + $0x8b0] sm:$0xff]
    %v2816 = vld [vmem:[#allocation9 + $0x8b8] sm:$0xff]
    %v2817 = vld [vmem:[#allocation9 + $0x8c0] sm:$0xff]
    %v2818 = vld [vmem:[#allocation9 + $0x8c8] sm:$0xff]
    %v2819 = vld [vmem:[#allocation9 + $0x8d0] sm:$0xff]
    %v2820 = vld [vmem:[#allocation9 + $0x8d8] sm:$0xff]
    %v2821 = vld [vmem:[#allocation9 + $0x8e0] sm:$0xff]
    %v2822 = vld [vmem:[#allocation9 + $0x8e8] sm:$0xff]
    %v2823 = vld [vmem:[#allocation9 + $0x8f0] sm:$0xff]
    %v2824 = vld [vmem:[#allocation9 + $0x8f8] sm:$0xff]
    %v2825 = vld [vmem:[#allocation9 + $0x900] sm:$0xff]
    %v2826 = vld [vmem:[#allocation9 + $0x908] sm:$0xff]
    %v2827 = vld [vmem:[#allocation9 + $0x910] sm:$0xff]
    %v2828 = vld [vmem:[#allocation9 + $0x918] sm:$0xff]
    %v2829 = vld [vmem:[#allocation9 + $0x920] sm:$0xff]
    %v2830 = vld [vmem:[#allocation9 + $0x928] sm:$0xff]
    %v2831 = vld [vmem:[#allocation9 + $0x930] sm:$0xff]
    %v2832 = vld [vmem:[#allocation9 + $0x938] sm:$0xff]
    %v2833 = vld [vmem:[#allocation9 + $0x940] sm:$0xff]
    %v2834 = vld [vmem:[#allocation9 + $0x948] sm:$0xff]
    %v2835 = vld [vmem:[#allocation9 + $0x950] sm:$0xff]
    %v2836 = vld [vmem:[#allocation9 + $0x958] sm:$0xff]
    %v2837 = vld [vmem:[#allocation9 + $0x960] sm:$0xff]
    %v2838 = vld [vmem:[#allocation9 + $0x968] sm:$0xff]
    %v2839 = vld [vmem:[#allocation9 + $0x970] sm:$0xff]
    %v2840 = vld [vmem:[#allocation9 + $0x978] sm:$0xff]
    %v2841 = vld [vmem:[#allocation9 + $0x980] sm:$0xff]
    %v2842 = vld [vmem:[#allocation9 + $0x988] sm:$0xff]
    %v2843 = vld [vmem:[#allocation9 + $0x990] sm:$0xff]
    %v2844 = vld [vmem:[#allocation9 + $0x998] sm:$0xff]
    %v2845 = vld [vmem:[#allocation9 + $0x9a0] sm:$0xff]
    %v2846 = vld [vmem:[#allocation9 + $0x9a8] sm:$0xff]
    %v2847 = vld [vmem:[#allocation9 + $0x9b0] sm:$0xff]
    %v2848 = vld [vmem:[#allocation9 + $0x9b8] sm:$0xff]
    %v2849 = vld [vmem:[#allocation9 + $0x9c0] sm:$0xff]
    %v2850 = vld [vmem:[#allocation9 + $0x9c8] sm:$0xff]
    %v2851 = vld [vmem:[#allocation9 + $0x9d0] sm:$0xff]
    %v2852 = vld [vmem:[#allocation9 + $0x9d8] sm:$0xff]
    %v2853 = vld [vmem:[#allocation9 + $0x9e0] sm:$0xff]
    %v2854 = vld [vmem:[#allocation9 + $0x9e8] sm:$0xff]
    %v2855 = vld [vmem:[#allocation9 + $0x9f0] sm:$0xff]
    %v2856 = vld [vmem:[#allocation9 + $0x9f8] sm:$0xff]
    %v2857 = vld [vmem:[#allocation9 + $0xa00] sm:$0xff]
    %v2858 = vld [vmem:[#allocation9 + $0xa08] sm:$0xff]
    %v2859 = vld [vmem:[#allocation9 + $0xa10] sm:$0xff]
    %v2860 = vld [vmem:[#allocation9 + $0xa18] sm:$0xff]
    %v2861 = vld [vmem:[#allocation9 + $0xa20] sm:$0xff]
    %v2862 = vld [vmem:[#allocation9 + $0xa28] sm:$0xff]
    %v2863 = vld [vmem:[#allocation9 + $0xa30] sm:$0xff]
    %v2864 = vld [vmem:[#allocation9 + $0xa38] sm:$0xff]
    %v2865 = vld [vmem:[#allocation9 + $0xa40] sm:$0xff]
    %v2866 = vld [vmem:[#allocation9 + $0xa48] sm:$0xff]
    %v2867 = vld [vmem:[#allocation9 + $0xa50] sm:$0xff]
    %v2868 = vld [vmem:[#allocation9 + $0xa58] sm:$0xff]
    %v2869 = vld [vmem:[#allocation9 + $0xa60] sm:$0xff]
    %v2870 = vld [vmem:[#allocation9 + $0xa68] sm:$0xff]
    %v2871 = vld [vmem:[#allocation9 + $0xa70] sm:$0xff]
    %v2872 = vld [vmem:[#allocation9 + $0xa78] sm:$0xff]
    %v2873 = vld [vmem:[#allocation9 + $0xa80] sm:$0xff]
    %v2874 = vld [vmem:[#allocation9 + $0xa88] sm:$0xff]
    %v2875 = vld [vmem:[#allocation9 + $0xa90] sm:$0xff]
    %v2876 = vld [vmem:[#allocation9 + $0xa98] sm:$0xff]
    %v2877 = vld [vmem:[#allocation9 + $0xaa0] sm:$0xff]
    %v2878 = vld [vmem:[#allocation9 + $0xaa8] sm:$0xff]
    %v2879 = vld [vmem:[#allocation9 + $0xab0] sm:$0xff]
    %v2880 = vld [vmem:[#allocation9 + $0xab8] sm:$0xff]
    %v2881 = vld [vmem:[#allocation9 + $0xac0] sm:$0xff]
    %v2882 = vld [vmem:[#allocation9 + $0xac8] sm:$0xff]
    %v2883 = vld [vmem:[#allocation9 + $0xad0] sm:$0xff]
    %v2884 = vld [vmem:[#allocation9 + $0xad8] sm:$0xff]
    %v2885 = vld [vmem:[#allocation9 + $0xae0] sm:$0xff]
    %v2886 = vld [vmem:[#allocation9 + $0xae8] sm:$0xff]
    %v2887 = vld [vmem:[#allocation9 + $0xaf0] sm:$0xff]
    %v2888 = vld [vmem:[#allocation9 + $0xaf8] sm:$0xff]
    %v2889 = vld [vmem:[#allocation9 + $0xb00] sm:$0xff]
    %v2890 = vld [vmem:[#allocation9 + $0xb08] sm:$0xff]
    %v2891 = vld [vmem:[#allocation9 + $0xb10] sm:$0xff]
    %v2892 = vld [vmem:[#allocation9 + $0xb18] sm:$0xff]
    %v2893 = vld [vmem:[#allocation9 + $0xb20] sm:$0xff]
    %v2894 = vld [vmem:[#allocation9 + $0xb28] sm:$0xff]
    %v2895 = vld [vmem:[#allocation9 + $0xb30] sm:$0xff]
    %v2896 = vld [vmem:[#allocation9 + $0xb38] sm:$0xff]
    %v2897 = vld [vmem:[#allocation9 + $0xb40] sm:$0xff]
    %v2898 = vld [vmem:[#allocation9 + $0xb48] sm:$0xff]
    %v2899 = vld [vmem:[#allocation9 + $0xb50] sm:$0xff]
    %v2900 = vld [vmem:[#allocation9 + $0xb58] sm:$0xff]
    %v2901 = vld [vmem:[#allocation9 + $0xb60] sm:$0xff]
    %v2902 = vld [vmem:[#allocation9 + $0xb68] sm:$0xff]
    %v2903 = vld [vmem:[#allocation9 + $0xb70] sm:$0xff]
    %v2904 = vld [vmem:[#allocation9 + $0xb78] sm:$0xff]
    %v2905 = vld [vmem:[#allocation9 + $0xb80] sm:$0xff]
    %v2906 = vld [vmem:[#allocation9 + $0xb88] sm:$0xff]
    %v2907 = vld [vmem:[#allocation9 + $0xb90] sm:$0xff]
    %v2908 = vld [vmem:[#allocation9 + $0xb98] sm:$0xff]
    %v2909 = vld [vmem:[#allocation9 + $0xba0] sm:$0xff]
    %v2910 = vld [vmem:[#allocation9 + $0xba8] sm:$0xff]
    %v2911 = vld [vmem:[#allocation9 + $0xbb0] sm:$0xff]
    %v2912 = vld [vmem:[#allocation9 + $0xbb8] sm:$0xff]
    %v2913 = vld [vmem:[#allocation9 + $0xbc0] sm:$0xff]
    %v2914 = vld [vmem:[#allocation9 + $0xbc8] sm:$0xff]
    %v2915 = vld [vmem:[#allocation9 + $0xbd0] sm:$0xff]
    %v2916 = vld [vmem:[#allocation9 + $0xbd8] sm:$0xff]
    %v2917 = vld [vmem:[#allocation9 + $0xbe0] sm:$0xff]
    %v2918 = vld [vmem:[#allocation9 + $0xbe8] sm:$0xff]
    %v2919 = vld [vmem:[#allocation9 + $0xbf0] sm:$0xff]
    %v2920 = vld [vmem:[#allocation9 + $0xbf8] sm:$0xff]
    %v2921 = vld [vmem:[#allocation12] sm:$0xf]
    %v2923 = vlaneseq
    %v2924 = vshrl.u32 %v2923, 7
    %v2925 = vsub.s32 0, %v2924
    %v2926 = vrot.slane %v2921, %v2925
    %v2927 = vlaneseq
    %v2928 = vshrl.u32 %v2927, 7
    %v2929 = vsub.s32 1, %v2928
    %v2930 = vrot.slane %v2921, %v2929
    %v2931 = vlaneseq
    %v2932 = vshrl.u32 %v2931, 7
    %v2933 = vsub.s32 2, %v2932
    %v2934 = vrot.slane %v2921, %v2933
    %v2935 = vlaneseq
    %v2936 = vshrl.u32 %v2935, 7
    %v2937 = vsub.s32 3, %v2936
    %v2938 = vrot.slane %v2921, %v2937
    %v2943 = vld [vmem:[#allocation3] sm:$0xff]
    %v2944 = vld [vmem:[#allocation3 + $0x8] sm:$0xff]
    %v2945 = vld [vmem:[#allocation3 + $0x10] sm:$0xff]
    %v2946 = vld [vmem:[#allocation3 + $0x18] sm:$0xff]
    %v2947 = vpack.c.bf16 %v2943, %v2943
    %v2948 = vpack.c.bf16 %v2944, %v2944
    %v2949 = vpack.c.bf16 %v2945, %v2945
    %v2950 = vpack.c.bf16 %v2946, %v2946
    %v3335 = vunpack.c.l.b16 %v2537
    %v3336 = vunpack.c.h.b16 %v2537
    %v3337 = vunpack.c.l.b16 %v2538
    %v3338 = vunpack.c.h.b16 %v2538
    %v3339 = vunpack.c.l.b16 %v2539
    %v3340 = vunpack.c.h.b16 %v2539
    %v3341 = vunpack.c.l.b16 %v2540
    %v3342 = vunpack.c.h.b16 %v2540
    %v3343 = vunpack.c.l.b16 %v2541
    %v3344 = vunpack.c.h.b16 %v2541
    %v3345 = vunpack.c.l.b16 %v2542
    %v3346 = vunpack.c.h.b16 %v2542
    %v3347 = vunpack.c.l.b16 %v2543
    %v3348 = vunpack.c.h.b16 %v2543
    %v3349 = vunpack.c.l.b16 %v2544
    %v3350 = vunpack.c.h.b16 %v2544
    %v3351 = vunpack.c.l.b16 %v2545
    %v3352 = vunpack.c.h.b16 %v2545
    %v3353 = vunpack.c.l.b16 %v2546
    %v3354 = vunpack.c.h.b16 %v2546
    %v3355 = vunpack.c.l.b16 %v2547
    %v3356 = vunpack.c.h.b16 %v2547
    %v3357 = vunpack.c.l.b16 %v2548
    %v3358 = vunpack.c.h.b16 %v2548
    %v3359 = vunpack.c.l.b16 %v2549
    %v3360 = vunpack.c.h.b16 %v2549
    %v3361 = vunpack.c.l.b16 %v2550
    %v3362 = vunpack.c.h.b16 %v2550
    %v3363 = vunpack.c.l.b16 %v2551
    %v3364 = vunpack.c.h.b16 %v2551
    %v3365 = vunpack.c.l.b16 %v2552
    %v3366 = vunpack.c.h.b16 %v2552
    %v3367 = vunpack.c.l.b16 %v2553
    %v3368 = vunpack.c.h.b16 %v2553
    %v3369 = vunpack.c.l.b16 %v2554
    %v3370 = vunpack.c.h.b16 %v2554
    %v3371 = vunpack.c.l.b16 %v2555
    %v3372 = vunpack.c.h.b16 %v2555
    %v3373 = vunpack.c.l.b16 %v2556
    %v3374 = vunpack.c.h.b16 %v2556
    %v3375 = vunpack.c.l.b16 %v2557
    %v3376 = vunpack.c.h.b16 %v2557
    %v3377 = vunpack.c.l.b16 %v2558
    %v3378 = vunpack.c.h.b16 %v2558
    %v3379 = vunpack.c.l.b16 %v2559
    %v3380 = vunpack.c.h.b16 %v2559
    %v3381 = vunpack.c.l.b16 %v2560
    %v3382 = vunpack.c.h.b16 %v2560
    %v3383 = vunpack.c.l.b16 %v2561
    %v3384 = vunpack.c.h.b16 %v2561
    %v3385 = vunpack.c.l.b16 %v2562
    %v3386 = vunpack.c.h.b16 %v2562
    %v3387 = vunpack.c.l.b16 %v2563
    %v3388 = vunpack.c.h.b16 %v2563
    %v3389 = vunpack.c.l.b16 %v2564
    %v3390 = vunpack.c.h.b16 %v2564
    %v3391 = vunpack.c.l.b16 %v2565
    %v3392 = vunpack.c.h.b16 %v2565
    %v3393 = vunpack.c.l.b16 %v2566
    %v3394 = vunpack.c.h.b16 %v2566
    %v3395 = vunpack.c.l.b16 %v2567
    %v3396 = vunpack.c.h.b16 %v2567
    %v3397 = vunpack.c.l.b16 %v2568
    %v3398 = vunpack.c.h.b16 %v2568
    %v3399 = vunpack.c.l.b16 %v2569
    %v3400 = vunpack.c.h.b16 %v2569
    %v3401 = vunpack.c.l.b16 %v2570
    %v3402 = vunpack.c.h.b16 %v2570
    %v3403 = vunpack.c.l.b16 %v2571
    %v3404 = vunpack.c.h.b16 %v2571
    %v3405 = vunpack.c.l.b16 %v2572
    %v3406 = vunpack.c.h.b16 %v2572
    %v3407 = vunpack.c.l.b16 %v2573
    %v3408 = vunpack.c.h.b16 %v2573
    %v3409 = vunpack.c.l.b16 %v2574
    %v3410 = vunpack.c.h.b16 %v2574
    %v3411 = vunpack.c.l.b16 %v2575
    %v3412 = vunpack.c.h.b16 %v2575
    %v3413 = vunpack.c.l.b16 %v2576
    %v3414 = vunpack.c.h.b16 %v2576
    %v3415 = vunpack.c.l.b16 %v2577
    %v3416 = vunpack.c.h.b16 %v2577
    %v3417 = vunpack.c.l.b16 %v2578
    %v3418 = vunpack.c.h.b16 %v2578
    %v3419 = vunpack.c.l.b16 %v2579
    %v3420 = vunpack.c.h.b16 %v2579
    %v3421 = vunpack.c.l.b16 %v2580
    %v3422 = vunpack.c.h.b16 %v2580
    %v3423 = vunpack.c.l.b16 %v2581
    %v3424 = vunpack.c.h.b16 %v2581
    %v3425 = vunpack.c.l.b16 %v2582
    %v3426 = vunpack.c.h.b16 %v2582
    %v3427 = vunpack.c.l.b16 %v2583
    %v3428 = vunpack.c.h.b16 %v2583
    %v3429 = vunpack.c.l.b16 %v2584
    %v3430 = vunpack.c.h.b16 %v2584
    %v3431 = vunpack.c.l.b16 %v2585
    %v3432 = vunpack.c.h.b16 %v2585
    %v3433 = vunpack.c.l.b16 %v2586
    %v3434 = vunpack.c.h.b16 %v2586
    %v3435 = vunpack.c.l.b16 %v2587
    %v3436 = vunpack.c.h.b16 %v2587
    %v3437 = vunpack.c.l.b16 %v2588
    %v3438 = vunpack.c.h.b16 %v2588
    %v3439 = vunpack.c.l.b16 %v2589
    %v3440 = vunpack.c.h.b16 %v2589
    %v3441 = vunpack.c.l.b16 %v2590
    %v3442 = vunpack.c.h.b16 %v2590
    %v3443 = vunpack.c.l.b16 %v2591
    %v3444 = vunpack.c.h.b16 %v2591
    %v3445 = vunpack.c.l.b16 %v2592
    %v3446 = vunpack.c.h.b16 %v2592
    %v3447 = vunpack.c.l.b16 %v2593
    %v3448 = vunpack.c.h.b16 %v2593
    %v3449 = vunpack.c.l.b16 %v2594
    %v3450 = vunpack.c.h.b16 %v2594
    %v3451 = vunpack.c.l.b16 %v2595
    %v3452 = vunpack.c.h.b16 %v2595
    %v3453 = vunpack.c.l.b16 %v2596
    %v3454 = vunpack.c.h.b16 %v2596
    %v3455 = vunpack.c.l.b16 %v2597
    %v3456 = vunpack.c.h.b16 %v2597
    %v3457 = vunpack.c.l.b16 %v2598
    %v3458 = vunpack.c.h.b16 %v2598
    %v3459 = vunpack.c.l.b16 %v2599
    %v3460 = vunpack.c.h.b16 %v2599
    %v3461 = vunpack.c.l.b16 %v2600
    %v3462 = vunpack.c.h.b16 %v2600
    %v3463 = vunpack.c.l.b16 %v2601
    %v3464 = vunpack.c.h.b16 %v2601
    %v3465 = vunpack.c.l.b16 %v2602
    %v3466 = vunpack.c.h.b16 %v2602
    %v3467 = vunpack.c.l.b16 %v2603
    %v3468 = vunpack.c.h.b16 %v2603
    %v3469 = vunpack.c.l.b16 %v2604
    %v3470 = vunpack.c.h.b16 %v2604
    %v3471 = vunpack.c.l.b16 %v2605
    %v3472 = vunpack.c.h.b16 %v2605
    %v3473 = vunpack.c.l.b16 %v2606
    %v3474 = vunpack.c.h.b16 %v2606
    %v3475 = vunpack.c.l.b16 %v2607
    %v3476 = vunpack.c.h.b16 %v2607
    %v3477 = vunpack.c.l.b16 %v2608
    %v3478 = vunpack.c.h.b16 %v2608
    %v3479 = vunpack.c.l.b16 %v2609
    %v3480 = vunpack.c.h.b16 %v2609
    %v3481 = vunpack.c.l.b16 %v2610
    %v3482 = vunpack.c.h.b16 %v2610
    %v3483 = vunpack.c.l.b16 %v2611
    %v3484 = vunpack.c.h.b16 %v2611
    %v3485 = vunpack.c.l.b16 %v2612
    %v3486 = vunpack.c.h.b16 %v2612
    %v3487 = vunpack.c.l.b16 %v2613
    %v3488 = vunpack.c.h.b16 %v2613
    %v3489 = vunpack.c.l.b16 %v2614
    %v3490 = vunpack.c.h.b16 %v2614
    %v3491 = vunpack.c.l.b16 %v2615
    %v3492 = vunpack.c.h.b16 %v2615
    %v3493 = vunpack.c.l.b16 %v2616
    %v3494 = vunpack.c.h.b16 %v2616
    %v3495 = vunpack.c.l.b16 %v2617
    %v3496 = vunpack.c.h.b16 %v2617
    %v3497 = vunpack.c.l.b16 %v2618
    %v3498 = vunpack.c.h.b16 %v2618
    %v3499 = vunpack.c.l.b16 %v2619
    %v3500 = vunpack.c.h.b16 %v2619
    %v3501 = vunpack.c.l.b16 %v2620
    %v3502 = vunpack.c.h.b16 %v2620
    %v3503 = vunpack.c.l.b16 %v2621
    %v3504 = vunpack.c.h.b16 %v2621
    %v3505 = vunpack.c.l.b16 %v2622
    %v3506 = vunpack.c.h.b16 %v2622
    %v3507 = vunpack.c.l.b16 %v2623
    %v3508 = vunpack.c.h.b16 %v2623
    %v3509 = vunpack.c.l.b16 %v2624
    %v3510 = vunpack.c.h.b16 %v2624
    %v3511 = vunpack.c.l.b16 %v2625
    %v3512 = vunpack.c.h.b16 %v2625
    %v3513 = vunpack.c.l.b16 %v2626
    %v3514 = vunpack.c.h.b16 %v2626
    %v3515 = vunpack.c.l.b16 %v2627
    %v3516 = vunpack.c.h.b16 %v2627
    %v3517 = vunpack.c.l.b16 %v2628
    %v3518 = vunpack.c.h.b16 %v2628
    %v3519 = vunpack.c.l.b16 %v2629
    %v3520 = vunpack.c.h.b16 %v2629
    %v3521 = vunpack.c.l.b16 %v2630
    %v3522 = vunpack.c.h.b16 %v2630
    %v3523 = vunpack.c.l.b16 %v2631
    %v3524 = vunpack.c.h.b16 %v2631
    %v3525 = vunpack.c.l.b16 %v2632
    %v3526 = vunpack.c.h.b16 %v2632
    %v3527 = vunpack.c.l.b16 %v2633
    %v3528 = vunpack.c.h.b16 %v2633
    %v3529 = vunpack.c.l.b16 %v2634
    %v3530 = vunpack.c.h.b16 %v2634
    %v3531 = vunpack.c.l.b16 %v2635
    %v3532 = vunpack.c.h.b16 %v2635
    %v3533 = vunpack.c.l.b16 %v2636
    %v3534 = vunpack.c.h.b16 %v2636
    %v3535 = vunpack.c.l.b16 %v2637
    %v3536 = vunpack.c.h.b16 %v2637
    %v3537 = vunpack.c.l.b16 %v2638
    %v3538 = vunpack.c.h.b16 %v2638
    %v3539 = vunpack.c.l.b16 %v2639
    %v3540 = vunpack.c.h.b16 %v2639
    %v3541 = vunpack.c.l.b16 %v2640
    %v3542 = vunpack.c.h.b16 %v2640
    %v3543 = vunpack.c.l.b16 %v2641
    %v3544 = vunpack.c.h.b16 %v2641
    %v3545 = vunpack.c.l.b16 %v2642
    %v3546 = vunpack.c.h.b16 %v2642
    %v3547 = vunpack.c.l.b16 %v2643
    %v3548 = vunpack.c.h.b16 %v2643
    %v3549 = vunpack.c.l.b16 %v2644
    %v3550 = vunpack.c.h.b16 %v2644
    %v3551 = vunpack.c.l.b16 %v2645
    %v3552 = vunpack.c.h.b16 %v2645
    %v3553 = vunpack.c.l.b16 %v2646
    %v3554 = vunpack.c.h.b16 %v2646
    %v3555 = vunpack.c.l.b16 %v2647
    %v3556 = vunpack.c.h.b16 %v2647
    %v3557 = vunpack.c.l.b16 %v2648
    %v3558 = vunpack.c.h.b16 %v2648
    %v3559 = vunpack.c.l.b16 %v2649
    %v3560 = vunpack.c.h.b16 %v2649
    %v3561 = vunpack.c.l.b16 %v2650
    %v3562 = vunpack.c.h.b16 %v2650
    %v3563 = vunpack.c.l.b16 %v2651
    %v3564 = vunpack.c.h.b16 %v2651
    %v3565 = vunpack.c.l.b16 %v2652
    %v3566 = vunpack.c.h.b16 %v2652
    %v3567 = vunpack.c.l.b16 %v2653
    %v3568 = vunpack.c.h.b16 %v2653
    %v3569 = vunpack.c.l.b16 %v2654
    %v3570 = vunpack.c.h.b16 %v2654
    %v3571 = vunpack.c.l.b16 %v2655
    %v3572 = vunpack.c.h.b16 %v2655
    %v3573 = vunpack.c.l.b16 %v2656
    %v3574 = vunpack.c.h.b16 %v2656
    %v3575 = vunpack.c.l.b16 %v2657
    %v3576 = vunpack.c.h.b16 %v2657
    %v3577 = vunpack.c.l.b16 %v2658
    %v3578 = vunpack.c.h.b16 %v2658
    %v3579 = vunpack.c.l.b16 %v2659
    %v3580 = vunpack.c.h.b16 %v2659
    %v3581 = vunpack.c.l.b16 %v2660
    %v3582 = vunpack.c.h.b16 %v2660
    %v3583 = vunpack.c.l.b16 %v2661
    %v3584 = vunpack.c.h.b16 %v2661
    %v3585 = vunpack.c.l.b16 %v2662
    %v3586 = vunpack.c.h.b16 %v2662
    %v3587 = vunpack.c.l.b16 %v2663
    %v3588 = vunpack.c.h.b16 %v2663
    %v3589 = vunpack.c.l.b16 %v2664
    %v3590 = vunpack.c.h.b16 %v2664
    %v3591 = vunpack.c.l.b16 %v2665
    %v3592 = vunpack.c.h.b16 %v2665
    %v3593 = vunpack.c.l.b16 %v2666
    %v3594 = vunpack.c.h.b16 %v2666
    %v3595 = vunpack.c.l.b16 %v2667
    %v3596 = vunpack.c.h.b16 %v2667
    %v3597 = vunpack.c.l.b16 %v2668
    %v3598 = vunpack.c.h.b16 %v2668
    %v3599 = vunpack.c.l.b16 %v2669
    %v3600 = vunpack.c.h.b16 %v2669
    %v3601 = vunpack.c.l.b16 %v2670
    %v3602 = vunpack.c.h.b16 %v2670
    %v3603 = vunpack.c.l.b16 %v2671
    %v3604 = vunpack.c.h.b16 %v2671
    %v3605 = vunpack.c.l.b16 %v2672
    %v3606 = vunpack.c.h.b16 %v2672
    %v3607 = vunpack.c.l.b16 %v2673
    %v3608 = vunpack.c.h.b16 %v2673
    %v3609 = vunpack.c.l.b16 %v2674
    %v3610 = vunpack.c.h.b16 %v2674
    %v3611 = vunpack.c.l.b16 %v2675
    %v3612 = vunpack.c.h.b16 %v2675
    %v3613 = vunpack.c.l.b16 %v2676
    %v3614 = vunpack.c.h.b16 %v2676
    %v3615 = vunpack.c.l.b16 %v2677
    %v3616 = vunpack.c.h.b16 %v2677
    %v3617 = vunpack.c.l.b16 %v2678
    %v3618 = vunpack.c.h.b16 %v2678
    %v3619 = vunpack.c.l.b16 %v2679
    %v3620 = vunpack.c.h.b16 %v2679
    %v3621 = vunpack.c.l.b16 %v2680
    %v3622 = vunpack.c.h.b16 %v2680
    %v3623 = vunpack.c.l.b16 %v2681
    %v3624 = vunpack.c.h.b16 %v2681
    %v3625 = vunpack.c.l.b16 %v2682
    %v3626 = vunpack.c.h.b16 %v2682
    %v3627 = vunpack.c.l.b16 %v2683
    %v3628 = vunpack.c.h.b16 %v2683
    %v3629 = vunpack.c.l.b16 %v2684
    %v3630 = vunpack.c.h.b16 %v2684
    %v3631 = vunpack.c.l.b16 %v2685
    %v3632 = vunpack.c.h.b16 %v2685
    %v3633 = vunpack.c.l.b16 %v2686
    %v3634 = vunpack.c.h.b16 %v2686
    %v3635 = vunpack.c.l.b16 %v2687
    %v3636 = vunpack.c.h.b16 %v2687
    %v3637 = vunpack.c.l.b16 %v2688
    %v3638 = vunpack.c.h.b16 %v2688
    %v3639 = vunpack.c.l.b16 %v2689
    %v3640 = vunpack.c.h.b16 %v2689
    %v3641 = vunpack.c.l.b16 %v2690
    %v3642 = vunpack.c.h.b16 %v2690
    %v3643 = vunpack.c.l.b16 %v2691
    %v3644 = vunpack.c.h.b16 %v2691
    %v3645 = vunpack.c.l.b16 %v2692
    %v3646 = vunpack.c.h.b16 %v2692
    %v3647 = vunpack.c.l.b16 %v2693
    %v3648 = vunpack.c.h.b16 %v2693
    %v3649 = vunpack.c.l.b16 %v2694
    %v3650 = vunpack.c.h.b16 %v2694
    %v3651 = vunpack.c.l.b16 %v2695
    %v3652 = vunpack.c.h.b16 %v2695
    %v3653 = vunpack.c.l.b16 %v2696
    %v3654 = vunpack.c.h.b16 %v2696
    %v3655 = vunpack.c.l.b16 %v2697
    %v3656 = vunpack.c.h.b16 %v2697
    %v3657 = vunpack.c.l.b16 %v2698
    %v3658 = vunpack.c.h.b16 %v2698
    %v3659 = vunpack.c.l.b16 %v2699
    %v3660 = vunpack.c.h.b16 %v2699
    %v3661 = vunpack.c.l.b16 %v2700
    %v3662 = vunpack.c.h.b16 %v2700
    %v3663 = vunpack.c.l.b16 %v2701
    %v3664 = vunpack.c.h.b16 %v2701
    %v3665 = vunpack.c.l.b16 %v2702
    %v3666 = vunpack.c.h.b16 %v2702
    %v3667 = vunpack.c.l.b16 %v2703
    %v3668 = vunpack.c.h.b16 %v2703
    %v3669 = vunpack.c.l.b16 %v2704
    %v3670 = vunpack.c.h.b16 %v2704
    %v3671 = vunpack.c.l.b16 %v2705
    %v3672 = vunpack.c.h.b16 %v2705
    %v3673 = vunpack.c.l.b16 %v2706
    %v3674 = vunpack.c.h.b16 %v2706
    %v3675 = vunpack.c.l.b16 %v2707
    %v3676 = vunpack.c.h.b16 %v2707
    %v3677 = vunpack.c.l.b16 %v2708
    %v3678 = vunpack.c.h.b16 %v2708
    %v3679 = vunpack.c.l.b16 %v2709
    %v3680 = vunpack.c.h.b16 %v2709
    %v3681 = vunpack.c.l.b16 %v2710
    %v3682 = vunpack.c.h.b16 %v2710
    %v3683 = vunpack.c.l.b16 %v2711
    %v3684 = vunpack.c.h.b16 %v2711
    %v3685 = vunpack.c.l.b16 %v2712
    %v3686 = vunpack.c.h.b16 %v2712
    %v3687 = vunpack.c.l.b16 %v2713
    %v3688 = vunpack.c.h.b16 %v2713
    %v3689 = vunpack.c.l.b16 %v2714
    %v3690 = vunpack.c.h.b16 %v2714
    %v3691 = vunpack.c.l.b16 %v2715
    %v3692 = vunpack.c.h.b16 %v2715
    %v3693 = vunpack.c.l.b16 %v2716
    %v3694 = vunpack.c.h.b16 %v2716
    %v3695 = vunpack.c.l.b16 %v2717
    %v3696 = vunpack.c.h.b16 %v2717
    %v3697 = vunpack.c.l.b16 %v2718
    %v3698 = vunpack.c.h.b16 %v2718
    %v3699 = vunpack.c.l.b16 %v2719
    %v3700 = vunpack.c.h.b16 %v2719
    %v3701 = vunpack.c.l.b16 %v2720
    %v3702 = vunpack.c.h.b16 %v2720
    %v3703 = vunpack.c.l.b16 %v2721
    %v3704 = vunpack.c.h.b16 %v2721
    %v3705 = vunpack.c.l.b16 %v2722
    %v3706 = vunpack.c.h.b16 %v2722
    %v3707 = vunpack.c.l.b16 %v2723
    %v3708 = vunpack.c.h.b16 %v2723
    %v3709 = vunpack.c.l.b16 %v2724
    %v3710 = vunpack.c.h.b16 %v2724
    %v3711 = vunpack.c.l.b16 %v2725
    %v3712 = vunpack.c.h.b16 %v2725
    %v3713 = vunpack.c.l.b16 %v2726
    %v3714 = vunpack.c.h.b16 %v2726
    %v3715 = vunpack.c.l.b16 %v2727
    %v3716 = vunpack.c.h.b16 %v2727
    %v3717 = vunpack.c.l.b16 %v2728
    %v3718 = vunpack.c.h.b16 %v2728
    %v3719 = vunpack.c.l.b16 %v2729
    %v3720 = vunpack.c.h.b16 %v2729
    %v3721 = vunpack.c.l.b16 %v2730
    %v3722 = vunpack.c.h.b16 %v2730
    %v3723 = vunpack.c.l.b16 %v2731
    %v3724 = vunpack.c.h.b16 %v2731
    %v3725 = vunpack.c.l.b16 %v2732
    %v3726 = vunpack.c.h.b16 %v2732
    %v3727 = vunpack.c.l.b16 %v2733
    %v3728 = vunpack.c.h.b16 %v2733
    %v3729 = vunpack.c.l.b16 %v2734
    %v3730 = vunpack.c.h.b16 %v2734
    %v3731 = vunpack.c.l.b16 %v2735
    %v3732 = vunpack.c.h.b16 %v2735
    %v3733 = vunpack.c.l.b16 %v2736
    %v3734 = vunpack.c.h.b16 %v2736
    %v3735 = vunpack.c.l.b16 %v2737
    %v3736 = vunpack.c.h.b16 %v2737
    %v3737 = vunpack.c.l.b16 %v2738
    %v3738 = vunpack.c.h.b16 %v2738
    %v3739 = vunpack.c.l.b16 %v2739
    %v3740 = vunpack.c.h.b16 %v2739
    %v3741 = vunpack.c.l.b16 %v2740
    %v3742 = vunpack.c.h.b16 %v2740
    %v3743 = vunpack.c.l.b16 %v2741
    %v3744 = vunpack.c.h.b16 %v2741
    %v3745 = vunpack.c.l.b16 %v2742
    %v3746 = vunpack.c.h.b16 %v2742
    %v3747 = vunpack.c.l.b16 %v2743
    %v3748 = vunpack.c.h.b16 %v2743
    %v3749 = vunpack.c.l.b16 %v2744
    %v3750 = vunpack.c.h.b16 %v2744
    %v3751 = vunpack.c.l.b16 %v2745
    %v3752 = vunpack.c.h.b16 %v2745
    %v3753 = vunpack.c.l.b16 %v2746
    %v3754 = vunpack.c.h.b16 %v2746
    %v3755 = vunpack.c.l.b16 %v2747
    %v3756 = vunpack.c.h.b16 %v2747
    %v3757 = vunpack.c.l.b16 %v2748
    %v3758 = vunpack.c.h.b16 %v2748
    %v3759 = vunpack.c.l.b16 %v2749
    %v3760 = vunpack.c.h.b16 %v2749
    %v3761 = vunpack.c.l.b16 %v2750
    %v3762 = vunpack.c.h.b16 %v2750
    %v3763 = vunpack.c.l.b16 %v2751
    %v3764 = vunpack.c.h.b16 %v2751
    %v3765 = vunpack.c.l.b16 %v2752
    %v3766 = vunpack.c.h.b16 %v2752
    %v3767 = vunpack.c.l.b16 %v2753
    %v3768 = vunpack.c.h.b16 %v2753
    %v3769 = vunpack.c.l.b16 %v2754
    %v3770 = vunpack.c.h.b16 %v2754
    %v3771 = vunpack.c.l.b16 %v2755
    %v3772 = vunpack.c.h.b16 %v2755
    %v3773 = vunpack.c.l.b16 %v2756
    %v3774 = vunpack.c.h.b16 %v2756
    %v3775 = vunpack.c.l.b16 %v2757
    %v3776 = vunpack.c.h.b16 %v2757
    %v3777 = vunpack.c.l.b16 %v2758
    %v3778 = vunpack.c.h.b16 %v2758
    %v3779 = vunpack.c.l.b16 %v2759
    %v3780 = vunpack.c.h.b16 %v2759
    %v3781 = vunpack.c.l.b16 %v2760
    %v3782 = vunpack.c.h.b16 %v2760
    %v3783 = vunpack.c.l.b16 %v2761
    %v3784 = vunpack.c.h.b16 %v2761
    %v3785 = vunpack.c.l.b16 %v2762
    %v3786 = vunpack.c.h.b16 %v2762
    %v3787 = vunpack.c.l.b16 %v2763
    %v3788 = vunpack.c.h.b16 %v2763
    %v3789 = vunpack.c.l.b16 %v2764
    %v3790 = vunpack.c.h.b16 %v2764
    %v3791 = vunpack.c.l.b16 %v2765
    %v3792 = vunpack.c.h.b16 %v2765
    %v3793 = vunpack.c.l.b16 %v2766
    %v3794 = vunpack.c.h.b16 %v2766
    %v3795 = vunpack.c.l.b16 %v2767
    %v3796 = vunpack.c.h.b16 %v2767
    %v3797 = vunpack.c.l.b16 %v2768
    %v3798 = vunpack.c.h.b16 %v2768
    %v3799 = vunpack.c.l.b16 %v2769
    %v3800 = vunpack.c.h.b16 %v2769
    %v3801 = vunpack.c.l.b16 %v2770
    %v3802 = vunpack.c.h.b16 %v2770
    %v3803 = vunpack.c.l.b16 %v2771
    %v3804 = vunpack.c.h.b16 %v2771
    %v3805 = vunpack.c.l.b16 %v2772
    %v3806 = vunpack.c.h.b16 %v2772
    %v3807 = vunpack.c.l.b16 %v2773
    %v3808 = vunpack.c.h.b16 %v2773
    %v3809 = vunpack.c.l.b16 %v2774
    %v3810 = vunpack.c.h.b16 %v2774
    %v3811 = vunpack.c.l.b16 %v2775
    %v3812 = vunpack.c.h.b16 %v2775
    %v3813 = vunpack.c.l.b16 %v2776
    %v3814 = vunpack.c.h.b16 %v2776
    %v3815 = vunpack.c.l.b16 %v2777
    %v3816 = vunpack.c.h.b16 %v2777
    %v3817 = vunpack.c.l.b16 %v2778
    %v3818 = vunpack.c.h.b16 %v2778
    %v3819 = vunpack.c.l.b16 %v2779
    %v3820 = vunpack.c.h.b16 %v2779
    %v3821 = vunpack.c.l.b16 %v2780
    %v3822 = vunpack.c.h.b16 %v2780
    %v3823 = vunpack.c.l.b16 %v2781
    %v3824 = vunpack.c.h.b16 %v2781
    %v3825 = vunpack.c.l.b16 %v2782
    %v3826 = vunpack.c.h.b16 %v2782
    %v3827 = vunpack.c.l.b16 %v2783
    %v3828 = vunpack.c.h.b16 %v2783
    %v3829 = vunpack.c.l.b16 %v2784
    %v3830 = vunpack.c.h.b16 %v2784
    %v3831 = vunpack.c.l.b16 %v2785
    %v3832 = vunpack.c.h.b16 %v2785
    %v3833 = vunpack.c.l.b16 %v2786
    %v3834 = vunpack.c.h.b16 %v2786
    %v3835 = vunpack.c.l.b16 %v2787
    %v3836 = vunpack.c.h.b16 %v2787
    %v3837 = vunpack.c.l.b16 %v2788
    %v3838 = vunpack.c.h.b16 %v2788
    %v3839 = vunpack.c.l.b16 %v2789
    %v3840 = vunpack.c.h.b16 %v2789
    %v3841 = vunpack.c.l.b16 %v2790
    %v3842 = vunpack.c.h.b16 %v2790
    %v3843 = vunpack.c.l.b16 %v2791
    %v3844 = vunpack.c.h.b16 %v2791
    %v3845 = vunpack.c.l.b16 %v2792
    %v3846 = vunpack.c.h.b16 %v2792
    %v3847 = vunpack.c.l.b16 %v2793
    %v3848 = vunpack.c.h.b16 %v2793
    %v3849 = vunpack.c.l.b16 %v2794
    %v3850 = vunpack.c.h.b16 %v2794
    %v3851 = vunpack.c.l.b16 %v2795
    %v3852 = vunpack.c.h.b16 %v2795
    %v3853 = vunpack.c.l.b16 %v2796
    %v3854 = vunpack.c.h.b16 %v2796
    %v3855 = vunpack.c.l.b16 %v2797
    %v3856 = vunpack.c.h.b16 %v2797
    %v3857 = vunpack.c.l.b16 %v2798
    %v3858 = vunpack.c.h.b16 %v2798
    %v3859 = vunpack.c.l.b16 %v2799
    %v3860 = vunpack.c.h.b16 %v2799
    %v3861 = vunpack.c.l.b16 %v2800
    %v3862 = vunpack.c.h.b16 %v2800
    %v3863 = vunpack.c.l.b16 %v2801
    %v3864 = vunpack.c.h.b16 %v2801
    %v3865 = vunpack.c.l.b16 %v2802
    %v3866 = vunpack.c.h.b16 %v2802
    %v3867 = vunpack.c.l.b16 %v2803
    %v3868 = vunpack.c.h.b16 %v2803
    %v3869 = vunpack.c.l.b16 %v2804
    %v3870 = vunpack.c.h.b16 %v2804
    %v3871 = vunpack.c.l.b16 %v2805
    %v3872 = vunpack.c.h.b16 %v2805
    %v3873 = vunpack.c.l.b16 %v2806
    %v3874 = vunpack.c.h.b16 %v2806
    %v3875 = vunpack.c.l.b16 %v2807
    %v3876 = vunpack.c.h.b16 %v2807
    %v3877 = vunpack.c.l.b16 %v2808
    %v3878 = vunpack.c.h.b16 %v2808
    %v3879 = vunpack.c.l.b16 %v2809
    %v3880 = vunpack.c.h.b16 %v2809
    %v3881 = vunpack.c.l.b16 %v2810
    %v3882 = vunpack.c.h.b16 %v2810
    %v3883 = vunpack.c.l.b16 %v2811
    %v3884 = vunpack.c.h.b16 %v2811
    %v3885 = vunpack.c.l.b16 %v2812
    %v3886 = vunpack.c.h.b16 %v2812
    %v3887 = vunpack.c.l.b16 %v2813
    %v3888 = vunpack.c.h.b16 %v2813
    %v3889 = vunpack.c.l.b16 %v2814
    %v3890 = vunpack.c.h.b16 %v2814
    %v3891 = vunpack.c.l.b16 %v2815
    %v3892 = vunpack.c.h.b16 %v2815
    %v3893 = vunpack.c.l.b16 %v2816
    %v3894 = vunpack.c.h.b16 %v2816
    %v3895 = vunpack.c.l.b16 %v2817
    %v3896 = vunpack.c.h.b16 %v2817
    %v3897 = vunpack.c.l.b16 %v2818
    %v3898 = vunpack.c.h.b16 %v2818
    %v3899 = vunpack.c.l.b16 %v2819
    %v3900 = vunpack.c.h.b16 %v2819
    %v3901 = vunpack.c.l.b16 %v2820
    %v3902 = vunpack.c.h.b16 %v2820
    %v3903 = vunpack.c.l.b16 %v2821
    %v3904 = vunpack.c.h.b16 %v2821
    %v3905 = vunpack.c.l.b16 %v2822
    %v3906 = vunpack.c.h.b16 %v2822
    %v3907 = vunpack.c.l.b16 %v2823
    %v3908 = vunpack.c.h.b16 %v2823
    %v3909 = vunpack.c.l.b16 %v2824
    %v3910 = vunpack.c.h.b16 %v2824
    %v3911 = vunpack.c.l.b16 %v2825
    %v3912 = vunpack.c.h.b16 %v2825
    %v3913 = vunpack.c.l.b16 %v2826
    %v3914 = vunpack.c.h.b16 %v2826
    %v3915 = vunpack.c.l.b16 %v2827
    %v3916 = vunpack.c.h.b16 %v2827
    %v3917 = vunpack.c.l.b16 %v2828
    %v3918 = vunpack.c.h.b16 %v2828
    %v3919 = vunpack.c.l.b16 %v2829
    %v3920 = vunpack.c.h.b16 %v2829
    %v3921 = vunpack.c.l.b16 %v2830
    %v3922 = vunpack.c.h.b16 %v2830
    %v3923 = vunpack.c.l.b16 %v2831
    %v3924 = vunpack.c.h.b16 %v2831
    %v3925 = vunpack.c.l.b16 %v2832
    %v3926 = vunpack.c.h.b16 %v2832
    %v3927 = vunpack.c.l.b16 %v2833
    %v3928 = vunpack.c.h.b16 %v2833
    %v3929 = vunpack.c.l.b16 %v2834
    %v3930 = vunpack.c.h.b16 %v2834
    %v3931 = vunpack.c.l.b16 %v2835
    %v3932 = vunpack.c.h.b16 %v2835
    %v3933 = vunpack.c.l.b16 %v2836
    %v3934 = vunpack.c.h.b16 %v2836
    %v3935 = vunpack.c.l.b16 %v2837
    %v3936 = vunpack.c.h.b16 %v2837
    %v3937 = vunpack.c.l.b16 %v2838
    %v3938 = vunpack.c.h.b16 %v2838
    %v3939 = vunpack.c.l.b16 %v2839
    %v3940 = vunpack.c.h.b16 %v2839
    %v3941 = vunpack.c.l.b16 %v2840
    %v3942 = vunpack.c.h.b16 %v2840
    %v3943 = vunpack.c.l.b16 %v2841
    %v3944 = vunpack.c.h.b16 %v2841
    %v3945 = vunpack.c.l.b16 %v2842
    %v3946 = vunpack.c.h.b16 %v2842
    %v3947 = vunpack.c.l.b16 %v2843
    %v3948 = vunpack.c.h.b16 %v2843
    %v3949 = vunpack.c.l.b16 %v2844
    %v3950 = vunpack.c.h.b16 %v2844
    %v3951 = vunpack.c.l.b16 %v2845
    %v3952 = vunpack.c.h.b16 %v2845
    %v3953 = vunpack.c.l.b16 %v2846
    %v3954 = vunpack.c.h.b16 %v2846
    %v3955 = vunpack.c.l.b16 %v2847
    %v3956 = vunpack.c.h.b16 %v2847
    %v3957 = vunpack.c.l.b16 %v2848
    %v3958 = vunpack.c.h.b16 %v2848
    %v3959 = vunpack.c.l.b16 %v2849
    %v3960 = vunpack.c.h.b16 %v2849
    %v3961 = vunpack.c.l.b16 %v2850
    %v3962 = vunpack.c.h.b16 %v2850
    %v3963 = vunpack.c.l.b16 %v2851
    %v3964 = vunpack.c.h.b16 %v2851
    %v3965 = vunpack.c.l.b16 %v2852
    %v3966 = vunpack.c.h.b16 %v2852
    %v3967 = vunpack.c.l.b16 %v2853
    %v3968 = vunpack.c.h.b16 %v2853
    %v3969 = vunpack.c.l.b16 %v2854
    %v3970 = vunpack.c.h.b16 %v2854
    %v3971 = vunpack.c.l.b16 %v2855
    %v3972 = vunpack.c.h.b16 %v2855
    %v3973 = vunpack.c.l.b16 %v2856
    %v3974 = vunpack.c.h.b16 %v2856
    %v3975 = vunpack.c.l.b16 %v2857
    %v3976 = vunpack.c.h.b16 %v2857
    %v3977 = vunpack.c.l.b16 %v2858
    %v3978 = vunpack.c.h.b16 %v2858
    %v3979 = vunpack.c.l.b16 %v2859
    %v3980 = vunpack.c.h.b16 %v2859
    %v3981 = vunpack.c.l.b16 %v2860
    %v3982 = vunpack.c.h.b16 %v2860
    %v3983 = vunpack.c.l.b16 %v2861
    %v3984 = vunpack.c.h.b16 %v2861
    %v3985 = vunpack.c.l.b16 %v2862
    %v3986 = vunpack.c.h.b16 %v2862
    %v3987 = vunpack.c.l.b16 %v2863
    %v3988 = vunpack.c.h.b16 %v2863
    %v3989 = vunpack.c.l.b16 %v2864
    %v3990 = vunpack.c.h.b16 %v2864
    %v3991 = vunpack.c.l.b16 %v2865
    %v3992 = vunpack.c.h.b16 %v2865
    %v3993 = vunpack.c.l.b16 %v2866
    %v3994 = vunpack.c.h.b16 %v2866
    %v3995 = vunpack.c.l.b16 %v2867
    %v3996 = vunpack.c.h.b16 %v2867
    %v3997 = vunpack.c.l.b16 %v2868
    %v3998 = vunpack.c.h.b16 %v2868
    %v3999 = vunpack.c.l.b16 %v2869
    %v4000 = vunpack.c.h.b16 %v2869
    %v4001 = vunpack.c.l.b16 %v2870
    %v4002 = vunpack.c.h.b16 %v2870
    %v4003 = vunpack.c.l.b16 %v2871
    %v4004 = vunpack.c.h.b16 %v2871
    %v4005 = vunpack.c.l.b16 %v2872
    %v4006 = vunpack.c.h.b16 %v2872
    %v4007 = vunpack.c.l.b16 %v2873
    %v4008 = vunpack.c.h.b16 %v2873
    %v4009 = vunpack.c.l.b16 %v2874
    %v4010 = vunpack.c.h.b16 %v2874
    %v4011 = vunpack.c.l.b16 %v2875
    %v4012 = vunpack.c.h.b16 %v2875
    %v4013 = vunpack.c.l.b16 %v2876
    %v4014 = vunpack.c.h.b16 %v2876
    %v4015 = vunpack.c.l.b16 %v2877
    %v4016 = vunpack.c.h.b16 %v2877
    %v4017 = vunpack.c.l.b16 %v2878
    %v4018 = vunpack.c.h.b16 %v2878
    %v4019 = vunpack.c.l.b16 %v2879
    %v4020 = vunpack.c.h.b16 %v2879
    %v4021 = vunpack.c.l.b16 %v2880
    %v4022 = vunpack.c.h.b16 %v2880
    %v4023 = vunpack.c.l.b16 %v2881
    %v4024 = vunpack.c.h.b16 %v2881
    %v4025 = vunpack.c.l.b16 %v2882
    %v4026 = vunpack.c.h.b16 %v2882
    %v4027 = vunpack.c.l.b16 %v2883
    %v4028 = vunpack.c.h.b16 %v2883
    %v4029 = vunpack.c.l.b16 %v2884
    %v4030 = vunpack.c.h.b16 %v2884
    %v4031 = vunpack.c.l.b16 %v2885
    %v4032 = vunpack.c.h.b16 %v2885
    %v4033 = vunpack.c.l.b16 %v2886
    %v4034 = vunpack.c.h.b16 %v2886
    %v4035 = vunpack.c.l.b16 %v2887
    %v4036 = vunpack.c.h.b16 %v2887
    %v4037 = vunpack.c.l.b16 %v2888
    %v4038 = vunpack.c.h.b16 %v2888
    %v4039 = vunpack.c.l.b16 %v2889
    %v4040 = vunpack.c.h.b16 %v2889
    %v4041 = vunpack.c.l.b16 %v2890
    %v4042 = vunpack.c.h.b16 %v2890
    %v4043 = vunpack.c.l.b16 %v2891
    %v4044 = vunpack.c.h.b16 %v2891
    %v4045 = vunpack.c.l.b16 %v2892
    %v4046 = vunpack.c.h.b16 %v2892
    %v4047 = vunpack.c.l.b16 %v2893
    %v4048 = vunpack.c.h.b16 %v2893
    %v4049 = vunpack.c.l.b16 %v2894
    %v4050 = vunpack.c.h.b16 %v2894
    %v4051 = vunpack.c.l.b16 %v2895
    %v4052 = vunpack.c.h.b16 %v2895
    %v4053 = vunpack.c.l.b16 %v2896
    %v4054 = vunpack.c.h.b16 %v2896
    %v4055 = vunpack.c.l.b16 %v2897
    %v4056 = vunpack.c.h.b16 %v2897
    %v4057 = vunpack.c.l.b16 %v2898
    %v4058 = vunpack.c.h.b16 %v2898
    %v4059 = vunpack.c.l.b16 %v2899
    %v4060 = vunpack.c.h.b16 %v2899
    %v4061 = vunpack.c.l.b16 %v2900
    %v4062 = vunpack.c.h.b16 %v2900
    %v4063 = vunpack.c.l.b16 %v2901
    %v4064 = vunpack.c.h.b16 %v2901
    %v4065 = vunpack.c.l.b16 %v2902
    %v4066 = vunpack.c.h.b16 %v2902
    %v4067 = vunpack.c.l.b16 %v2903
    %v4068 = vunpack.c.h.b16 %v2903
    %v4069 = vunpack.c.l.b16 %v2904
    %v4070 = vunpack.c.h.b16 %v2904
    %v4071 = vunpack.c.l.b16 %v2905
    %v4072 = vunpack.c.h.b16 %v2905
    %v4073 = vunpack.c.l.b16 %v2906
    %v4074 = vunpack.c.h.b16 %v2906
    %v4075 = vunpack.c.l.b16 %v2907
    %v4076 = vunpack.c.h.b16 %v2907
    %v4077 = vunpack.c.l.b16 %v2908
    %v4078 = vunpack.c.h.b16 %v2908
    %v4079 = vunpack.c.l.b16 %v2909
    %v4080 = vunpack.c.h.b16 %v2909
    %v4081 = vunpack.c.l.b16 %v2910
    %v4082 = vunpack.c.h.b16 %v2910
    %v4083 = vunpack.c.l.b16 %v2911
    %v4084 = vunpack.c.h.b16 %v2911
    %v4085 = vunpack.c.l.b16 %v2912
    %v4086 = vunpack.c.h.b16 %v2912
    %v4087 = vunpack.c.l.b16 %v2913
    %v4088 = vunpack.c.h.b16 %v2913
    %v4089 = vunpack.c.l.b16 %v2914
    %v4090 = vunpack.c.h.b16 %v2914
    %v4091 = vunpack.c.l.b16 %v2915
    %v4092 = vunpack.c.h.b16 %v2915
    %v4093 = vunpack.c.l.b16 %v2916
    %v4094 = vunpack.c.h.b16 %v2916
    %v4095 = vunpack.c.l.b16 %v2917
    %v4096 = vunpack.c.h.b16 %v2917
    %v4097 = vunpack.c.l.b16 %v2918
    %v4098 = vunpack.c.h.b16 %v2918
    %v4099 = vunpack.c.l.b16 %v2919
    %v4100 = vunpack.c.h.b16 %v2919
    %v4101 = vunpack.c.l.b16 %v2920
    %v4102 = vunpack.c.h.b16 %v2920
    %v4103 = vpack.c.b16 %v3347, %v3335
    %v4104 = vpack.c.b16 %v3348, %v3336
    %v4105 = vpack.c.b16 %v3349, %v3337
    %v4106 = vpack.c.b16 %v3350, %v3338
    %v4107 = vpack.c.b16 %v3351, %v3339
    %v4108 = vpack.c.b16 %v3352, %v3340
    %v4109 = vpack.c.b16 %v3353, %v3341
    %v4110 = vpack.c.b16 %v3354, %v3342
    %v4111 = vpack.c.b16 %v3355, %v3343
    %v4112 = vpack.c.b16 %v3356, %v3344
    %v4113 = vpack.c.b16 %v3357, %v3345
    %v4114 = vpack.c.b16 %v3358, %v3346
    %v4115 = vpack.c.b16 %v3371, %v3359
    %v4116 = vpack.c.b16 %v3372, %v3360
    %v4117 = vpack.c.b16 %v3373, %v3361
    %v4118 = vpack.c.b16 %v3374, %v3362
    %v4119 = vpack.c.b16 %v3375, %v3363
    %v4120 = vpack.c.b16 %v3376, %v3364
    %v4121 = vpack.c.b16 %v3377, %v3365
    %v4122 = vpack.c.b16 %v3378, %v3366
    %v4123 = vpack.c.b16 %v3379, %v3367
    %v4124 = vpack.c.b16 %v3380, %v3368
    %v4125 = vpack.c.b16 %v3381, %v3369
    %v4126 = vpack.c.b16 %v3382, %v3370
    %v4127 = vpack.c.b16 %v3395, %v3383
    %v4128 = vpack.c.b16 %v3396, %v3384
    %v4129 = vpack.c.b16 %v3397, %v3385
    %v4130 = vpack.c.b16 %v3398, %v3386
    %v4131 = vpack.c.b16 %v3399, %v3387
    %v4132 = vpack.c.b16 %v3400, %v3388
    %v4133 = vpack.c.b16 %v3401, %v3389
    %v4134 = vpack.c.b16 %v3402, %v3390
    %v4135 = vpack.c.b16 %v3403, %v3391
    %v4136 = vpack.c.b16 %v3404, %v3392
    %v4137 = vpack.c.b16 %v3405, %v3393
    %v4138 = vpack.c.b16 %v3406, %v3394
    %v4139 = vpack.c.b16 %v3419, %v3407
    %v4140 = vpack.c.b16 %v3420, %v3408
    %v4141 = vpack.c.b16 %v3421, %v3409
    %v4142 = vpack.c.b16 %v3422, %v3410
    %v4143 = vpack.c.b16 %v3423, %v3411
    %v4144 = vpack.c.b16 %v3424, %v3412
    %v4145 = vpack.c.b16 %v3425, %v3413
    %v4146 = vpack.c.b16 %v3426, %v3414
    %v4147 = vpack.c.b16 %v3427, %v3415
    %v4148 = vpack.c.b16 %v3428, %v3416
    %v4149 = vpack.c.b16 %v3429, %v3417
    %v4150 = vpack.c.b16 %v3430, %v3418
    %v4151 = vpack.c.b16 %v3443, %v3431
    %v4152 = vpack.c.b16 %v3444, %v3432
    %v4153 = vpack.c.b16 %v3445, %v3433
    %v4154 = vpack.c.b16 %v3446, %v3434
    %v4155 = vpack.c.b16 %v3447, %v3435
    %v4156 = vpack.c.b16 %v3448, %v3436
    %v4157 = vpack.c.b16 %v3449, %v3437
    %v4158 = vpack.c.b16 %v3450, %v3438
    %v4159 = vpack.c.b16 %v3451, %v3439
    %v4160 = vpack.c.b16 %v3452, %v3440
    %v4161 = vpack.c.b16 %v3453, %v3441
    %v4162 = vpack.c.b16 %v3454, %v3442
    %v4163 = vpack.c.b16 %v3467, %v3455
    %v4164 = vpack.c.b16 %v3468, %v3456
    %v4165 = vpack.c.b16 %v3469, %v3457
    %v4166 = vpack.c.b16 %v3470, %v3458
    %v4167 = vpack.c.b16 %v3471, %v3459
    %v4168 = vpack.c.b16 %v3472, %v3460
    %v4169 = vpack.c.b16 %v3473, %v3461
    %v4170 = vpack.c.b16 %v3474, %v3462
    %v4171 = vpack.c.b16 %v3475, %v3463
    %v4172 = vpack.c.b16 %v3476, %v3464
    %v4173 = vpack.c.b16 %v3477, %v3465
    %v4174 = vpack.c.b16 %v3478, %v3466
    %v4175 = vpack.c.b16 %v3491, %v3479
    %v4176 = vpack.c.b16 %v3492, %v3480
    %v4177 = vpack.c.b16 %v3493, %v3481
    %v4178 = vpack.c.b16 %v3494, %v3482
    %v4179 = vpack.c.b16 %v3495, %v3483
    %v4180 = vpack.c.b16 %v3496, %v3484
    %v4181 = vpack.c.b16 %v3497, %v3485
    %v4182 = vpack.c.b16 %v3498, %v3486
    %v4183 = vpack.c.b16 %v3499, %v3487
    %v4184 = vpack.c.b16 %v3500, %v3488
    %v4185 = vpack.c.b16 %v3501, %v3489
    %v4186 = vpack.c.b16 %v3502, %v3490
    %v4187 = vpack.c.b16 %v3515, %v3503
    %v4188 = vpack.c.b16 %v3516, %v3504
    %v4189 = vpack.c.b16 %v3517, %v3505
    %v4190 = vpack.c.b16 %v3518, %v3506
    %v4191 = vpack.c.b16 %v3519, %v3507
    %v4192 = vpack.c.b16 %v3520, %v3508
    %v4193 = vpack.c.b16 %v3521, %v3509
    %v4194 = vpack.c.b16 %v3522, %v3510
    %v4195 = vpack.c.b16 %v3523, %v3511
    %v4196 = vpack.c.b16 %v3524, %v3512
    %v4197 = vpack.c.b16 %v3525, %v3513
    %v4198 = vpack.c.b16 %v3526, %v3514
    %v4199 = vpack.c.b16 %v3539, %v3527
    %v4200 = vpack.c.b16 %v3540, %v3528
    %v4201 = vpack.c.b16 %v3541, %v3529
    %v4202 = vpack.c.b16 %v3542, %v3530
    %v4203 = vpack.c.b16 %v3543, %v3531
    %v4204 = vpack.c.b16 %v3544, %v3532
    %v4205 = vpack.c.b16 %v3545, %v3533
    %v4206 = vpack.c.b16 %v3546, %v3534
    %v4207 = vpack.c.b16 %v3547, %v3535
    %v4208 = vpack.c.b16 %v3548, %v3536
    %v4209 = vpack.c.b16 %v3549, %v3537
    %v4210 = vpack.c.b16 %v3550, %v3538
    %v4211 = vpack.c.b16 %v3563, %v3551
    %v4212 = vpack.c.b16 %v3564, %v3552
    %v4213 = vpack.c.b16 %v3565, %v3553
    %v4214 = vpack.c.b16 %v3566, %v3554
    %v4215 = vpack.c.b16 %v3567, %v3555
    %v4216 = vpack.c.b16 %v3568, %v3556
    %v4217 = vpack.c.b16 %v3569, %v3557
    %v4218 = vpack.c.b16 %v3570, %v3558
    %v4219 = vpack.c.b16 %v3571, %v3559
    %v4220 = vpack.c.b16 %v3572, %v3560
    %v4221 = vpack.c.b16 %v3573, %v3561
    %v4222 = vpack.c.b16 %v3574, %v3562
    %v4223 = vpack.c.b16 %v3587, %v3575
    %v4224 = vpack.c.b16 %v3588, %v3576
    %v4225 = vpack.c.b16 %v3589, %v3577
    %v4226 = vpack.c.b16 %v3590, %v3578
    %v4227 = vpack.c.b16 %v3591, %v3579
    %v4228 = vpack.c.b16 %v3592, %v3580
    %v4229 = vpack.c.b16 %v3593, %v3581
    %v4230 = vpack.c.b16 %v3594, %v3582
    %v4231 = vpack.c.b16 %v3595, %v3583
    %v4232 = vpack.c.b16 %v3596, %v3584
    %v4233 = vpack.c.b16 %v3597, %v3585
    %v4234 = vpack.c.b16 %v3598, %v3586
    %v4235 = vpack.c.b16 %v3611, %v3599
    %v4236 = vpack.c.b16 %v3612, %v3600
    %v4237 = vpack.c.b16 %v3613, %v3601
    %v4238 = vpack.c.b16 %v3614, %v3602
    %v4239 = vpack.c.b16 %v3615, %v3603
    %v4240 = vpack.c.b16 %v3616, %v3604
    %v4241 = vpack.c.b16 %v3617, %v3605
    %v4242 = vpack.c.b16 %v3618, %v3606
    %v4243 = vpack.c.b16 %v3619, %v3607
    %v4244 = vpack.c.b16 %v3620, %v3608
    %v4245 = vpack.c.b16 %v3621, %v3609
    %v4246 = vpack.c.b16 %v3622, %v3610
    %v4247 = vpack.c.b16 %v3635, %v3623
    %v4248 = vpack.c.b16 %v3636, %v3624
    %v4249 = vpack.c.b16 %v3637, %v3625
    %v4250 = vpack.c.b16 %v3638, %v3626
    %v4251 = vpack.c.b16 %v3639, %v3627
    %v4252 = vpack.c.b16 %v3640, %v3628
    %v4253 = vpack.c.b16 %v3641, %v3629
    %v4254 = vpack.c.b16 %v3642, %v3630
    %v4255 = vpack.c.b16 %v3643, %v3631
    %v4256 = vpack.c.b16 %v3644, %v3632
    %v4257 = vpack.c.b16 %v3645, %v3633
    %v4258 = vpack.c.b16 %v3646, %v3634
    %v4259 = vpack.c.b16 %v3659, %v3647
    %v4260 = vpack.c.b16 %v3660, %v3648
    %v4261 = vpack.c.b16 %v3661, %v3649
    %v4262 = vpack.c.b16 %v3662, %v3650
    %v4263 = vpack.c.b16 %v3663, %v3651
    %v4264 = vpack.c.b16 %v3664, %v3652
    %v4265 = vpack.c.b16 %v3665, %v3653
    %v4266 = vpack.c.b16 %v3666, %v3654
    %v4267 = vpack.c.b16 %v3667, %v3655
    %v4268 = vpack.c.b16 %v3668, %v3656
    %v4269 = vpack.c.b16 %v3669, %v3657
    %v4270 = vpack.c.b16 %v3670, %v3658
    %v4271 = vpack.c.b16 %v3683, %v3671
    %v4272 = vpack.c.b16 %v3684, %v3672
    %v4273 = vpack.c.b16 %v3685, %v3673
    %v4274 = vpack.c.b16 %v3686, %v3674
    %v4275 = vpack.c.b16 %v3687, %v3675
    %v4276 = vpack.c.b16 %v3688, %v3676
    %v4277 = vpack.c.b16 %v3689, %v3677
    %v4278 = vpack.c.b16 %v3690, %v3678
    %v4279 = vpack.c.b16 %v3691, %v3679
    %v4280 = vpack.c.b16 %v3692, %v3680
    %v4281 = vpack.c.b16 %v3693, %v3681
    %v4282 = vpack.c.b16 %v3694, %v3682
    %v4283 = vpack.c.b16 %v3707, %v3695
    %v4284 = vpack.c.b16 %v3708, %v3696
    %v4285 = vpack.c.b16 %v3709, %v3697
    %v4286 = vpack.c.b16 %v3710, %v3698
    %v4287 = vpack.c.b16 %v3711, %v3699
    %v4288 = vpack.c.b16 %v3712, %v3700
    %v4289 = vpack.c.b16 %v3713, %v3701
    %v4290 = vpack.c.b16 %v3714, %v3702
    %v4291 = vpack.c.b16 %v3715, %v3703
    %v4292 = vpack.c.b16 %v3716, %v3704
    %v4293 = vpack.c.b16 %v3717, %v3705
    %v4294 = vpack.c.b16 %v3718, %v3706
    %v4295 = vpack.c.b16 %v3731, %v3719
    %v4296 = vpack.c.b16 %v3732, %v3720
    %v4297 = vpack.c.b16 %v3733, %v3721
    %v4298 = vpack.c.b16 %v3734, %v3722
    %v4299 = vpack.c.b16 %v3735, %v3723
    %v4300 = vpack.c.b16 %v3736, %v3724
    %v4301 = vpack.c.b16 %v3737, %v3725
    %v4302 = vpack.c.b16 %v3738, %v3726
    %v4303 = vpack.c.b16 %v3739, %v3727
    %v4304 = vpack.c.b16 %v3740, %v3728
    %v4305 = vpack.c.b16 %v3741, %v3729
    %v4306 = vpack.c.b16 %v3742, %v3730
    %v4307 = vpack.c.b16 %v3755, %v3743
    %v4308 = vpack.c.b16 %v3756, %v3744
    %v4309 = vpack.c.b16 %v3757, %v3745
    %v4310 = vpack.c.b16 %v3758, %v3746
    %v4311 = vpack.c.b16 %v3759, %v3747
    %v4312 = vpack.c.b16 %v3760, %v3748
    %v4313 = vpack.c.b16 %v3761, %v3749
    %v4314 = vpack.c.b16 %v3762, %v3750
    %v4315 = vpack.c.b16 %v3763, %v3751
    %v4316 = vpack.c.b16 %v3764, %v3752
    %v4317 = vpack.c.b16 %v3765, %v3753
    %v4318 = vpack.c.b16 %v3766, %v3754
    %v4319 = vpack.c.b16 %v3779, %v3767
    %v4320 = vpack.c.b16 %v3780, %v3768
    %v4321 = vpack.c.b16 %v3781, %v3769
    %v4322 = vpack.c.b16 %v3782, %v3770
    %v4323 = vpack.c.b16 %v3783, %v3771
    %v4324 = vpack.c.b16 %v3784, %v3772
    %v4325 = vpack.c.b16 %v3785, %v3773
    %v4326 = vpack.c.b16 %v3786, %v3774
    %v4327 = vpack.c.b16 %v3787, %v3775
    %v4328 = vpack.c.b16 %v3788, %v3776
    %v4329 = vpack.c.b16 %v3789, %v3777
    %v4330 = vpack.c.b16 %v3790, %v3778
    %v4331 = vpack.c.b16 %v3803, %v3791
    %v4332 = vpack.c.b16 %v3804, %v3792
    %v4333 = vpack.c.b16 %v3805, %v3793
    %v4334 = vpack.c.b16 %v3806, %v3794
    %v4335 = vpack.c.b16 %v3807, %v3795
    %v4336 = vpack.c.b16 %v3808, %v3796
    %v4337 = vpack.c.b16 %v3809, %v3797
    %v4338 = vpack.c.b16 %v3810, %v3798
    %v4339 = vpack.c.b16 %v3811, %v3799
    %v4340 = vpack.c.b16 %v3812, %v3800
    %v4341 = vpack.c.b16 %v3813, %v3801
    %v4342 = vpack.c.b16 %v3814, %v3802
    %v4343 = vpack.c.b16 %v3827, %v3815
    %v4344 = vpack.c.b16 %v3828, %v3816
    %v4345 = vpack.c.b16 %v3829, %v3817
    %v4346 = vpack.c.b16 %v3830, %v3818
    %v4347 = vpack.c.b16 %v3831, %v3819
    %v4348 = vpack.c.b16 %v3832, %v3820
    %v4349 = vpack.c.b16 %v3833, %v3821
    %v4350 = vpack.c.b16 %v3834, %v3822
    %v4351 = vpack.c.b16 %v3835, %v3823
    %v4352 = vpack.c.b16 %v3836, %v3824
    %v4353 = vpack.c.b16 %v3837, %v3825
    %v4354 = vpack.c.b16 %v3838, %v3826
    %v4355 = vpack.c.b16 %v3851, %v3839
    %v4356 = vpack.c.b16 %v3852, %v3840
    %v4357 = vpack.c.b16 %v3853, %v3841
    %v4358 = vpack.c.b16 %v3854, %v3842
    %v4359 = vpack.c.b16 %v3855, %v3843
    %v4360 = vpack.c.b16 %v3856, %v3844
    %v4361 = vpack.c.b16 %v3857, %v3845
    %v4362 = vpack.c.b16 %v3858, %v3846
    %v4363 = vpack.c.b16 %v3859, %v3847
    %v4364 = vpack.c.b16 %v3860, %v3848
    %v4365 = vpack.c.b16 %v3861, %v3849
    %v4366 = vpack.c.b16 %v3862, %v3850
    %v4367 = vpack.c.b16 %v3875, %v3863
    %v4368 = vpack.c.b16 %v3876, %v3864
    %v4369 = vpack.c.b16 %v3877, %v3865
    %v4370 = vpack.c.b16 %v3878, %v3866
    %v4371 = vpack.c.b16 %v3879, %v3867
    %v4372 = vpack.c.b16 %v3880, %v3868
    %v4373 = vpack.c.b16 %v3881, %v3869
    %v4374 = vpack.c.b16 %v3882, %v3870
    %v4375 = vpack.c.b16 %v3883, %v3871
    %v4376 = vpack.c.b16 %v3884, %v3872
    %v4377 = vpack.c.b16 %v3885, %v3873
    %v4378 = vpack.c.b16 %v3886, %v3874
    %v4379 = vpack.c.b16 %v3899, %v3887
    %v4380 = vpack.c.b16 %v3900, %v3888
    %v4381 = vpack.c.b16 %v3901, %v3889
    %v4382 = vpack.c.b16 %v3902, %v3890
    %v4383 = vpack.c.b16 %v3903, %v3891
    %v4384 = vpack.c.b16 %v3904, %v3892
    %v4385 = vpack.c.b16 %v3905, %v3893
    %v4386 = vpack.c.b16 %v3906, %v3894
    %v4387 = vpack.c.b16 %v3907, %v3895
    %v4388 = vpack.c.b16 %v3908, %v3896
    %v4389 = vpack.c.b16 %v3909, %v3897
    %v4390 = vpack.c.b16 %v3910, %v3898
    %v4391 = vpack.c.b16 %v3923, %v3911
    %v4392 = vpack.c.b16 %v3924, %v3912
    %v4393 = vpack.c.b16 %v3925, %v3913
    %v4394 = vpack.c.b16 %v3926, %v3914
    %v4395 = vpack.c.b16 %v3927, %v3915
    %v4396 = vpack.c.b16 %v3928, %v3916
    %v4397 = vpack.c.b16 %v3929, %v3917
    %v4398 = vpack.c.b16 %v3930, %v3918
    %v4399 = vpack.c.b16 %v3931, %v3919
    %v4400 = vpack.c.b16 %v3932, %v3920
    %v4401 = vpack.c.b16 %v3933, %v3921
    %v4402 = vpack.c.b16 %v3934, %v3922
    %v4403 = vpack.c.b16 %v3947, %v3935
    %v4404 = vpack.c.b16 %v3948, %v3936
    %v4405 = vpack.c.b16 %v3949, %v3937
    %v4406 = vpack.c.b16 %v3950, %v3938
    %v4407 = vpack.c.b16 %v3951, %v3939
    %v4408 = vpack.c.b16 %v3952, %v3940
    %v4409 = vpack.c.b16 %v3953, %v3941
    %v4410 = vpack.c.b16 %v3954, %v3942
    %v4411 = vpack.c.b16 %v3955, %v3943
    %v4412 = vpack.c.b16 %v3956, %v3944
    %v4413 = vpack.c.b16 %v3957, %v3945
    %v4414 = vpack.c.b16 %v3958, %v3946
    %v4415 = vpack.c.b16 %v3971, %v3959
    %v4416 = vpack.c.b16 %v3972, %v3960
    %v4417 = vpack.c.b16 %v3973, %v3961
    %v4418 = vpack.c.b16 %v3974, %v3962
    %v4419 = vpack.c.b16 %v3975, %v3963
    %v4420 = vpack.c.b16 %v3976, %v3964
    %v4421 = vpack.c.b16 %v3977, %v3965
    %v4422 = vpack.c.b16 %v3978, %v3966
    %v4423 = vpack.c.b16 %v3979, %v3967
    %v4424 = vpack.c.b16 %v3980, %v3968
    %v4425 = vpack.c.b16 %v3981, %v3969
    %v4426 = vpack.c.b16 %v3982, %v3970
    %v4427 = vpack.c.b16 %v3995, %v3983
    %v4428 = vpack.c.b16 %v3996, %v3984
    %v4429 = vpack.c.b16 %v3997, %v3985
    %v4430 = vpack.c.b16 %v3998, %v3986
    %v4431 = vpack.c.b16 %v3999, %v3987
    %v4432 = vpack.c.b16 %v4000, %v3988
    %v4433 = vpack.c.b16 %v4001, %v3989
    %v4434 = vpack.c.b16 %v4002, %v3990
    %v4435 = vpack.c.b16 %v4003, %v3991
    %v4436 = vpack.c.b16 %v4004, %v3992
    %v4437 = vpack.c.b16 %v4005, %v3993
    %v4438 = vpack.c.b16 %v4006, %v3994
    %v4439 = vpack.c.b16 %v4019, %v4007
    %v4440 = vpack.c.b16 %v4020, %v4008
    %v4441 = vpack.c.b16 %v4021, %v4009
    %v4442 = vpack.c.b16 %v4022, %v4010
    %v4443 = vpack.c.b16 %v4023, %v4011
    %v4444 = vpack.c.b16 %v4024, %v4012
    %v4445 = vpack.c.b16 %v4025, %v4013
    %v4446 = vpack.c.b16 %v4026, %v4014
    %v4447 = vpack.c.b16 %v4027, %v4015
    %v4448 = vpack.c.b16 %v4028, %v4016
    %v4449 = vpack.c.b16 %v4029, %v4017
    %v4450 = vpack.c.b16 %v4030, %v4018
    %v4451 = vpack.c.b16 %v4043, %v4031
    %v4452 = vpack.c.b16 %v4044, %v4032
    %v4453 = vpack.c.b16 %v4045, %v4033
    %v4454 = vpack.c.b16 %v4046, %v4034
    %v4455 = vpack.c.b16 %v4047, %v4035
    %v4456 = vpack.c.b16 %v4048, %v4036
    %v4457 = vpack.c.b16 %v4049, %v4037
    %v4458 = vpack.c.b16 %v4050, %v4038
    %v4459 = vpack.c.b16 %v4051, %v4039
    %v4460 = vpack.c.b16 %v4052, %v4040
    %v4461 = vpack.c.b16 %v4053, %v4041
    %v4462 = vpack.c.b16 %v4054, %v4042
    %v4463 = vpack.c.b16 %v4067, %v4055
    %v4464 = vpack.c.b16 %v4068, %v4056
    %v4465 = vpack.c.b16 %v4069, %v4057
    %v4466 = vpack.c.b16 %v4070, %v4058
    %v4467 = vpack.c.b16 %v4071, %v4059
    %v4468 = vpack.c.b16 %v4072, %v4060
    %v4469 = vpack.c.b16 %v4073, %v4061
    %v4470 = vpack.c.b16 %v4074, %v4062
    %v4471 = vpack.c.b16 %v4075, %v4063
    %v4472 = vpack.c.b16 %v4076, %v4064
    %v4473 = vpack.c.b16 %v4077, %v4065
    %v4474 = vpack.c.b16 %v4078, %v4066
    %v4475 = vpack.c.b16 %v4091, %v4079
    %v4476 = vpack.c.b16 %v4092, %v4080
    %v4477 = vpack.c.b16 %v4093, %v4081
    %v4478 = vpack.c.b16 %v4094, %v4082
    %v4479 = vpack.c.b16 %v4095, %v4083
    %v4480 = vpack.c.b16 %v4096, %v4084
    %v4481 = vpack.c.b16 %v4097, %v4085
    %v4482 = vpack.c.b16 %v4098, %v4086
    %v4483 = vpack.c.b16 %v4099, %v4087
    %v4484 = vpack.c.b16 %v4100, %v4088
    %v4485 = vpack.c.b16 %v4101, %v4089
    %v4486 = vpack.c.b16 %v4102, %v4090
    %4871 = vmatprep.subr.bf16.mxu0 %v4188
    %4872 = vmatpush1.bf16.msra.mxu0 %v4187
    %4873 = vmatprep.subr.bf16.mxu0 %v4176
    %4874 = vmatpush1.bf16.msra.mxu0 %v4175
    %4875 = vmatprep.subr.bf16.mxu0 %v4164
    %4876 = vmatpush1.bf16.msra.mxu0 %v4163
    %4877 = vmatprep.subr.bf16.mxu0 %v4152
    %4878 = vmatpush1.bf16.msra.mxu0 %v4151
    %4879 = vmatprep.subr.bf16.mxu0 %v4140
    %4880 = vmatpush1.bf16.msra.mxu0 %v4139
    %4881 = vmatprep.subr.bf16.mxu0 %v4128
    %4882 = vmatpush1.bf16.msra.mxu0 %v4127
    %4883 = vmatprep.subr.bf16.mxu0 %v4116
    %4884 = vmatpush1.bf16.msra.mxu0 %v4115
    %4885 = vmatprep.subr.bf16.mxu0 %v4104
    %4886 = vmatpush1.bf16.msra.mxu0 %v4103
    %4887 = vmatprep.subr.bf16.mxu0 %v4284
    %4888 = vmatpush2.bf16.msra.mxu0 %v4283
    %4889 = vmatprep.subr.bf16.mxu0 %v4272
    %4890 = vmatpush2.bf16.msra.mxu0 %v4271
    %4891 = vmatprep.subr.bf16.mxu0 %v4260
    %4892 = vmatpush2.bf16.msra.mxu0 %v4259
    %4893 = vmatprep.subr.bf16.mxu0 %v4248
    %4894 = vmatpush2.bf16.msra.mxu0 %v4247
    %4895 = vmatprep.subr.bf16.mxu0 %v4236
    %4896 = vmatpush2.bf16.msra.mxu0 %v4235
    %4897 = vmatprep.subr.bf16.mxu0 %v4224
    %4898 = vmatpush2.bf16.msra.mxu0 %v4223
    %4899 = vmatprep.subr.bf16.mxu0 %v4212
    %4900 = vmatpush2.bf16.msra.mxu0 %v4211
    %4901 = vmatprep.subr.bf16.mxu0 %v4200
    %4902 = vmatpush2.bf16.msra.mxu0 %v4199
    %4903 = vmatprep.mubr.bf16.mxu0 %v2948
    %4904 = vmatmul.mubr.bf16.gmra.mxu0 %v2947
    %v4905 = vpop.f32.mrf.mxu0
    %v4906 = vadd.f32 0.0, %v4905
    %v4907 = vpop.f32.mrf.mxu0
    %v4908 = vadd.f32 0.0, %v4907
    %v4909 = vpop.f32.mrf.mxu0
    %v4910 = vpop.f32.mrf.mxu0
    %4911 = vdwg.mxu0
    %4912 = vmatprep.subr.bf16.mxu0 %v4380
    %4913 = vmatpush1.bf16.msra.mxu0 %v4379
    %4914 = vmatprep.subr.bf16.mxu0 %v4368
    %4915 = vmatpush1.bf16.msra.mxu0 %v4367
    %4916 = vmatprep.subr.bf16.mxu0 %v4356
    %4917 = vmatpush1.bf16.msra.mxu0 %v4355
    %4918 = vmatprep.subr.bf16.mxu0 %v4344
    %4919 = vmatpush1.bf16.msra.mxu0 %v4343
    %4920 = vmatprep.subr.bf16.mxu0 %v4332
    %4921 = vmatpush1.bf16.msra.mxu0 %v4331
    %4922 = vmatprep.subr.bf16.mxu0 %v4320
    %4923 = vmatpush1.bf16.msra.mxu0 %v4319
    %4924 = vmatprep.subr.bf16.mxu0 %v4308
    %4925 = vmatpush1.bf16.msra.mxu0 %v4307
    %4926 = vmatprep.subr.bf16.mxu0 %v4296
    %4927 = vmatpush1.bf16.msra.mxu0 %v4295
    %4928 = vmatprep.subr.bf16.mxu0 %v4476
    %4929 = vmatpush2.bf16.msra.mxu0 %v4475
    %4930 = vmatprep.subr.bf16.mxu0 %v4464
    %4931 = vmatpush2.bf16.msra.mxu0 %v4463
    %4932 = vmatprep.subr.bf16.mxu0 %v4452
    %4933 = vmatpush2.bf16.msra.mxu0 %v4451
    %4934 = vmatprep.subr.bf16.mxu0 %v4440
    %4935 = vmatpush2.bf16.msra.mxu0 %v4439
    %4936 = vmatprep.subr.bf16.mxu0 %v4428
    %4937 = vmatpush2.bf16.msra.mxu0 %v4427
    %4938 = vmatprep.subr.bf16.mxu0 %v4416
    %4939 = vmatpush2.bf16.msra.mxu0 %v4415
    %4940 = vmatprep.subr.bf16.mxu0 %v4404
    %4941 = vmatpush2.bf16.msra.mxu0 %v4403
    %4942 = vmatprep.subr.bf16.mxu0 %v4392
    %4943 = vmatpush2.bf16.msra.mxu0 %v4391
    %4944 = vmatprep.mubr.bf16.mxu0 %v2950
    %4945 = vmatmul.mubr.bf16.gmra.mxu0 %v2949
    %v4946 = vpop.f32.mrf.mxu0
    %v4947 = vadd.f32 %v4906, %v4946
    %v4948 = vpop.f32.mrf.mxu0
    %v4949 = vadd.f32 %v4908, %v4948
    %v4950 = vpop.f32.mrf.mxu0
    %v4951 = vpop.f32.mrf.mxu0
    %4952 = vdwg.mxu0
    %4953 = vmatprep.subr.bf16.mxu0 %v4190
    %4954 = vmatpush1.bf16.msra.mxu0 %v4189
    %4955 = vmatprep.subr.bf16.mxu0 %v4178
    %4956 = vmatpush1.bf16.msra.mxu0 %v4177
    %4957 = vmatprep.subr.bf16.mxu0 %v4166
    %4958 = vmatpush1.bf16.msra.mxu0 %v4165
    %4959 = vmatprep.subr.bf16.mxu0 %v4154
    %4960 = vmatpush1.bf16.msra.mxu0 %v4153
    %4961 = vmatprep.subr.bf16.mxu0 %v4142
    %4962 = vmatpush1.bf16.msra.mxu0 %v4141
    %4963 = vmatprep.subr.bf16.mxu0 %v4130
    %4964 = vmatpush1.bf16.msra.mxu0 %v4129
    %4965 = vmatprep.subr.bf16.mxu0 %v4118
    %4966 = vmatpush1.bf16.msra.mxu0 %v4117
    %4967 = vmatprep.subr.bf16.mxu0 %v4106
    %4968 = vmatpush1.bf16.msra.mxu0 %v4105
    %4969 = vmatprep.subr.bf16.mxu0 %v4286
    %4970 = vmatpush2.bf16.msra.mxu0 %v4285
    %4971 = vmatprep.subr.bf16.mxu0 %v4274
    %4972 = vmatpush2.bf16.msra.mxu0 %v4273
    %4973 = vmatprep.subr.bf16.mxu0 %v4262
    %4974 = vmatpush2.bf16.msra.mxu0 %v4261
    %4975 = vmatprep.subr.bf16.mxu0 %v4250
    %4976 = vmatpush2.bf16.msra.mxu0 %v4249
    %4977 = vmatprep.subr.bf16.mxu0 %v4238
    %4978 = vmatpush2.bf16.msra.mxu0 %v4237
    %4979 = vmatprep.subr.bf16.mxu0 %v4226
    %4980 = vmatpush2.bf16.msra.mxu0 %v4225
    %4981 = vmatprep.subr.bf16.mxu0 %v4214
    %4982 = vmatpush2.bf16.msra.mxu0 %v4213
    %4983 = vmatprep.subr.bf16.mxu0 %v4202
    %4984 = vmatpush2.bf16.msra.mxu0 %v4201
    %4985 = vmatprep.mubr.bf16.mxu0 %v2948
    %4986 = vmatmul.mubr.bf16.gmra.mxu0 %v2947
    %v4987 = vpop.f32.mrf.mxu0
    %v4988 = vadd.f32 0.0, %v4987
    %v4989 = vpop.f32.mrf.mxu0
    %v4990 = vadd.f32 0.0, %v4989
    %v4991 = vpop.f32.mrf.mxu0
    %v4992 = vpop.f32.mrf.mxu0
    %4993 = vdwg.mxu0
    %4994 = vmatprep.subr.bf16.mxu0 %v4382
    %4995 = vmatpush1.bf16.msra.mxu0 %v4381
    %4996 = vmatprep.subr.bf16.mxu0 %v4370
    %4997 = vmatpush1.bf16.msra.mxu0 %v4369
    %4998 = vmatprep.subr.bf16.mxu0 %v4358
    %4999 = vmatpush1.bf16.msra.mxu0 %v4357
    %5000 = vmatprep.subr.bf16.mxu0 %v4346
    %5001 = vmatpush1.bf16.msra.mxu0 %v4345
    %5002 = vmatprep.subr.bf16.mxu0 %v4334
    %5003 = vmatpush1.bf16.msra.mxu0 %v4333
    %5004 = vmatprep.subr.bf16.mxu0 %v4322
    %5005 = vmatpush1.bf16.msra.mxu0 %v4321
    %5006 = vmatprep.subr.bf16.mxu0 %v4310
    %5007 = vmatpush1.bf16.msra.mxu0 %v4309
    %5008 = vmatprep.subr.bf16.mxu0 %v4298
    %5009 = vmatpush1.bf16.msra.mxu0 %v4297
    %5010 = vmatprep.subr.bf16.mxu0 %v4478
    %5011 = vmatpush2.bf16.msra.mxu0 %v4477
    %5012 = vmatprep.subr.bf16.mxu0 %v4466
    %5013 = vmatpush2.bf16.msra.mxu0 %v4465
    %5014 = vmatprep.subr.bf16.mxu0 %v4454
    %5015 = vmatpush2.bf16.msra.mxu0 %v4453
    %5016 = vmatprep.subr.bf16.mxu0 %v4442
    %5017 = vmatpush2.bf16.msra.mxu0 %v4441
    %5018 = vmatprep.subr.bf16.mxu0 %v4430
    %5019 = vmatpush2.bf16.msra.mxu0 %v4429
    %5020 = vmatprep.subr.bf16.mxu0 %v4418
    %5021 = vmatpush2.bf16.msra.mxu0 %v4417
    %5022 = vmatprep.subr.bf16.mxu0 %v4406
    %5023 = vmatpush2.bf16.msra.mxu0 %v4405
    %5024 = vmatprep.subr.bf16.mxu0 %v4394
    %5025 = vmatpush2.bf16.msra.mxu0 %v4393
    %5026 = vmatprep.mubr.bf16.mxu0 %v2950
    %5027 = vmatmul.mubr.bf16.gmra.mxu0 %v2949
    %v5028 = vpop.f32.mrf.mxu0
    %v5029 = vadd.f32 %v4988, %v5028
    %v5030 = vpop.f32.mrf.mxu0
    %v5031 = vadd.f32 %v4990, %v5030
    %v5032 = vpop.f32.mrf.mxu0
    %v5033 = vpop.f32.mrf.mxu0
    %5034 = vdwg.mxu0
    %5035 = vmatprep.subr.bf16.mxu0 %v4192
    %5036 = vmatpush1.bf16.msra.mxu0 %v4191
    %5037 = vmatprep.subr.bf16.mxu0 %v4180
    %5038 = vmatpush1.bf16.msra.mxu0 %v4179
    %5039 = vmatprep.subr.bf16.mxu0 %v4168
    %5040 = vmatpush1.bf16.msra.mxu0 %v4167
    %5041 = vmatprep.subr.bf16.mxu0 %v4156
    %5042 = vmatpush1.bf16.msra.mxu0 %v4155
    %5043 = vmatprep.subr.bf16.mxu0 %v4144
    %5044 = vmatpush1.bf16.msra.mxu0 %v4143
    %5045 = vmatprep.subr.bf16.mxu0 %v4132
    %5046 = vmatpush1.bf16.msra.mxu0 %v4131
    %5047 = vmatprep.subr.bf16.mxu0 %v4120
    %5048 = vmatpush1.bf16.msra.mxu0 %v4119
    %5049 = vmatprep.subr.bf16.mxu0 %v4108
    %5050 = vmatpush1.bf16.msra.mxu0 %v4107
    %5051 = vmatprep.subr.bf16.mxu0 %v4288
    %5052 = vmatpush2.bf16.msra.mxu0 %v4287
    %5053 = vmatprep.subr.bf16.mxu0 %v4276
    %5054 = vmatpush2.bf16.msra.mxu0 %v4275
    %5055 = vmatprep.subr.bf16.mxu0 %v4264
    %5056 = vmatpush2.bf16.msra.mxu0 %v4263
    %5057 = vmatprep.subr.bf16.mxu0 %v4252
    %5058 = vmatpush2.bf16.msra.mxu0 %v4251
    %5059 = vmatprep.subr.bf16.mxu0 %v4240
    %5060 = vmatpush2.bf16.msra.mxu0 %v4239
    %5061 = vmatprep.subr.bf16.mxu0 %v4228
    %5062 = vmatpush2.bf16.msra.mxu0 %v4227
    %5063 = vmatprep.subr.bf16.mxu0 %v4216
    %5064 = vmatpush2.bf16.msra.mxu0 %v4215
    %5065 = vmatprep.subr.bf16.mxu0 %v4204
    %5066 = vmatpush2.bf16.msra.mxu0 %v4203
    %5067 = vmatprep.mubr.bf16.mxu0 %v2948
    %5068 = vmatmul.mubr.bf16.gmra.mxu0 %v2947
    %v5069 = vpop.f32.mrf.mxu0
    %v5070 = vadd.f32 0.0, %v5069
    %v5071 = vpop.f32.mrf.mxu0
    %v5072 = vadd.f32 0.0, %v5071
    %v5073 = vpop.f32.mrf.mxu0
    %v5074 = vpop.f32.mrf.mxu0
    %5075 = vdwg.mxu0
    %5076 = vmatprep.subr.bf16.mxu0 %v4384
    %5077 = vmatpush1.bf16.msra.mxu0 %v4383
    %5078 = vmatprep.subr.bf16.mxu0 %v4372
    %5079 = vmatpush1.bf16.msra.mxu0 %v4371
    %5080 = vmatprep.subr.bf16.mxu0 %v4360
    %5081 = vmatpush1.bf16.msra.mxu0 %v4359
    %5082 = vmatprep.subr.bf16.mxu0 %v4348
    %5083 = vmatpush1.bf16.msra.mxu0 %v4347
    %5084 = vmatprep.subr.bf16.mxu0 %v4336
    %5085 = vmatpush1.bf16.msra.mxu0 %v4335
    %5086 = vmatprep.subr.bf16.mxu0 %v4324
    %5087 = vmatpush1.bf16.msra.mxu0 %v4323
    %5088 = vmatprep.subr.bf16.mxu0 %v4312
    %5089 = vmatpush1.bf16.msra.mxu0 %v4311
    %5090 = vmatprep.subr.bf16.mxu0 %v4300
    %5091 = vmatpush1.bf16.msra.mxu0 %v4299
    %5092 = vmatprep.subr.bf16.mxu0 %v4480
    %5093 = vmatpush2.bf16.msra.mxu0 %v4479
    %5094 = vmatprep.subr.bf16.mxu0 %v4468
    %5095 = vmatpush2.bf16.msra.mxu0 %v4467
    %5096 = vmatprep.subr.bf16.mxu0 %v4456
    %5097 = vmatpush2.bf16.msra.mxu0 %v4455
    %5098 = vmatprep.subr.bf16.mxu0 %v4444
    %5099 = vmatpush2.bf16.msra.mxu0 %v4443
    %5100 = vmatprep.subr.bf16.mxu0 %v4432
    %5101 = vmatpush2.bf16.msra.mxu0 %v4431
    %5102 = vmatprep.subr.bf16.mxu0 %v4420
    %5103 = vmatpush2.bf16.msra.mxu0 %v4419
    %5104 = vmatprep.subr.bf16.mxu0 %v4408
    %5105 = vmatpush2.bf16.msra.mxu0 %v4407
    %5106 = vmatprep.subr.bf16.mxu0 %v4396
    %5107 = vmatpush2.bf16.msra.mxu0 %v4395
    %5108 = vmatprep.mubr.bf16.mxu0 %v2950
    %5109 = vmatmul.mubr.bf16.gmra.mxu0 %v2949
    %v5110 = vpop.f32.mrf.mxu0
    %v5111 = vadd.f32 %v5070, %v5110
    %v5112 = vpop.f32.mrf.mxu0
    %v5113 = vadd.f32 %v5072, %v5112
    %v5114 = vpop.f32.mrf.mxu0
    %v5115 = vpop.f32.mrf.mxu0
    %5116 = vdwg.mxu0
    %5117 = vmatprep.subr.bf16.mxu0 %v4194
    %5118 = vmatpush1.bf16.msra.mxu0 %v4193
    %5119 = vmatprep.subr.bf16.mxu0 %v4182
    %5120 = vmatpush1.bf16.msra.mxu0 %v4181
    %5121 = vmatprep.subr.bf16.mxu0 %v4170
    %5122 = vmatpush1.bf16.msra.mxu0 %v4169
    %5123 = vmatprep.subr.bf16.mxu0 %v4158
    %5124 = vmatpush1.bf16.msra.mxu0 %v4157
    %5125 = vmatprep.subr.bf16.mxu0 %v4146
    %5126 = vmatpush1.bf16.msra.mxu0 %v4145
    %5127 = vmatprep.subr.bf16.mxu0 %v4134
    %5128 = vmatpush1.bf16.msra.mxu0 %v4133
    %5129 = vmatprep.subr.bf16.mxu0 %v4122
    %5130 = vmatpush1.bf16.msra.mxu0 %v4121
    %5131 = vmatprep.subr.bf16.mxu0 %v4110
    %5132 = vmatpush1.bf16.msra.mxu0 %v4109
    %5133 = vmatprep.subr.bf16.mxu0 %v4290
    %5134 = vmatpush2.bf16.msra.mxu0 %v4289
    %5135 = vmatprep.subr.bf16.mxu0 %v4278
    %5136 = vmatpush2.bf16.msra.mxu0 %v4277
    %5137 = vmatprep.subr.bf16.mxu0 %v4266
    %5138 = vmatpush2.bf16.msra.mxu0 %v4265
    %5139 = vmatprep.subr.bf16.mxu0 %v4254
    %5140 = vmatpush2.bf16.msra.mxu0 %v4253
    %5141 = vmatprep.subr.bf16.mxu0 %v4242
    %5142 = vmatpush2.bf16.msra.mxu0 %v4241
    %5143 = vmatprep.subr.bf16.mxu0 %v4230
    %5144 = vmatpush2.bf16.msra.mxu0 %v4229
    %5145 = vmatprep.subr.bf16.mxu0 %v4218
    %5146 = vmatpush2.bf16.msra.mxu0 %v4217
    %5147 = vmatprep.subr.bf16.mxu0 %v4206
    %5148 = vmatpush2.bf16.msra.mxu0 %v4205
    %5149 = vmatprep.mubr.bf16.mxu0 %v2948
    %5150 = vmatmul.mubr.bf16.gmra.mxu0 %v2947
    %v5151 = vpop.f32.mrf.mxu0
    %v5152 = vadd.f32 0.0, %v5151
    %v5153 = vpop.f32.mrf.mxu0
    %v5154 = vadd.f32 0.0, %v5153
    %v5155 = vpop.f32.mrf.mxu0
    %v5156 = vpop.f32.mrf.mxu0
    %5157 = vdwg.mxu0
    %5158 = vmatprep.subr.bf16.mxu0 %v4386
    %5159 = vmatpush1.bf16.msra.mxu0 %v4385
    %5160 = vmatprep.subr.bf16.mxu0 %v4374
    %5161 = vmatpush1.bf16.msra.mxu0 %v4373
    %5162 = vmatprep.subr.bf16.mxu0 %v4362
    %5163 = vmatpush1.bf16.msra.mxu0 %v4361
    %5164 = vmatprep.subr.bf16.mxu0 %v4350
    %5165 = vmatpush1.bf16.msra.mxu0 %v4349
    %5166 = vmatprep.subr.bf16.mxu0 %v4338
    %5167 = vmatpush1.bf16.msra.mxu0 %v4337
    %5168 = vmatprep.subr.bf16.mxu0 %v4326
    %5169 = vmatpush1.bf16.msra.mxu0 %v4325
    %5170 = vmatprep.subr.bf16.mxu0 %v4314
    %5171 = vmatpush1.bf16.msra.mxu0 %v4313
    %5172 = vmatprep.subr.bf16.mxu0 %v4302
    %5173 = vmatpush1.bf16.msra.mxu0 %v4301
    %5174 = vmatprep.subr.bf16.mxu0 %v4482
    %5175 = vmatpush2.bf16.msra.mxu0 %v4481
    %5176 = vmatprep.subr.bf16.mxu0 %v4470
    %5177 = vmatpush2.bf16.msra.mxu0 %v4469
    %5178 = vmatprep.subr.bf16.mxu0 %v4458
    %5179 = vmatpush2.bf16.msra.mxu0 %v4457
    %5180 = vmatprep.subr.bf16.mxu0 %v4446
    %5181 = vmatpush2.bf16.msra.mxu0 %v4445
    %5182 = vmatprep.subr.bf16.mxu0 %v4434
    %5183 = vmatpush2.bf16.msra.mxu0 %v4433
    %5184 = vmatprep.subr.bf16.mxu0 %v4422
    %5185 = vmatpush2.bf16.msra.mxu0 %v4421
    %5186 = vmatprep.subr.bf16.mxu0 %v4410
    %5187 = vmatpush2.bf16.msra.mxu0 %v4409
    %5188 = vmatprep.subr.bf16.mxu0 %v4398
    %5189 = vmatpush2.bf16.msra.mxu0 %v4397
    %5190 = vmatprep.mubr.bf16.mxu0 %v2950
    %5191 = vmatmul.mubr.bf16.gmra.mxu0 %v2949
    %v5192 = vpop.f32.mrf.mxu0
    %v5193 = vadd.f32 %v5152, %v5192
    %v5194 = vpop.f32.mrf.mxu0
    %v5195 = vadd.f32 %v5154, %v5194
    %v5196 = vpop.f32.mrf.mxu0
    %v5197 = vpop.f32.mrf.mxu0
    %5198 = vdwg.mxu0
    %5199 = vmatprep.subr.bf16.mxu0 %v4196
    %5200 = vmatpush1.bf16.msra.mxu0 %v4195
    %5201 = vmatprep.subr.bf16.mxu0 %v4184
    %5202 = vmatpush1.bf16.msra.mxu0 %v4183
    %5203 = vmatprep.subr.bf16.mxu0 %v4172
    %5204 = vmatpush1.bf16.msra.mxu0 %v4171
    %5205 = vmatprep.subr.bf16.mxu0 %v4160
    %5206 = vmatpush1.bf16.msra.mxu0 %v4159
    %5207 = vmatprep.subr.bf16.mxu0 %v4148
    %5208 = vmatpush1.bf16.msra.mxu0 %v4147
    %5209 = vmatprep.subr.bf16.mxu0 %v4136
    %5210 = vmatpush1.bf16.msra.mxu0 %v4135
    %5211 = vmatprep.subr.bf16.mxu0 %v4124
    %5212 = vmatpush1.bf16.msra.mxu0 %v4123
    %5213 = vmatprep.subr.bf16.mxu0 %v4112
    %5214 = vmatpush1.bf16.msra.mxu0 %v4111
    %5215 = vmatprep.subr.bf16.mxu0 %v4292
    %5216 = vmatpush2.bf16.msra.mxu0 %v4291
    %5217 = vmatprep.subr.bf16.mxu0 %v4280
    %5218 = vmatpush2.bf16.msra.mxu0 %v4279
    %5219 = vmatprep.subr.bf16.mxu0 %v4268
    %5220 = vmatpush2.bf16.msra.mxu0 %v4267
    %5221 = vmatprep.subr.bf16.mxu0 %v4256
    %5222 = vmatpush2.bf16.msra.mxu0 %v4255
    %5223 = vmatprep.subr.bf16.mxu0 %v4244
    %5224 = vmatpush2.bf16.msra.mxu0 %v4243
    %5225 = vmatprep.subr.bf16.mxu0 %v4232
    %5226 = vmatpush2.bf16.msra.mxu0 %v4231
    %5227 = vmatprep.subr.bf16.mxu0 %v4220
    %5228 = vmatpush2.bf16.msra.mxu0 %v4219
    %5229 = vmatprep.subr.bf16.mxu0 %v4208
    %5230 = vmatpush2.bf16.msra.mxu0 %v4207
    %5231 = vmatprep.mubr.bf16.mxu0 %v2948
    %5232 = vmatmul.mubr.bf16.gmra.mxu0 %v2947
    %v5233 = vpop.f32.mrf.mxu0
    %v5234 = vadd.f32 0.0, %v5233
    %v5235 = vpop.f32.mrf.mxu0
    %v5236 = vadd.f32 0.0, %v5235
    %v5237 = vpop.f32.mrf.mxu0
    %v5238 = vpop.f32.mrf.mxu0
    %5239 = vdwg.mxu0
    %5240 = vmatprep.subr.bf16.mxu0 %v4388
    %5241 = vmatpush1.bf16.msra.mxu0 %v4387
    %5242 = vmatprep.subr.bf16.mxu0 %v4376
    %5243 = vmatpush1.bf16.msra.mxu0 %v4375
    %5244 = vmatprep.subr.bf16.mxu0 %v4364
    %5245 = vmatpush1.bf16.msra.mxu0 %v4363
    %5246 = vmatprep.subr.bf16.mxu0 %v4352
    %5247 = vmatpush1.bf16.msra.mxu0 %v4351
    %5248 = vmatprep.subr.bf16.mxu0 %v4340
    %5249 = vmatpush1.bf16.msra.mxu0 %v4339
    %5250 = vmatprep.subr.bf16.mxu0 %v4328
    %5251 = vmatpush1.bf16.msra.mxu0 %v4327
    %5252 = vmatprep.subr.bf16.mxu0 %v4316
    %5253 = vmatpush1.bf16.msra.mxu0 %v4315
    %5254 = vmatprep.subr.bf16.mxu0 %v4304
    %5255 = vmatpush1.bf16.msra.mxu0 %v4303
    %5256 = vmatprep.subr.bf16.mxu0 %v4484
    %5257 = vmatpush2.bf16.msra.mxu0 %v4483
    %5258 = vmatprep.subr.bf16.mxu0 %v4472
    %5259 = vmatpush2.bf16.msra.mxu0 %v4471
    %5260 = vmatprep.subr.bf16.mxu0 %v4460
    %5261 = vmatpush2.bf16.msra.mxu0 %v4459
    %5262 = vmatprep.subr.bf16.mxu0 %v4448
    %5263 = vmatpush2.bf16.msra.mxu0 %v4447
    %5264 = vmatprep.subr.bf16.mxu0 %v4436
    %5265 = vmatpush2.bf16.msra.mxu0 %v4435
    %5266 = vmatprep.subr.bf16.mxu0 %v4424
    %5267 = vmatpush2.bf16.msra.mxu0 %v4423
    %5268 = vmatprep.subr.bf16.mxu0 %v4412
    %5269 = vmatpush2.bf16.msra.mxu0 %v4411
    %5270 = vmatprep.subr.bf16.mxu0 %v4400
    %5271 = vmatpush2.bf16.msra.mxu0 %v4399
    %5272 = vmatprep.mubr.bf16.mxu0 %v2950
    %5273 = vmatmul.mubr.bf16.gmra.mxu0 %v2949
    %v5274 = vpop.f32.mrf.mxu0
    %v5275 = vadd.f32 %v5234, %v5274
    %v5276 = vpop.f32.mrf.mxu0
    %v5277 = vadd.f32 %v5236, %v5276
    %v5278 = vpop.f32.mrf.mxu0
    %v5279 = vpop.f32.mrf.mxu0
    %5280 = vdwg.mxu0
    %5281 = vmatprep.subr.bf16.mxu0 %v4198
    %5282 = vmatpush1.bf16.msra.mxu0 %v4197
    %5283 = vmatprep.subr.bf16.mxu0 %v4186
    %5284 = vmatpush1.bf16.msra.mxu0 %v4185
    %5285 = vmatprep.subr.bf16.mxu0 %v4174
    %5286 = vmatpush1.bf16.msra.mxu0 %v4173
    %5287 = vmatprep.subr.bf16.mxu0 %v4162
    %5288 = vmatpush1.bf16.msra.mxu0 %v4161
    %5289 = vmatprep.subr.bf16.mxu0 %v4150
    %5290 = vmatpush1.bf16.msra.mxu0 %v4149
    %5291 = vmatprep.subr.bf16.mxu0 %v4138
    %5292 = vmatpush1.bf16.msra.mxu0 %v4137
    %5293 = vmatprep.subr.bf16.mxu0 %v4126
    %5294 = vmatpush1.bf16.msra.mxu0 %v4125
    %5295 = vmatprep.subr.bf16.mxu0 %v4114
    %5296 = vmatpush1.bf16.msra.mxu0 %v4113
    %5297 = vmatprep.subr.bf16.mxu0 %v4294
    %5298 = vmatpush2.bf16.msra.mxu0 %v4293
    %5299 = vmatprep.subr.bf16.mxu0 %v4282
    %5300 = vmatpush2.bf16.msra.mxu0 %v4281
    %5301 = vmatprep.subr.bf16.mxu0 %v4270
    %5302 = vmatpush2.bf16.msra.mxu0 %v4269
    %5303 = vmatprep.subr.bf16.mxu0 %v4258
    %5304 = vmatpush2.bf16.msra.mxu0 %v4257
    %5305 = vmatprep.subr.bf16.mxu0 %v4246
    %5306 = vmatpush2.bf16.msra.mxu0 %v4245
    %5307 = vmatprep.subr.bf16.mxu0 %v4234
    %5308 = vmatpush2.bf16.msra.mxu0 %v4233
    %5309 = vmatprep.subr.bf16.mxu0 %v4222
    %5310 = vmatpush2.bf16.msra.mxu0 %v4221
    %5311 = vmatprep.subr.bf16.mxu0 %v4210
    %5312 = vmatpush2.bf16.msra.mxu0 %v4209
    %5313 = vmatprep.mubr.bf16.mxu0 %v2948
    %5314 = vmatmul.mubr.bf16.gmra.mxu0 %v2947
    %v5315 = vpop.f32.mrf.mxu0
    %v5316 = vadd.f32 0.0, %v5315
    %v5317 = vpop.f32.mrf.mxu0
    %v5318 = vadd.f32 0.0, %v5317
    %v5319 = vpop.f32.mrf.mxu0
    %v5320 = vpop.f32.mrf.mxu0
    %5321 = vdwg.mxu0
    %5322 = vmatprep.subr.bf16.mxu0 %v4390
    %5323 = vmatpush1.bf16.msra.mxu0 %v4389
    %5324 = vmatprep.subr.bf16.mxu0 %v4378
    %5325 = vmatpush1.bf16.msra.mxu0 %v4377
    %5326 = vmatprep.subr.bf16.mxu0 %v4366
    %5327 = vmatpush1.bf16.msra.mxu0 %v4365
    %5328 = vmatprep.subr.bf16.mxu0 %v4354
    %5329 = vmatpush1.bf16.msra.mxu0 %v4353
    %5330 = vmatprep.subr.bf16.mxu0 %v4342
    %5331 = vmatpush1.bf16.msra.mxu0 %v4341
    %5332 = vmatprep.subr.bf16.mxu0 %v4330
    %5333 = vmatpush1.bf16.msra.mxu0 %v4329
    %5334 = vmatprep.subr.bf16.mxu0 %v4318
    %5335 = vmatpush1.bf16.msra.mxu0 %v4317
    %5336 = vmatprep.subr.bf16.mxu0 %v4306
    %5337 = vmatpush1.bf16.msra.mxu0 %v4305
    %5338 = vmatprep.subr.bf16.mxu0 %v4486
    %5339 = vmatpush2.bf16.msra.mxu0 %v4485
    %5340 = vmatprep.subr.bf16.mxu0 %v4474
    %5341 = vmatpush2.bf16.msra.mxu0 %v4473
    %5342 = vmatprep.subr.bf16.mxu0 %v4462
    %5343 = vmatpush2.bf16.msra.mxu0 %v4461
    %5344 = vmatprep.subr.bf16.mxu0 %v4450
    %5345 = vmatpush2.bf16.msra.mxu0 %v4449
    %5346 = vmatprep.subr.bf16.mxu0 %v4438
    %5347 = vmatpush2.bf16.msra.mxu0 %v4437
    %5348 = vmatprep.subr.bf16.mxu0 %v4426
    %5349 = vmatpush2.bf16.msra.mxu0 %v4425
    %5350 = vmatprep.subr.bf16.mxu0 %v4414
    %5351 = vmatpush2.bf16.msra.mxu0 %v4413
    %5352 = vmatprep.subr.bf16.mxu0 %v4402
    %5353 = vmatpush2.bf16.msra.mxu0 %v4401
    %5354 = vmatprep.mubr.bf16.mxu0 %v2950
    %5355 = vmatmul.mubr.bf16.gmra.mxu0 %v2949
    %v5356 = vpop.f32.mrf.mxu0
    %v5357 = vadd.f32 %v5316, %v5356
    %v5358 = vpop.f32.mrf.mxu0
    %v5359 = vadd.f32 %v5318, %v5358
    %v5360 = vpop.f32.mrf.mxu0
    %v5361 = vpop.f32.mrf.mxu0
    %5362 = vdwg.mxu0
    %v5363 = vld [vmem:[#allocation2] sm:$0xff]
    %v5364 = vld [vmem:[#allocation2 + $0x8] sm:$0xff]
    %v5365 = vld [vmem:[#allocation2 + $0x10] sm:$0xff]
    %v5366 = vld [vmem:[#allocation2 + $0x18] sm:$0xff]
    %v5367 = vld [vmem:[#allocation2 + $0x20] sm:$0xff]
    %v5368 = vld [vmem:[#allocation2 + $0x28] sm:$0xff]
    %v5369 = vld [vmem:[#allocation2 + $0x30] sm:$0xff]
    %v5370 = vld [vmem:[#allocation2 + $0x38] sm:$0xff]
    %v5371 = vld [vmem:[#allocation2 + $0x40] sm:$0xff]
    %v5372 = vld [vmem:[#allocation2 + $0x48] sm:$0xff]
    %v5373 = vld [vmem:[#allocation2 + $0x50] sm:$0xff]
    %v5374 = vld [vmem:[#allocation2 + $0x58] sm:$0xff]
    %v5375 = vadd.f32 %v5363, %v4947
    %v5376 = vadd.f32 %v5364, %v4949
    %v5377 = vadd.f32 %v5365, %v5029
    %v5378 = vadd.f32 %v5366, %v5031
    %v5379 = vxor.u32 %v5375, 2147483648
    %v5380 = vxor.u32 %v5376, 2147483648
    %v5381 = vxor.u32 %v5377, 2147483648
    %v5382 = vxor.u32 %v5378, 2147483648
    %v5383 = vmul.f32 %v5379, 1.442695
    %v5384 = vpow.pop %v5383
    %v5385 = vmul.f32 %v5380, 1.442695
    %v5386 = vpow.pop %v5385
    %v5387 = vmul.f32 %v5381, 1.442695
    %v5388 = vpow.pop %v5387
    %v5389 = vmul.f32 %v5382, 1.442695
    %v5390 = vpow.pop %v5389
    %v5391 = vadd.f32 %v5384, 1.0
    %v5392 = vadd.f32 %v5386, 1.0
    %v5393 = vadd.f32 %v5388, 1.0
    %v5394 = vadd.f32 %v5390, 1.0
    %v5395 = vrcp.pop %v5391
    %v5396 = vmul.f32 1.0, %v5395
    %v5397 = vrcp.pop %v5392
    %v5398 = vmul.f32 1.0, %v5397
    %v5399 = vrcp.pop %v5393
    %v5400 = vmul.f32 1.0, %v5399
    %v5401 = vrcp.pop %v5394
    %v5402 = vmul.f32 1.0, %v5401
    %v5403 = vadd.f32 %v5367, %v5111
    %v5404 = vadd.f32 %v5368, %v5113
    %v5405 = vadd.f32 %v5369, %v5193
    %v5406 = vadd.f32 %v5370, %v5195
    %v5407 = vxor.u32 %v5403, 2147483648
    %v5408 = vxor.u32 %v5404, 2147483648
    %v5409 = vxor.u32 %v5405, 2147483648
    %v5410 = vxor.u32 %v5406, 2147483648
    %v5411 = vmul.f32 %v5407, 1.442695
    %v5412 = vpow.pop %v5411
    %v5413 = vmul.f32 %v5408, 1.442695
    %v5414 = vpow.pop %v5413
    %v5415 = vmul.f32 %v5409, 1.442695
    %v5416 = vpow.pop %v5415
    %v5417 = vmul.f32 %v5410, 1.442695
    %v5418 = vpow.pop %v5417
    %v5419 = vadd.f32 %v5412, 1.0
    %v5420 = vadd.f32 %v5414, 1.0
    %v5421 = vadd.f32 %v5416, 1.0
    %v5422 = vadd.f32 %v5418, 1.0
    %v5423 = vrcp.pop %v5419
    %v5424 = vmul.f32 1.0, %v5423
    %v5425 = vrcp.pop %v5420
    %v5426 = vmul.f32 1.0, %v5425
    %v5427 = vrcp.pop %v5421
    %v5428 = vmul.f32 1.0, %v5427
    %v5429 = vrcp.pop %v5422
    %v5430 = vmul.f32 1.0, %v5429
    %v5431 = vadd.f32 %v5275, %v2926
    %v5432 = vadd.f32 %v5277, %v2930
    %v5433 = vadd.f32 %v5357, %v2934
    %v5434 = vadd.f32 %v5359, %v2938
    %v5435 = vmul.f32 %v5396, %v5431
    %v5436 = vmul.f32 %v5398, %v5432
    %v5437 = vmul.f32 %v5400, %v5433
    %v5438 = vmul.f32 %v5402, %v5434
    %v5439 = vadd.f32 %v5371, %v5435
    %v5440 = vadd.f32 %v5372, %v5436
    %v5441 = vadd.f32 %v5373, %v5437
    %v5442 = vadd.f32 %v5374, %v5438
    %v5443 = vtanh.pop %v5439
    %v5444 = vtanh.pop %v5440
    %v5445 = vtanh.pop %v5441
    %v5446 = vtanh.pop %v5442
    %v5447 = vsub.f32 1.0, %v5424
    %v5448 = vsub.f32 1.0, %v5426
    %v5449 = vsub.f32 1.0, %v5428
    %v5450 = vsub.f32 1.0, %v5430
    %v5451 = vmul.f32 %v5447, %v5443
    %v5452 = vmul.f32 %v5448, %v5444
    %v5453 = vmul.f32 %v5449, %v5445
    %v5454 = vmul.f32 %v5450, %v5446
    %v5455 = vmul.f32 %v5424, %v2943
    %v5456 = vmul.f32 %v5426, %v2944
    %v5457 = vmul.f32 %v5428, %v2945
    %v5458 = vmul.f32 %v5430, %v2946
    %v5459 = vadd.f32 %v5451, %v5455
    %v5460 = vadd.f32 %v5452, %v5456
    %v5461 = vadd.f32 %v5453, %v5457
    %v5462 = vadd.f32 %v5454, %v5458
    %5463 = vst [vmem:[#allocation3] sm:$0xff] %v5459
    %5464 = vst [vmem:[#allocation3 + $0x8] sm:$0xff] %v5460
    %5465 = vst [vmem:[#allocation3 + $0x10] sm:$0xff] %v5461
    %5466 = vst [vmem:[#allocation3 + $0x18] sm:$0xff] %v5462
    %v5467 = vpack.c.bf16 %v5459, %v5459
    %v5468 = vpack.c.bf16 %v5460, %v5460
    %v5469 = vpack.c.bf16 %v5461, %v5461
    %v5470 = vpack.c.bf16 %v5462, %v5462
    %v5475 = vunpack.c.l.b16 %v5467
    %v5476 = vunpack.c.l.b16 %v5468
    %v5477 = vunpack.c.l.b16 %v5469
    %v5478 = vunpack.c.l.b16 %v5470
    %v5479 = vpack.c.b16 %v5476, %v5475
    %v5480 = vpack.c.b16 %v5478, %v5477
    %5483 = vst [vmem:[#allocation15] sm:$0xff] %v5479
    %5484 = vst [vmem:[#allocation15 + $0x8] sm:$0xff] %v5480
    %v5485 = vld [vmem:[#allocation3] sm:$0xff]
    %v5486 = vld [vmem:[#allocation3 + $0x8] sm:$0xff]
    %v5487 = vld [vmem:[#allocation3 + $0x10] sm:$0xff]
    %v5488 = vld [vmem:[#allocation3 + $0x18] sm:$0xff]
    %v5489 = vpack.c.bf16 %v5485, %v5485
    %v5490 = vpack.c.bf16 %v5486, %v5486
    %v5491 = vpack.c.bf16 %v5487, %v5487
    %v5492 = vpack.c.bf16 %v5488, %v5488
    %5493 = vmatprep.subr.bf16.mxu0 %v4188
    %5494 = vmatpush1.bf16.msra.mxu0 %v4187
    %5495 = vmatprep.subr.bf16.mxu0 %v4176
    %5496 = vmatpush1.bf16.msra.mxu0 %v4175
    %5497 = vmatprep.subr.bf16.mxu0 %v4164
    %5498 = vmatpush1.bf16.msra.mxu0 %v4163
    %5499 = vmatprep.subr.bf16.mxu0 %v4152
    %5500 = vmatpush1.bf16.msra.mxu0 %v4151
    %5501 = vmatprep.subr.bf16.mxu0 %v4140
    %5502 = vmatpush1.bf16.msra.mxu0 %v4139
    %5503 = vmatprep.subr.bf16.mxu0 %v4128
    %5504 = vmatpush1.bf16.msra.mxu0 %v4127
    %5505 = vmatprep.subr.bf16.mxu0 %v4116
    %5506 = vmatpush1.bf16.msra.mxu0 %v4115
    %5507 = vmatprep.subr.bf16.mxu0 %v4104
    %5508 = vmatpush1.bf16.msra.mxu0 %v4103
    %5509 = vmatprep.subr.bf16.mxu0 %v4284
    %5510 = vmatpush2.bf16.msra.mxu0 %v4283
    %5511 = vmatprep.subr.bf16.mxu0 %v4272
    %5512 = vmatpush2.bf16.msra.mxu0 %v4271
    %5513 = vmatprep.subr.bf16.mxu0 %v4260
    %5514 = vmatpush2.bf16.msra.mxu0 %v4259
    %5515 = vmatprep.subr.bf16.mxu0 %v4248
    %5516 = vmatpush2.bf16.msra.mxu0 %v4247
    %5517 = vmatprep.subr.bf16.mxu0 %v4236
    %5518 = vmatpush2.bf16.msra.mxu0 %v4235
    %5519 = vmatprep.subr.bf16.mxu0 %v4224
    %5520 = vmatpush2.bf16.msra.mxu0 %v4223
    %5521 = vmatprep.subr.bf16.mxu0 %v4212
    %5522 = vmatpush2.bf16.msra.mxu0 %v4211
    %5523 = vmatprep.subr.bf16.mxu0 %v4200
    %5524 = vmatpush2.bf16.msra.mxu0 %v4199
    %5525 = vmatprep.mubr.bf16.mxu0 %v5490
    %5526 = vmatmul.mubr.bf16.gmra.mxu0 %v5489
    %v5527 = vpop.f32.mrf.mxu0
    %v5528 = vadd.f32 0.0, %v5527
    %v5529 = vpop.f32.mrf.mxu0
    %v5530 = vadd.f32 0.0, %v5529
    %v5531 = vpop.f32.mrf.mxu0
    %v5532 = vpop.f32.mrf.mxu0
    %5533 = vdwg.mxu0
    %5534 = vmatprep.subr.bf16.mxu0 %v4380
    %5535 = vmatpush1.bf16.msra.mxu0 %v4379
    %5536 = vmatprep.subr.bf16.mxu0 %v4368
    %5537 = vmatpush1.bf16.msra.mxu0 %v4367
    %5538 = vmatprep.subr.bf16.mxu0 %v4356
    %5539 = vmatpush1.bf16.msra.mxu0 %v4355
    %5540 = vmatprep.subr.bf16.mxu0 %v4344
    %5541 = vmatpush1.bf16.msra.mxu0 %v4343
    %5542 = vmatprep.subr.bf16.mxu0 %v4332
    %5543 = vmatpush1.bf16.msra.mxu0 %v4331
    %5544 = vmatprep.subr.bf16.mxu0 %v4320
    %5545 = vmatpush1.bf16.msra.mxu0 %v4319
    %5546 = vmatprep.subr.bf16.mxu0 %v4308
    %5547 = vmatpush1.bf16.msra.mxu0 %v4307
    %5548 = vmatprep.subr.bf16.mxu0 %v4296
    %5549 = vmatpush1.bf16.msra.mxu0 %v4295
    %5550 = vmatprep.subr.bf16.mxu0 %v4476
    %5551 = vmatpush2.bf16.msra.mxu0 %v4475
    %5552 = vmatprep.subr.bf16.mxu0 %v4464
    %5553 = vmatpush2.bf16.msra.mxu0 %v4463
    %5554 = vmatprep.subr.bf16.mxu0 %v4452
    %5555 = vmatpush2.bf16.msra.mxu0 %v4451
    %5556 = vmatprep.subr.bf16.mxu0 %v4440
    %5557 = vmatpush2.bf16.msra.mxu0 %v4439
    %5558 = vmatprep.subr.bf16.mxu0 %v4428
    %5559 = vmatpush2.bf16.msra.mxu0 %v4427
    %5560 = vmatprep.subr.bf16.mxu0 %v4416
    %5561 = vmatpush2.bf16.msra.mxu0 %v4415
    %5562 = vmatprep.subr.bf16.mxu0 %v4404
    %5563 = vmatpush2.bf16.msra.mxu0 %v4403
    %5564 = vmatprep.subr.bf16.mxu0 %v4392
    %5565 = vmatpush2.bf16.msra.mxu0 %v4391
    %5566 = vmatprep.mubr.bf16.mxu0 %v5492
    %5567 = vmatmul.mubr.bf16.gmra.mxu0 %v5491
    %v5568 = vpop.f32.mrf.mxu0
    %v5569 = vadd.f32 %v5528, %v5568
    %v5570 = vpop.f32.mrf.mxu0
    %v5571 = vadd.f32 %v5530, %v5570
    %v5572 = vpop.f32.mrf.mxu0
    %v5573 = vpop.f32.mrf.mxu0
    %5574 = vdwg.mxu0
    %5575 = vmatprep.subr.bf16.mxu0 %v4190
    %5576 = vmatpush1.bf16.msra.mxu0 %v4189
    %5577 = vmatprep.subr.bf16.mxu0 %v4178
    %5578 = vmatpush1.bf16.msra.mxu0 %v4177
    %5579 = vmatprep.subr.bf16.mxu0 %v4166
    %5580 = vmatpush1.bf16.msra.mxu0 %v4165
    %5581 = vmatprep.subr.bf16.mxu0 %v4154
    %5582 = vmatpush1.bf16.msra.mxu0 %v4153
    %5583 = vmatprep.subr.bf16.mxu0 %v4142
    %5584 = vmatpush1.bf16.msra.mxu0 %v4141
    %5585 = vmatprep.subr.bf16.mxu0 %v4130
    %5586 = vmatpush1.bf16.msra.mxu0 %v4129
    %5587 = vmatprep.subr.bf16.mxu0 %v4118
    %5588 = vmatpush1.bf16.msra.mxu0 %v4117
    %5589 = vmatprep.subr.bf16.mxu0 %v4106
    %5590 = vmatpush1.bf16.msra.mxu0 %v4105
    %5591 = vmatprep.subr.bf16.mxu0 %v4286
    %5592 = vmatpush2.bf16.msra.mxu0 %v4285
    %5593 = vmatprep.subr.bf16.mxu0 %v4274
    %5594 = vmatpush2.bf16.msra.mxu0 %v4273
    %5595 = vmatprep.subr.bf16.mxu0 %v4262
    %5596 = vmatpush2.bf16.msra.mxu0 %v4261
    %5597 = vmatprep.subr.bf16.mxu0 %v4250
    %5598 = vmatpush2.bf16.msra.mxu0 %v4249
    %5599 = vmatprep.subr.bf16.mxu0 %v4238
    %5600 = vmatpush2.bf16.msra.mxu0 %v4237
    %5601 = vmatprep.subr.bf16.mxu0 %v4226
    %5602 = vmatpush2.bf16.msra.mxu0 %v4225
    %5603 = vmatprep.subr.bf16.mxu0 %v4214
    %5604 = vmatpush2.bf16.msra.mxu0 %v4213
    %5605 = vmatprep.subr.bf16.mxu0 %v4202
    %5606 = vmatpush2.bf16.msra.mxu0 %v4201
    %5607 = vmatprep.mubr.bf16.mxu0 %v5490
    %5608 = vmatmul.mubr.bf16.gmra.mxu0 %v5489
    %v5609 = vpop.f32.mrf.mxu0
    %v5610 = vadd.f32 0.0, %v5609
    %v5611 = vpop.f32.mrf.mxu0
    %v5612 = vadd.f32 0.0, %v5611
    %v5613 = vpop.f32.mrf.mxu0
    %v5614 = vpop.f32.mrf.mxu0
    %5615 = vdwg.mxu0
    %5616 = vmatprep.subr.bf16.mxu0 %v4382
    %5617 = vmatpush1.bf16.msra.mxu0 %v4381
    %5618 = vmatprep.subr.bf16.mxu0 %v4370
    %5619 = vmatpush1.bf16.msra.mxu0 %v4369
    %5620 = vmatprep.subr.bf16.mxu0 %v4358
    %5621 = vmatpush1.bf16.msra.mxu0 %v4357
    %5622 = vmatprep.subr.bf16.mxu0 %v4346
    %5623 = vmatpush1.bf16.msra.mxu0 %v4345
    %5624 = vmatprep.subr.bf16.mxu0 %v4334
    %5625 = vmatpush1.bf16.msra.mxu0 %v4333
    %5626 = vmatprep.subr.bf16.mxu0 %v4322
    %5627 = vmatpush1.bf16.msra.mxu0 %v4321
    %5628 = vmatprep.subr.bf16.mxu0 %v4310
    %5629 = vmatpush1.bf16.msra.mxu0 %v4309
    %5630 = vmatprep.subr.bf16.mxu0 %v4298
    %5631 = vmatpush1.bf16.msra.mxu0 %v4297
    %5632 = vmatprep.subr.bf16.mxu0 %v4478
    %5633 = vmatpush2.bf16.msra.mxu0 %v4477
    %5634 = vmatprep.subr.bf16.mxu0 %v4466
    %5635 = vmatpush2.bf16.msra.mxu0 %v4465
    %5636 = vmatprep.subr.bf16.mxu0 %v4454
    %5637 = vmatpush2.bf16.msra.mxu0 %v4453
    %5638 = vmatprep.subr.bf16.mxu0 %v4442
    %5639 = vmatpush2.bf16.msra.mxu0 %v4441
    %5640 = vmatprep.subr.bf16.mxu0 %v4430
    %5641 = vmatpush2.bf16.msra.mxu0 %v4429
    %5642 = vmatprep.subr.bf16.mxu0 %v4418
    %5643 = vmatpush2.bf16.msra.mxu0 %v4417
    %5644 = vmatprep.subr.bf16.mxu0 %v4406
    %5645 = vmatpush2.bf16.msra.mxu0 %v4405
    %5646 = vmatprep.subr.bf16.mxu0 %v4394
    %5647 = vmatpush2.bf16.msra.mxu0 %v4393
    %5648 = vmatprep.mubr.bf16.mxu0 %v5492
    %5649 = vmatmul.mubr.bf16.gmra.mxu0 %v5491
    %v5650 = vpop.f32.mrf.mxu0
    %v5651 = vadd.f32 %v5610, %v5650
    %v5652 = vpop.f32.mrf.mxu0
    %v5653 = vadd.f32 %v5612, %v5652
    %v5654 = vpop.f32.mrf.mxu0
    %v5655 = vpop.f32.mrf.mxu0
    %5656 = vdwg.mxu0
    %5657 = vmatprep.subr.bf16.mxu0 %v4192
    %5658 = vmatpush1.bf16.msra.mxu0 %v4191
    %5659 = vmatprep.subr.bf16.mxu0 %v4180
    %5660 = vmatpush1.bf16.msra.mxu0 %v4179
    %5661 = vmatprep.subr.bf16.mxu0 %v4168
    %5662 = vmatpush1.bf16.msra.mxu0 %v4167
    %5663 = vmatprep.subr.bf16.mxu0 %v4156
    %5664 = vmatpush1.bf16.msra.mxu0 %v4155
    %5665 = vmatprep.subr.bf16.mxu0 %v4144
    %5666 = vmatpush1.bf16.msra.mxu0 %v4143
    %5667 = vmatprep.subr.bf16.mxu0 %v4132
    %5668 = vmatpush1.bf16.msra.mxu0 %v4131
    %5669 = vmatprep.subr.bf16.mxu0 %v4120
    %5670 = vmatpush1.bf16.msra.mxu0 %v4119
    %5671 = vmatprep.subr.bf16.mxu0 %v4108
    %5672 = vmatpush1.bf16.msra.mxu0 %v4107
    %5673 = vmatprep.subr.bf16.mxu0 %v4288
    %5674 = vmatpush2.bf16.msra.mxu0 %v4287
    %5675 = vmatprep.subr.bf16.mxu0 %v4276
    %5676 = vmatpush2.bf16.msra.mxu0 %v4275
    %5677 = vmatprep.subr.bf16.mxu0 %v4264
    %5678 = vmatpush2.bf16.msra.mxu0 %v4263
    %5679 = vmatprep.subr.bf16.mxu0 %v4252
    %5680 = vmatpush2.bf16.msra.mxu0 %v4251
    %5681 = vmatprep.subr.bf16.mxu0 %v4240
    %5682 = vmatpush2.bf16.msra.mxu0 %v4239
    %5683 = vmatprep.subr.bf16.mxu0 %v4228
    %5684 = vmatpush2.bf16.msra.mxu0 %v4227
    %5685 = vmatprep.subr.bf16.mxu0 %v4216
    %5686 = vmatpush2.bf16.msra.mxu0 %v4215
    %5687 = vmatprep.subr.bf16.mxu0 %v4204
    %5688 = vmatpush2.bf16.msra.mxu0 %v4203
    %5689 = vmatprep.mubr.bf16.mxu0 %v5490
    %5690 = vmatmul.mubr.bf16.gmra.mxu0 %v5489
    %v5691 = vpop.f32.mrf.mxu0
    %v5692 = vadd.f32 0.0, %v5691
    %v5693 = vpop.f32.mrf.mxu0
    %v5694 = vadd.f32 0.0, %v5693
    %v5695 = vpop.f32.mrf.mxu0
    %v5696 = vpop.f32.mrf.mxu0
    %5697 = vdwg.mxu0
    %5698 = vmatprep.subr.bf16.mxu0 %v4384
    %5699 = vmatpush1.bf16.msra.mxu0 %v4383
    %5700 = vmatprep.subr.bf16.mxu0 %v4372
    %5701 = vmatpush1.bf16.msra.mxu0 %v4371
    %5702 = vmatprep.subr.bf16.mxu0 %v4360
    %5703 = vmatpush1.bf16.msra.mxu0 %v4359
    %5704 = vmatprep.subr.bf16.mxu0 %v4348
    %5705 = vmatpush1.bf16.msra.mxu0 %v4347
    %5706 = vmatprep.subr.bf16.mxu0 %v4336
    %5707 = vmatpush1.bf16.msra.mxu0 %v4335
    %5708 = vmatprep.subr.bf16.mxu0 %v4324
    %5709 = vmatpush1.bf16.msra.mxu0 %v4323
    %5710 = vmatprep.subr.bf16.mxu0 %v4312
    %5711 = vmatpush1.bf16.msra.mxu0 %v4311
    %5712 = vmatprep.subr.bf16.mxu0 %v4300
    %5713 = vmatpush1.bf16.msra.mxu0 %v4299
    %5714 = vmatprep.subr.bf16.mxu0 %v4480
    %5715 = vmatpush2.bf16.msra.mxu0 %v4479
    %5716 = vmatprep.subr.bf16.mxu0 %v4468
    %5717 = vmatpush2.bf16.msra.mxu0 %v4467
    %5718 = vmatprep.subr.bf16.mxu0 %v4456
    %5719 = vmatpush2.bf16.msra.mxu0 %v4455
    %5720 = vmatprep.subr.bf16.mxu0 %v4444
    %5721 = vmatpush2.bf16.msra.mxu0 %v4443
    %5722 = vmatprep.subr.bf16.mxu0 %v4432
    %5723 = vmatpush2.bf16.msra.mxu0 %v4431
    %5724 = vmatprep.subr.bf16.mxu0 %v4420
    %5725 = vmatpush2.bf16.msra.mxu0 %v4419
    %5726 = vmatprep.subr.bf16.mxu0 %v4408
    %5727 = vmatpush2.bf16.msra.mxu0 %v4407
    %5728 = vmatprep.subr.bf16.mxu0 %v4396
    %5729 = vmatpush2.bf16.msra.mxu0 %v4395
    %5730 = vmatprep.mubr.bf16.mxu0 %v5492
    %5731 = vmatmul.mubr.bf16.gmra.mxu0 %v5491
    %v5732 = vpop.f32.mrf.mxu0
    %v5733 = vadd.f32 %v5692, %v5732
    %v5734 = vpop.f32.mrf.mxu0
    %v5735 = vadd.f32 %v5694, %v5734
    %v5736 = vpop.f32.mrf.mxu0
    %v5737 = vpop.f32.mrf.mxu0
    %5738 = vdwg.mxu0
    %5739 = vmatprep.subr.bf16.mxu0 %v4194
    %5740 = vmatpush1.bf16.msra.mxu0 %v4193
    %5741 = vmatprep.subr.bf16.mxu0 %v4182
    %5742 = vmatpush1.bf16.msra.mxu0 %v4181
    %5743 = vmatprep.subr.bf16.mxu0 %v4170
    %5744 = vmatpush1.bf16.msra.mxu0 %v4169
    %5745 = vmatprep.subr.bf16.mxu0 %v4158
    %5746 = vmatpush1.bf16.msra.mxu0 %v4157
    %5747 = vmatprep.subr.bf16.mxu0 %v4146
    %5748 = vmatpush1.bf16.msra.mxu0 %v4145
    %5749 = vmatprep.subr.bf16.mxu0 %v4134
    %5750 = vmatpush1.bf16.msra.mxu0 %v4133
    %5751 = vmatprep.subr.bf16.mxu0 %v4122
    %5752 = vmatpush1.bf16.msra.mxu0 %v4121
    %5753 = vmatprep.subr.bf16.mxu0 %v4110
    %5754 = vmatpush1.bf16.msra.mxu0 %v4109
    %5755 = vmatprep.subr.bf16.mxu0 %v4290
    %5756 = vmatpush2.bf16.msra.mxu0 %v4289
    %5757 = vmatprep.subr.bf16.mxu0 %v4278
    %5758 = vmatpush2.bf16.msra.mxu0 %v4277
    %5759 = vmatprep.subr.bf16.mxu0 %v4266
    %5760 = vmatpush2.bf16.msra.mxu0 %v4265
    %5761 = vmatprep.subr.bf16.mxu0 %v4254
    %5762 = vmatpush2.bf16.msra.mxu0 %v4253
    %5763 = vmatprep.subr.bf16.mxu0 %v4242
    %5764 = vmatpush2.bf16.msra.mxu0 %v4241
    %5765 = vmatprep.subr.bf16.mxu0 %v4230
    %5766 = vmatpush2.bf16.msra.mxu0 %v4229
    %5767 = vmatprep.subr.bf16.mxu0 %v4218
    %5768 = vmatpush2.bf16.msra.mxu0 %v4217
    %5769 = vmatprep.subr.bf16.mxu0 %v4206
    %5770 = vmatpush2.bf16.msra.mxu0 %v4205
    %5771 = vmatprep.mubr.bf16.mxu0 %v5490
    %5772 = vmatmul.mubr.bf16.gmra.mxu0 %v5489
    %v5773 = vpop.f32.mrf.mxu0
    %v5774 = vadd.f32 0.0, %v5773
    %v5775 = vpop.f32.mrf.mxu0
    %v5776 = vadd.f32 0.0, %v5775
    %v5777 = vpop.f32.mrf.mxu0
    %v5778 = vpop.f32.mrf.mxu0
    %5779 = vdwg.mxu0
    %5780 = vmatprep.subr.bf16.mxu0 %v4386
    %5781 = vmatpush1.bf16.msra.mxu0 %v4385
    %5782 = vmatprep.subr.bf16.mxu0 %v4374
    %5783 = vmatpush1.bf16.msra.mxu0 %v4373
    %5784 = vmatprep.subr.bf16.mxu0 %v4362
    %5785 = vmatpush1.bf16.msra.mxu0 %v4361
    %5786 = vmatprep.subr.bf16.mxu0 %v4350
    %5787 = vmatpush1.bf16.msra.mxu0 %v4349
    %5788 = vmatprep.subr.bf16.mxu0 %v4338
    %5789 = vmatpush1.bf16.msra.mxu0 %v4337
    %5790 = vmatprep.subr.bf16.mxu0 %v4326
    %5791 = vmatpush1.bf16.msra.mxu0 %v4325
    %5792 = vmatprep.subr.bf16.mxu0 %v4314
    %5793 = vmatpush1.bf16.msra.mxu0 %v4313
    %5794 = vmatprep.subr.bf16.mxu0 %v4302
    %5795 = vmatpush1.bf16.msra.mxu0 %v4301
    %5796 = vmatprep.subr.bf16.mxu0 %v4482
    %5797 = vmatpush2.bf16.msra.mxu0 %v4481
    %5798 = vmatprep.subr.bf16.mxu0 %v4470
    %5799 = vmatpush2.bf16.msra.mxu0 %v4469
    %5800 = vmatprep.subr.bf16.mxu0 %v4458
    %5801 = vmatpush2.bf16.msra.mxu0 %v4457
    %5802 = vmatprep.subr.bf16.mxu0 %v4446
    %5803 = vmatpush2.bf16.msra.mxu0 %v4445
    %5804 = vmatprep.subr.bf16.mxu0 %v4434
    %5805 = vmatpush2.bf16.msra.mxu0 %v4433
    %5806 = vmatprep.subr.bf16.mxu0 %v4422
    %5807 = vmatpush2.bf16.msra.mxu0 %v4421
    %5808 = vmatprep.subr.bf16.mxu0 %v4410
    %5809 = vmatpush2.bf16.msra.mxu0 %v4409
    %5810 = vmatprep.subr.bf16.mxu0 %v4398
    %5811 = vmatpush2.bf16.msra.mxu0 %v4397
    %5812 = vmatprep.mubr.bf16.mxu0 %v5492
    %5813 = vmatmul.mubr.bf16.gmra.mxu0 %v5491
    %v5814 = vpop.f32.mrf.mxu0
    %v5815 = vadd.f32 %v5774, %v5814
    %v5816 = vpop.f32.mrf.mxu0
    %v5817 = vadd.f32 %v5776, %v5816
    %v5818 = vpop.f32.mrf.mxu0
    %v5819 = vpop.f32.mrf.mxu0
    %5820 = vdwg.mxu0
    %5821 = vmatprep.subr.bf16.mxu0 %v4196
    %5822 = vmatpush1.bf16.msra.mxu0 %v4195
    %5823 = vmatprep.subr.bf16.mxu0 %v4184
    %5824 = vmatpush1.bf16.msra.mxu0 %v4183
    %5825 = vmatprep.subr.bf16.mxu0 %v4172
    %5826 = vmatpush1.bf16.msra.mxu0 %v4171
    %5827 = vmatprep.subr.bf16.mxu0 %v4160
    %5828 = vmatpush1.bf16.msra.mxu0 %v4159
    %5829 = vmatprep.subr.bf16.mxu0 %v4148
    %5830 = vmatpush1.bf16.msra.mxu0 %v4147
    %5831 = vmatprep.subr.bf16.mxu0 %v4136
    %5832 = vmatpush1.bf16.msra.mxu0 %v4135
    %5833 = vmatprep.subr.bf16.mxu0 %v4124
    %5834 = vmatpush1.bf16.msra.mxu0 %v4123
    %5835 = vmatprep.subr.bf16.mxu0 %v4112
    %5836 = vmatpush1.bf16.msra.mxu0 %v4111
    %5837 = vmatprep.subr.bf16.mxu0 %v4292
    %5838 = vmatpush2.bf16.msra.mxu0 %v4291
    %5839 = vmatprep.subr.bf16.mxu0 %v4280
    %5840 = vmatpush2.bf16.msra.mxu0 %v4279
    %5841 = vmatprep.subr.bf16.mxu0 %v4268
    %5842 = vmatpush2.bf16.msra.mxu0 %v4267
    %5843 = vmatprep.subr.bf16.mxu0 %v4256
    %5844 = vmatpush2.bf16.msra.mxu0 %v4255
    %5845 = vmatprep.subr.bf16.mxu0 %v4244
    %5846 = vmatpush2.bf16.msra.mxu0 %v4243
    %5847 = vmatprep.subr.bf16.mxu0 %v4232
    %5848 = vmatpush2.bf16.msra.mxu0 %v4231
    %5849 = vmatprep.subr.bf16.mxu0 %v4220
    %5850 = vmatpush2.bf16.msra.mxu0 %v4219
    %5851 = vmatprep.subr.bf16.mxu0 %v4208
    %5852 = vmatpush2.bf16.msra.mxu0 %v4207
    %5853 = vmatprep.mubr.bf16.mxu0 %v5490
    %5854 = vmatmul.mubr.bf16.gmra.mxu0 %v5489
    %v5855 = vpop.f32.mrf.mxu0
    %v5856 = vadd.f32 0.0, %v5855
    %v5857 = vpop.f32.mrf.mxu0
    %v5858 = vadd.f32 0.0, %v5857
    %v5859 = vpop.f32.mrf.mxu0
    %v5860 = vpop.f32.mrf.mxu0
    %5861 = vdwg.mxu0
    %5862 = vmatprep.subr.bf16.mxu0 %v4388
    %5863 = vmatpush1.bf16.msra.mxu0 %v4387
    %5864 = vmatprep.subr.bf16.mxu0 %v4376
    %5865 = vmatpush1.bf16.msra.mxu0 %v4375
    %5866 = vmatprep.subr.bf16.mxu0 %v4364
    %5867 = vmatpush1.bf16.msra.mxu0 %v4363
    %5868 = vmatprep.subr.bf16.mxu0 %v4352
    %5869 = vmatpush1.bf16.msra.mxu0 %v4351
    %5870 = vmatprep.subr.bf16.mxu0 %v4340
    %5871 = vmatpush1.bf16.msra.mxu0 %v4339
    %5872 = vmatprep.subr.bf16.mxu0 %v4328
    %5873 = vmatpush1.bf16.msra.mxu0 %v4327
    %5874 = vmatprep.subr.bf16.mxu0 %v4316
    %5875 = vmatpush1.bf16.msra.mxu0 %v4315
    %5876 = vmatprep.subr.bf16.mxu0 %v4304
    %5877 = vmatpush1.bf16.msra.mxu0 %v4303
    %5878 = vmatprep.subr.bf16.mxu0 %v4484
    %5879 = vmatpush2.bf16.msra.mxu0 %v4483
    %5880 = vmatprep.subr.bf16.mxu0 %v4472
    %5881 = vmatpush2.bf16.msra.mxu0 %v4471
    %5882 = vmatprep.subr.bf16.mxu0 %v4460
    %5883 = vmatpush2.bf16.msra.mxu0 %v4459
    %5884 = vmatprep.subr.bf16.mxu0 %v4448
    %5885 = vmatpush2.bf16.msra.mxu0 %v4447
    %5886 = vmatprep.subr.bf16.mxu0 %v4436
    %5887 = vmatpush2.bf16.msra.mxu0 %v4435
    %5888 = vmatprep.subr.bf16.mxu0 %v4424
    %5889 = vmatpush2.bf16.msra.mxu0 %v4423
    %5890 = vmatprep.subr.bf16.mxu0 %v4412
    %5891 = vmatpush2.bf16.msra.mxu0 %v4411
    %5892 = vmatprep.subr.bf16.mxu0 %v4400
    %5893 = vmatpush2.bf16.msra.mxu0 %v4399
    %5894 = vmatprep.mubr.bf16.mxu0 %v5492
    %5895 = vmatmul.mubr.bf16.gmra.mxu0 %v5491
    %v5896 = vpop.f32.mrf.mxu0
    %v5897 = vadd.f32 %v5856, %v5896
    %v5898 = vpop.f32.mrf.mxu0
    %v5899 = vadd.f32 %v5858, %v5898
    %v5900 = vpop.f32.mrf.mxu0
    %v5901 = vpop.f32.mrf.mxu0
    %5902 = vdwg.mxu0
    %5903 = vmatprep.subr.bf16.mxu0 %v4198
    %5904 = vmatpush1.bf16.msra.mxu0 %v4197
    %5905 = vmatprep.subr.bf16.mxu0 %v4186
    %5906 = vmatpush1.bf16.msra.mxu0 %v4185
    %5907 = vmatprep.subr.bf16.mxu0 %v4174
    %5908 = vmatpush1.bf16.msra.mxu0 %v4173
    %5909 = vmatprep.subr.bf16.mxu0 %v4162
    %5910 = vmatpush1.bf16.msra.mxu0 %v4161
    %5911 = vmatprep.subr.bf16.mxu0 %v4150
    %5912 = vmatpush1.bf16.msra.mxu0 %v4149
    %5913 = vmatprep.subr.bf16.mxu0 %v4138
    %5914 = vmatpush1.bf16.msra.mxu0 %v4137
    %5915 = vmatprep.subr.bf16.mxu0 %v4126
    %5916 = vmatpush1.bf16.msra.mxu0 %v4125
    %5917 = vmatprep.subr.bf16.mxu0 %v4114
    %5918 = vmatpush1.bf16.msra.mxu0 %v4113
    %5919 = vmatprep.subr.bf16.mxu0 %v4294
    %5920 = vmatpush2.bf16.msra.mxu0 %v4293
    %5921 = vmatprep.subr.bf16.mxu0 %v4282
    %5922 = vmatpush2.bf16.msra.mxu0 %v4281
    %5923 = vmatprep.subr.bf16.mxu0 %v4270
    %5924 = vmatpush2.bf16.msra.mxu0 %v4269
    %5925 = vmatprep.subr.bf16.mxu0 %v4258
    %5926 = vmatpush2.bf16.msra.mxu0 %v4257
    %5927 = vmatprep.subr.bf16.mxu0 %v4246
    %5928 = vmatpush2.bf16.msra.mxu0 %v4245
    %5929 = vmatprep.subr.bf16.mxu0 %v4234
    %5930 = vmatpush2.bf16.msra.mxu0 %v4233
    %5931 = vmatprep.subr.bf16.mxu0 %v4222
    %5932 = vmatpush2.bf16.msra.mxu0 %v4221
    %5933 = vmatprep.subr.bf16.mxu0 %v4210
    %5934 = vmatpush2.bf16.msra.mxu0 %v4209
    %5935 = vmatprep.mubr.bf16.mxu0 %v5490
    %5936 = vmatmul.mubr.bf16.gmra.mxu0 %v5489
    %v5937 = vpop.f32.mrf.mxu0
    %v5938 = vadd.f32 0.0, %v5937
    %v5939 = vpop.f32.mrf.mxu0
    %v5940 = vadd.f32 0.0, %v5939
    %v5941 = vpop.f32.mrf.mxu0
    %v5942 = vpop.f32.mrf.mxu0
    %5943 = vdwg.mxu0
    %5944 = vmatprep.subr.bf16.mxu0 %v4390
    %5945 = vmatpush1.bf16.msra.mxu0 %v4389
    %5946 = vmatprep.subr.bf16.mxu0 %v4378
    %5947 = vmatpush1.bf16.msra.mxu0 %v4377
    %5948 = vmatprep.subr.bf16.mxu0 %v4366
    %5949 = vmatpush1.bf16.msra.mxu0 %v4365
    %5950 = vmatprep.subr.bf16.mxu0 %v4354
    %5951 = vmatpush1.bf16.msra.mxu0 %v4353
    %5952 = vmatprep.subr.bf16.mxu0 %v4342
    %5953 = vmatpush1.bf16.msra.mxu0 %v4341
    %5954 = vmatprep.subr.bf16.mxu0 %v4330
    %5955 = vmatpush1.bf16.msra.mxu0 %v4329
    %5956 = vmatprep.subr.bf16.mxu0 %v4318
    %5957 = vmatpush1.bf16.msra.mxu0 %v4317
    %5958 = vmatprep.subr.bf16.mxu0 %v4306
    %5959 = vmatpush1.bf16.msra.mxu0 %v4305
    %5960 = vmatprep.subr.bf16.mxu0 %v4486
    %5961 = vmatpush2.bf16.msra.mxu0 %v4485
    %5962 = vmatprep.subr.bf16.mxu0 %v4474
    %5963 = vmatpush2.bf16.msra.mxu0 %v4473
    %5964 = vmatprep.subr.bf16.mxu0 %v4462
    %5965 = vmatpush2.bf16.msra.mxu0 %v4461
    %5966 = vmatprep.subr.bf16.mxu0 %v4450
    %5967 = vmatpush2.bf16.msra.mxu0 %v4449
    %5968 = vmatprep.subr.bf16.mxu0 %v4438
    %5969 = vmatpush2.bf16.msra.mxu0 %v4437
    %5970 = vmatprep.subr.bf16.mxu0 %v4426
    %5971 = vmatpush2.bf16.msra.mxu0 %v4425
    %5972 = vmatprep.subr.bf16.mxu0 %v4414
    %5973 = vmatpush2.bf16.msra.mxu0 %v4413
    %5974 = vmatprep.subr.bf16.mxu0 %v4402
    %5975 = vmatpush2.bf16.msra.mxu0 %v4401
    %5976 = vmatprep.mubr.bf16.mxu0 %v5492
    %5977 = vmatmul.mubr.bf16.gmra.mxu0 %v5491
    %v5978 = vpop.f32.mrf.mxu0
    %v5979 = vadd.f32 %v5938, %v5978
    %v5980 = vpop.f32.mrf.mxu0
    %v5981 = vadd.f32 %v5940, %v5980
    %v5982 = vpop.f32.mrf.mxu0
    %v5983 = vpop.f32.mrf.mxu0
    %5984 = vdwg.mxu0
    %v5985 = vld [vmem:[#allocation2 + $0x60] sm:$0xff]
    %v5986 = vld [vmem:[#allocation2 + $0x68] sm:$0xff]
    %v5987 = vld [vmem:[#allocation2 + $0x70] sm:$0xff]
    %v5988 = vld [vmem:[#allocation2 + $0x78] sm:$0xff]
    %v5989 = vld [vmem:[#allocation2 + $0x80] sm:$0xff]
    %v5990 = vld [vmem:[#allocation2 + $0x88] sm:$0xff]
    %v5991 = vld [vmem:[#allocation2 + $0x90] sm:$0xff]
    %v5992 = vld [vmem:[#allocation2 + $0x98] sm:$0xff]
    %v5993 = vld [vmem:[#allocation2 + $0xa0] sm:$0xff]
    %v5994 = vld [vmem:[#allocation2 + $0xa8] sm:$0xff]
    %v5995 = vld [vmem:[#allocation2 + $0xb0] sm:$0xff]
    %v5996 = vld [vmem:[#allocation2 + $0xb8] sm:$0xff]
    %v5997 = vadd.f32 %v5985, %v5569
    %v5998 = vadd.f32 %v5986, %v5571
    %v5999 = vadd.f32 %v5987, %v5651
    %v6000 = vadd.f32 %v5988, %v5653
    %v6001 = vxor.u32 %v5997, 2147483648
    %v6002 = vxor.u32 %v5998, 2147483648
    %v6003 = vxor.u32 %v5999, 2147483648
    %v6004 = vxor.u32 %v6000, 2147483648
    %v6005 = vmul.f32 %v6001, 1.442695
    %v6006 = vpow.pop %v6005
    %v6007 = vmul.f32 %v6002, 1.442695
    %v6008 = vpow.pop %v6007
    %v6009 = vmul.f32 %v6003, 1.442695
    %v6010 = vpow.pop %v6009
    %v6011 = vmul.f32 %v6004, 1.442695
    %v6012 = vpow.pop %v6011
    %v6013 = vadd.f32 %v6006, 1.0
    %v6014 = vadd.f32 %v6008, 1.0
    %v6015 = vadd.f32 %v6010, 1.0
    %v6016 = vadd.f32 %v6012, 1.0
    %v6017 = vrcp.pop %v6013
    %v6018 = vmul.f32 1.0, %v6017
    %v6019 = vrcp.pop %v6014
    %v6020 = vmul.f32 1.0, %v6019
    %v6021 = vrcp.pop %v6015
    %v6022 = vmul.f32 1.0, %v6021
    %v6023 = vrcp.pop %v6016
    %v6024 = vmul.f32 1.0, %v6023
    %v6025 = vadd.f32 %v5989, %v5733
    %v6026 = vadd.f32 %v5990, %v5735
    %v6027 = vadd.f32 %v5991, %v5815
    %v6028 = vadd.f32 %v5992, %v5817
    %v6029 = vxor.u32 %v6025, 2147483648
    %v6030 = vxor.u32 %v6026, 2147483648
    %v6031 = vxor.u32 %v6027, 2147483648
    %v6032 = vxor.u32 %v6028, 2147483648
    %v6033 = vmul.f32 %v6029, 1.442695
    %v6034 = vpow.pop %v6033
    %v6035 = vmul.f32 %v6030, 1.442695
    %v6036 = vpow.pop %v6035
    %v6037 = vmul.f32 %v6031, 1.442695
    %v6038 = vpow.pop %v6037
    %v6039 = vmul.f32 %v6032, 1.442695
    %v6040 = vpow.pop %v6039
    %v6041 = vadd.f32 %v6034, 1.0
    %v6042 = vadd.f32 %v6036, 1.0
    %v6043 = vadd.f32 %v6038, 1.0
    %v6044 = vadd.f32 %v6040, 1.0
    %v6045 = vrcp.pop %v6041
    %v6046 = vmul.f32 1.0, %v6045
    %v6047 = vrcp.pop %v6042
    %v6048 = vmul.f32 1.0, %v6047
    %v6049 = vrcp.pop %v6043
    %v6050 = vmul.f32 1.0, %v6049
    %v6051 = vrcp.pop %v6044
    %v6052 = vmul.f32 1.0, %v6051
    %v6053 = vadd.f32 %v5897, %v2926
    %v6054 = vadd.f32 %v5899, %v2930
    %v6055 = vadd.f32 %v5979, %v2934
    %v6056 = vadd.f32 %v5981, %v2938
    %v6057 = vmul.f32 %v6018, %v6053
    %v6058 = vmul.f32 %v6020, %v6054
    %v6059 = vmul.f32 %v6022, %v6055
    %v6060 = vmul.f32 %v6024, %v6056
    %v6061 = vadd.f32 %v5993, %v6057
    %v6062 = vadd.f32 %v5994, %v6058
    %v6063 = vadd.f32 %v5995, %v6059
    %v6064 = vadd.f32 %v5996, %v6060
    %v6065 = vtanh.pop %v6061
    %v6066 = vtanh.pop %v6062
    %v6067 = vtanh.pop %v6063
    %v6068 = vtanh.pop %v6064
    %v6069 = vsub.f32 1.0, %v6046
    %v6070 = vsub.f32 1.0, %v6048
    %v6071 = vsub.f32 1.0, %v6050
    %v6072 = vsub.f32 1.0, %v6052
    %v6073 = vmul.f32 %v6069, %v6065
    %v6074 = vmul.f32 %v6070, %v6066
    %v6075 = vmul.f32 %v6071, %v6067
    %v6076 = vmul.f32 %v6072, %v6068
    %v6077 = vmul.f32 %v6046, %v5485
    %v6078 = vmul.f32 %v6048, %v5486
    %v6079 = vmul.f32 %v6050, %v5487
    %v6080 = vmul.f32 %v6052, %v5488
    %v6081 = vadd.f32 %v6073, %v6077
    %v6082 = vadd.f32 %v6074, %v6078
    %v6083 = vadd.f32 %v6075, %v6079
    %v6084 = vadd.f32 %v6076, %v6080
    %6085 = vst [vmem:[#allocation3] sm:$0xff] %v6081
    %6086 = vst [vmem:[#allocation3 + $0x8] sm:$0xff] %v6082
    %6087 = vst [vmem:[#allocation3 + $0x10] sm:$0xff] %v6083
    %6088 = vst [vmem:[#allocation3 + $0x18] sm:$0xff] %v6084
    %v6089 = vpack.c.bf16 %v6081, %v6081
    %v6090 = vpack.c.bf16 %v6082, %v6082
    %v6091 = vpack.c.bf16 %v6083, %v6083
    %v6092 = vpack.c.bf16 %v6084, %v6084
    %v6097 = vunpack.c.l.b16 %v6089
    %v6098 = vunpack.c.l.b16 %v6090
    %v6099 = vunpack.c.l.b16 %v6091
    %v6100 = vunpack.c.l.b16 %v6092
    %v6101 = vpack.c.b16 %v6098, %v6097
    %v6102 = vpack.c.b16 %v6100, %v6099
    %6105 = vst [vmem:[#allocation15 + $0x10] sm:$0xff] %v6101
    %6106 = vst [vmem:[#allocation15 + $0x18] sm:$0xff] %v6102
    %v6107 = vld [vmem:[#allocation3] sm:$0xff]
    %v6108 = vld [vmem:[#allocation3 + $0x8] sm:$0xff]
    %v6109 = vld [vmem:[#allocation3 + $0x10] sm:$0xff]
    %v6110 = vld [vmem:[#allocation3 + $0x18] sm:$0xff]
    %v6111 = vpack.c.bf16 %v6107, %v6107
    %v6112 = vpack.c.bf16 %v6108, %v6108
    %v6113 = vpack.c.bf16 %v6109, %v6109
    %v6114 = vpack.c.bf16 %v6110, %v6110
    %6115 = vmatprep.subr.bf16.mxu0 %v4188
    %6116 = vmatpush1.bf16.msra.mxu0 %v4187
    %6117 = vmatprep.subr.bf16.mxu0 %v4176
    %6118 = vmatpush1.bf16.msra.mxu0 %v4175
    %6119 = vmatprep.subr.bf16.mxu0 %v4164
    %6120 = vmatpush1.bf16.msra.mxu0 %v4163
    %6121 = vmatprep.subr.bf16.mxu0 %v4152
    %6122 = vmatpush1.bf16.msra.mxu0 %v4151
    %6123 = vmatprep.subr.bf16.mxu0 %v4140
    %6124 = vmatpush1.bf16.msra.mxu0 %v4139
    %6125 = vmatprep.subr.bf16.mxu0 %v4128
    %6126 = vmatpush1.bf16.msra.mxu0 %v4127
    %6127 = vmatprep.subr.bf16.mxu0 %v4116
    %6128 = vmatpush1.bf16.msra.mxu0 %v4115
    %6129 = vmatprep.subr.bf16.mxu0 %v4104
    %6130 = vmatpush1.bf16.msra.mxu0 %v4103
    %6131 = vmatprep.subr.bf16.mxu0 %v4284
    %6132 = vmatpush2.bf16.msra.mxu0 %v4283
    %6133 = vmatprep.subr.bf16.mxu0 %v4272
    %6134 = vmatpush2.bf16.msra.mxu0 %v4271
    %6135 = vmatprep.subr.bf16.mxu0 %v4260
    %6136 = vmatpush2.bf16.msra.mxu0 %v4259
    %6137 = vmatprep.subr.bf16.mxu0 %v4248
    %6138 = vmatpush2.bf16.msra.mxu0 %v4247
    %6139 = vmatprep.subr.bf16.mxu0 %v4236
    %6140 = vmatpush2.bf16.msra.mxu0 %v4235
    %6141 = vmatprep.subr.bf16.mxu0 %v4224
    %6142 = vmatpush2.bf16.msra.mxu0 %v4223
    %6143 = vmatprep.subr.bf16.mxu0 %v4212
    %6144 = vmatpush2.bf16.msra.mxu0 %v4211
    %6145 = vmatprep.subr.bf16.mxu0 %v4200
    %6146 = vmatpush2.bf16.msra.mxu0 %v4199
    %6147 = vmatprep.mubr.bf16.mxu0 %v6112
    %6148 = vmatmul.mubr.bf16.gmra.mxu0 %v6111
    %v6149 = vpop.f32.mrf.mxu0
    %v6150 = vadd.f32 0.0, %v6149
    %v6151 = vpop.f32.mrf.mxu0
    %v6152 = vadd.f32 0.0, %v6151
    %v6153 = vpop.f32.mrf.mxu0
    %v6154 = vpop.f32.mrf.mxu0
    %6155 = vdwg.mxu0
    %6156 = vmatprep.subr.bf16.mxu0 %v4380
    %6157 = vmatpush1.bf16.msra.mxu0 %v4379
    %6158 = vmatprep.subr.bf16.mxu0 %v4368
    %6159 = vmatpush1.bf16.msra.mxu0 %v4367
    %6160 = vmatprep.subr.bf16.mxu0 %v4356
    %6161 = vmatpush1.bf16.msra.mxu0 %v4355
    %6162 = vmatprep.subr.bf16.mxu0 %v4344
    %6163 = vmatpush1.bf16.msra.mxu0 %v4343
    %6164 = vmatprep.subr.bf16.mxu0 %v4332
    %6165 = vmatpush1.bf16.msra.mxu0 %v4331
    %6166 = vmatprep.subr.bf16.mxu0 %v4320
    %6167 = vmatpush1.bf16.msra.mxu0 %v4319
    %6168 = vmatprep.subr.bf16.mxu0 %v4308
    %6169 = vmatpush1.bf16.msra.mxu0 %v4307
    %6170 = vmatprep.subr.bf16.mxu0 %v4296
    %6171 = vmatpush1.bf16.msra.mxu0 %v4295
    %6172 = vmatprep.subr.bf16.mxu0 %v4476
    %6173 = vmatpush2.bf16.msra.mxu0 %v4475
    %6174 = vmatprep.subr.bf16.mxu0 %v4464
    %6175 = vmatpush2.bf16.msra.mxu0 %v4463
    %6176 = vmatprep.subr.bf16.mxu0 %v4452
    %6177 = vmatpush2.bf16.msra.mxu0 %v4451
    %6178 = vmatprep.subr.bf16.mxu0 %v4440
    %6179 = vmatpush2.bf16.msra.mxu0 %v4439
    %6180 = vmatprep.subr.bf16.mxu0 %v4428
    %6181 = vmatpush2.bf16.msra.mxu0 %v4427
    %6182 = vmatprep.subr.bf16.mxu0 %v4416
    %6183 = vmatpush2.bf16.msra.mxu0 %v4415
    %6184 = vmatprep.subr.bf16.mxu0 %v4404
    %6185 = vmatpush2.bf16.msra.mxu0 %v4403
    %6186 = vmatprep.subr.bf16.mxu0 %v4392
    %6187 = vmatpush2.bf16.msra.mxu0 %v4391
    %6188 = vmatprep.mubr.bf16.mxu0 %v6114
    %6189 = vmatmul.mubr.bf16.gmra.mxu0 %v6113
    %v6190 = vpop.f32.mrf.mxu0
    %v6191 = vadd.f32 %v6150, %v6190
    %v6192 = vpop.f32.mrf.mxu0
    %v6193 = vadd.f32 %v6152, %v6192
    %v6194 = vpop.f32.mrf.mxu0
    %v6195 = vpop.f32.mrf.mxu0
    %6196 = vdwg.mxu0
    %6197 = vmatprep.subr.bf16.mxu0 %v4190
    %6198 = vmatpush1.bf16.msra.mxu0 %v4189
    %6199 = vmatprep.subr.bf16.mxu0 %v4178
    %6200 = vmatpush1.bf16.msra.mxu0 %v4177
    %6201 = vmatprep.subr.bf16.mxu0 %v4166
    %6202 = vmatpush1.bf16.msra.mxu0 %v4165
    %6203 = vmatprep.subr.bf16.mxu0 %v4154
    %6204 = vmatpush1.bf16.msra.mxu0 %v4153
    %6205 = vmatprep.subr.bf16.mxu0 %v4142
    %6206 = vmatpush1.bf16.msra.mxu0 %v4141
    %6207 = vmatprep.subr.bf16.mxu0 %v4130
    %6208 = vmatpush1.bf16.msra.mxu0 %v4129
    %6209 = vmatprep.subr.bf16.mxu0 %v4118
    %6210 = vmatpush1.bf16.msra.mxu0 %v4117
    %6211 = vmatprep.subr.bf16.mxu0 %v4106
    %6212 = vmatpush1.bf16.msra.mxu0 %v4105
    %6213 = vmatprep.subr.bf16.mxu0 %v4286
    %6214 = vmatpush2.bf16.msra.mxu0 %v4285
    %6215 = vmatprep.subr.bf16.mxu0 %v4274
    %6216 = vmatpush2.bf16.msra.mxu0 %v4273
    %6217 = vmatprep.subr.bf16.mxu0 %v4262
    %6218 = vmatpush2.bf16.msra.mxu0 %v4261
    %6219 = vmatprep.subr.bf16.mxu0 %v4250
    %6220 = vmatpush2.bf16.msra.mxu0 %v4249
    %6221 = vmatprep.subr.bf16.mxu0 %v4238
    %6222 = vmatpush2.bf16.msra.mxu0 %v4237
    %6223 = vmatprep.subr.bf16.mxu0 %v4226
    %6224 = vmatpush2.bf16.msra.mxu0 %v4225
    %6225 = vmatprep.subr.bf16.mxu0 %v4214
    %6226 = vmatpush2.bf16.msra.mxu0 %v4213
    %6227 = vmatprep.subr.bf16.mxu0 %v4202
    %6228 = vmatpush2.bf16.msra.mxu0 %v4201
    %6229 = vmatprep.mubr.bf16.mxu0 %v6112
    %6230 = vmatmul.mubr.bf16.gmra.mxu0 %v6111
    %v6231 = vpop.f32.mrf.mxu0
    %v6232 = vadd.f32 0.0, %v6231
    %v6233 = vpop.f32.mrf.mxu0
    %v6234 = vadd.f32 0.0, %v6233
    %v6235 = vpop.f32.mrf.mxu0
    %v6236 = vpop.f32.mrf.mxu0
    %6237 = vdwg.mxu0
    %6238 = vmatprep.subr.bf16.mxu0 %v4382
    %6239 = vmatpush1.bf16.msra.mxu0 %v4381
    %6240 = vmatprep.subr.bf16.mxu0 %v4370
    %6241 = vmatpush1.bf16.msra.mxu0 %v4369
    %6242 = vmatprep.subr.bf16.mxu0 %v4358
    %6243 = vmatpush1.bf16.msra.mxu0 %v4357
    %6244 = vmatprep.subr.bf16.mxu0 %v4346
    %6245 = vmatpush1.bf16.msra.mxu0 %v4345
    %6246 = vmatprep.subr.bf16.mxu0 %v4334
    %6247 = vmatpush1.bf16.msra.mxu0 %v4333
    %6248 = vmatprep.subr.bf16.mxu0 %v4322
    %6249 = vmatpush1.bf16.msra.mxu0 %v4321
    %6250 = vmatprep.subr.bf16.mxu0 %v4310
    %6251 = vmatpush1.bf16.msra.mxu0 %v4309
    %6252 = vmatprep.subr.bf16.mxu0 %v4298
    %6253 = vmatpush1.bf16.msra.mxu0 %v4297
    %6254 = vmatprep.subr.bf16.mxu0 %v4478
    %6255 = vmatpush2.bf16.msra.mxu0 %v4477
    %6256 = vmatprep.subr.bf16.mxu0 %v4466
    %6257 = vmatpush2.bf16.msra.mxu0 %v4465
    %6258 = vmatprep.subr.bf16.mxu0 %v4454
    %6259 = vmatpush2.bf16.msra.mxu0 %v4453
    %6260 = vmatprep.subr.bf16.mxu0 %v4442
    %6261 = vmatpush2.bf16.msra.mxu0 %v4441
    %6262 = vmatprep.subr.bf16.mxu0 %v4430
    %6263 = vmatpush2.bf16.msra.mxu0 %v4429
    %6264 = vmatprep.subr.bf16.mxu0 %v4418
    %6265 = vmatpush2.bf16.msra.mxu0 %v4417
    %6266 = vmatprep.subr.bf16.mxu0 %v4406
    %6267 = vmatpush2.bf16.msra.mxu0 %v4405
    %6268 = vmatprep.subr.bf16.mxu0 %v4394
    %6269 = vmatpush2.bf16.msra.mxu0 %v4393
    %6270 = vmatprep.mubr.bf16.mxu0 %v6114
    %6271 = vmatmul.mubr.bf16.gmra.mxu0 %v6113
    %v6272 = vpop.f32.mrf.mxu0
    %v6273 = vadd.f32 %v6232, %v6272
    %v6274 = vpop.f32.mrf.mxu0
    %v6275 = vadd.f32 %v6234, %v6274
    %v6276 = vpop.f32.mrf.mxu0
    %v6277 = vpop.f32.mrf.mxu0
    %6278 = vdwg.mxu0
    %6279 = vmatprep.subr.bf16.mxu0 %v4192
    %6280 = vmatpush1.bf16.msra.mxu0 %v4191
    %6281 = vmatprep.subr.bf16.mxu0 %v4180
    %6282 = vmatpush1.bf16.msra.mxu0 %v4179
    %6283 = vmatprep.subr.bf16.mxu0 %v4168
    %6284 = vmatpush1.bf16.msra.mxu0 %v4167
    %6285 = vmatprep.subr.bf16.mxu0 %v4156
    %6286 = vmatpush1.bf16.msra.mxu0 %v4155
    %6287 = vmatprep.subr.bf16.mxu0 %v4144
    %6288 = vmatpush1.bf16.msra.mxu0 %v4143
    %6289 = vmatprep.subr.bf16.mxu0 %v4132
    %6290 = vmatpush1.bf16.msra.mxu0 %v4131
    %6291 = vmatprep.subr.bf16.mxu0 %v4120
    %6292 = vmatpush1.bf16.msra.mxu0 %v4119
    %6293 = vmatprep.subr.bf16.mxu0 %v4108
    %6294 = vmatpush1.bf16.msra.mxu0 %v4107
    %6295 = vmatprep.subr.bf16.mxu0 %v4288
    %6296 = vmatpush2.bf16.msra.mxu0 %v4287
    %6297 = vmatprep.subr.bf16.mxu0 %v4276
    %6298 = vmatpush2.bf16.msra.mxu0 %v4275
    %6299 = vmatprep.subr.bf16.mxu0 %v4264
    %6300 = vmatpush2.bf16.msra.mxu0 %v4263
    %6301 = vmatprep.subr.bf16.mxu0 %v4252
    %6302 = vmatpush2.bf16.msra.mxu0 %v4251
    %6303 = vmatprep.subr.bf16.mxu0 %v4240
    %6304 = vmatpush2.bf16.msra.mxu0 %v4239
    %6305 = vmatprep.subr.bf16.mxu0 %v4228
    %6306 = vmatpush2.bf16.msra.mxu0 %v4227
    %6307 = vmatprep.subr.bf16.mxu0 %v4216
    %6308 = vmatpush2.bf16.msra.mxu0 %v4215
    %6309 = vmatprep.subr.bf16.mxu0 %v4204
    %6310 = vmatpush2.bf16.msra.mxu0 %v4203
    %6311 = vmatprep.mubr.bf16.mxu0 %v6112
    %6312 = vmatmul.mubr.bf16.gmra.mxu0 %v6111
    %v6313 = vpop.f32.mrf.mxu0
    %v6314 = vadd.f32 0.0, %v6313
    %v6315 = vpop.f32.mrf.mxu0
    %v6316 = vadd.f32 0.0, %v6315
    %v6317 = vpop.f32.mrf.mxu0
    %v6318 = vpop.f32.mrf.mxu0
    %6319 = vdwg.mxu0
    %6320 = vmatprep.subr.bf16.mxu0 %v4384
    %6321 = vmatpush1.bf16.msra.mxu0 %v4383
    %6322 = vmatprep.subr.bf16.mxu0 %v4372
    %6323 = vmatpush1.bf16.msra.mxu0 %v4371
    %6324 = vmatprep.subr.bf16.mxu0 %v4360
    %6325 = vmatpush1.bf16.msra.mxu0 %v4359
    %6326 = vmatprep.subr.bf16.mxu0 %v4348
    %6327 = vmatpush1.bf16.msra.mxu0 %v4347
    %6328 = vmatprep.subr.bf16.mxu0 %v4336
    %6329 = vmatpush1.bf16.msra.mxu0 %v4335
    %6330 = vmatprep.subr.bf16.mxu0 %v4324
    %6331 = vmatpush1.bf16.msra.mxu0 %v4323
    %6332 = vmatprep.subr.bf16.mxu0 %v4312
    %6333 = vmatpush1.bf16.msra.mxu0 %v4311
    %6334 = vmatprep.subr.bf16.mxu0 %v4300
    %6335 = vmatpush1.bf16.msra.mxu0 %v4299
    %6336 = vmatprep.subr.bf16.mxu0 %v4480
    %6337 = vmatpush2.bf16.msra.mxu0 %v4479
    %6338 = vmatprep.subr.bf16.mxu0 %v4468
    %6339 = vmatpush2.bf16.msra.mxu0 %v4467
    %6340 = vmatprep.subr.bf16.mxu0 %v4456
    %6341 = vmatpush2.bf16.msra.mxu0 %v4455
    %6342 = vmatprep.subr.bf16.mxu0 %v4444
    %6343 = vmatpush2.bf16.msra.mxu0 %v4443
    %6344 = vmatprep.subr.bf16.mxu0 %v4432
    %6345 = vmatpush2.bf16.msra.mxu0 %v4431
    %6346 = vmatprep.subr.bf16.mxu0 %v4420
    %6347 = vmatpush2.bf16.msra.mxu0 %v4419
    %6348 = vmatprep.subr.bf16.mxu0 %v4408
    %6349 = vmatpush2.bf16.msra.mxu0 %v4407
    %6350 = vmatprep.subr.bf16.mxu0 %v4396
    %6351 = vmatpush2.bf16.msra.mxu0 %v4395
    %6352 = vmatprep.mubr.bf16.mxu0 %v6114
    %6353 = vmatmul.mubr.bf16.gmra.mxu0 %v6113
    %v6354 = vpop.f32.mrf.mxu0
    %v6355 = vadd.f32 %v6314, %v6354
    %v6356 = vpop.f32.mrf.mxu0
    %v6357 = vadd.f32 %v6316, %v6356
    %v6358 = vpop.f32.mrf.mxu0
    %v6359 = vpop.f32.mrf.mxu0
    %6360 = vdwg.mxu0
    %6361 = vmatprep.subr.bf16.mxu0 %v4194
    %6362 = vmatpush1.bf16.msra.mxu0 %v4193
    %6363 = vmatprep.subr.bf16.mxu0 %v4182
    %6364 = vmatpush1.bf16.msra.mxu0 %v4181
    %6365 = vmatprep.subr.bf16.mxu0 %v4170
    %6366 = vmatpush1.bf16.msra.mxu0 %v4169
    %6367 = vmatprep.subr.bf16.mxu0 %v4158
    %6368 = vmatpush1.bf16.msra.mxu0 %v4157
    %6369 = vmatprep.subr.bf16.mxu0 %v4146
    %6370 = vmatpush1.bf16.msra.mxu0 %v4145
    %6371 = vmatprep.subr.bf16.mxu0 %v4134
    %6372 = vmatpush1.bf16.msra.mxu0 %v4133
    %6373 = vmatprep.subr.bf16.mxu0 %v4122
    %6374 = vmatpush1.bf16.msra.mxu0 %v4121
    %6375 = vmatprep.subr.bf16.mxu0 %v4110
    %6376 = vmatpush1.bf16.msra.mxu0 %v4109
    %6377 = vmatprep.subr.bf16.mxu0 %v4290
    %6378 = vmatpush2.bf16.msra.mxu0 %v4289
    %6379 = vmatprep.subr.bf16.mxu0 %v4278
    %6380 = vmatpush2.bf16.msra.mxu0 %v4277
    %6381 = vmatprep.subr.bf16.mxu0 %v4266
    %6382 = vmatpush2.bf16.msra.mxu0 %v4265
    %6383 = vmatprep.subr.bf16.mxu0 %v4254
    %6384 = vmatpush2.bf16.msra.mxu0 %v4253
    %6385 = vmatprep.subr.bf16.mxu0 %v4242
    %6386 = vmatpush2.bf16.msra.mxu0 %v4241
    %6387 = vmatprep.subr.bf16.mxu0 %v4230
    %6388 = vmatpush2.bf16.msra.mxu0 %v4229
    %6389 = vmatprep.subr.bf16.mxu0 %v4218
    %6390 = vmatpush2.bf16.msra.mxu0 %v4217
    %6391 = vmatprep.subr.bf16.mxu0 %v4206
    %6392 = vmatpush2.bf16.msra.mxu0 %v4205
    %6393 = vmatprep.mubr.bf16.mxu0 %v6112
    %6394 = vmatmul.mubr.bf16.gmra.mxu0 %v6111
    %v6395 = vpop.f32.mrf.mxu0
    %v6396 = vadd.f32 0.0, %v6395
    %v6397 = vpop.f32.mrf.mxu0
    %v6398 = vadd.f32 0.0, %v6397
    %v6399 = vpop.f32.mrf.mxu0
    %v6400 = vpop.f32.mrf.mxu0
    %6401 = vdwg.mxu0
    %6402 = vmatprep.subr.bf16.mxu0 %v4386
    %6403 = vmatpush1.bf16.msra.mxu0 %v4385
    %6404 = vmatprep.subr.bf16.mxu0 %v4374
    %6405 = vmatpush1.bf16.msra.mxu0 %v4373
    %6406 = vmatprep.subr.bf16.mxu0 %v4362
    %6407 = vmatpush1.bf16.msra.mxu0 %v4361
    %6408 = vmatprep.subr.bf16.mxu0 %v4350
    %6409 = vmatpush1.bf16.msra.mxu0 %v4349
    %6410 = vmatprep.subr.bf16.mxu0 %v4338
    %6411 = vmatpush1.bf16.msra.mxu0 %v4337
    %6412 = vmatprep.subr.bf16.mxu0 %v4326
    %6413 = vmatpush1.bf16.msra.mxu0 %v4325
    %6414 = vmatprep.subr.bf16.mxu0 %v4314
    %6415 = vmatpush1.bf16.msra.mxu0 %v4313
    %6416 = vmatprep.subr.bf16.mxu0 %v4302
    %6417 = vmatpush1.bf16.msra.mxu0 %v4301
    %6418 = vmatprep.subr.bf16.mxu0 %v4482
    %6419 = vmatpush2.bf16.msra.mxu0 %v4481
    %6420 = vmatprep.subr.bf16.mxu0 %v4470
    %6421 = vmatpush2.bf16.msra.mxu0 %v4469
    %6422 = vmatprep.subr.bf16.mxu0 %v4458
    %6423 = vmatpush2.bf16.msra.mxu0 %v4457
    %6424 = vmatprep.subr.bf16.mxu0 %v4446
    %6425 = vmatpush2.bf16.msra.mxu0 %v4445
    %6426 = vmatprep.subr.bf16.mxu0 %v4434
    %6427 = vmatpush2.bf16.msra.mxu0 %v4433
    %6428 = vmatprep.subr.bf16.mxu0 %v4422
    %6429 = vmatpush2.bf16.msra.mxu0 %v4421
    %6430 = vmatprep.subr.bf16.mxu0 %v4410
    %6431 = vmatpush2.bf16.msra.mxu0 %v4409
    %6432 = vmatprep.subr.bf16.mxu0 %v4398
    %6433 = vmatpush2.bf16.msra.mxu0 %v4397
    %6434 = vmatprep.mubr.bf16.mxu0 %v6114
    %6435 = vmatmul.mubr.bf16.gmra.mxu0 %v6113
    %v6436 = vpop.f32.mrf.mxu0
    %v6437 = vadd.f32 %v6396, %v6436
    %v6438 = vpop.f32.mrf.mxu0
    %v6439 = vadd.f32 %v6398, %v6438
    %v6440 = vpop.f32.mrf.mxu0
    %v6441 = vpop.f32.mrf.mxu0
    %6442 = vdwg.mxu0
    %6443 = vmatprep.subr.bf16.mxu0 %v4196
    %6444 = vmatpush1.bf16.msra.mxu0 %v4195
    %6445 = vmatprep.subr.bf16.mxu0 %v4184
    %6446 = vmatpush1.bf16.msra.mxu0 %v4183
    %6447 = vmatprep.subr.bf16.mxu0 %v4172
    %6448 = vmatpush1.bf16.msra.mxu0 %v4171
    %6449 = vmatprep.subr.bf16.mxu0 %v4160
    %6450 = vmatpush1.bf16.msra.mxu0 %v4159
    %6451 = vmatprep.subr.bf16.mxu0 %v4148
    %6452 = vmatpush1.bf16.msra.mxu0 %v4147
    %6453 = vmatprep.subr.bf16.mxu0 %v4136
    %6454 = vmatpush1.bf16.msra.mxu0 %v4135
    %6455 = vmatprep.subr.bf16.mxu0 %v4124
    %6456 = vmatpush1.bf16.msra.mxu0 %v4123
    %6457 = vmatprep.subr.bf16.mxu0 %v4112
    %6458 = vmatpush1.bf16.msra.mxu0 %v4111
    %6459 = vmatprep.subr.bf16.mxu0 %v4292
    %6460 = vmatpush2.bf16.msra.mxu0 %v4291
    %6461 = vmatprep.subr.bf16.mxu0 %v4280
    %6462 = vmatpush2.bf16.msra.mxu0 %v4279
    %6463 = vmatprep.subr.bf16.mxu0 %v4268
    %6464 = vmatpush2.bf16.msra.mxu0 %v4267
    %6465 = vmatprep.subr.bf16.mxu0 %v4256
    %6466 = vmatpush2.bf16.msra.mxu0 %v4255
    %6467 = vmatprep.subr.bf16.mxu0 %v4244
    %6468 = vmatpush2.bf16.msra.mxu0 %v4243
    %6469 = vmatprep.subr.bf16.mxu0 %v4232
    %6470 = vmatpush2.bf16.msra.mxu0 %v4231
    %6471 = vmatprep.subr.bf16.mxu0 %v4220
    %6472 = vmatpush2.bf16.msra.mxu0 %v4219
    %6473 = vmatprep.subr.bf16.mxu0 %v4208
    %6474 = vmatpush2.bf16.msra.mxu0 %v4207
    %6475 = vmatprep.mubr.bf16.mxu0 %v6112
    %6476 = vmatmul.mubr.bf16.gmra.mxu0 %v6111
    %v6477 = vpop.f32.mrf.mxu0
    %v6478 = vadd.f32 0.0, %v6477
    %v6479 = vpop.f32.mrf.mxu0
    %v6480 = vadd.f32 0.0, %v6479
    %v6481 = vpop.f32.mrf.mxu0
    %v6482 = vpop.f32.mrf.mxu0
    %6483 = vdwg.mxu0
    %6484 = vmatprep.subr.bf16.mxu0 %v4388
    %6485 = vmatpush1.bf16.msra.mxu0 %v4387
    %6486 = vmatprep.subr.bf16.mxu0 %v4376
    %6487 = vmatpush1.bf16.msra.mxu0 %v4375
    %6488 = vmatprep.subr.bf16.mxu0 %v4364
    %6489 = vmatpush1.bf16.msra.mxu0 %v4363
    %6490 = vmatprep.subr.bf16.mxu0 %v4352
    %6491 = vmatpush1.bf16.msra.mxu0 %v4351
    %6492 = vmatprep.subr.bf16.mxu0 %v4340
    %6493 = vmatpush1.bf16.msra.mxu0 %v4339
    %6494 = vmatprep.subr.bf16.mxu0 %v4328
    %6495 = vmatpush1.bf16.msra.mxu0 %v4327
    %6496 = vmatprep.subr.bf16.mxu0 %v4316
    %6497 = vmatpush1.bf16.msra.mxu0 %v4315
    %6498 = vmatprep.subr.bf16.mxu0 %v4304
    %6499 = vmatpush1.bf16.msra.mxu0 %v4303
    %6500 = vmatprep.subr.bf16.mxu0 %v4484
    %6501 = vmatpush2.bf16.msra.mxu0 %v4483
    %6502 = vmatprep.subr.bf16.mxu0 %v4472
    %6503 = vmatpush2.bf16.msra.mxu0 %v4471
    %6504 = vmatprep.subr.bf16.mxu0 %v4460
    %6505 = vmatpush2.bf16.msra.mxu0 %v4459
    %6506 = vmatprep.subr.bf16.mxu0 %v4448
    %6507 = vmatpush2.bf16.msra.mxu0 %v4447
    %6508 = vmatprep.subr.bf16.mxu0 %v4436
    %6509 = vmatpush2.bf16.msra.mxu0 %v4435
    %6510 = vmatprep.subr.bf16.mxu0 %v4424
    %6511 = vmatpush2.bf16.msra.mxu0 %v4423
    %6512 = vmatprep.subr.bf16.mxu0 %v4412
    %6513 = vmatpush2.bf16.msra.mxu0 %v4411
    %6514 = vmatprep.subr.bf16.mxu0 %v4400
    %6515 = vmatpush2.bf16.msra.mxu0 %v4399
    %6516 = vmatprep.mubr.bf16.mxu0 %v6114
    %6517 = vmatmul.mubr.bf16.gmra.mxu0 %v6113
    %v6518 = vpop.f32.mrf.mxu0
    %v6519 = vadd.f32 %v6478, %v6518
    %v6520 = vpop.f32.mrf.mxu0
    %v6521 = vadd.f32 %v6480, %v6520
    %v6522 = vpop.f32.mrf.mxu0
    %v6523 = vpop.f32.mrf.mxu0
    %6524 = vdwg.mxu0
    %6525 = vmatprep.subr.bf16.mxu0 %v4198
    %6526 = vmatpush1.bf16.msra.mxu0 %v4197
    %6527 = vmatprep.subr.bf16.mxu0 %v4186
    %6528 = vmatpush1.bf16.msra.mxu0 %v4185
    %6529 = vmatprep.subr.bf16.mxu0 %v4174
    %6530 = vmatpush1.bf16.msra.mxu0 %v4173
    %6531 = vmatprep.subr.bf16.mxu0 %v4162
    %6532 = vmatpush1.bf16.msra.mxu0 %v4161
    %6533 = vmatprep.subr.bf16.mxu0 %v4150
    %6534 = vmatpush1.bf16.msra.mxu0 %v4149
    %6535 = vmatprep.subr.bf16.mxu0 %v4138
    %6536 = vmatpush1.bf16.msra.mxu0 %v4137
    %6537 = vmatprep.subr.bf16.mxu0 %v4126
    %6538 = vmatpush1.bf16.msra.mxu0 %v4125
    %6539 = vmatprep.subr.bf16.mxu0 %v4114
    %6540 = vmatpush1.bf16.msra.mxu0 %v4113
    %6541 = vmatprep.subr.bf16.mxu0 %v4294
    %6542 = vmatpush2.bf16.msra.mxu0 %v4293
    %6543 = vmatprep.subr.bf16.mxu0 %v4282
    %6544 = vmatpush2.bf16.msra.mxu0 %v4281
    %6545 = vmatprep.subr.bf16.mxu0 %v4270
    %6546 = vmatpush2.bf16.msra.mxu0 %v4269
    %6547 = vmatprep.subr.bf16.mxu0 %v4258
    %6548 = vmatpush2.bf16.msra.mxu0 %v4257
    %6549 = vmatprep.subr.bf16.mxu0 %v4246
    %6550 = vmatpush2.bf16.msra.mxu0 %v4245
    %6551 = vmatprep.subr.bf16.mxu0 %v4234
    %6552 = vmatpush2.bf16.msra.mxu0 %v4233
    %6553 = vmatprep.subr.bf16.mxu0 %v4222
    %6554 = vmatpush2.bf16.msra.mxu0 %v4221
    %6555 = vmatprep.subr.bf16.mxu0 %v4210
    %6556 = vmatpush2.bf16.msra.mxu0 %v4209
    %6557 = vmatprep.mubr.bf16.mxu0 %v6112
    %6558 = vmatmul.mubr.bf16.gmra.mxu0 %v6111
    %v6559 = vpop.f32.mrf.mxu0
    %v6560 = vadd.f32 0.0, %v6559
    %v6561 = vpop.f32.mrf.mxu0
    %v6562 = vadd.f32 0.0, %v6561
    %v6563 = vpop.f32.mrf.mxu0
    %v6564 = vpop.f32.mrf.mxu0
    %6565 = vdwg.mxu0
    %6566 = vmatprep.subr.bf16.mxu0 %v4390
    %6567 = vmatpush1.bf16.msra.mxu0 %v4389
    %6568 = vmatprep.subr.bf16.mxu0 %v4378
    %6569 = vmatpush1.bf16.msra.mxu0 %v4377
    %6570 = vmatprep.subr.bf16.mxu0 %v4366
    %6571 = vmatpush1.bf16.msra.mxu0 %v4365
    %6572 = vmatprep.subr.bf16.mxu0 %v4354
    %6573 = vmatpush1.bf16.msra.mxu0 %v4353
    %6574 = vmatprep.subr.bf16.mxu0 %v4342
    %6575 = vmatpush1.bf16.msra.mxu0 %v4341
    %6576 = vmatprep.subr.bf16.mxu0 %v4330
    %6577 = vmatpush1.bf16.msra.mxu0 %v4329
    %6578 = vmatprep.subr.bf16.mxu0 %v4318
    %6579 = vmatpush1.bf16.msra.mxu0 %v4317
    %6580 = vmatprep.subr.bf16.mxu0 %v4306
    %6581 = vmatpush1.bf16.msra.mxu0 %v4305
    %6582 = vmatprep.subr.bf16.mxu0 %v4486
    %6583 = vmatpush2.bf16.msra.mxu0 %v4485
    %6584 = vmatprep.subr.bf16.mxu0 %v4474
    %6585 = vmatpush2.bf16.msra.mxu0 %v4473
    %6586 = vmatprep.subr.bf16.mxu0 %v4462
    %6587 = vmatpush2.bf16.msra.mxu0 %v4461
    %6588 = vmatprep.subr.bf16.mxu0 %v4450
    %6589 = vmatpush2.bf16.msra.mxu0 %v4449
    %6590 = vmatprep.subr.bf16.mxu0 %v4438
    %6591 = vmatpush2.bf16.msra.mxu0 %v4437
    %6592 = vmatprep.subr.bf16.mxu0 %v4426
    %6593 = vmatpush2.bf16.msra.mxu0 %v4425
    %6594 = vmatprep.subr.bf16.mxu0 %v4414
    %6595 = vmatpush2.bf16.msra.mxu0 %v4413
    %6596 = vmatprep.subr.bf16.mxu0 %v4402
    %6597 = vmatpush2.bf16.msra.mxu0 %v4401
    %6598 = vmatprep.mubr.bf16.mxu0 %v6114
    %6599 = vmatmul.mubr.bf16.gmra.mxu0 %v6113
    %v6600 = vpop.f32.mrf.mxu0
    %v6601 = vadd.f32 %v6560, %v6600
    %v6602 = vpop.f32.mrf.mxu0
    %v6603 = vadd.f32 %v6562, %v6602
    %v6604 = vpop.f32.mrf.mxu0
    %v6605 = vpop.f32.mrf.mxu0
    %6606 = vdwg.mxu0
    %v6607 = vld [vmem:[#allocation2 + $0xc0] sm:$0xff]
    %v6608 = vld [vmem:[#allocation2 + $0xc8] sm:$0xff]
    %v6609 = vld [vmem:[#allocation2 + $0xd0] sm:$0xff]
    %v6610 = vld [vmem:[#allocation2 + $0xd8] sm:$0xff]
    %v6611 = vld [vmem:[#allocation2 + $0xe0] sm:$0xff]
    %v6612 = vld [vmem:[#allocation2 + $0xe8] sm:$0xff]
    %v6613 = vld [vmem:[#allocation2 + $0xf0] sm:$0xff]
    %v6614 = vld [vmem:[#allocation2 + $0xf8] sm:$0xff]
    %v6615 = vld [vmem:[#allocation2 + $0x100] sm:$0xff]
    %v6616 = vld [vmem:[#allocation2 + $0x108] sm:$0xff]
    %v6617 = vld [vmem:[#allocation2 + $0x110] sm:$0xff]
    %v6618 = vld [vmem:[#allocation2 + $0x118] sm:$0xff]
    %v6619 = vadd.f32 %v6607, %v6191
    %v6620 = vadd.f32 %v6608, %v6193
    %v6621 = vadd.f32 %v6609, %v6273
    %v6622 = vadd.f32 %v6610, %v6275
    %v6623 = vxor.u32 %v6619, 2147483648
    %v6624 = vxor.u32 %v6620, 2147483648
    %v6625 = vxor.u32 %v6621, 2147483648
    %v6626 = vxor.u32 %v6622, 2147483648
    %v6627 = vmul.f32 %v6623, 1.442695
    %v6628 = vpow.pop %v6627
    %v6629 = vmul.f32 %v6624, 1.442695
    %v6630 = vpow.pop %v6629
    %v6631 = vmul.f32 %v6625, 1.442695
    %v6632 = vpow.pop %v6631
    %v6633 = vmul.f32 %v6626, 1.442695
    %v6634 = vpow.pop %v6633
    %v6635 = vadd.f32 %v6628, 1.0
    %v6636 = vadd.f32 %v6630, 1.0
    %v6637 = vadd.f32 %v6632, 1.0
    %v6638 = vadd.f32 %v6634, 1.0
    %v6639 = vrcp.pop %v6635
    %v6640 = vmul.f32 1.0, %v6639
    %v6641 = vrcp.pop %v6636
    %v6642 = vmul.f32 1.0, %v6641
    %v6643 = vrcp.pop %v6637
    %v6644 = vmul.f32 1.0, %v6643
    %v6645 = vrcp.pop %v6638
    %v6646 = vmul.f32 1.0, %v6645
    %v6647 = vadd.f32 %v6611, %v6355
    %v6648 = vadd.f32 %v6612, %v6357
    %v6649 = vadd.f32 %v6613, %v6437
    %v6650 = vadd.f32 %v6614, %v6439
    %v6651 = vxor.u32 %v6647, 2147483648
    %v6652 = vxor.u32 %v6648, 2147483648
    %v6653 = vxor.u32 %v6649, 2147483648
    %v6654 = vxor.u32 %v6650, 2147483648
    %v6655 = vmul.f32 %v6651, 1.442695
    %v6656 = vpow.pop %v6655
    %v6657 = vmul.f32 %v6652, 1.442695
    %v6658 = vpow.pop %v6657
    %v6659 = vmul.f32 %v6653, 1.442695
    %v6660 = vpow.pop %v6659
    %v6661 = vmul.f32 %v6654, 1.442695
    %v6662 = vpow.pop %v6661
    %v6663 = vadd.f32 %v6656, 1.0
    %v6664 = vadd.f32 %v6658, 1.0
    %v6665 = vadd.f32 %v6660, 1.0
    %v6666 = vadd.f32 %v6662, 1.0
    %v6667 = vrcp.pop %v6663
    %v6668 = vmul.f32 1.0, %v6667
    %v6669 = vrcp.pop %v6664
    %v6670 = vmul.f32 1.0, %v6669
    %v6671 = vrcp.pop %v6665
    %v6672 = vmul.f32 1.0, %v6671
    %v6673 = vrcp.pop %v6666
    %v6674 = vmul.f32 1.0, %v6673
    %v6675 = vadd.f32 %v6519, %v2926
    %v6676 = vadd.f32 %v6521, %v2930
    %v6677 = vadd.f32 %v6601, %v2934
    %v6678 = vadd.f32 %v6603, %v2938
    %v6679 = vmul.f32 %v6640, %v6675
    %v6680 = vmul.f32 %v6642, %v6676
    %v6681 = vmul.f32 %v6644, %v6677
    %v6682 = vmul.f32 %v6646, %v6678
    %v6683 = vadd.f32 %v6615, %v6679
    %v6684 = vadd.f32 %v6616, %v6680
    %v6685 = vadd.f32 %v6617, %v6681
    %v6686 = vadd.f32 %v6618, %v6682
    %v6687 = vtanh.pop %v6683
    %v6688 = vtanh.pop %v6684
    %v6689 = vtanh.pop %v6685
    %v6690 = vtanh.pop %v6686
    %v6691 = vsub.f32 1.0, %v6668
    %v6692 = vsub.f32 1.0, %v6670
    %v6693 = vsub.f32 1.0, %v6672
    %v6694 = vsub.f32 1.0, %v6674
    %v6695 = vmul.f32 %v6691, %v6687
    %v6696 = vmul.f32 %v6692, %v6688
    %v6697 = vmul.f32 %v6693, %v6689
    %v6698 = vmul.f32 %v6694, %v6690
    %v6699 = vmul.f32 %v6668, %v6107
    %v6700 = vmul.f32 %v6670, %v6108
    %v6701 = vmul.f32 %v6672, %v6109
    %v6702 = vmul.f32 %v6674, %v6110
    %v6703 = vadd.f32 %v6695, %v6699
    %v6704 = vadd.f32 %v6696, %v6700
    %v6705 = vadd.f32 %v6697, %v6701
    %v6706 = vadd.f32 %v6698, %v6702
    %6707 = vst [vmem:[#allocation3] sm:$0xff] %v6703
    %6708 = vst [vmem:[#allocation3 + $0x8] sm:$0xff] %v6704
    %6709 = vst [vmem:[#allocation3 + $0x10] sm:$0xff] %v6705
    %6710 = vst [vmem:[#allocation3 + $0x18] sm:$0xff] %v6706
    %v6711 = vpack.c.bf16 %v6703, %v6703
    %v6712 = vpack.c.bf16 %v6704, %v6704
    %v6713 = vpack.c.bf16 %v6705, %v6705
    %v6714 = vpack.c.bf16 %v6706, %v6706
    %v6719 = vunpack.c.l.b16 %v6711
    %v6720 = vunpack.c.l.b16 %v6712
    %v6721 = vunpack.c.l.b16 %v6713
    %v6722 = vunpack.c.l.b16 %v6714
    %v6723 = vpack.c.b16 %v6720, %v6719
    %v6724 = vpack.c.b16 %v6722, %v6721
    %6727 = vst [vmem:[#allocation15 + $0x20] sm:$0xff] %v6723
    %6728 = vst [vmem:[#allocation15 + $0x28] sm:$0xff] %v6724
    %v6729 = vld [vmem:[#allocation3] sm:$0xff]
    %v6730 = vld [vmem:[#allocation3 + $0x8] sm:$0xff]
    %v6731 = vld [vmem:[#allocation3 + $0x10] sm:$0xff]
    %v6732 = vld [vmem:[#allocation3 + $0x18] sm:$0xff]
    %v6733 = vpack.c.bf16 %v6729, %v6729
    %v6734 = vpack.c.bf16 %v6730, %v6730
    %v6735 = vpack.c.bf16 %v6731, %v6731
    %v6736 = vpack.c.bf16 %v6732, %v6732
    %6737 = vmatprep.subr.bf16.mxu0 %v4188
    %6738 = vmatpush1.bf16.msra.mxu0 %v4187
    %6739 = vmatprep.subr.bf16.mxu0 %v4176
    %6740 = vmatpush1.bf16.msra.mxu0 %v4175
    %6741 = vmatprep.subr.bf16.mxu0 %v4164
    %6742 = vmatpush1.bf16.msra.mxu0 %v4163
    %6743 = vmatprep.subr.bf16.mxu0 %v4152
    %6744 = vmatpush1.bf16.msra.mxu0 %v4151
    %6745 = vmatprep.subr.bf16.mxu0 %v4140
    %6746 = vmatpush1.bf16.msra.mxu0 %v4139
    %6747 = vmatprep.subr.bf16.mxu0 %v4128
    %6748 = vmatpush1.bf16.msra.mxu0 %v4127
    %6749 = vmatprep.subr.bf16.mxu0 %v4116
    %6750 = vmatpush1.bf16.msra.mxu0 %v4115
    %6751 = vmatprep.subr.bf16.mxu0 %v4104
    %6752 = vmatpush1.bf16.msra.mxu0 %v4103
    %6753 = vmatprep.subr.bf16.mxu0 %v4284
    %6754 = vmatpush2.bf16.msra.mxu0 %v4283
    %6755 = vmatprep.subr.bf16.mxu0 %v4272
    %6756 = vmatpush2.bf16.msra.mxu0 %v4271
    %6757 = vmatprep.subr.bf16.mxu0 %v4260
    %6758 = vmatpush2.bf16.msra.mxu0 %v4259
    %6759 = vmatprep.subr.bf16.mxu0 %v4248
    %6760 = vmatpush2.bf16.msra.mxu0 %v4247
    %6761 = vmatprep.subr.bf16.mxu0 %v4236
    %6762 = vmatpush2.bf16.msra.mxu0 %v4235
    %6763 = vmatprep.subr.bf16.mxu0 %v4224
    %6764 = vmatpush2.bf16.msra.mxu0 %v4223
    %6765 = vmatprep.subr.bf16.mxu0 %v4212
    %6766 = vmatpush2.bf16.msra.mxu0 %v4211
    %6767 = vmatprep.subr.bf16.mxu0 %v4200
    %6768 = vmatpush2.bf16.msra.mxu0 %v4199
    %6769 = vmatprep.mubr.bf16.mxu0 %v6734
    %6770 = vmatmul.mubr.bf16.gmra.mxu0 %v6733
    %v6771 = vpop.f32.mrf.mxu0
    %v6772 = vadd.f32 0.0, %v6771
    %v6773 = vpop.f32.mrf.mxu0
    %v6774 = vadd.f32 0.0, %v6773
    %v6775 = vpop.f32.mrf.mxu0
    %v6776 = vpop.f32.mrf.mxu0
    %6777 = vdwg.mxu0
    %6778 = vmatprep.subr.bf16.mxu0 %v4380
    %6779 = vmatpush1.bf16.msra.mxu0 %v4379
    %6780 = vmatprep.subr.bf16.mxu0 %v4368
    %6781 = vmatpush1.bf16.msra.mxu0 %v4367
    %6782 = vmatprep.subr.bf16.mxu0 %v4356
    %6783 = vmatpush1.bf16.msra.mxu0 %v4355
    %6784 = vmatprep.subr.bf16.mxu0 %v4344
    %6785 = vmatpush1.bf16.msra.mxu0 %v4343
    %6786 = vmatprep.subr.bf16.mxu0 %v4332
    %6787 = vmatpush1.bf16.msra.mxu0 %v4331
    %6788 = vmatprep.subr.bf16.mxu0 %v4320
    %6789 = vmatpush1.bf16.msra.mxu0 %v4319
    %6790 = vmatprep.subr.bf16.mxu0 %v4308
    %6791 = vmatpush1.bf16.msra.mxu0 %v4307
    %6792 = vmatprep.subr.bf16.mxu0 %v4296
    %6793 = vmatpush1.bf16.msra.mxu0 %v4295
    %6794 = vmatprep.subr.bf16.mxu0 %v4476
    %6795 = vmatpush2.bf16.msra.mxu0 %v4475
    %6796 = vmatprep.subr.bf16.mxu0 %v4464
    %6797 = vmatpush2.bf16.msra.mxu0 %v4463
    %6798 = vmatprep.subr.bf16.mxu0 %v4452
    %6799 = vmatpush2.bf16.msra.mxu0 %v4451
    %6800 = vmatprep.subr.bf16.mxu0 %v4440
    %6801 = vmatpush2.bf16.msra.mxu0 %v4439
    %6802 = vmatprep.subr.bf16.mxu0 %v4428
    %6803 = vmatpush2.bf16.msra.mxu0 %v4427
    %6804 = vmatprep.subr.bf16.mxu0 %v4416
    %6805 = vmatpush2.bf16.msra.mxu0 %v4415
    %6806 = vmatprep.subr.bf16.mxu0 %v4404
    %6807 = vmatpush2.bf16.msra.mxu0 %v4403
    %6808 = vmatprep.subr.bf16.mxu0 %v4392
    %6809 = vmatpush2.bf16.msra.mxu0 %v4391
    %6810 = vmatprep.mubr.bf16.mxu0 %v6736
    %6811 = vmatmul.mubr.bf16.gmra.mxu0 %v6735
    %v6812 = vpop.f32.mrf.mxu0
    %v6813 = vadd.f32 %v6772, %v6812
    %v6814 = vpop.f32.mrf.mxu0
    %v6815 = vadd.f32 %v6774, %v6814
    %v6816 = vpop.f32.mrf.mxu0
    %v6817 = vpop.f32.mrf.mxu0
    %6818 = vdwg.mxu0
    %6819 = vmatprep.subr.bf16.mxu0 %v4190
    %6820 = vmatpush1.bf16.msra.mxu0 %v4189
    %6821 = vmatprep.subr.bf16.mxu0 %v4178
    %6822 = vmatpush1.bf16.msra.mxu0 %v4177
    %6823 = vmatprep.subr.bf16.mxu0 %v4166
    %6824 = vmatpush1.bf16.msra.mxu0 %v4165
    %6825 = vmatprep.subr.bf16.mxu0 %v4154
    %6826 = vmatpush1.bf16.msra.mxu0 %v4153
    %6827 = vmatprep.subr.bf16.mxu0 %v4142
    %6828 = vmatpush1.bf16.msra.mxu0 %v4141
    %6829 = vmatprep.subr.bf16.mxu0 %v4130
    %6830 = vmatpush1.bf16.msra.mxu0 %v4129
    %6831 = vmatprep.subr.bf16.mxu0 %v4118
    %6832 = vmatpush1.bf16.msra.mxu0 %v4117
    %6833 = vmatprep.subr.bf16.mxu0 %v4106
    %6834 = vmatpush1.bf16.msra.mxu0 %v4105
    %6835 = vmatprep.subr.bf16.mxu0 %v4286
    %6836 = vmatpush2.bf16.msra.mxu0 %v4285
    %6837 = vmatprep.subr.bf16.mxu0 %v4274
    %6838 = vmatpush2.bf16.msra.mxu0 %v4273
    %6839 = vmatprep.subr.bf16.mxu0 %v4262
    %6840 = vmatpush2.bf16.msra.mxu0 %v4261
    %6841 = vmatprep.subr.bf16.mxu0 %v4250
    %6842 = vmatpush2.bf16.msra.mxu0 %v4249
    %6843 = vmatprep.subr.bf16.mxu0 %v4238
    %6844 = vmatpush2.bf16.msra.mxu0 %v4237
    %6845 = vmatprep.subr.bf16.mxu0 %v4226
    %6846 = vmatpush2.bf16.msra.mxu0 %v4225
    %6847 = vmatprep.subr.bf16.mxu0 %v4214
    %6848 = vmatpush2.bf16.msra.mxu0 %v4213
    %6849 = vmatprep.subr.bf16.mxu0 %v4202
    %6850 = vmatpush2.bf16.msra.mxu0 %v4201
    %6851 = vmatprep.mubr.bf16.mxu0 %v6734
    %6852 = vmatmul.mubr.bf16.gmra.mxu0 %v6733
    %v6853 = vpop.f32.mrf.mxu0
    %v6854 = vadd.f32 0.0, %v6853
    %v6855 = vpop.f32.mrf.mxu0
    %v6856 = vadd.f32 0.0, %v6855
    %v6857 = vpop.f32.mrf.mxu0
    %v6858 = vpop.f32.mrf.mxu0
    %6859 = vdwg.mxu0
    %6860 = vmatprep.subr.bf16.mxu0 %v4382
    %6861 = vmatpush1.bf16.msra.mxu0 %v4381
    %6862 = vmatprep.subr.bf16.mxu0 %v4370
    %6863 = vmatpush1.bf16.msra.mxu0 %v4369
    %6864 = vmatprep.subr.bf16.mxu0 %v4358
    %6865 = vmatpush1.bf16.msra.mxu0 %v4357
    %6866 = vmatprep.subr.bf16.mxu0 %v4346
    %6867 = vmatpush1.bf16.msra.mxu0 %v4345
    %6868 = vmatprep.subr.bf16.mxu0 %v4334
    %6869 = vmatpush1.bf16.msra.mxu0 %v4333
    %6870 = vmatprep.subr.bf16.mxu0 %v4322
    %6871 = vmatpush1.bf16.msra.mxu0 %v4321
    %6872 = vmatprep.subr.bf16.mxu0 %v4310
    %6873 = vmatpush1.bf16.msra.mxu0 %v4309
    %6874 = vmatprep.subr.bf16.mxu0 %v4298
    %6875 = vmatpush1.bf16.msra.mxu0 %v4297
    %6876 = vmatprep.subr.bf16.mxu0 %v4478
    %6877 = vmatpush2.bf16.msra.mxu0 %v4477
    %6878 = vmatprep.subr.bf16.mxu0 %v4466
    %6879 = vmatpush2.bf16.msra.mxu0 %v4465
    %6880 = vmatprep.subr.bf16.mxu0 %v4454
    %6881 = vmatpush2.bf16.msra.mxu0 %v4453
    %6882 = vmatprep.subr.bf16.mxu0 %v4442
    %6883 = vmatpush2.bf16.msra.mxu0 %v4441
    %6884 = vmatprep.subr.bf16.mxu0 %v4430
    %6885 = vmatpush2.bf16.msra.mxu0 %v4429
    %6886 = vmatprep.subr.bf16.mxu0 %v4418
    %6887 = vmatpush2.bf16.msra.mxu0 %v4417
    %6888 = vmatprep.subr.bf16.mxu0 %v4406
    %6889 = vmatpush2.bf16.msra.mxu0 %v4405
    %6890 = vmatprep.subr.bf16.mxu0 %v4394
    %6891 = vmatpush2.bf16.msra.mxu0 %v4393
    %6892 = vmatprep.mubr.bf16.mxu0 %v6736
    %6893 = vmatmul.mubr.bf16.gmra.mxu0 %v6735
    %v6894 = vpop.f32.mrf.mxu0
    %v6895 = vadd.f32 %v6854, %v6894
    %v6896 = vpop.f32.mrf.mxu0
    %v6897 = vadd.f32 %v6856, %v6896
    %v6898 = vpop.f32.mrf.mxu0
    %v6899 = vpop.f32.mrf.mxu0
    %6900 = vdwg.mxu0
    %6901 = vmatprep.subr.bf16.mxu0 %v4192
    %6902 = vmatpush1.bf16.msra.mxu0 %v4191
    %6903 = vmatprep.subr.bf16.mxu0 %v4180
    %6904 = vmatpush1.bf16.msra.mxu0 %v4179
    %6905 = vmatprep.subr.bf16.mxu0 %v4168
    %6906 = vmatpush1.bf16.msra.mxu0 %v4167
    %6907 = vmatprep.subr.bf16.mxu0 %v4156
    %6908 = vmatpush1.bf16.msra.mxu0 %v4155
    %6909 = vmatprep.subr.bf16.mxu0 %v4144
    %6910 = vmatpush1.bf16.msra.mxu0 %v4143
    %6911 = vmatprep.subr.bf16.mxu0 %v4132
    %6912 = vmatpush1.bf16.msra.mxu0 %v4131
    %6913 = vmatprep.subr.bf16.mxu0 %v4120
    %6914 = vmatpush1.bf16.msra.mxu0 %v4119
    %6915 = vmatprep.subr.bf16.mxu0 %v4108
    %6916 = vmatpush1.bf16.msra.mxu0 %v4107
    %6917 = vmatprep.subr.bf16.mxu0 %v4288
    %6918 = vmatpush2.bf16.msra.mxu0 %v4287
    %6919 = vmatprep.subr.bf16.mxu0 %v4276
    %6920 = vmatpush2.bf16.msra.mxu0 %v4275
    %6921 = vmatprep.subr.bf16.mxu0 %v4264
    %6922 = vmatpush2.bf16.msra.mxu0 %v4263
    %6923 = vmatprep.subr.bf16.mxu0 %v4252
    %6924 = vmatpush2.bf16.msra.mxu0 %v4251
    %6925 = vmatprep.subr.bf16.mxu0 %v4240
    %6926 = vmatpush2.bf16.msra.mxu0 %v4239
    %6927 = vmatprep.subr.bf16.mxu0 %v4228
    %6928 = vmatpush2.bf16.msra.mxu0 %v4227
    %6929 = vmatprep.subr.bf16.mxu0 %v4216
    %6930 = vmatpush2.bf16.msra.mxu0 %v4215
    %6931 = vmatprep.subr.bf16.mxu0 %v4204
    %6932 = vmatpush2.bf16.msra.mxu0 %v4203
    %6933 = vmatprep.mubr.bf16.mxu0 %v6734
    %6934 = vmatmul.mubr.bf16.gmra.mxu0 %v6733
    %v6935 = vpop.f32.mrf.mxu0
    %v6936 = vadd.f32 0.0, %v6935
    %v6937 = vpop.f32.mrf.mxu0
    %v6938 = vadd.f32 0.0, %v6937
    %v6939 = vpop.f32.mrf.mxu0
    %v6940 = vpop.f32.mrf.mxu0
    %6941 = vdwg.mxu0
    %6942 = vmatprep.subr.bf16.mxu0 %v4384
    %6943 = vmatpush1.bf16.msra.mxu0 %v4383
    %6944 = vmatprep.subr.bf16.mxu0 %v4372
    %6945 = vmatpush1.bf16.msra.mxu0 %v4371
    %6946 = vmatprep.subr.bf16.mxu0 %v4360
    %6947 = vmatpush1.bf16.msra.mxu0 %v4359
    %6948 = vmatprep.subr.bf16.mxu0 %v4348
    %6949 = vmatpush1.bf16.msra.mxu0 %v4347
    %6950 = vmatprep.subr.bf16.mxu0 %v4336
    %6951 = vmatpush1.bf16.msra.mxu0 %v4335
    %6952 = vmatprep.subr.bf16.mxu0 %v4324
    %6953 = vmatpush1.bf16.msra.mxu0 %v4323
    %6954 = vmatprep.subr.bf16.mxu0 %v4312
    %6955 = vmatpush1.bf16.msra.mxu0 %v4311
    %6956 = vmatprep.subr.bf16.mxu0 %v4300
    %6957 = vmatpush1.bf16.msra.mxu0 %v4299
    %6958 = vmatprep.subr.bf16.mxu0 %v4480
    %6959 = vmatpush2.bf16.msra.mxu0 %v4479
    %6960 = vmatprep.subr.bf16.mxu0 %v4468
    %6961 = vmatpush2.bf16.msra.mxu0 %v4467
    %6962 = vmatprep.subr.bf16.mxu0 %v4456
    %6963 = vmatpush2.bf16.msra.mxu0 %v4455
    %6964 = vmatprep.subr.bf16.mxu0 %v4444
    %6965 = vmatpush2.bf16.msra.mxu0 %v4443
    %6966 = vmatprep.subr.bf16.mxu0 %v4432
    %6967 = vmatpush2.bf16.msra.mxu0 %v4431
    %6968 = vmatprep.subr.bf16.mxu0 %v4420
    %6969 = vmatpush2.bf16.msra.mxu0 %v4419
    %6970 = vmatprep.subr.bf16.mxu0 %v4408
    %6971 = vmatpush2.bf16.msra.mxu0 %v4407
    %6972 = vmatprep.subr.bf16.mxu0 %v4396
    %6973 = vmatpush2.bf16.msra.mxu0 %v4395
    %6974 = vmatprep.mubr.bf16.mxu0 %v6736
    %6975 = vmatmul.mubr.bf16.gmra.mxu0 %v6735
    %v6976 = vpop.f32.mrf.mxu0
    %v6977 = vadd.f32 %v6936, %v6976
    %v6978 = vpop.f32.mrf.mxu0
    %v6979 = vadd.f32 %v6938, %v6978
    %v6980 = vpop.f32.mrf.mxu0
    %v6981 = vpop.f32.mrf.mxu0
    %6982 = vdwg.mxu0
    %6983 = vmatprep.subr.bf16.mxu0 %v4194
    %6984 = vmatpush1.bf16.msra.mxu0 %v4193
    %6985 = vmatprep.subr.bf16.mxu0 %v4182
    %6986 = vmatpush1.bf16.msra.mxu0 %v4181
    %6987 = vmatprep.subr.bf16.mxu0 %v4170
    %6988 = vmatpush1.bf16.msra.mxu0 %v4169
    %6989 = vmatprep.subr.bf16.mxu0 %v4158
    %6990 = vmatpush1.bf16.msra.mxu0 %v4157
    %6991 = vmatprep.subr.bf16.mxu0 %v4146
    %6992 = vmatpush1.bf16.msra.mxu0 %v4145
    %6993 = vmatprep.subr.bf16.mxu0 %v4134
    %6994 = vmatpush1.bf16.msra.mxu0 %v4133
    %6995 = vmatprep.subr.bf16.mxu0 %v4122
    %6996 = vmatpush1.bf16.msra.mxu0 %v4121
    %6997 = vmatprep.subr.bf16.mxu0 %v4110
    %6998 = vmatpush1.bf16.msra.mxu0 %v4109
    %6999 = vmatprep.subr.bf16.mxu0 %v4290
    %7000 = vmatpush2.bf16.msra.mxu0 %v4289
    %7001 = vmatprep.subr.bf16.mxu0 %v4278
    %7002 = vmatpush2.bf16.msra.mxu0 %v4277
    %7003 = vmatprep.subr.bf16.mxu0 %v4266
    %7004 = vmatpush2.bf16.msra.mxu0 %v4265
    %7005 = vmatprep.subr.bf16.mxu0 %v4254
    %7006 = vmatpush2.bf16.msra.mxu0 %v4253
    %7007 = vmatprep.subr.bf16.mxu0 %v4242
    %7008 = vmatpush2.bf16.msra.mxu0 %v4241
    %7009 = vmatprep.subr.bf16.mxu0 %v4230
    %7010 = vmatpush2.bf16.msra.mxu0 %v4229
    %7011 = vmatprep.subr.bf16.mxu0 %v4218
    %7012 = vmatpush2.bf16.msra.mxu0 %v4217
    %7013 = vmatprep.subr.bf16.mxu0 %v4206
    %7014 = vmatpush2.bf16.msra.mxu0 %v4205
    %7015 = vmatprep.mubr.bf16.mxu0 %v6734
    %7016 = vmatmul.mubr.bf16.gmra.mxu0 %v6733
    %v7017 = vpop.f32.mrf.mxu0
    %v7018 = vadd.f32 0.0, %v7017
    %v7019 = vpop.f32.mrf.mxu0
    %v7020 = vadd.f32 0.0, %v7019
    %v7021 = vpop.f32.mrf.mxu0
    %v7022 = vpop.f32.mrf.mxu0
    %7023 = vdwg.mxu0
    %7024 = vmatprep.subr.bf16.mxu0 %v4386
    %7025 = vmatpush1.bf16.msra.mxu0 %v4385
    %7026 = vmatprep.subr.bf16.mxu0 %v4374
    %7027 = vmatpush1.bf16.msra.mxu0 %v4373
    %7028 = vmatprep.subr.bf16.mxu0 %v4362
    %7029 = vmatpush1.bf16.msra.mxu0 %v4361
    %7030 = vmatprep.subr.bf16.mxu0 %v4350
    %7031 = vmatpush1.bf16.msra.mxu0 %v4349
    %7032 = vmatprep.subr.bf16.mxu0 %v4338
    %7033 = vmatpush1.bf16.msra.mxu0 %v4337
    %7034 = vmatprep.subr.bf16.mxu0 %v4326
    %7035 = vmatpush1.bf16.msra.mxu0 %v4325
    %7036 = vmatprep.subr.bf16.mxu0 %v4314
    %7037 = vmatpush1.bf16.msra.mxu0 %v4313
    %7038 = vmatprep.subr.bf16.mxu0 %v4302
    %7039 = vmatpush1.bf16.msra.mxu0 %v4301
    %7040 = vmatprep.subr.bf16.mxu0 %v4482
    %7041 = vmatpush2.bf16.msra.mxu0 %v4481
    %7042 = vmatprep.subr.bf16.mxu0 %v4470
    %7043 = vmatpush2.bf16.msra.mxu0 %v4469
    %7044 = vmatprep.subr.bf16.mxu0 %v4458
    %7045 = vmatpush2.bf16.msra.mxu0 %v4457
    %7046 = vmatprep.subr.bf16.mxu0 %v4446
    %7047 = vmatpush2.bf16.msra.mxu0 %v4445
    %7048 = vmatprep.subr.bf16.mxu0 %v4434
    %7049 = vmatpush2.bf16.msra.mxu0 %v4433
    %7050 = vmatprep.subr.bf16.mxu0 %v4422
    %7051 = vmatpush2.bf16.msra.mxu0 %v4421
    %7052 = vmatprep.subr.bf16.mxu0 %v4410
    %7053 = vmatpush2.bf16.msra.mxu0 %v4409
    %7054 = vmatprep.subr.bf16.mxu0 %v4398
    %7055 = vmatpush2.bf16.msra.mxu0 %v4397
    %7056 = vmatprep.mubr.bf16.mxu0 %v6736
    %7057 = vmatmul.mubr.bf16.gmra.mxu0 %v6735
    %v7058 = vpop.f32.mrf.mxu0
    %v7059 = vadd.f32 %v7018, %v7058
    %v7060 = vpop.f32.mrf.mxu0
    %v7061 = vadd.f32 %v7020, %v7060
    %v7062 = vpop.f32.mrf.mxu0
    %v7063 = vpop.f32.mrf.mxu0
    %7064 = vdwg.mxu0
    %7065 = vmatprep.subr.bf16.mxu0 %v4196
    %7066 = vmatpush1.bf16.msra.mxu0 %v4195
    %7067 = vmatprep.subr.bf16.mxu0 %v4184
    %7068 = vmatpush1.bf16.msra.mxu0 %v4183
    %7069 = vmatprep.subr.bf16.mxu0 %v4172
    %7070 = vmatpush1.bf16.msra.mxu0 %v4171
    %7071 = vmatprep.subr.bf16.mxu0 %v4160
    %7072 = vmatpush1.bf16.msra.mxu0 %v4159
    %7073 = vmatprep.subr.bf16.mxu0 %v4148
    %7074 = vmatpush1.bf16.msra.mxu0 %v4147
    %7075 = vmatprep.subr.bf16.mxu0 %v4136
    %7076 = vmatpush1.bf16.msra.mxu0 %v4135
    %7077 = vmatprep.subr.bf16.mxu0 %v4124
    %7078 = vmatpush1.bf16.msra.mxu0 %v4123
    %7079 = vmatprep.subr.bf16.mxu0 %v4112
    %7080 = vmatpush1.bf16.msra.mxu0 %v4111
    %7081 = vmatprep.subr.bf16.mxu0 %v4292
    %7082 = vmatpush2.bf16.msra.mxu0 %v4291
    %7083 = vmatprep.subr.bf16.mxu0 %v4280
    %7084 = vmatpush2.bf16.msra.mxu0 %v4279
    %7085 = vmatprep.subr.bf16.mxu0 %v4268
    %7086 = vmatpush2.bf16.msra.mxu0 %v4267
    %7087 = vmatprep.subr.bf16.mxu0 %v4256
    %7088 = vmatpush2.bf16.msra.mxu0 %v4255
    %7089 = vmatprep.subr.bf16.mxu0 %v4244
    %7090 = vmatpush2.bf16.msra.mxu0 %v4243
    %7091 = vmatprep.subr.bf16.mxu0 %v4232
    %7092 = vmatpush2.bf16.msra.mxu0 %v4231
    %7093 = vmatprep.subr.bf16.mxu0 %v4220
    %7094 = vmatpush2.bf16.msra.mxu0 %v4219
    %7095 = vmatprep.subr.bf16.mxu0 %v4208
    %7096 = vmatpush2.bf16.msra.mxu0 %v4207
    %7097 = vmatprep.mubr.bf16.mxu0 %v6734
    %7098 = vmatmul.mubr.bf16.gmra.mxu0 %v6733
    %v7099 = vpop.f32.mrf.mxu0
    %v7100 = vadd.f32 0.0, %v7099
    %v7101 = vpop.f32.mrf.mxu0
    %v7102 = vadd.f32 0.0, %v7101
    %v7103 = vpop.f32.mrf.mxu0
    %v7104 = vpop.f32.mrf.mxu0
    %7105 = vdwg.mxu0
    %7106 = vmatprep.subr.bf16.mxu0 %v4388
    %7107 = vmatpush1.bf16.msra.mxu0 %v4387
    %7108 = vmatprep.subr.bf16.mxu0 %v4376
    %7109 = vmatpush1.bf16.msra.mxu0 %v4375
    %7110 = vmatprep.subr.bf16.mxu0 %v4364
    %7111 = vmatpush1.bf16.msra.mxu0 %v4363
    %7112 = vmatprep.subr.bf16.mxu0 %v4352
    %7113 = vmatpush1.bf16.msra.mxu0 %v4351
    %7114 = vmatprep.subr.bf16.mxu0 %v4340
    %7115 = vmatpush1.bf16.msra.mxu0 %v4339
    %7116 = vmatprep.subr.bf16.mxu0 %v4328
    %7117 = vmatpush1.bf16.msra.mxu0 %v4327
    %7118 = vmatprep.subr.bf16.mxu0 %v4316
    %7119 = vmatpush1.bf16.msra.mxu0 %v4315
    %7120 = vmatprep.subr.bf16.mxu0 %v4304
    %7121 = vmatpush1.bf16.msra.mxu0 %v4303
    %7122 = vmatprep.subr.bf16.mxu0 %v4484
    %7123 = vmatpush2.bf16.msra.mxu0 %v4483
    %7124 = vmatprep.subr.bf16.mxu0 %v4472
    %7125 = vmatpush2.bf16.msra.mxu0 %v4471
    %7126 = vmatprep.subr.bf16.mxu0 %v4460
    %7127 = vmatpush2.bf16.msra.mxu0 %v4459
    %7128 = vmatprep.subr.bf16.mxu0 %v4448
    %7129 = vmatpush2.bf16.msra.mxu0 %v4447
    %7130 = vmatprep.subr.bf16.mxu0 %v4436
    %7131 = vmatpush2.bf16.msra.mxu0 %v4435
    %7132 = vmatprep.subr.bf16.mxu0 %v4424
    %7133 = vmatpush2.bf16.msra.mxu0 %v4423
    %7134 = vmatprep.subr.bf16.mxu0 %v4412
    %7135 = vmatpush2.bf16.msra.mxu0 %v4411
    %7136 = vmatprep.subr.bf16.mxu0 %v4400
    %7137 = vmatpush2.bf16.msra.mxu0 %v4399
    %7138 = vmatprep.mubr.bf16.mxu0 %v6736
    %7139 = vmatmul.mubr.bf16.gmra.mxu0 %v6735
    %v7140 = vpop.f32.mrf.mxu0
    %v7141 = vadd.f32 %v7100, %v7140
    %v7142 = vpop.f32.mrf.mxu0
    %v7143 = vadd.f32 %v7102, %v7142
    %v7144 = vpop.f32.mrf.mxu0
    %v7145 = vpop.f32.mrf.mxu0
    %7146 = vdwg.mxu0
    %7147 = vmatprep.subr.bf16.mxu0 %v4198
    %7148 = vmatpush1.bf16.msra.mxu0 %v4197
    %7149 = vmatprep.subr.bf16.mxu0 %v4186
    %7150 = vmatpush1.bf16.msra.mxu0 %v4185
    %7151 = vmatprep.subr.bf16.mxu0 %v4174
    %7152 = vmatpush1.bf16.msra.mxu0 %v4173
    %7153 = vmatprep.subr.bf16.mxu0 %v4162
    %7154 = vmatpush1.bf16.msra.mxu0 %v4161
    %7155 = vmatprep.subr.bf16.mxu0 %v4150
    %7156 = vmatpush1.bf16.msra.mxu0 %v4149
    %7157 = vmatprep.subr.bf16.mxu0 %v4138
    %7158 = vmatpush1.bf16.msra.mxu0 %v4137
    %7159 = vmatprep.subr.bf16.mxu0 %v4126
    %7160 = vmatpush1.bf16.msra.mxu0 %v4125
    %7161 = vmatprep.subr.bf16.mxu0 %v4114
    %7162 = vmatpush1.bf16.msra.mxu0 %v4113
    %7163 = vmatprep.subr.bf16.mxu0 %v4294
    %7164 = vmatpush2.bf16.msra.mxu0 %v4293
    %7165 = vmatprep.subr.bf16.mxu0 %v4282
    %7166 = vmatpush2.bf16.msra.mxu0 %v4281
    %7167 = vmatprep.subr.bf16.mxu0 %v4270
    %7168 = vmatpush2.bf16.msra.mxu0 %v4269
    %7169 = vmatprep.subr.bf16.mxu0 %v4258
    %7170 = vmatpush2.bf16.msra.mxu0 %v4257
    %7171 = vmatprep.subr.bf16.mxu0 %v4246
    %7172 = vmatpush2.bf16.msra.mxu0 %v4245
    %7173 = vmatprep.subr.bf16.mxu0 %v4234
    %7174 = vmatpush2.bf16.msra.mxu0 %v4233
    %7175 = vmatprep.subr.bf16.mxu0 %v4222
    %7176 = vmatpush2.bf16.msra.mxu0 %v4221
    %7177 = vmatprep.subr.bf16.mxu0 %v4210
    %7178 = vmatpush2.bf16.msra.mxu0 %v4209
    %7179 = vmatprep.mubr.bf16.mxu0 %v6734
    %7180 = vmatmul.mubr.bf16.gmra.mxu0 %v6733
    %v7181 = vpop.f32.mrf.mxu0
    %v7182 = vadd.f32 0.0, %v7181
    %v7183 = vpop.f32.mrf.mxu0
    %v7184 = vadd.f32 0.0, %v7183
    %v7185 = vpop.f32.mrf.mxu0
    %v7186 = vpop.f32.mrf.mxu0
    %7187 = vdwg.mxu0
    %7188 = vmatprep.subr.bf16.mxu0 %v4390
    %7189 = vmatpush1.bf16.msra.mxu0 %v4389
    %7190 = vmatprep.subr.bf16.mxu0 %v4378
    %7191 = vmatpush1.bf16.msra.mxu0 %v4377
    %7192 = vmatprep.subr.bf16.mxu0 %v4366
    %7193 = vmatpush1.bf16.msra.mxu0 %v4365
    %7194 = vmatprep.subr.bf16.mxu0 %v4354
    %7195 = vmatpush1.bf16.msra.mxu0 %v4353
    %7196 = vmatprep.subr.bf16.mxu0 %v4342
    %7197 = vmatpush1.bf16.msra.mxu0 %v4341
    %7198 = vmatprep.subr.bf16.mxu0 %v4330
    %7199 = vmatpush1.bf16.msra.mxu0 %v4329
    %7200 = vmatprep.subr.bf16.mxu0 %v4318
    %7201 = vmatpush1.bf16.msra.mxu0 %v4317
    %7202 = vmatprep.subr.bf16.mxu0 %v4306
    %7203 = vmatpush1.bf16.msra.mxu0 %v4305
    %7204 = vmatprep.subr.bf16.mxu0 %v4486
    %7205 = vmatpush2.bf16.msra.mxu0 %v4485
    %7206 = vmatprep.subr.bf16.mxu0 %v4474
    %7207 = vmatpush2.bf16.msra.mxu0 %v4473
    %7208 = vmatprep.subr.bf16.mxu0 %v4462
    %7209 = vmatpush2.bf16.msra.mxu0 %v4461
    %7210 = vmatprep.subr.bf16.mxu0 %v4450
    %7211 = vmatpush2.bf16.msra.mxu0 %v4449
    %7212 = vmatprep.subr.bf16.mxu0 %v4438
    %7213 = vmatpush2.bf16.msra.mxu0 %v4437
    %7214 = vmatprep.subr.bf16.mxu0 %v4426
    %7215 = vmatpush2.bf16.msra.mxu0 %v4425
    %7216 = vmatprep.subr.bf16.mxu0 %v4414
    %7217 = vmatpush2.bf16.msra.mxu0 %v4413
    %7218 = vmatprep.subr.bf16.mxu0 %v4402
    %7219 = vmatpush2.bf16.msra.mxu0 %v4401
    %7220 = vmatprep.mubr.bf16.mxu0 %v6736
    %7221 = vmatmul.mubr.bf16.gmra.mxu0 %v6735
    %v7222 = vpop.f32.mrf.mxu0
    %v7223 = vadd.f32 %v7182, %v7222
    %v7224 = vpop.f32.mrf.mxu0
    %v7225 = vadd.f32 %v7184, %v7224
    %v7226 = vpop.f32.mrf.mxu0
    %v7227 = vpop.f32.mrf.mxu0
    %7228 = vdwg.mxu0
    %v7229 = vld [vmem:[#allocation2 + $0x120] sm:$0xff]
    %v7230 = vld [vmem:[#allocation2 + $0x128] sm:$0xff]
    %v7231 = vld [vmem:[#allocation2 + $0x130] sm:$0xff]
    %v7232 = vld [vmem:[#allocation2 + $0x138] sm:$0xff]
    %v7233 = vld [vmem:[#allocation2 + $0x140] sm:$0xff]
    %v7234 = vld [vmem:[#allocation2 + $0x148] sm:$0xff]
    %v7235 = vld [vmem:[#allocation2 + $0x150] sm:$0xff]
    %v7236 = vld [vmem:[#allocation2 + $0x158] sm:$0xff]
    %v7237 = vld [vmem:[#allocation2 + $0x160] sm:$0xff]
    %v7238 = vld [vmem:[#allocation2 + $0x168] sm:$0xff]
    %v7239 = vld [vmem:[#allocation2 + $0x170] sm:$0xff]
    %v7240 = vld [vmem:[#allocation2 + $0x178] sm:$0xff]
    %v7241 = vadd.f32 %v7229, %v6813
    %v7242 = vadd.f32 %v7230, %v6815
    %v7243 = vadd.f32 %v7231, %v6895
    %v7244 = vadd.f32 %v7232, %v6897
    %v7245 = vxor.u32 %v7241, 2147483648
    %v7246 = vxor.u32 %v7242, 2147483648
    %v7247 = vxor.u32 %v7243, 2147483648
    %v7248 = vxor.u32 %v7244, 2147483648
    %v7249 = vmul.f32 %v7245, 1.442695
    %v7250 = vpow.pop %v7249
    %v7251 = vmul.f32 %v7246, 1.442695
    %v7252 = vpow.pop %v7251
    %v7253 = vmul.f32 %v7247, 1.442695
    %v7254 = vpow.pop %v7253
    %v7255 = vmul.f32 %v7248, 1.442695
    %v7256 = vpow.pop %v7255
    %v7257 = vadd.f32 %v7250, 1.0
    %v7258 = vadd.f32 %v7252, 1.0
    %v7259 = vadd.f32 %v7254, 1.0
    %v7260 = vadd.f32 %v7256, 1.0
    %v7261 = vrcp.pop %v7257
    %v7262 = vmul.f32 1.0, %v7261
    %v7263 = vrcp.pop %v7258
    %v7264 = vmul.f32 1.0, %v7263
    %v7265 = vrcp.pop %v7259
    %v7266 = vmul.f32 1.0, %v7265
    %v7267 = vrcp.pop %v7260
    %v7268 = vmul.f32 1.0, %v7267
    %v7269 = vadd.f32 %v7233, %v6977
    %v7270 = vadd.f32 %v7234, %v6979
    %v7271 = vadd.f32 %v7235, %v7059
    %v7272 = vadd.f32 %v7236, %v7061
    %v7273 = vxor.u32 %v7269, 2147483648
    %v7274 = vxor.u32 %v7270, 2147483648
    %v7275 = vxor.u32 %v7271, 2147483648
    %v7276 = vxor.u32 %v7272, 2147483648
    %v7277 = vmul.f32 %v7273, 1.442695
    %v7278 = vpow.pop %v7277
    %v7279 = vmul.f32 %v7274, 1.442695
    %v7280 = vpow.pop %v7279
    %v7281 = vmul.f32 %v7275, 1.442695
    %v7282 = vpow.pop %v7281
    %v7283 = vmul.f32 %v7276, 1.442695
    %v7284 = vpow.pop %v7283
    %v7285 = vadd.f32 %v7278, 1.0
    %v7286 = vadd.f32 %v7280, 1.0
    %v7287 = vadd.f32 %v7282, 1.0
    %v7288 = vadd.f32 %v7284, 1.0
    %v7289 = vrcp.pop %v7285
    %v7290 = vmul.f32 1.0, %v7289
    %v7291 = vrcp.pop %v7286
    %v7292 = vmul.f32 1.0, %v7291
    %v7293 = vrcp.pop %v7287
    %v7294 = vmul.f32 1.0, %v7293
    %v7295 = vrcp.pop %v7288
    %v7296 = vmul.f32 1.0, %v7295
    %v7297 = vadd.f32 %v7141, %v2926
    %v7298 = vadd.f32 %v7143, %v2930
    %v7299 = vadd.f32 %v7223, %v2934
    %v7300 = vadd.f32 %v7225, %v2938
    %v7301 = vmul.f32 %v7262, %v7297
    %v7302 = vmul.f32 %v7264, %v7298
    %v7303 = vmul.f32 %v7266, %v7299
    %v7304 = vmul.f32 %v7268, %v7300
    %v7305 = vadd.f32 %v7237, %v7301
    %v7306 = vadd.f32 %v7238, %v7302
    %v7307 = vadd.f32 %v7239, %v7303
    %v7308 = vadd.f32 %v7240, %v7304
    %v7309 = vtanh.pop %v7305
    %v7310 = vtanh.pop %v7306
    %v7311 = vtanh.pop %v7307
    %v7312 = vtanh.pop %v7308
    %v7313 = vsub.f32 1.0, %v7290
    %v7314 = vsub.f32 1.0, %v7292
    %v7315 = vsub.f32 1.0, %v7294
    %v7316 = vsub.f32 1.0, %v7296
    %v7317 = vmul.f32 %v7313, %v7309
    %v7318 = vmul.f32 %v7314, %v7310
    %v7319 = vmul.f32 %v7315, %v7311
    %v7320 = vmul.f32 %v7316, %v7312
    %v7321 = vmul.f32 %v7290, %v6729
    %v7322 = vmul.f32 %v7292, %v6730
    %v7323 = vmul.f32 %v7294, %v6731
    %v7324 = vmul.f32 %v7296, %v6732
    %v7325 = vadd.f32 %v7317, %v7321
    %v7326 = vadd.f32 %v7318, %v7322
    %v7327 = vadd.f32 %v7319, %v7323
    %v7328 = vadd.f32 %v7320, %v7324
    %7329 = vst [vmem:[#allocation3] sm:$0xff] %v7325
    %7330 = vst [vmem:[#allocation3 + $0x8] sm:$0xff] %v7326
    %7331 = vst [vmem:[#allocation3 + $0x10] sm:$0xff] %v7327
    %7332 = vst [vmem:[#allocation3 + $0x18] sm:$0xff] %v7328
    %v7333 = vpack.c.bf16 %v7325, %v7325
    %v7334 = vpack.c.bf16 %v7326, %v7326
    %v7335 = vpack.c.bf16 %v7327, %v7327
    %v7336 = vpack.c.bf16 %v7328, %v7328
    %v7341 = vunpack.c.l.b16 %v7333
    %v7342 = vunpack.c.l.b16 %v7334
    %v7343 = vunpack.c.l.b16 %v7335
    %v7344 = vunpack.c.l.b16 %v7336
    %v7345 = vpack.c.b16 %v7342, %v7341
    %v7346 = vpack.c.b16 %v7344, %v7343
    %7349 = vst [vmem:[#allocation15 + $0x30] sm:$0xff] %v7345
    %7350 = vst [vmem:[#allocation15 + $0x38] sm:$0xff] %v7346
    %v7351 = vld [vmem:[#allocation3] sm:$0xff]
    %v7352 = vld [vmem:[#allocation3 + $0x8] sm:$0xff]
    %v7353 = vld [vmem:[#allocation3 + $0x10] sm:$0xff]
    %v7354 = vld [vmem:[#allocation3 + $0x18] sm:$0xff]
    %v7355 = vpack.c.bf16 %v7351, %v7351
    %v7356 = vpack.c.bf16 %v7352, %v7352
    %v7357 = vpack.c.bf16 %v7353, %v7353
    %v7358 = vpack.c.bf16 %v7354, %v7354
    %7359 = vmatprep.subr.bf16.mxu0 %v4188
    %7360 = vmatpush1.bf16.msra.mxu0 %v4187
    %7361 = vmatprep.subr.bf16.mxu0 %v4176
    %7362 = vmatpush1.bf16.msra.mxu0 %v4175
    %7363 = vmatprep.subr.bf16.mxu0 %v4164
    %7364 = vmatpush1.bf16.msra.mxu0 %v4163
    %7365 = vmatprep.subr.bf16.mxu0 %v4152
    %7366 = vmatpush1.bf16.msra.mxu0 %v4151
    %7367 = vmatprep.subr.bf16.mxu0 %v4140
    %7368 = vmatpush1.bf16.msra.mxu0 %v4139
    %7369 = vmatprep.subr.bf16.mxu0 %v4128
    %7370 = vmatpush1.bf16.msra.mxu0 %v4127
    %7371 = vmatprep.subr.bf16.mxu0 %v4116
    %7372 = vmatpush1.bf16.msra.mxu0 %v4115
    %7373 = vmatprep.subr.bf16.mxu0 %v4104
    %7374 = vmatpush1.bf16.msra.mxu0 %v4103
    %7375 = vmatprep.subr.bf16.mxu0 %v4284
    %7376 = vmatpush2.bf16.msra.mxu0 %v4283
    %7377 = vmatprep.subr.bf16.mxu0 %v4272
    %7378 = vmatpush2.bf16.msra.mxu0 %v4271
    %7379 = vmatprep.subr.bf16.mxu0 %v4260
    %7380 = vmatpush2.bf16.msra.mxu0 %v4259
    %7381 = vmatprep.subr.bf16.mxu0 %v4248
    %7382 = vmatpush2.bf16.msra.mxu0 %v4247
    %7383 = vmatprep.subr.bf16.mxu0 %v4236
    %7384 = vmatpush2.bf16.msra.mxu0 %v4235
    %7385 = vmatprep.subr.bf16.mxu0 %v4224
    %7386 = vmatpush2.bf16.msra.mxu0 %v4223
    %7387 = vmatprep.subr.bf16.mxu0 %v4212
    %7388 = vmatpush2.bf16.msra.mxu0 %v4211
    %7389 = vmatprep.subr.bf16.mxu0 %v4200
    %7390 = vmatpush2.bf16.msra.mxu0 %v4199
    %7391 = vmatprep.mubr.bf16.mxu0 %v7356
    %7392 = vmatmul.mubr.bf16.gmra.mxu0 %v7355
    %v7393 = vpop.f32.mrf.mxu0
    %v7394 = vadd.f32 0.0, %v7393
    %v7395 = vpop.f32.mrf.mxu0
    %v7396 = vadd.f32 0.0, %v7395
    %v7397 = vpop.f32.mrf.mxu0
    %v7398 = vpop.f32.mrf.mxu0
    %7399 = vdwg.mxu0
    %7400 = vmatprep.subr.bf16.mxu0 %v4380
    %7401 = vmatpush1.bf16.msra.mxu0 %v4379
    %7402 = vmatprep.subr.bf16.mxu0 %v4368
    %7403 = vmatpush1.bf16.msra.mxu0 %v4367
    %7404 = vmatprep.subr.bf16.mxu0 %v4356
    %7405 = vmatpush1.bf16.msra.mxu0 %v4355
    %7406 = vmatprep.subr.bf16.mxu0 %v4344
    %7407 = vmatpush1.bf16.msra.mxu0 %v4343
    %7408 = vmatprep.subr.bf16.mxu0 %v4332
    %7409 = vmatpush1.bf16.msra.mxu0 %v4331
    %7410 = vmatprep.subr.bf16.mxu0 %v4320
    %7411 = vmatpush1.bf16.msra.mxu0 %v4319
    %7412 = vmatprep.subr.bf16.mxu0 %v4308
    %7413 = vmatpush1.bf16.msra.mxu0 %v4307
    %7414 = vmatprep.subr.bf16.mxu0 %v4296
    %7415 = vmatpush1.bf16.msra.mxu0 %v4295
    %7416 = vmatprep.subr.bf16.mxu0 %v4476
    %7417 = vmatpush2.bf16.msra.mxu0 %v4475
    %7418 = vmatprep.subr.bf16.mxu0 %v4464
    %7419 = vmatpush2.bf16.msra.mxu0 %v4463
    %7420 = vmatprep.subr.bf16.mxu0 %v4452
    %7421 = vmatpush2.bf16.msra.mxu0 %v4451
    %7422 = vmatprep.subr.bf16.mxu0 %v4440
    %7423 = vmatpush2.bf16.msra.mxu0 %v4439
    %7424 = vmatprep.subr.bf16.mxu0 %v4428
    %7425 = vmatpush2.bf16.msra.mxu0 %v4427
    %7426 = vmatprep.subr.bf16.mxu0 %v4416
    %7427 = vmatpush2.bf16.msra.mxu0 %v4415
    %7428 = vmatprep.subr.bf16.mxu0 %v4404
    %7429 = vmatpush2.bf16.msra.mxu0 %v4403
    %7430 = vmatprep.subr.bf16.mxu0 %v4392
    %7431 = vmatpush2.bf16.msra.mxu0 %v4391
    %7432 = vmatprep.mubr.bf16.mxu0 %v7358
    %7433 = vmatmul.mubr.bf16.gmra.mxu0 %v7357
    %v7434 = vpop.f32.mrf.mxu0
    %v7435 = vadd.f32 %v7394, %v7434
    %v7436 = vpop.f32.mrf.mxu0
    %v7437 = vadd.f32 %v7396, %v7436
    %v7438 = vpop.f32.mrf.mxu0
    %v7439 = vpop.f32.mrf.mxu0
    %7440 = vdwg.mxu0
    %7441 = vmatprep.subr.bf16.mxu0 %v4190
    %7442 = vmatpush1.bf16.msra.mxu0 %v4189
    %7443 = vmatprep.subr.bf16.mxu0 %v4178
    %7444 = vmatpush1.bf16.msra.mxu0 %v4177
    %7445 = vmatprep.subr.bf16.mxu0 %v4166
    %7446 = vmatpush1.bf16.msra.mxu0 %v4165
    %7447 = vmatprep.subr.bf16.mxu0 %v4154
    %7448 = vmatpush1.bf16.msra.mxu0 %v4153
    %7449 = vmatprep.subr.bf16.mxu0 %v4142
    %7450 = vmatpush1.bf16.msra.mxu0 %v4141
    %7451 = vmatprep.subr.bf16.mxu0 %v4130
    %7452 = vmatpush1.bf16.msra.mxu0 %v4129
    %7453 = vmatprep.subr.bf16.mxu0 %v4118
    %7454 = vmatpush1.bf16.msra.mxu0 %v4117
    %7455 = vmatprep.subr.bf16.mxu0 %v4106
    %7456 = vmatpush1.bf16.msra.mxu0 %v4105
    %7457 = vmatprep.subr.bf16.mxu0 %v4286
    %7458 = vmatpush2.bf16.msra.mxu0 %v4285
    %7459 = vmatprep.subr.bf16.mxu0 %v4274
    %7460 = vmatpush2.bf16.msra.mxu0 %v4273
    %7461 = vmatprep.subr.bf16.mxu0 %v4262
    %7462 = vmatpush2.bf16.msra.mxu0 %v4261
    %7463 = vmatprep.subr.bf16.mxu0 %v4250
    %7464 = vmatpush2.bf16.msra.mxu0 %v4249
    %7465 = vmatprep.subr.bf16.mxu0 %v4238
    %7466 = vmatpush2.bf16.msra.mxu0 %v4237
    %7467 = vmatprep.subr.bf16.mxu0 %v4226
    %7468 = vmatpush2.bf16.msra.mxu0 %v4225
    %7469 = vmatprep.subr.bf16.mxu0 %v4214
    %7470 = vmatpush2.bf16.msra.mxu0 %v4213
    %7471 = vmatprep.subr.bf16.mxu0 %v4202
    %7472 = vmatpush2.bf16.msra.mxu0 %v4201
    %7473 = vmatprep.mubr.bf16.mxu0 %v7356
    %7474 = vmatmul.mubr.bf16.gmra.mxu0 %v7355
    %v7475 = vpop.f32.mrf.mxu0
    %v7476 = vadd.f32 0.0, %v7475
    %v7477 = vpop.f32.mrf.mxu0
    %v7478 = vadd.f32 0.0, %v7477
    %v7479 = vpop.f32.mrf.mxu0
    %v7480 = vpop.f32.mrf.mxu0
    %7481 = vdwg.mxu0
    %7482 = vmatprep.subr.bf16.mxu0 %v4382
    %7483 = vmatpush1.bf16.msra.mxu0 %v4381
    %7484 = vmatprep.subr.bf16.mxu0 %v4370
    %7485 = vmatpush1.bf16.msra.mxu0 %v4369
    %7486 = vmatprep.subr.bf16.mxu0 %v4358
    %7487 = vmatpush1.bf16.msra.mxu0 %v4357
    %7488 = vmatprep.subr.bf16.mxu0 %v4346
    %7489 = vmatpush1.bf16.msra.mxu0 %v4345
    %7490 = vmatprep.subr.bf16.mxu0 %v4334
    %7491 = vmatpush1.bf16.msra.mxu0 %v4333
    %7492 = vmatprep.subr.bf16.mxu0 %v4322
    %7493 = vmatpush1.bf16.msra.mxu0 %v4321
    %7494 = vmatprep.subr.bf16.mxu0 %v4310
    %7495 = vmatpush1.bf16.msra.mxu0 %v4309
    %7496 = vmatprep.subr.bf16.mxu0 %v4298
    %7497 = vmatpush1.bf16.msra.mxu0 %v4297
    %7498 = vmatprep.subr.bf16.mxu0 %v4478
    %7499 = vmatpush2.bf16.msra.mxu0 %v4477
    %7500 = vmatprep.subr.bf16.mxu0 %v4466
    %7501 = vmatpush2.bf16.msra.mxu0 %v4465
    %7502 = vmatprep.subr.bf16.mxu0 %v4454
    %7503 = vmatpush2.bf16.msra.mxu0 %v4453
    %7504 = vmatprep.subr.bf16.mxu0 %v4442
    %7505 = vmatpush2.bf16.msra.mxu0 %v4441
    %7506 = vmatprep.subr.bf16.mxu0 %v4430
    %7507 = vmatpush2.bf16.msra.mxu0 %v4429
    %7508 = vmatprep.subr.bf16.mxu0 %v4418
    %7509 = vmatpush2.bf16.msra.mxu0 %v4417
    %7510 = vmatprep.subr.bf16.mxu0 %v4406
    %7511 = vmatpush2.bf16.msra.mxu0 %v4405
    %7512 = vmatprep.subr.bf16.mxu0 %v4394
    %7513 = vmatpush2.bf16.msra.mxu0 %v4393
    %7514 = vmatprep.mubr.bf16.mxu0 %v7358
    %7515 = vmatmul.mubr.bf16.gmra.mxu0 %v7357
    %v7516 = vpop.f32.mrf.mxu0
    %v7517 = vadd.f32 %v7476, %v7516
    %v7518 = vpop.f32.mrf.mxu0
    %v7519 = vadd.f32 %v7478, %v7518
    %v7520 = vpop.f32.mrf.mxu0
    %v7521 = vpop.f32.mrf.mxu0
    %7522 = vdwg.mxu0
    %7523 = vmatprep.subr.bf16.mxu0 %v4192
    %7524 = vmatpush1.bf16.msra.mxu0 %v4191
    %7525 = vmatprep.subr.bf16.mxu0 %v4180
    %7526 = vmatpush1.bf16.msra.mxu0 %v4179
    %7527 = vmatprep.subr.bf16.mxu0 %v4168
    %7528 = vmatpush1.bf16.msra.mxu0 %v4167
    %7529 = vmatprep.subr.bf16.mxu0 %v4156
    %7530 = vmatpush1.bf16.msra.mxu0 %v4155
    %7531 = vmatprep.subr.bf16.mxu0 %v4144
    %7532 = vmatpush1.bf16.msra.mxu0 %v4143
    %7533 = vmatprep.subr.bf16.mxu0 %v4132
    %7534 = vmatpush1.bf16.msra.mxu0 %v4131
    %7535 = vmatprep.subr.bf16.mxu0 %v4120
    %7536 = vmatpush1.bf16.msra.mxu0 %v4119
    %7537 = vmatprep.subr.bf16.mxu0 %v4108
    %7538 = vmatpush1.bf16.msra.mxu0 %v4107
    %7539 = vmatprep.subr.bf16.mxu0 %v4288
    %7540 = vmatpush2.bf16.msra.mxu0 %v4287
    %7541 = vmatprep.subr.bf16.mxu0 %v4276
    %7542 = vmatpush2.bf16.msra.mxu0 %v4275
    %7543 = vmatprep.subr.bf16.mxu0 %v4264
    %7544 = vmatpush2.bf16.msra.mxu0 %v4263
    %7545 = vmatprep.subr.bf16.mxu0 %v4252
    %7546 = vmatpush2.bf16.msra.mxu0 %v4251
    %7547 = vmatprep.subr.bf16.mxu0 %v4240
    %7548 = vmatpush2.bf16.msra.mxu0 %v4239
    %7549 = vmatprep.subr.bf16.mxu0 %v4228
    %7550 = vmatpush2.bf16.msra.mxu0 %v4227
    %7551 = vmatprep.subr.bf16.mxu0 %v4216
    %7552 = vmatpush2.bf16.msra.mxu0 %v4215
    %7553 = vmatprep.subr.bf16.mxu0 %v4204
    %7554 = vmatpush2.bf16.msra.mxu0 %v4203
    %7555 = vmatprep.mubr.bf16.mxu0 %v7356
    %7556 = vmatmul.mubr.bf16.gmra.mxu0 %v7355
    %v7557 = vpop.f32.mrf.mxu0
    %v7558 = vadd.f32 0.0, %v7557
    %v7559 = vpop.f32.mrf.mxu0
    %v7560 = vadd.f32 0.0, %v7559
    %v7561 = vpop.f32.mrf.mxu0
    %v7562 = vpop.f32.mrf.mxu0
    %7563 = vdwg.mxu0
    %7564 = vmatprep.subr.bf16.mxu0 %v4384
    %7565 = vmatpush1.bf16.msra.mxu0 %v4383
    %7566 = vmatprep.subr.bf16.mxu0 %v4372
    %7567 = vmatpush1.bf16.msra.mxu0 %v4371
    %7568 = vmatprep.subr.bf16.mxu0 %v4360
    %7569 = vmatpush1.bf16.msra.mxu0 %v4359
    %7570 = vmatprep.subr.bf16.mxu0 %v4348
    %7571 = vmatpush1.bf16.msra.mxu0 %v4347
    %7572 = vmatprep.subr.bf16.mxu0 %v4336
    %7573 = vmatpush1.bf16.msra.mxu0 %v4335
    %7574 = vmatprep.subr.bf16.mxu0 %v4324
    %7575 = vmatpush1.bf16.msra.mxu0 %v4323
    %7576 = vmatprep.subr.bf16.mxu0 %v4312
    %7577 = vmatpush1.bf16.msra.mxu0 %v4311
    %7578 = vmatprep.subr.bf16.mxu0 %v4300
    %7579 = vmatpush1.bf16.msra.mxu0 %v4299
    %7580 = vmatprep.subr.bf16.mxu0 %v4480
    %7581 = vmatpush2.bf16.msra.mxu0 %v4479
    %7582 = vmatprep.subr.bf16.mxu0 %v4468
    %7583 = vmatpush2.bf16.msra.mxu0 %v4467
    %7584 = vmatprep.subr.bf16.mxu0 %v4456
    %7585 = vmatpush2.bf16.msra.mxu0 %v4455
    %7586 = vmatprep.subr.bf16.mxu0 %v4444
    %7587 = vmatpush2.bf16.msra.mxu0 %v4443
    %7588 = vmatprep.subr.bf16.mxu0 %v4432
    %7589 = vmatpush2.bf16.msra.mxu0 %v4431
    %7590 = vmatprep.subr.bf16.mxu0 %v4420
    %7591 = vmatpush2.bf16.msra.mxu0 %v4419
    %7592 = vmatprep.subr.bf16.mxu0 %v4408
    %7593 = vmatpush2.bf16.msra.mxu0 %v4407
    %7594 = vmatprep.subr.bf16.mxu0 %v4396
    %7595 = vmatpush2.bf16.msra.mxu0 %v4395
    %7596 = vmatprep.mubr.bf16.mxu0 %v7358
    %7597 = vmatmul.mubr.bf16.gmra.mxu0 %v7357
    %v7598 = vpop.f32.mrf.mxu0
    %v7599 = vadd.f32 %v7558, %v7598
    %v7600 = vpop.f32.mrf.mxu0
    %v7601 = vadd.f32 %v7560, %v7600
    %v7602 = vpop.f32.mrf.mxu0
    %v7603 = vpop.f32.mrf.mxu0
    %7604 = vdwg.mxu0
    %7605 = vmatprep.subr.bf16.mxu0 %v4194
    %7606 = vmatpush1.bf16.msra.mxu0 %v4193
    %7607 = vmatprep.subr.bf16.mxu0 %v4182
    %7608 = vmatpush1.bf16.msra.mxu0 %v4181
    %7609 = vmatprep.subr.bf16.mxu0 %v4170
    %7610 = vmatpush1.bf16.msra.mxu0 %v4169
    %7611 = vmatprep.subr.bf16.mxu0 %v4158
    %7612 = vmatpush1.bf16.msra.mxu0 %v4157
    %7613 = vmatprep.subr.bf16.mxu0 %v4146
    %7614 = vmatpush1.bf16.msra.mxu0 %v4145
    %7615 = vmatprep.subr.bf16.mxu0 %v4134
    %7616 = vmatpush1.bf16.msra.mxu0 %v4133
    %7617 = vmatprep.subr.bf16.mxu0 %v4122
    %7618 = vmatpush1.bf16.msra.mxu0 %v4121
    %7619 = vmatprep.subr.bf16.mxu0 %v4110
    %7620 = vmatpush1.bf16.msra.mxu0 %v4109
    %7621 = vmatprep.subr.bf16.mxu0 %v4290
    %7622 = vmatpush2.bf16.msra.mxu0 %v4289
    %7623 = vmatprep.subr.bf16.mxu0 %v4278
    %7624 = vmatpush2.bf16.msra.mxu0 %v4277
    %7625 = vmatprep.subr.bf16.mxu0 %v4266
    %7626 = vmatpush2.bf16.msra.mxu0 %v4265
    %7627 = vmatprep.subr.bf16.mxu0 %v4254
    %7628 = vmatpush2.bf16.msra.mxu0 %v4253
    %7629 = vmatprep.subr.bf16.mxu0 %v4242
    %7630 = vmatpush2.bf16.msra.mxu0 %v4241
    %7631 = vmatprep.subr.bf16.mxu0 %v4230
    %7632 = vmatpush2.bf16.msra.mxu0 %v4229
    %7633 = vmatprep.subr.bf16.mxu0 %v4218
    %7634 = vmatpush2.bf16.msra.mxu0 %v4217
    %7635 = vmatprep.subr.bf16.mxu0 %v4206
    %7636 = vmatpush2.bf16.msra.mxu0 %v4205
    %7637 = vmatprep.mubr.bf16.mxu0 %v7356
    %7638 = vmatmul.mubr.bf16.gmra.mxu0 %v7355
    %v7639 = vpop.f32.mrf.mxu0
    %v7640 = vadd.f32 0.0, %v7639
    %v7641 = vpop.f32.mrf.mxu0
    %v7642 = vadd.f32 0.0, %v7641
    %v7643 = vpop.f32.mrf.mxu0
    %v7644 = vpop.f32.mrf.mxu0
    %7645 = vdwg.mxu0
    %7646 = vmatprep.subr.bf16.mxu0 %v4386
    %7647 = vmatpush1.bf16.msra.mxu0 %v4385
    %7648 = vmatprep.subr.bf16.mxu0 %v4374
    %7649 = vmatpush1.bf16.msra.mxu0 %v4373
    %7650 = vmatprep.subr.bf16.mxu0 %v4362
    %7651 = vmatpush1.bf16.msra.mxu0 %v4361
    %7652 = vmatprep.subr.bf16.mxu0 %v4350
    %7653 = vmatpush1.bf16.msra.mxu0 %v4349
    %7654 = vmatprep.subr.bf16.mxu0 %v4338
    %7655 = vmatpush1.bf16.msra.mxu0 %v4337
    %7656 = vmatprep.subr.bf16.mxu0 %v4326
    %7657 = vmatpush1.bf16.msra.mxu0 %v4325
    %7658 = vmatprep.subr.bf16.mxu0 %v4314
    %7659 = vmatpush1.bf16.msra.mxu0 %v4313
    %7660 = vmatprep.subr.bf16.mxu0 %v4302
    %7661 = vmatpush1.bf16.msra.mxu0 %v4301
    %7662 = vmatprep.subr.bf16.mxu0 %v4482
    %7663 = vmatpush2.bf16.msra.mxu0 %v4481
    %7664 = vmatprep.subr.bf16.mxu0 %v4470
    %7665 = vmatpush2.bf16.msra.mxu0 %v4469
    %7666 = vmatprep.subr.bf16.mxu0 %v4458
    %7667 = vmatpush2.bf16.msra.mxu0 %v4457
    %7668 = vmatprep.subr.bf16.mxu0 %v4446
    %7669 = vmatpush2.bf16.msra.mxu0 %v4445
    %7670 = vmatprep.subr.bf16.mxu0 %v4434
    %7671 = vmatpush2.bf16.msra.mxu0 %v4433
    %7672 = vmatprep.subr.bf16.mxu0 %v4422
    %7673 = vmatpush2.bf16.msra.mxu0 %v4421
    %7674 = vmatprep.subr.bf16.mxu0 %v4410
    %7675 = vmatpush2.bf16.msra.mxu0 %v4409
    %7676 = vmatprep.subr.bf16.mxu0 %v4398
    %7677 = vmatpush2.bf16.msra.mxu0 %v4397
    %7678 = vmatprep.mubr.bf16.mxu0 %v7358
    %7679 = vmatmul.mubr.bf16.gmra.mxu0 %v7357
    %v7680 = vpop.f32.mrf.mxu0
    %v7681 = vadd.f32 %v7640, %v7680
    %v7682 = vpop.f32.mrf.mxu0
    %v7683 = vadd.f32 %v7642, %v7682
    %v7684 = vpop.f32.mrf.mxu0
    %v7685 = vpop.f32.mrf.mxu0
    %7686 = vdwg.mxu0
    %7687 = vmatprep.subr.bf16.mxu0 %v4196
    %7688 = vmatpush1.bf16.msra.mxu0 %v4195
    %7689 = vmatprep.subr.bf16.mxu0 %v4184
    %7690 = vmatpush1.bf16.msra.mxu0 %v4183
    %7691 = vmatprep.subr.bf16.mxu0 %v4172
    %7692 = vmatpush1.bf16.msra.mxu0 %v4171
    %7693 = vmatprep.subr.bf16.mxu0 %v4160
    %7694 = vmatpush1.bf16.msra.mxu0 %v4159
    %7695 = vmatprep.subr.bf16.mxu0 %v4148
    %7696 = vmatpush1.bf16.msra.mxu0 %v4147
    %7697 = vmatprep.subr.bf16.mxu0 %v4136
    %7698 = vmatpush1.bf16.msra.mxu0 %v4135
    %7699 = vmatprep.subr.bf16.mxu0 %v4124
    %7700 = vmatpush1.bf16.msra.mxu0 %v4123
    %7701 = vmatprep.subr.bf16.mxu0 %v4112
    %7702 = vmatpush1.bf16.msra.mxu0 %v4111
    %7703 = vmatprep.subr.bf16.mxu0 %v4292
    %7704 = vmatpush2.bf16.msra.mxu0 %v4291
    %7705 = vmatprep.subr.bf16.mxu0 %v4280
    %7706 = vmatpush2.bf16.msra.mxu0 %v4279
    %7707 = vmatprep.subr.bf16.mxu0 %v4268
    %7708 = vmatpush2.bf16.msra.mxu0 %v4267
    %7709 = vmatprep.subr.bf16.mxu0 %v4256
    %7710 = vmatpush2.bf16.msra.mxu0 %v4255
    %7711 = vmatprep.subr.bf16.mxu0 %v4244
    %7712 = vmatpush2.bf16.msra.mxu0 %v4243
    %7713 = vmatprep.subr.bf16.mxu0 %v4232
    %7714 = vmatpush2.bf16.msra.mxu0 %v4231
    %7715 = vmatprep.subr.bf16.mxu0 %v4220
    %7716 = vmatpush2.bf16.msra.mxu0 %v4219
    %7717 = vmatprep.subr.bf16.mxu0 %v4208
    %7718 = vmatpush2.bf16.msra.mxu0 %v4207
    %7719 = vmatprep.mubr.bf16.mxu0 %v7356
    %7720 = vmatmul.mubr.bf16.gmra.mxu0 %v7355
    %v7721 = vpop.f32.mrf.mxu0
    %v7722 = vadd.f32 0.0, %v7721
    %v7723 = vpop.f32.mrf.mxu0
    %v7724 = vadd.f32 0.0, %v7723
    %v7725 = vpop.f32.mrf.mxu0
    %v7726 = vpop.f32.mrf.mxu0
    %7727 = vdwg.mxu0
    %7728 = vmatprep.subr.bf16.mxu0 %v4388
    %7729 = vmatpush1.bf16.msra.mxu0 %v4387
    %7730 = vmatprep.subr.bf16.mxu0 %v4376
    %7731 = vmatpush1.bf16.msra.mxu0 %v4375
    %7732 = vmatprep.subr.bf16.mxu0 %v4364
    %7733 = vmatpush1.bf16.msra.mxu0 %v4363
    %7734 = vmatprep.subr.bf16.mxu0 %v4352
    %7735 = vmatpush1.bf16.msra.mxu0 %v4351
    %7736 = vmatprep.subr.bf16.mxu0 %v4340
    %7737 = vmatpush1.bf16.msra.mxu0 %v4339
    %7738 = vmatprep.subr.bf16.mxu0 %v4328
    %7739 = vmatpush1.bf16.msra.mxu0 %v4327
    %7740 = vmatprep.subr.bf16.mxu0 %v4316
    %7741 = vmatpush1.bf16.msra.mxu0 %v4315
    %7742 = vmatprep.subr.bf16.mxu0 %v4304
    %7743 = vmatpush1.bf16.msra.mxu0 %v4303
    %7744 = vmatprep.subr.bf16.mxu0 %v4484
    %7745 = vmatpush2.bf16.msra.mxu0 %v4483
    %7746 = vmatprep.subr.bf16.mxu0 %v4472
    %7747 = vmatpush2.bf16.msra.mxu0 %v4471
    %7748 = vmatprep.subr.bf16.mxu0 %v4460
    %7749 = vmatpush2.bf16.msra.mxu0 %v4459
    %7750 = vmatprep.subr.bf16.mxu0 %v4448
    %7751 = vmatpush2.bf16.msra.mxu0 %v4447
    %7752 = vmatprep.subr.bf16.mxu0 %v4436
    %7753 = vmatpush2.bf16.msra.mxu0 %v4435
    %7754 = vmatprep.subr.bf16.mxu0 %v4424
    %7755 = vmatpush2.bf16.msra.mxu0 %v4423
    %7756 = vmatprep.subr.bf16.mxu0 %v4412
    %7757 = vmatpush2.bf16.msra.mxu0 %v4411
    %7758 = vmatprep.subr.bf16.mxu0 %v4400
    %7759 = vmatpush2.bf16.msra.mxu0 %v4399
    %7760 = vmatprep.mubr.bf16.mxu0 %v7358
    %7761 = vmatmul.mubr.bf16.gmra.mxu0 %v7357
    %v7762 = vpop.f32.mrf.mxu0
    %v7763 = vadd.f32 %v7722, %v7762
    %v7764 = vpop.f32.mrf.mxu0
    %v7765 = vadd.f32 %v7724, %v7764
    %v7766 = vpop.f32.mrf.mxu0
    %v7767 = vpop.f32.mrf.mxu0
    %7768 = vdwg.mxu0
    %7769 = vmatprep.subr.bf16.mxu0 %v4198
    %7770 = vmatpush1.bf16.msra.mxu0 %v4197
    %7771 = vmatprep.subr.bf16.mxu0 %v4186
    %7772 = vmatpush1.bf16.msra.mxu0 %v4185
    %7773 = vmatprep.subr.bf16.mxu0 %v4174
    %7774 = vmatpush1.bf16.msra.mxu0 %v4173
    %7775 = vmatprep.subr.bf16.mxu0 %v4162
    %7776 = vmatpush1.bf16.msra.mxu0 %v4161
    %7777 = vmatprep.subr.bf16.mxu0 %v4150
    %7778 = vmatpush1.bf16.msra.mxu0 %v4149
    %7779 = vmatprep.subr.bf16.mxu0 %v4138
    %7780 = vmatpush1.bf16.msra.mxu0 %v4137
    %7781 = vmatprep.subr.bf16.mxu0 %v4126
    %7782 = vmatpush1.bf16.msra.mxu0 %v4125
    %7783 = vmatprep.subr.bf16.mxu0 %v4114
    %7784 = vmatpush1.bf16.msra.mxu0 %v4113
    %7785 = vmatprep.subr.bf16.mxu0 %v4294
    %7786 = vmatpush2.bf16.msra.mxu0 %v4293
    %7787 = vmatprep.subr.bf16.mxu0 %v4282
    %7788 = vmatpush2.bf16.msra.mxu0 %v4281
    %7789 = vmatprep.subr.bf16.mxu0 %v4270
    %7790 = vmatpush2.bf16.msra.mxu0 %v4269
    %7791 = vmatprep.subr.bf16.mxu0 %v4258
    %7792 = vmatpush2.bf16.msra.mxu0 %v4257
    %7793 = vmatprep.subr.bf16.mxu0 %v4246
    %7794 = vmatpush2.bf16.msra.mxu0 %v4245
    %7795 = vmatprep.subr.bf16.mxu0 %v4234
    %7796 = vmatpush2.bf16.msra.mxu0 %v4233
    %7797 = vmatprep.subr.bf16.mxu0 %v4222
    %7798 = vmatpush2.bf16.msra.mxu0 %v4221
    %7799 = vmatprep.subr.bf16.mxu0 %v4210
    %7800 = vmatpush2.bf16.msra.mxu0 %v4209
    %7801 = vmatprep.mubr.bf16.mxu0 %v7356
    %7802 = vmatmul.mubr.bf16.gmra.mxu0 %v7355
    %v7803 = vpop.f32.mrf.mxu0
    %v7804 = vadd.f32 0.0, %v7803
    %v7805 = vpop.f32.mrf.mxu0
    %v7806 = vadd.f32 0.0, %v7805
    %v7807 = vpop.f32.mrf.mxu0
    %v7808 = vpop.f32.mrf.mxu0
    %7809 = vdwg.mxu0
    %7810 = vmatprep.subr.bf16.mxu0 %v4390
    %7811 = vmatpush1.bf16.msra.mxu0 %v4389
    %7812 = vmatprep.subr.bf16.mxu0 %v4378
    %7813 = vmatpush1.bf16.msra.mxu0 %v4377
    %7814 = vmatprep.subr.bf16.mxu0 %v4366
    %7815 = vmatpush1.bf16.msra.mxu0 %v4365
    %7816 = vmatprep.subr.bf16.mxu0 %v4354
    %7817 = vmatpush1.bf16.msra.mxu0 %v4353
    %7818 = vmatprep.subr.bf16.mxu0 %v4342
    %7819 = vmatpush1.bf16.msra.mxu0 %v4341
    %7820 = vmatprep.subr.bf16.mxu0 %v4330
    %7821 = vmatpush1.bf16.msra.mxu0 %v4329
    %7822 = vmatprep.subr.bf16.mxu0 %v4318
    %7823 = vmatpush1.bf16.msra.mxu0 %v4317
    %7824 = vmatprep.subr.bf16.mxu0 %v4306
    %7825 = vmatpush1.bf16.msra.mxu0 %v4305
    %7826 = vmatprep.subr.bf16.mxu0 %v4486
    %7827 = vmatpush2.bf16.msra.mxu0 %v4485
    %7828 = vmatprep.subr.bf16.mxu0 %v4474
    %7829 = vmatpush2.bf16.msra.mxu0 %v4473
    %7830 = vmatprep.subr.bf16.mxu0 %v4462
    %7831 = vmatpush2.bf16.msra.mxu0 %v4461
    %7832 = vmatprep.subr.bf16.mxu0 %v4450
    %7833 = vmatpush2.bf16.msra.mxu0 %v4449
    %7834 = vmatprep.subr.bf16.mxu0 %v4438
    %7835 = vmatpush2.bf16.msra.mxu0 %v4437
    %7836 = vmatprep.subr.bf16.mxu0 %v4426
    %7837 = vmatpush2.bf16.msra.mxu0 %v4425
    %7838 = vmatprep.subr.bf16.mxu0 %v4414
    %7839 = vmatpush2.bf16.msra.mxu0 %v4413
    %7840 = vmatprep.subr.bf16.mxu0 %v4402
    %7841 = vmatpush2.bf16.msra.mxu0 %v4401
    %7842 = vmatprep.mubr.bf16.mxu0 %v7358
    %7843 = vmatmul.mubr.bf16.gmra.mxu0 %v7357
    %v7844 = vpop.f32.mrf.mxu0
    %v7845 = vadd.f32 %v7804, %v7844
    %v7846 = vpop.f32.mrf.mxu0
    %v7847 = vadd.f32 %v7806, %v7846
    %v7848 = vpop.f32.mrf.mxu0
    %v7849 = vpop.f32.mrf.mxu0
    %7850 = vdwg.mxu0
    %v7851 = vld [vmem:[#allocation2 + $0x180] sm:$0xff]
    %v7852 = vld [vmem:[#allocation2 + $0x188] sm:$0xff]
    %v7853 = vld [vmem:[#allocation2 + $0x190] sm:$0xff]
    %v7854 = vld [vmem:[#allocation2 + $0x198] sm:$0xff]
    %v7855 = vld [vmem:[#allocation2 + $0x1a0] sm:$0xff]
    %v7856 = vld [vmem:[#allocation2 + $0x1a8] sm:$0xff]
    %v7857 = vld [vmem:[#allocation2 + $0x1b0] sm:$0xff]
    %v7858 = vld [vmem:[#allocation2 + $0x1b8] sm:$0xff]
    %v7859 = vld [vmem:[#allocation2 + $0x1c0] sm:$0xff]
    %v7860 = vld [vmem:[#allocation2 + $0x1c8] sm:$0xff]
    %v7861 = vld [vmem:[#allocation2 + $0x1d0] sm:$0xff]
    %v7862 = vld [vmem:[#allocation2 + $0x1d8] sm:$0xff]
    %v7863 = vadd.f32 %v7851, %v7435
    %v7864 = vadd.f32 %v7852, %v7437
    %v7865 = vadd.f32 %v7853, %v7517
    %v7866 = vadd.f32 %v7854, %v7519
    %v7867 = vxor.u32 %v7863, 2147483648
    %v7868 = vxor.u32 %v7864, 2147483648
    %v7869 = vxor.u32 %v7865, 2147483648
    %v7870 = vxor.u32 %v7866, 2147483648
    %v7871 = vmul.f32 %v7867, 1.442695
    %v7872 = vpow.pop %v7871
    %v7873 = vmul.f32 %v7868, 1.442695
    %v7874 = vpow.pop %v7873
    %v7875 = vmul.f32 %v7869, 1.442695
    %v7876 = vpow.pop %v7875
    %v7877 = vmul.f32 %v7870, 1.442695
    %v7878 = vpow.pop %v7877
    %v7879 = vadd.f32 %v7872, 1.0
    %v7880 = vadd.f32 %v7874, 1.0
    %v7881 = vadd.f32 %v7876, 1.0
    %v7882 = vadd.f32 %v7878, 1.0
    %v7883 = vrcp.pop %v7879
    %v7884 = vmul.f32 1.0, %v7883
    %v7885 = vrcp.pop %v7880
    %v7886 = vmul.f32 1.0, %v7885
    %v7887 = vrcp.pop %v7881
    %v7888 = vmul.f32 1.0, %v7887
    %v7889 = vrcp.pop %v7882
    %v7890 = vmul.f32 1.0, %v7889
    %v7891 = vadd.f32 %v7855, %v7599
    %v7892 = vadd.f32 %v7856, %v7601
    %v7893 = vadd.f32 %v7857, %v7681
    %v7894 = vadd.f32 %v7858, %v7683
    %v7895 = vxor.u32 %v7891, 2147483648
    %v7896 = vxor.u32 %v7892, 2147483648
    %v7897 = vxor.u32 %v7893, 2147483648
    %v7898 = vxor.u32 %v7894, 2147483648
    %v7899 = vmul.f32 %v7895, 1.442695
    %v7900 = vpow.pop %v7899
    %v7901 = vmul.f32 %v7896, 1.442695
    %v7902 = vpow.pop %v7901
    %v7903 = vmul.f32 %v7897, 1.442695
    %v7904 = vpow.pop %v7903
    %v7905 = vmul.f32 %v7898, 1.442695
    %v7906 = vpow.pop %v7905
    %v7907 = vadd.f32 %v7900, 1.0
    %v7908 = vadd.f32 %v7902, 1.0
    %v7909 = vadd.f32 %v7904, 1.0
    %v7910 = vadd.f32 %v7906, 1.0
    %v7911 = vrcp.pop %v7907
    %v7912 = vmul.f32 1.0, %v7911
    %v7913 = vrcp.pop %v7908
    %v7914 = vmul.f32 1.0, %v7913
    %v7915 = vrcp.pop %v7909
    %v7916 = vmul.f32 1.0, %v7915
    %v7917 = vrcp.pop %v7910
    %v7918 = vmul.f32 1.0, %v7917
    %v7919 = vadd.f32 %v7763, %v2926
    %v7920 = vadd.f32 %v7765, %v2930
    %v7921 = vadd.f32 %v7845, %v2934
    %v7922 = vadd.f32 %v7847, %v2938
    %v7923 = vmul.f32 %v7884, %v7919
    %v7924 = vmul.f32 %v7886, %v7920
    %v7925 = vmul.f32 %v7888, %v7921
    %v7926 = vmul.f32 %v7890, %v7922
    %v7927 = vadd.f32 %v7859, %v7923
    %v7928 = vadd.f32 %v7860, %v7924
    %v7929 = vadd.f32 %v7861, %v7925
    %v7930 = vadd.f32 %v7862, %v7926
    %v7931 = vtanh.pop %v7927
    %v7932 = vtanh.pop %v7928
    %v7933 = vtanh.pop %v7929
    %v7934 = vtanh.pop %v7930
    %v7935 = vsub.f32 1.0, %v7912
    %v7936 = vsub.f32 1.0, %v7914
    %v7937 = vsub.f32 1.0, %v7916
    %v7938 = vsub.f32 1.0, %v7918
    %v7939 = vmul.f32 %v7935, %v7931
    %v7940 = vmul.f32 %v7936, %v7932
    %v7941 = vmul.f32 %v7937, %v7933
    %v7942 = vmul.f32 %v7938, %v7934
    %v7943 = vmul.f32 %v7912, %v7351
    %v7944 = vmul.f32 %v7914, %v7352
    %v7945 = vmul.f32 %v7916, %v7353
    %v7946 = vmul.f32 %v7918, %v7354
    %v7947 = vadd.f32 %v7939, %v7943
    %v7948 = vadd.f32 %v7940, %v7944
    %v7949 = vadd.f32 %v7941, %v7945
    %v7950 = vadd.f32 %v7942, %v7946
    %7951 = vst [vmem:[#allocation3] sm:$0xff] %v7947
    %7952 = vst [vmem:[#allocation3 + $0x8] sm:$0xff] %v7948
    %7953 = vst [vmem:[#allocation3 + $0x10] sm:$0xff] %v7949
    %7954 = vst [vmem:[#allocation3 + $0x18] sm:$0xff] %v7950
    %v7955 = vpack.c.bf16 %v7947, %v7947
    %v7956 = vpack.c.bf16 %v7948, %v7948
    %v7957 = vpack.c.bf16 %v7949, %v7949
    %v7958 = vpack.c.bf16 %v7950, %v7950
    %v7963 = vunpack.c.l.b16 %v7955
    %v7964 = vunpack.c.l.b16 %v7956
    %v7965 = vunpack.c.l.b16 %v7957
    %v7966 = vunpack.c.l.b16 %v7958
    %v7967 = vpack.c.b16 %v7964, %v7963
    %v7968 = vpack.c.b16 %v7966, %v7965
    %7971 = vst [vmem:[#allocation15 + $0x40] sm:$0xff] %v7967
    %7972 = vst [vmem:[#allocation15 + $0x48] sm:$0xff] %v7968
    %v7973 = vld [vmem:[#allocation3] sm:$0xff]
    %v7974 = vld [vmem:[#allocation3 + $0x8] sm:$0xff]
    %v7975 = vld [vmem:[#allocation3 + $0x10] sm:$0xff]
    %v7976 = vld [vmem:[#allocation3 + $0x18] sm:$0xff]
    %v7977 = vpack.c.bf16 %v7973, %v7973
    %v7978 = vpack.c.bf16 %v7974, %v7974
    %v7979 = vpack.c.bf16 %v7975, %v7975
    %v7980 = vpack.c.bf16 %v7976, %v7976
    %7981 = vmatprep.subr.bf16.mxu0 %v4188
    %7982 = vmatpush1.bf16.msra.mxu0 %v4187
    %7983 = vmatprep.subr.bf16.mxu0 %v4176
    %7984 = vmatpush1.bf16.msra.mxu0 %v4175
    %7985 = vmatprep.subr.bf16.mxu0 %v4164
    %7986 = vmatpush1.bf16.msra.mxu0 %v4163
    %7987 = vmatprep.subr.bf16.mxu0 %v4152
    %7988 = vmatpush1.bf16.msra.mxu0 %v4151
    %7989 = vmatprep.subr.bf16.mxu0 %v4140
    %7990 = vmatpush1.bf16.msra.mxu0 %v4139
    %7991 = vmatprep.subr.bf16.mxu0 %v4128
    %7992 = vmatpush1.bf16.msra.mxu0 %v4127
    %7993 = vmatprep.subr.bf16.mxu0 %v4116
    %7994 = vmatpush1.bf16.msra.mxu0 %v4115
    %7995 = vmatprep.subr.bf16.mxu0 %v4104
    %7996 = vmatpush1.bf16.msra.mxu0 %v4103
    %7997 = vmatprep.subr.bf16.mxu0 %v4284
    %7998 = vmatpush2.bf16.msra.mxu0 %v4283
    %7999 = vmatprep.subr.bf16.mxu0 %v4272
    %8000 = vmatpush2.bf16.msra.mxu0 %v4271
    %8001 = vmatprep.subr.bf16.mxu0 %v4260
    %8002 = vmatpush2.bf16.msra.mxu0 %v4259
    %8003 = vmatprep.subr.bf16.mxu0 %v4248
    %8004 = vmatpush2.bf16.msra.mxu0 %v4247
    %8005 = vmatprep.subr.bf16.mxu0 %v4236
    %8006 = vmatpush2.bf16.msra.mxu0 %v4235
    %8007 = vmatprep.subr.bf16.mxu0 %v4224
    %8008 = vmatpush2.bf16.msra.mxu0 %v4223
    %8009 = vmatprep.subr.bf16.mxu0 %v4212
    %8010 = vmatpush2.bf16.msra.mxu0 %v4211
    %8011 = vmatprep.subr.bf16.mxu0 %v4200
    %8012 = vmatpush2.bf16.msra.mxu0 %v4199
    %8013 = vmatprep.mubr.bf16.mxu0 %v7978
    %8014 = vmatmul.mubr.bf16.gmra.mxu0 %v7977
    %v8015 = vpop.f32.mrf.mxu0
    %v8016 = vadd.f32 0.0, %v8015
    %v8017 = vpop.f32.mrf.mxu0
    %v8018 = vadd.f32 0.0, %v8017
    %v8019 = vpop.f32.mrf.mxu0
    %v8020 = vpop.f32.mrf.mxu0
    %8021 = vdwg.mxu0
    %8022 = vmatprep.subr.bf16.mxu0 %v4380
    %8023 = vmatpush1.bf16.msra.mxu0 %v4379
    %8024 = vmatprep.subr.bf16.mxu0 %v4368
    %8025 = vmatpush1.bf16.msra.mxu0 %v4367
    %8026 = vmatprep.subr.bf16.mxu0 %v4356
    %8027 = vmatpush1.bf16.msra.mxu0 %v4355
    %8028 = vmatprep.subr.bf16.mxu0 %v4344
    %8029 = vmatpush1.bf16.msra.mxu0 %v4343
    %8030 = vmatprep.subr.bf16.mxu0 %v4332
    %8031 = vmatpush1.bf16.msra.mxu0 %v4331
    %8032 = vmatprep.subr.bf16.mxu0 %v4320
    %8033 = vmatpush1.bf16.msra.mxu0 %v4319
    %8034 = vmatprep.subr.bf16.mxu0 %v4308
    %8035 = vmatpush1.bf16.msra.mxu0 %v4307
    %8036 = vmatprep.subr.bf16.mxu0 %v4296
    %8037 = vmatpush1.bf16.msra.mxu0 %v4295
    %8038 = vmatprep.subr.bf16.mxu0 %v4476
    %8039 = vmatpush2.bf16.msra.mxu0 %v4475
    %8040 = vmatprep.subr.bf16.mxu0 %v4464
    %8041 = vmatpush2.bf16.msra.mxu0 %v4463
    %8042 = vmatprep.subr.bf16.mxu0 %v4452
    %8043 = vmatpush2.bf16.msra.mxu0 %v4451
    %8044 = vmatprep.subr.bf16.mxu0 %v4440
    %8045 = vmatpush2.bf16.msra.mxu0 %v4439
    %8046 = vmatprep.subr.bf16.mxu0 %v4428
    %8047 = vmatpush2.bf16.msra.mxu0 %v4427
    %8048 = vmatprep.subr.bf16.mxu0 %v4416
    %8049 = vmatpush2.bf16.msra.mxu0 %v4415
    %8050 = vmatprep.subr.bf16.mxu0 %v4404
    %8051 = vmatpush2.bf16.msra.mxu0 %v4403
    %8052 = vmatprep.subr.bf16.mxu0 %v4392
    %8053 = vmatpush2.bf16.msra.mxu0 %v4391
    %8054 = vmatprep.mubr.bf16.mxu0 %v7980
    %8055 = vmatmul.mubr.bf16.gmra.mxu0 %v7979
    %v8056 = vpop.f32.mrf.mxu0
    %v8057 = vadd.f32 %v8016, %v8056
    %v8058 = vpop.f32.mrf.mxu0
    %v8059 = vadd.f32 %v8018, %v8058
    %v8060 = vpop.f32.mrf.mxu0
    %v8061 = vpop.f32.mrf.mxu0
    %8062 = vdwg.mxu0
    %8063 = vmatprep.subr.bf16.mxu0 %v4190
    %8064 = vmatpush1.bf16.msra.mxu0 %v4189
    %8065 = vmatprep.subr.bf16.mxu0 %v4178
    %8066 = vmatpush1.bf16.msra.mxu0 %v4177
    %8067 = vmatprep.subr.bf16.mxu0 %v4166
    %8068 = vmatpush1.bf16.msra.mxu0 %v4165
    %8069 = vmatprep.subr.bf16.mxu0 %v4154
    %8070 = vmatpush1.bf16.msra.mxu0 %v4153
    %8071 = vmatprep.subr.bf16.mxu0 %v4142
    %8072 = vmatpush1.bf16.msra.mxu0 %v4141
    %8073 = vmatprep.subr.bf16.mxu0 %v4130
    %8074 = vmatpush1.bf16.msra.mxu0 %v4129
    %8075 = vmatprep.subr.bf16.mxu0 %v4118
    %8076 = vmatpush1.bf16.msra.mxu0 %v4117
    %8077 = vmatprep.subr.bf16.mxu0 %v4106
    %8078 = vmatpush1.bf16.msra.mxu0 %v4105
    %8079 = vmatprep.subr.bf16.mxu0 %v4286
    %8080 = vmatpush2.bf16.msra.mxu0 %v4285
    %8081 = vmatprep.subr.bf16.mxu0 %v4274
    %8082 = vmatpush2.bf16.msra.mxu0 %v4273
    %8083 = vmatprep.subr.bf16.mxu0 %v4262
    %8084 = vmatpush2.bf16.msra.mxu0 %v4261
    %8085 = vmatprep.subr.bf16.mxu0 %v4250
    %8086 = vmatpush2.bf16.msra.mxu0 %v4249
    %8087 = vmatprep.subr.bf16.mxu0 %v4238
    %8088 = vmatpush2.bf16.msra.mxu0 %v4237
    %8089 = vmatprep.subr.bf16.mxu0 %v4226
    %8090 = vmatpush2.bf16.msra.mxu0 %v4225
    %8091 = vmatprep.subr.bf16.mxu0 %v4214
    %8092 = vmatpush2.bf16.msra.mxu0 %v4213
    %8093 = vmatprep.subr.bf16.mxu0 %v4202
    %8094 = vmatpush2.bf16.msra.mxu0 %v4201
    %8095 = vmatprep.mubr.bf16.mxu0 %v7978
    %8096 = vmatmul.mubr.bf16.gmra.mxu0 %v7977
    %v8097 = vpop.f32.mrf.mxu0
    %v8098 = vadd.f32 0.0, %v8097
    %v8099 = vpop.f32.mrf.mxu0
    %v8100 = vadd.f32 0.0, %v8099
    %v8101 = vpop.f32.mrf.mxu0
    %v8102 = vpop.f32.mrf.mxu0
    %8103 = vdwg.mxu0
    %8104 = vmatprep.subr.bf16.mxu0 %v4382
    %8105 = vmatpush1.bf16.msra.mxu0 %v4381
    %8106 = vmatprep.subr.bf16.mxu0 %v4370
    %8107 = vmatpush1.bf16.msra.mxu0 %v4369
    %8108 = vmatprep.subr.bf16.mxu0 %v4358
    %8109 = vmatpush1.bf16.msra.mxu0 %v4357
    %8110 = vmatprep.subr.bf16.mxu0 %v4346
    %8111 = vmatpush1.bf16.msra.mxu0 %v4345
    %8112 = vmatprep.subr.bf16.mxu0 %v4334
    %8113 = vmatpush1.bf16.msra.mxu0 %v4333
    %8114 = vmatprep.subr.bf16.mxu0 %v4322
    %8115 = vmatpush1.bf16.msra.mxu0 %v4321
    %8116 = vmatprep.subr.bf16.mxu0 %v4310
    %8117 = vmatpush1.bf16.msra.mxu0 %v4309
    %8118 = vmatprep.subr.bf16.mxu0 %v4298
    %8119 = vmatpush1.bf16.msra.mxu0 %v4297
    %8120 = vmatprep.subr.bf16.mxu0 %v4478
    %8121 = vmatpush2.bf16.msra.mxu0 %v4477
    %8122 = vmatprep.subr.bf16.mxu0 %v4466
    %8123 = vmatpush2.bf16.msra.mxu0 %v4465
    %8124 = vmatprep.subr.bf16.mxu0 %v4454
    %8125 = vmatpush2.bf16.msra.mxu0 %v4453
    %8126 = vmatprep.subr.bf16.mxu0 %v4442
    %8127 = vmatpush2.bf16.msra.mxu0 %v4441
    %8128 = vmatprep.subr.bf16.mxu0 %v4430
    %8129 = vmatpush2.bf16.msra.mxu0 %v4429
    %8130 = vmatprep.subr.bf16.mxu0 %v4418
    %8131 = vmatpush2.bf16.msra.mxu0 %v4417
    %8132 = vmatprep.subr.bf16.mxu0 %v4406
    %8133 = vmatpush2.bf16.msra.mxu0 %v4405
    %8134 = vmatprep.subr.bf16.mxu0 %v4394
    %8135 = vmatpush2.bf16.msra.mxu0 %v4393
    %8136 = vmatprep.mubr.bf16.mxu0 %v7980
    %8137 = vmatmul.mubr.bf16.gmra.mxu0 %v7979
    %v8138 = vpop.f32.mrf.mxu0
    %v8139 = vadd.f32 %v8098, %v8138
    %v8140 = vpop.f32.mrf.mxu0
    %v8141 = vadd.f32 %v8100, %v8140
    %v8142 = vpop.f32.mrf.mxu0
    %v8143 = vpop.f32.mrf.mxu0
    %8144 = vdwg.mxu0
    %8145 = vmatprep.subr.bf16.mxu0 %v4192
    %8146 = vmatpush1.bf16.msra.mxu0 %v4191
    %8147 = vmatprep.subr.bf16.mxu0 %v4180
    %8148 = vmatpush1.bf16.msra.mxu0 %v4179
    %8149 = vmatprep.subr.bf16.mxu0 %v4168
    %8150 = vmatpush1.bf16.msra.mxu0 %v4167
    %8151 = vmatprep.subr.bf16.mxu0 %v4156
    %8152 = vmatpush1.bf16.msra.mxu0 %v4155
    %8153 = vmatprep.subr.bf16.mxu0 %v4144
    %8154 = vmatpush1.bf16.msra.mxu0 %v4143
    %8155 = vmatprep.subr.bf16.mxu0 %v4132
    %8156 = vmatpush1.bf16.msra.mxu0 %v4131
    %8157 = vmatprep.subr.bf16.mxu0 %v4120
    %8158 = vmatpush1.bf16.msra.mxu0 %v4119
    %8159 = vmatprep.subr.bf16.mxu0 %v4108
    %8160 = vmatpush1.bf16.msra.mxu0 %v4107
    %8161 = vmatprep.subr.bf16.mxu0 %v4288
    %8162 = vmatpush2.bf16.msra.mxu0 %v4287
    %8163 = vmatprep.subr.bf16.mxu0 %v4276
    %8164 = vmatpush2.bf16.msra.mxu0 %v4275
    %8165 = vmatprep.subr.bf16.mxu0 %v4264
    %8166 = vmatpush2.bf16.msra.mxu0 %v4263
    %8167 = vmatprep.subr.bf16.mxu0 %v4252
    %8168 = vmatpush2.bf16.msra.mxu0 %v4251
    %8169 = vmatprep.subr.bf16.mxu0 %v4240
    %8170 = vmatpush2.bf16.msra.mxu0 %v4239
    %8171 = vmatprep.subr.bf16.mxu0 %v4228
    %8172 = vmatpush2.bf16.msra.mxu0 %v4227
    %8173 = vmatprep.subr.bf16.mxu0 %v4216
    %8174 = vmatpush2.bf16.msra.mxu0 %v4215
    %8175 = vmatprep.subr.bf16.mxu0 %v4204
    %8176 = vmatpush2.bf16.msra.mxu0 %v4203
    %8177 = vmatprep.mubr.bf16.mxu0 %v7978
    %8178 = vmatmul.mubr.bf16.gmra.mxu0 %v7977
    %v8179 = vpop.f32.mrf.mxu0
    %v8180 = vadd.f32 0.0, %v8179
    %v8181 = vpop.f32.mrf.mxu0
    %v8182 = vadd.f32 0.0, %v8181
    %v8183 = vpop.f32.mrf.mxu0
    %v8184 = vpop.f32.mrf.mxu0
    %8185 = vdwg.mxu0
    %8186 = vmatprep.subr.bf16.mxu0 %v4384
    %8187 = vmatpush1.bf16.msra.mxu0 %v4383
    %8188 = vmatprep.subr.bf16.mxu0 %v4372
    %8189 = vmatpush1.bf16.msra.mxu0 %v4371
    %8190 = vmatprep.subr.bf16.mxu0 %v4360
    %8191 = vmatpush1.bf16.msra.mxu0 %v4359
    %8192 = vmatprep.subr.bf16.mxu0 %v4348
    %8193 = vmatpush1.bf16.msra.mxu0 %v4347
    %8194 = vmatprep.subr.bf16.mxu0 %v4336
    %8195 = vmatpush1.bf16.msra.mxu0 %v4335
    %8196 = vmatprep.subr.bf16.mxu0 %v4324
    %8197 = vmatpush1.bf16.msra.mxu0 %v4323
    %8198 = vmatprep.subr.bf16.mxu0 %v4312
    %8199 = vmatpush1.bf16.msra.mxu0 %v4311
    %8200 = vmatprep.subr.bf16.mxu0 %v4300
    %8201 = vmatpush1.bf16.msra.mxu0 %v4299
    %8202 = vmatprep.subr.bf16.mxu0 %v4480
    %8203 = vmatpush2.bf16.msra.mxu0 %v4479
    %8204 = vmatprep.subr.bf16.mxu0 %v4468
    %8205 = vmatpush2.bf16.msra.mxu0 %v4467
    %8206 = vmatprep.subr.bf16.mxu0 %v4456
    %8207 = vmatpush2.bf16.msra.mxu0 %v4455
    %8208 = vmatprep.subr.bf16.mxu0 %v4444
    %8209 = vmatpush2.bf16.msra.mxu0 %v4443
    %8210 = vmatprep.subr.bf16.mxu0 %v4432
    %8211 = vmatpush2.bf16.msra.mxu0 %v4431
    %8212 = vmatprep.subr.bf16.mxu0 %v4420
    %8213 = vmatpush2.bf16.msra.mxu0 %v4419
    %8214 = vmatprep.subr.bf16.mxu0 %v4408
    %8215 = vmatpush2.bf16.msra.mxu0 %v4407
    %8216 = vmatprep.subr.bf16.mxu0 %v4396
    %8217 = vmatpush2.bf16.msra.mxu0 %v4395
    %8218 = vmatprep.mubr.bf16.mxu0 %v7980
    %8219 = vmatmul.mubr.bf16.gmra.mxu0 %v7979
    %v8220 = vpop.f32.mrf.mxu0
    %v8221 = vadd.f32 %v8180, %v8220
    %v8222 = vpop.f32.mrf.mxu0
    %v8223 = vadd.f32 %v8182, %v8222
    %v8224 = vpop.f32.mrf.mxu0
    %v8225 = vpop.f32.mrf.mxu0
    %8226 = vdwg.mxu0
    %8227 = vmatprep.subr.bf16.mxu0 %v4194
    %8228 = vmatpush1.bf16.msra.mxu0 %v4193
    %8229 = vmatprep.subr.bf16.mxu0 %v4182
    %8230 = vmatpush1.bf16.msra.mxu0 %v4181
    %8231 = vmatprep.subr.bf16.mxu0 %v4170
    %8232 = vmatpush1.bf16.msra.mxu0 %v4169
    %8233 = vmatprep.subr.bf16.mxu0 %v4158
    %8234 = vmatpush1.bf16.msra.mxu0 %v4157
    %8235 = vmatprep.subr.bf16.mxu0 %v4146
    %8236 = vmatpush1.bf16.msra.mxu0 %v4145
    %8237 = vmatprep.subr.bf16.mxu0 %v4134
    %8238 = vmatpush1.bf16.msra.mxu0 %v4133
    %8239 = vmatprep.subr.bf16.mxu0 %v4122
    %8240 = vmatpush1.bf16.msra.mxu0 %v4121
    %8241 = vmatprep.subr.bf16.mxu0 %v4110
    %8242 = vmatpush1.bf16.msra.mxu0 %v4109
    %8243 = vmatprep.subr.bf16.mxu0 %v4290
    %8244 = vmatpush2.bf16.msra.mxu0 %v4289
    %8245 = vmatprep.subr.bf16.mxu0 %v4278
    %8246 = vmatpush2.bf16.msra.mxu0 %v4277
    %8247 = vmatprep.subr.bf16.mxu0 %v4266
    %8248 = vmatpush2.bf16.msra.mxu0 %v4265
    %8249 = vmatprep.subr.bf16.mxu0 %v4254
    %8250 = vmatpush2.bf16.msra.mxu0 %v4253
    %8251 = vmatprep.subr.bf16.mxu0 %v4242
    %8252 = vmatpush2.bf16.msra.mxu0 %v4241
    %8253 = vmatprep.subr.bf16.mxu0 %v4230
    %8254 = vmatpush2.bf16.msra.mxu0 %v4229
    %8255 = vmatprep.subr.bf16.mxu0 %v4218
    %8256 = vmatpush2.bf16.msra.mxu0 %v4217
    %8257 = vmatprep.subr.bf16.mxu0 %v4206
    %8258 = vmatpush2.bf16.msra.mxu0 %v4205
    %8259 = vmatprep.mubr.bf16.mxu0 %v7978
    %8260 = vmatmul.mubr.bf16.gmra.mxu0 %v7977
    %v8261 = vpop.f32.mrf.mxu0
    %v8262 = vadd.f32 0.0, %v8261
    %v8263 = vpop.f32.mrf.mxu0
    %v8264 = vadd.f32 0.0, %v8263
    %v8265 = vpop.f32.mrf.mxu0
    %v8266 = vpop.f32.mrf.mxu0
    %8267 = vdwg.mxu0
    %8268 = vmatprep.subr.bf16.mxu0 %v4386
    %8269 = vmatpush1.bf16.msra.mxu0 %v4385
    %8270 = vmatprep.subr.bf16.mxu0 %v4374
    %8271 = vmatpush1.bf16.msra.mxu0 %v4373
    %8272 = vmatprep.subr.bf16.mxu0 %v4362
    %8273 = vmatpush1.bf16.msra.mxu0 %v4361
    %8274 = vmatprep.subr.bf16.mxu0 %v4350
    %8275 = vmatpush1.bf16.msra.mxu0 %v4349
    %8276 = vmatprep.subr.bf16.mxu0 %v4338
    %8277 = vmatpush1.bf16.msra.mxu0 %v4337
    %8278 = vmatprep.subr.bf16.mxu0 %v4326
    %8279 = vmatpush1.bf16.msra.mxu0 %v4325
    %8280 = vmatprep.subr.bf16.mxu0 %v4314
    %8281 = vmatpush1.bf16.msra.mxu0 %v4313
    %8282 = vmatprep.subr.bf16.mxu0 %v4302
    %8283 = vmatpush1.bf16.msra.mxu0 %v4301
    %8284 = vmatprep.subr.bf16.mxu0 %v4482
    %8285 = vmatpush2.bf16.msra.mxu0 %v4481
    %8286 = vmatprep.subr.bf16.mxu0 %v4470
    %8287 = vmatpush2.bf16.msra.mxu0 %v4469
    %8288 = vmatprep.subr.bf16.mxu0 %v4458
    %8289 = vmatpush2.bf16.msra.mxu0 %v4457
    %8290 = vmatprep.subr.bf16.mxu0 %v4446
    %8291 = vmatpush2.bf16.msra.mxu0 %v4445
    %8292 = vmatprep.subr.bf16.mxu0 %v4434
    %8293 = vmatpush2.bf16.msra.mxu0 %v4433
    %8294 = vmatprep.subr.bf16.mxu0 %v4422
    %8295 = vmatpush2.bf16.msra.mxu0 %v4421
    %8296 = vmatprep.subr.bf16.mxu0 %v4410
    %8297 = vmatpush2.bf16.msra.mxu0 %v4409
    %8298 = vmatprep.subr.bf16.mxu0 %v4398
    %8299 = vmatpush2.bf16.msra.mxu0 %v4397
    %8300 = vmatprep.mubr.bf16.mxu0 %v7980
    %8301 = vmatmul.mubr.bf16.gmra.mxu0 %v7979
    %v8302 = vpop.f32.mrf.mxu0
    %v8303 = vadd.f32 %v8262, %v8302
    %v8304 = vpop.f32.mrf.mxu0
    %v8305 = vadd.f32 %v8264, %v8304
    %v8306 = vpop.f32.mrf.mxu0
    %v8307 = vpop.f32.mrf.mxu0
    %8308 = vdwg.mxu0
    %8309 = vmatprep.subr.bf16.mxu0 %v4196
    %8310 = vmatpush1.bf16.msra.mxu0 %v4195
    %8311 = vmatprep.subr.bf16.mxu0 %v4184
    %8312 = vmatpush1.bf16.msra.mxu0 %v4183
    %8313 = vmatprep.subr.bf16.mxu0 %v4172
    %8314 = vmatpush1.bf16.msra.mxu0 %v4171
    %8315 = vmatprep.subr.bf16.mxu0 %v4160
    %8316 = vmatpush1.bf16.msra.mxu0 %v4159
    %8317 = vmatprep.subr.bf16.mxu0 %v4148
    %8318 = vmatpush1.bf16.msra.mxu0 %v4147
    %8319 = vmatprep.subr.bf16.mxu0 %v4136
    %8320 = vmatpush1.bf16.msra.mxu0 %v4135
    %8321 = vmatprep.subr.bf16.mxu0 %v4124
    %8322 = vmatpush1.bf16.msra.mxu0 %v4123
    %8323 = vmatprep.subr.bf16.mxu0 %v4112
    %8324 = vmatpush1.bf16.msra.mxu0 %v4111
    %8325 = vmatprep.subr.bf16.mxu0 %v4292
    %8326 = vmatpush2.bf16.msra.mxu0 %v4291
    %8327 = vmatprep.subr.bf16.mxu0 %v4280
    %8328 = vmatpush2.bf16.msra.mxu0 %v4279
    %8329 = vmatprep.subr.bf16.mxu0 %v4268
    %8330 = vmatpush2.bf16.msra.mxu0 %v4267
    %8331 = vmatprep.subr.bf16.mxu0 %v4256
    %8332 = vmatpush2.bf16.msra.mxu0 %v4255
    %8333 = vmatprep.subr.bf16.mxu0 %v4244
    %8334 = vmatpush2.bf16.msra.mxu0 %v4243
    %8335 = vmatprep.subr.bf16.mxu0 %v4232
    %8336 = vmatpush2.bf16.msra.mxu0 %v4231
    %8337 = vmatprep.subr.bf16.mxu0 %v4220
    %8338 = vmatpush2.bf16.msra.mxu0 %v4219
    %8339 = vmatprep.subr.bf16.mxu0 %v4208
    %8340 = vmatpush2.bf16.msra.mxu0 %v4207
    %8341 = vmatprep.mubr.bf16.mxu0 %v7978
    %8342 = vmatmul.mubr.bf16.gmra.mxu0 %v7977
    %v8343 = vpop.f32.mrf.mxu0
    %v8344 = vadd.f32 0.0, %v8343
    %v8345 = vpop.f32.mrf.mxu0
    %v8346 = vadd.f32 0.0, %v8345
    %v8347 = vpop.f32.mrf.mxu0
    %v8348 = vpop.f32.mrf.mxu0
    %8349 = vdwg.mxu0
    %8350 = vmatprep.subr.bf16.mxu0 %v4388
    %8351 = vmatpush1.bf16.msra.mxu0 %v4387
    %8352 = vmatprep.subr.bf16.mxu0 %v4376
    %8353 = vmatpush1.bf16.msra.mxu0 %v4375
    %8354 = vmatprep.subr.bf16.mxu0 %v4364
    %8355 = vmatpush1.bf16.msra.mxu0 %v4363
    %8356 = vmatprep.subr.bf16.mxu0 %v4352
    %8357 = vmatpush1.bf16.msra.mxu0 %v4351
    %8358 = vmatprep.subr.bf16.mxu0 %v4340
    %8359 = vmatpush1.bf16.msra.mxu0 %v4339
    %8360 = vmatprep.subr.bf16.mxu0 %v4328
    %8361 = vmatpush1.bf16.msra.mxu0 %v4327
    %8362 = vmatprep.subr.bf16.mxu0 %v4316
    %8363 = vmatpush1.bf16.msra.mxu0 %v4315
    %8364 = vmatprep.subr.bf16.mxu0 %v4304
    %8365 = vmatpush1.bf16.msra.mxu0 %v4303
    %8366 = vmatprep.subr.bf16.mxu0 %v4484
    %8367 = vmatpush2.bf16.msra.mxu0 %v4483
    %8368 = vmatprep.subr.bf16.mxu0 %v4472
    %8369 = vmatpush2.bf16.msra.mxu0 %v4471
    %8370 = vmatprep.subr.bf16.mxu0 %v4460
    %8371 = vmatpush2.bf16.msra.mxu0 %v4459
    %8372 = vmatprep.subr.bf16.mxu0 %v4448
    %8373 = vmatpush2.bf16.msra.mxu0 %v4447
    %8374 = vmatprep.subr.bf16.mxu0 %v4436
    %8375 = vmatpush2.bf16.msra.mxu0 %v4435
    %8376 = vmatprep.subr.bf16.mxu0 %v4424
    %8377 = vmatpush2.bf16.msra.mxu0 %v4423
    %8378 = vmatprep.subr.bf16.mxu0 %v4412
    %8379 = vmatpush2.bf16.msra.mxu0 %v4411
    %8380 = vmatprep.subr.bf16.mxu0 %v4400
    %8381 = vmatpush2.bf16.msra.mxu0 %v4399
    %8382 = vmatprep.mubr.bf16.mxu0 %v7980
    %8383 = vmatmul.mubr.bf16.gmra.mxu0 %v7979
    %v8384 = vpop.f32.mrf.mxu0
    %v8385 = vadd.f32 %v8344, %v8384
    %v8386 = vpop.f32.mrf.mxu0
    %v8387 = vadd.f32 %v8346, %v8386
    %v8388 = vpop.f32.mrf.mxu0
    %v8389 = vpop.f32.mrf.mxu0
    %8390 = vdwg.mxu0
    %8391 = vmatprep.subr.bf16.mxu0 %v4198
    %8392 = vmatpush1.bf16.msra.mxu0 %v4197
    %8393 = vmatprep.subr.bf16.mxu0 %v4186
    %8394 = vmatpush1.bf16.msra.mxu0 %v4185
    %8395 = vmatprep.subr.bf16.mxu0 %v4174
    %8396 = vmatpush1.bf16.msra.mxu0 %v4173
    %8397 = vmatprep.subr.bf16.mxu0 %v4162
    %8398 = vmatpush1.bf16.msra.mxu0 %v4161
    %8399 = vmatprep.subr.bf16.mxu0 %v4150
    %8400 = vmatpush1.bf16.msra.mxu0 %v4149
    %8401 = vmatprep.subr.bf16.mxu0 %v4138
    %8402 = vmatpush1.bf16.msra.mxu0 %v4137
    %8403 = vmatprep.subr.bf16.mxu0 %v4126
    %8404 = vmatpush1.bf16.msra.mxu0 %v4125
    %8405 = vmatprep.subr.bf16.mxu0 %v4114
    %8406 = vmatpush1.bf16.msra.mxu0 %v4113
    %8407 = vmatprep.subr.bf16.mxu0 %v4294
    %8408 = vmatpush2.bf16.msra.mxu0 %v4293
    %8409 = vmatprep.subr.bf16.mxu0 %v4282
    %8410 = vmatpush2.bf16.msra.mxu0 %v4281
    %8411 = vmatprep.subr.bf16.mxu0 %v4270
    %8412 = vmatpush2.bf16.msra.mxu0 %v4269
    %8413 = vmatprep.subr.bf16.mxu0 %v4258
    %8414 = vmatpush2.bf16.msra.mxu0 %v4257
    %8415 = vmatprep.subr.bf16.mxu0 %v4246
    %8416 = vmatpush2.bf16.msra.mxu0 %v4245
    %8417 = vmatprep.subr.bf16.mxu0 %v4234
    %8418 = vmatpush2.bf16.msra.mxu0 %v4233
    %8419 = vmatprep.subr.bf16.mxu0 %v4222
    %8420 = vmatpush2.bf16.msra.mxu0 %v4221
    %8421 = vmatprep.subr.bf16.mxu0 %v4210
    %8422 = vmatpush2.bf16.msra.mxu0 %v4209
    %8423 = vmatprep.mubr.bf16.mxu0 %v7978
    %8424 = vmatmul.mubr.bf16.gmra.mxu0 %v7977
    %v8425 = vpop.f32.mrf.mxu0
    %v8426 = vadd.f32 0.0, %v8425
    %v8427 = vpop.f32.mrf.mxu0
    %v8428 = vadd.f32 0.0, %v8427
    %v8429 = vpop.f32.mrf.mxu0
    %v8430 = vpop.f32.mrf.mxu0
    %8431 = vdwg.mxu0
    %8432 = vmatprep.subr.bf16.mxu0 %v4390
    %8433 = vmatpush1.bf16.msra.mxu0 %v4389
    %8434 = vmatprep.subr.bf16.mxu0 %v4378
    %8435 = vmatpush1.bf16.msra.mxu0 %v4377
    %8436 = vmatprep.subr.bf16.mxu0 %v4366
    %8437 = vmatpush1.bf16.msra.mxu0 %v4365
    %8438 = vmatprep.subr.bf16.mxu0 %v4354
    %8439 = vmatpush1.bf16.msra.mxu0 %v4353
    %8440 = vmatprep.subr.bf16.mxu0 %v4342
    %8441 = vmatpush1.bf16.msra.mxu0 %v4341
    %8442 = vmatprep.subr.bf16.mxu0 %v4330
    %8443 = vmatpush1.bf16.msra.mxu0 %v4329
    %8444 = vmatprep.subr.bf16.mxu0 %v4318
    %8445 = vmatpush1.bf16.msra.mxu0 %v4317
    %8446 = vmatprep.subr.bf16.mxu0 %v4306
    %8447 = vmatpush1.bf16.msra.mxu0 %v4305
    %8448 = vmatprep.subr.bf16.mxu0 %v4486
    %8449 = vmatpush2.bf16.msra.mxu0 %v4485
    %8450 = vmatprep.subr.bf16.mxu0 %v4474
    %8451 = vmatpush2.bf16.msra.mxu0 %v4473
    %8452 = vmatprep.subr.bf16.mxu0 %v4462
    %8453 = vmatpush2.bf16.msra.mxu0 %v4461
    %8454 = vmatprep.subr.bf16.mxu0 %v4450
    %8455 = vmatpush2.bf16.msra.mxu0 %v4449
    %8456 = vmatprep.subr.bf16.mxu0 %v4438
    %8457 = vmatpush2.bf16.msra.mxu0 %v4437
    %8458 = vmatprep.subr.bf16.mxu0 %v4426
    %8459 = vmatpush2.bf16.msra.mxu0 %v4425
    %8460 = vmatprep.subr.bf16.mxu0 %v4414
    %8461 = vmatpush2.bf16.msra.mxu0 %v4413
    %8462 = vmatprep.subr.bf16.mxu0 %v4402
    %8463 = vmatpush2.bf16.msra.mxu0 %v4401
    %8464 = vmatprep.mubr.bf16.mxu0 %v7980
    %8465 = vmatmul.mubr.bf16.gmra.mxu0 %v7979
    %v8466 = vpop.f32.mrf.mxu0
    %v8467 = vadd.f32 %v8426, %v8466
    %v8468 = vpop.f32.mrf.mxu0
    %v8469 = vadd.f32 %v8428, %v8468
    %v8470 = vpop.f32.mrf.mxu0
    %v8471 = vpop.f32.mrf.mxu0
    %8472 = vdwg.mxu0
    %v8473 = vld [vmem:[#allocation2 + $0x1e0] sm:$0xff]
    %v8474 = vld [vmem:[#allocation2 + $0x1e8] sm:$0xff]
    %v8475 = vld [vmem:[#allocation2 + $0x1f0] sm:$0xff]
    %v8476 = vld [vmem:[#allocation2 + $0x1f8] sm:$0xff]
    %v8477 = vld [vmem:[#allocation2 + $0x200] sm:$0xff]
    %v8478 = vld [vmem:[#allocation2 + $0x208] sm:$0xff]
    %v8479 = vld [vmem:[#allocation2 + $0x210] sm:$0xff]
    %v8480 = vld [vmem:[#allocation2 + $0x218] sm:$0xff]
    %v8481 = vld [vmem:[#allocation2 + $0x220] sm:$0xff]
    %v8482 = vld [vmem:[#allocation2 + $0x228] sm:$0xff]
    %v8483 = vld [vmem:[#allocation2 + $0x230] sm:$0xff]
    %v8484 = vld [vmem:[#allocation2 + $0x238] sm:$0xff]
    %v8485 = vadd.f32 %v8473, %v8057
    %v8486 = vadd.f32 %v8474, %v8059
    %v8487 = vadd.f32 %v8475, %v8139
    %v8488 = vadd.f32 %v8476, %v8141
    %v8489 = vxor.u32 %v8485, 2147483648
    %v8490 = vxor.u32 %v8486, 2147483648
    %v8491 = vxor.u32 %v8487, 2147483648
    %v8492 = vxor.u32 %v8488, 2147483648
    %v8493 = vmul.f32 %v8489, 1.442695
    %v8494 = vpow.pop %v8493
    %v8495 = vmul.f32 %v8490, 1.442695
    %v8496 = vpow.pop %v8495
    %v8497 = vmul.f32 %v8491, 1.442695
    %v8498 = vpow.pop %v8497
    %v8499 = vmul.f32 %v8492, 1.442695
    %v8500 = vpow.pop %v8499
    %v8501 = vadd.f32 %v8494, 1.0
    %v8502 = vadd.f32 %v8496, 1.0
    %v8503 = vadd.f32 %v8498, 1.0
    %v8504 = vadd.f32 %v8500, 1.0
    %v8505 = vrcp.pop %v8501
    %v8506 = vmul.f32 1.0, %v8505
    %v8507 = vrcp.pop %v8502
    %v8508 = vmul.f32 1.0, %v8507
    %v8509 = vrcp.pop %v8503
    %v8510 = vmul.f32 1.0, %v8509
    %v8511 = vrcp.pop %v8504
    %v8512 = vmul.f32 1.0, %v8511
    %v8513 = vadd.f32 %v8477, %v8221
    %v8514 = vadd.f32 %v8478, %v8223
    %v8515 = vadd.f32 %v8479, %v8303
    %v8516 = vadd.f32 %v8480, %v8305
    %v8517 = vxor.u32 %v8513, 2147483648
    %v8518 = vxor.u32 %v8514, 2147483648
    %v8519 = vxor.u32 %v8515, 2147483648
    %v8520 = vxor.u32 %v8516, 2147483648
    %v8521 = vmul.f32 %v8517, 1.442695
    %v8522 = vpow.pop %v8521
    %v8523 = vmul.f32 %v8518, 1.442695
    %v8524 = vpow.pop %v8523
    %v8525 = vmul.f32 %v8519, 1.442695
    %v8526 = vpow.pop %v8525
    %v8527 = vmul.f32 %v8520, 1.442695
    %v8528 = vpow.pop %v8527
    %v8529 = vadd.f32 %v8522, 1.0
    %v8530 = vadd.f32 %v8524, 1.0
    %v8531 = vadd.f32 %v8526, 1.0
    %v8532 = vadd.f32 %v8528, 1.0
    %v8533 = vrcp.pop %v8529
    %v8534 = vmul.f32 1.0, %v8533
    %v8535 = vrcp.pop %v8530
    %v8536 = vmul.f32 1.0, %v8535
    %v8537 = vrcp.pop %v8531
    %v8538 = vmul.f32 1.0, %v8537
    %v8539 = vrcp.pop %v8532
    %v8540 = vmul.f32 1.0, %v8539
    %v8541 = vadd.f32 %v8385, %v2926
    %v8542 = vadd.f32 %v8387, %v2930
    %v8543 = vadd.f32 %v8467, %v2934
    %v8544 = vadd.f32 %v8469, %v2938
    %v8545 = vmul.f32 %v8506, %v8541
    %v8546 = vmul.f32 %v8508, %v8542
    %v8547 = vmul.f32 %v8510, %v8543
    %v8548 = vmul.f32 %v8512, %v8544
    %v8549 = vadd.f32 %v8481, %v8545
    %v8550 = vadd.f32 %v8482, %v8546
    %v8551 = vadd.f32 %v8483, %v8547
    %v8552 = vadd.f32 %v8484, %v8548
    %v8553 = vtanh.pop %v8549
    %v8554 = vtanh.pop %v8550
    %v8555 = vtanh.pop %v8551
    %v8556 = vtanh.pop %v8552
    %v8557 = vsub.f32 1.0, %v8534
    %v8558 = vsub.f32 1.0, %v8536
    %v8559 = vsub.f32 1.0, %v8538
    %v8560 = vsub.f32 1.0, %v8540
    %v8561 = vmul.f32 %v8557, %v8553
    %v8562 = vmul.f32 %v8558, %v8554
    %v8563 = vmul.f32 %v8559, %v8555
    %v8564 = vmul.f32 %v8560, %v8556
    %v8565 = vmul.f32 %v8534, %v7973
    %v8566 = vmul.f32 %v8536, %v7974
    %v8567 = vmul.f32 %v8538, %v7975
    %v8568 = vmul.f32 %v8540, %v7976
    %v8569 = vadd.f32 %v8561, %v8565
    %v8570 = vadd.f32 %v8562, %v8566
    %v8571 = vadd.f32 %v8563, %v8567
    %v8572 = vadd.f32 %v8564, %v8568
    %8573 = vst [vmem:[#allocation3] sm:$0xff] %v8569
    %8574 = vst [vmem:[#allocation3 + $0x8] sm:$0xff] %v8570
    %8575 = vst [vmem:[#allocation3 + $0x10] sm:$0xff] %v8571
    %8576 = vst [vmem:[#allocation3 + $0x18] sm:$0xff] %v8572
    %v8577 = vpack.c.bf16 %v8569, %v8569
    %v8578 = vpack.c.bf16 %v8570, %v8570
    %v8579 = vpack.c.bf16 %v8571, %v8571
    %v8580 = vpack.c.bf16 %v8572, %v8572
    %v8585 = vunpack.c.l.b16 %v8577
    %v8586 = vunpack.c.l.b16 %v8578
    %v8587 = vunpack.c.l.b16 %v8579
    %v8588 = vunpack.c.l.b16 %v8580
    %v8589 = vpack.c.b16 %v8586, %v8585
    %v8590 = vpack.c.b16 %v8588, %v8587
    %8593 = vst [vmem:[#allocation15 + $0x50] sm:$0xff] %v8589
    %8594 = vst [vmem:[#allocation15 + $0x58] sm:$0xff] %v8590
    %v8595 = vld [vmem:[#allocation3] sm:$0xff]
    %v8596 = vld [vmem:[#allocation3 + $0x8] sm:$0xff]
    %v8597 = vld [vmem:[#allocation3 + $0x10] sm:$0xff]
    %v8598 = vld [vmem:[#allocation3 + $0x18] sm:$0xff]
    %v8599 = vpack.c.bf16 %v8595, %v8595
    %v8600 = vpack.c.bf16 %v8596, %v8596
    %v8601 = vpack.c.bf16 %v8597, %v8597
    %v8602 = vpack.c.bf16 %v8598, %v8598
    %8603 = vmatprep.subr.bf16.mxu0 %v4188
    %8604 = vmatpush1.bf16.msra.mxu0 %v4187
    %8605 = vmatprep.subr.bf16.mxu0 %v4176
    %8606 = vmatpush1.bf16.msra.mxu0 %v4175
    %8607 = vmatprep.subr.bf16.mxu0 %v4164
    %8608 = vmatpush1.bf16.msra.mxu0 %v4163
    %8609 = vmatprep.subr.bf16.mxu0 %v4152
    %8610 = vmatpush1.bf16.msra.mxu0 %v4151
    %8611 = vmatprep.subr.bf16.mxu0 %v4140
    %8612 = vmatpush1.bf16.msra.mxu0 %v4139
    %8613 = vmatprep.subr.bf16.mxu0 %v4128
    %8614 = vmatpush1.bf16.msra.mxu0 %v4127
    %8615 = vmatprep.subr.bf16.mxu0 %v4116
    %8616 = vmatpush1.bf16.msra.mxu0 %v4115
    %8617 = vmatprep.subr.bf16.mxu0 %v4104
    %8618 = vmatpush1.bf16.msra.mxu0 %v4103
    %8619 = vmatprep.subr.bf16.mxu0 %v4284
    %8620 = vmatpush2.bf16.msra.mxu0 %v4283
    %8621 = vmatprep.subr.bf16.mxu0 %v4272
    %8622 = vmatpush2.bf16.msra.mxu0 %v4271
    %8623 = vmatprep.subr.bf16.mxu0 %v4260
    %8624 = vmatpush2.bf16.msra.mxu0 %v4259
    %8625 = vmatprep.subr.bf16.mxu0 %v4248
    %8626 = vmatpush2.bf16.msra.mxu0 %v4247
    %8627 = vmatprep.subr.bf16.mxu0 %v4236
    %8628 = vmatpush2.bf16.msra.mxu0 %v4235
    %8629 = vmatprep.subr.bf16.mxu0 %v4224
    %8630 = vmatpush2.bf16.msra.mxu0 %v4223
    %8631 = vmatprep.subr.bf16.mxu0 %v4212
    %8632 = vmatpush2.bf16.msra.mxu0 %v4211
    %8633 = vmatprep.subr.bf16.mxu0 %v4200
    %8634 = vmatpush2.bf16.msra.mxu0 %v4199
    %8635 = vmatprep.mubr.bf16.mxu0 %v8600
    %8636 = vmatmul.mubr.bf16.gmra.mxu0 %v8599
    %v8637 = vpop.f32.mrf.mxu0
    %v8638 = vadd.f32 0.0, %v8637
    %v8639 = vpop.f32.mrf.mxu0
    %v8640 = vadd.f32 0.0, %v8639
    %v8641 = vpop.f32.mrf.mxu0
    %v8642 = vpop.f32.mrf.mxu0
    %8643 = vdwg.mxu0
    %8644 = vmatprep.subr.bf16.mxu0 %v4380
    %8645 = vmatpush1.bf16.msra.mxu0 %v4379
    %8646 = vmatprep.subr.bf16.mxu0 %v4368
    %8647 = vmatpush1.bf16.msra.mxu0 %v4367
    %8648 = vmatprep.subr.bf16.mxu0 %v4356
    %8649 = vmatpush1.bf16.msra.mxu0 %v4355
    %8650 = vmatprep.subr.bf16.mxu0 %v4344
    %8651 = vmatpush1.bf16.msra.mxu0 %v4343
    %8652 = vmatprep.subr.bf16.mxu0 %v4332
    %8653 = vmatpush1.bf16.msra.mxu0 %v4331
    %8654 = vmatprep.subr.bf16.mxu0 %v4320
    %8655 = vmatpush1.bf16.msra.mxu0 %v4319
    %8656 = vmatprep.subr.bf16.mxu0 %v4308
    %8657 = vmatpush1.bf16.msra.mxu0 %v4307
    %8658 = vmatprep.subr.bf16.mxu0 %v4296
    %8659 = vmatpush1.bf16.msra.mxu0 %v4295
    %8660 = vmatprep.subr.bf16.mxu0 %v4476
    %8661 = vmatpush2.bf16.msra.mxu0 %v4475
    %8662 = vmatprep.subr.bf16.mxu0 %v4464
    %8663 = vmatpush2.bf16.msra.mxu0 %v4463
    %8664 = vmatprep.subr.bf16.mxu0 %v4452
    %8665 = vmatpush2.bf16.msra.mxu0 %v4451
    %8666 = vmatprep.subr.bf16.mxu0 %v4440
    %8667 = vmatpush2.bf16.msra.mxu0 %v4439
    %8668 = vmatprep.subr.bf16.mxu0 %v4428
    %8669 = vmatpush2.bf16.msra.mxu0 %v4427
    %8670 = vmatprep.subr.bf16.mxu0 %v4416
    %8671 = vmatpush2.bf16.msra.mxu0 %v4415
    %8672 = vmatprep.subr.bf16.mxu0 %v4404
    %8673 = vmatpush2.bf16.msra.mxu0 %v4403
    %8674 = vmatprep.subr.bf16.mxu0 %v4392
    %8675 = vmatpush2.bf16.msra.mxu0 %v4391
    %8676 = vmatprep.mubr.bf16.mxu0 %v8602
    %8677 = vmatmul.mubr.bf16.gmra.mxu0 %v8601
    %v8678 = vpop.f32.mrf.mxu0
    %v8679 = vadd.f32 %v8638, %v8678
    %v8680 = vpop.f32.mrf.mxu0
    %v8681 = vadd.f32 %v8640, %v8680
    %v8682 = vpop.f32.mrf.mxu0
    %v8683 = vpop.f32.mrf.mxu0
    %8684 = vdwg.mxu0
    %8685 = vmatprep.subr.bf16.mxu0 %v4190
    %8686 = vmatpush1.bf16.msra.mxu0 %v4189
    %8687 = vmatprep.subr.bf16.mxu0 %v4178
    %8688 = vmatpush1.bf16.msra.mxu0 %v4177
    %8689 = vmatprep.subr.bf16.mxu0 %v4166
    %8690 = vmatpush1.bf16.msra.mxu0 %v4165
    %8691 = vmatprep.subr.bf16.mxu0 %v4154
    %8692 = vmatpush1.bf16.msra.mxu0 %v4153
    %8693 = vmatprep.subr.bf16.mxu0 %v4142
    %8694 = vmatpush1.bf16.msra.mxu0 %v4141
    %8695 = vmatprep.subr.bf16.mxu0 %v4130
    %8696 = vmatpush1.bf16.msra.mxu0 %v4129
    %8697 = vmatprep.subr.bf16.mxu0 %v4118
    %8698 = vmatpush1.bf16.msra.mxu0 %v4117
    %8699 = vmatprep.subr.bf16.mxu0 %v4106
    %8700 = vmatpush1.bf16.msra.mxu0 %v4105
    %8701 = vmatprep.subr.bf16.mxu0 %v4286
    %8702 = vmatpush2.bf16.msra.mxu0 %v4285
    %8703 = vmatprep.subr.bf16.mxu0 %v4274
    %8704 = vmatpush2.bf16.msra.mxu0 %v4273
    %8705 = vmatprep.subr.bf16.mxu0 %v4262
    %8706 = vmatpush2.bf16.msra.mxu0 %v4261
    %8707 = vmatprep.subr.bf16.mxu0 %v4250
    %8708 = vmatpush2.bf16.msra.mxu0 %v4249
    %8709 = vmatprep.subr.bf16.mxu0 %v4238
    %8710 = vmatpush2.bf16.msra.mxu0 %v4237
    %8711 = vmatprep.subr.bf16.mxu0 %v4226
    %8712 = vmatpush2.bf16.msra.mxu0 %v4225
    %8713 = vmatprep.subr.bf16.mxu0 %v4214
    %8714 = vmatpush2.bf16.msra.mxu0 %v4213
    %8715 = vmatprep.subr.bf16.mxu0 %v4202
    %8716 = vmatpush2.bf16.msra.mxu0 %v4201
    %8717 = vmatprep.mubr.bf16.mxu0 %v8600
    %8718 = vmatmul.mubr.bf16.gmra.mxu0 %v8599
    %v8719 = vpop.f32.mrf.mxu0
    %v8720 = vadd.f32 0.0, %v8719
    %v8721 = vpop.f32.mrf.mxu0
    %v8722 = vadd.f32 0.0, %v8721
    %v8723 = vpop.f32.mrf.mxu0
    %v8724 = vpop.f32.mrf.mxu0
    %8725 = vdwg.mxu0
    %8726 = vmatprep.subr.bf16.mxu0 %v4382
    %8727 = vmatpush1.bf16.msra.mxu0 %v4381
    %8728 = vmatprep.subr.bf16.mxu0 %v4370
    %8729 = vmatpush1.bf16.msra.mxu0 %v4369
    %8730 = vmatprep.subr.bf16.mxu0 %v4358
    %8731 = vmatpush1.bf16.msra.mxu0 %v4357
    %8732 = vmatprep.subr.bf16.mxu0 %v4346
    %8733 = vmatpush1.bf16.msra.mxu0 %v4345
    %8734 = vmatprep.subr.bf16.mxu0 %v4334
    %8735 = vmatpush1.bf16.msra.mxu0 %v4333
    %8736 = vmatprep.subr.bf16.mxu0 %v4322
    %8737 = vmatpush1.bf16.msra.mxu0 %v4321
    %8738 = vmatprep.subr.bf16.mxu0 %v4310
    %8739 = vmatpush1.bf16.msra.mxu0 %v4309
    %8740 = vmatprep.subr.bf16.mxu0 %v4298
    %8741 = vmatpush1.bf16.msra.mxu0 %v4297
    %8742 = vmatprep.subr.bf16.mxu0 %v4478
    %8743 = vmatpush2.bf16.msra.mxu0 %v4477
    %8744 = vmatprep.subr.bf16.mxu0 %v4466
    %8745 = vmatpush2.bf16.msra.mxu0 %v4465
    %8746 = vmatprep.subr.bf16.mxu0 %v4454
    %8747 = vmatpush2.bf16.msra.mxu0 %v4453
    %8748 = vmatprep.subr.bf16.mxu0 %v4442
    %8749 = vmatpush2.bf16.msra.mxu0 %v4441
    %8750 = vmatprep.subr.bf16.mxu0 %v4430
    %8751 = vmatpush2.bf16.msra.mxu0 %v4429
    %8752 = vmatprep.subr.bf16.mxu0 %v4418
    %8753 = vmatpush2.bf16.msra.mxu0 %v4417
    %8754 = vmatprep.subr.bf16.mxu0 %v4406
    %8755 = vmatpush2.bf16.msra.mxu0 %v4405
    %8756 = vmatprep.subr.bf16.mxu0 %v4394
    %8757 = vmatpush2.bf16.msra.mxu0 %v4393
    %8758 = vmatprep.mubr.bf16.mxu0 %v8602
    %8759 = vmatmul.mubr.bf16.gmra.mxu0 %v8601
    %v8760 = vpop.f32.mrf.mxu0
    %v8761 = vadd.f32 %v8720, %v8760
    %v8762 = vpop.f32.mrf.mxu0
    %v8763 = vadd.f32 %v8722, %v8762
    %v8764 = vpop.f32.mrf.mxu0
    %v8765 = vpop.f32.mrf.mxu0
    %8766 = vdwg.mxu0
    %8767 = vmatprep.subr.bf16.mxu0 %v4192
    %8768 = vmatpush1.bf16.msra.mxu0 %v4191
    %8769 = vmatprep.subr.bf16.mxu0 %v4180
    %8770 = vmatpush1.bf16.msra.mxu0 %v4179
    %8771 = vmatprep.subr.bf16.mxu0 %v4168
    %8772 = vmatpush1.bf16.msra.mxu0 %v4167
    %8773 = vmatprep.subr.bf16.mxu0 %v4156
    %8774 = vmatpush1.bf16.msra.mxu0 %v4155
    %8775 = vmatprep.subr.bf16.mxu0 %v4144
    %8776 = vmatpush1.bf16.msra.mxu0 %v4143
    %8777 = vmatprep.subr.bf16.mxu0 %v4132
    %8778 = vmatpush1.bf16.msra.mxu0 %v4131
    %8779 = vmatprep.subr.bf16.mxu0 %v4120
    %8780 = vmatpush1.bf16.msra.mxu0 %v4119
    %8781 = vmatprep.subr.bf16.mxu0 %v4108
    %8782 = vmatpush1.bf16.msra.mxu0 %v4107
    %8783 = vmatprep.subr.bf16.mxu0 %v4288
    %8784 = vmatpush2.bf16.msra.mxu0 %v4287
    %8785 = vmatprep.subr.bf16.mxu0 %v4276
    %8786 = vmatpush2.bf16.msra.mxu0 %v4275
    %8787 = vmatprep.subr.bf16.mxu0 %v4264
    %8788 = vmatpush2.bf16.msra.mxu0 %v4263
    %8789 = vmatprep.subr.bf16.mxu0 %v4252
    %8790 = vmatpush2.bf16.msra.mxu0 %v4251
    %8791 = vmatprep.subr.bf16.mxu0 %v4240
    %8792 = vmatpush2.bf16.msra.mxu0 %v4239
    %8793 = vmatprep.subr.bf16.mxu0 %v4228
    %8794 = vmatpush2.bf16.msra.mxu0 %v4227
    %8795 = vmatprep.subr.bf16.mxu0 %v4216
    %8796 = vmatpush2.bf16.msra.mxu0 %v4215
    %8797 = vmatprep.subr.bf16.mxu0 %v4204
    %8798 = vmatpush2.bf16.msra.mxu0 %v4203
    %8799 = vmatprep.mubr.bf16.mxu0 %v8600
    %8800 = vmatmul.mubr.bf16.gmra.mxu0 %v8599
    %v8801 = vpop.f32.mrf.mxu0
    %v8802 = vadd.f32 0.0, %v8801
    %v8803 = vpop.f32.mrf.mxu0
    %v8804 = vadd.f32 0.0, %v8803
    %v8805 = vpop.f32.mrf.mxu0
    %v8806 = vpop.f32.mrf.mxu0
    %8807 = vdwg.mxu0
    %8808 = vmatprep.subr.bf16.mxu0 %v4384
    %8809 = vmatpush1.bf16.msra.mxu0 %v4383
    %8810 = vmatprep.subr.bf16.mxu0 %v4372
    %8811 = vmatpush1.bf16.msra.mxu0 %v4371
    %8812 = vmatprep.subr.bf16.mxu0 %v4360
    %8813 = vmatpush1.bf16.msra.mxu0 %v4359
    %8814 = vmatprep.subr.bf16.mxu0 %v4348
    %8815 = vmatpush1.bf16.msra.mxu0 %v4347
    %8816 = vmatprep.subr.bf16.mxu0 %v4336
    %8817 = vmatpush1.bf16.msra.mxu0 %v4335
    %8818 = vmatprep.subr.bf16.mxu0 %v4324
    %8819 = vmatpush1.bf16.msra.mxu0 %v4323
    %8820 = vmatprep.subr.bf16.mxu0 %v4312
    %8821 = vmatpush1.bf16.msra.mxu0 %v4311
    %8822 = vmatprep.subr.bf16.mxu0 %v4300
    %8823 = vmatpush1.bf16.msra.mxu0 %v4299
    %8824 = vmatprep.subr.bf16.mxu0 %v4480
    %8825 = vmatpush2.bf16.msra.mxu0 %v4479
    %8826 = vmatprep.subr.bf16.mxu0 %v4468
    %8827 = vmatpush2.bf16.msra.mxu0 %v4467
    %8828 = vmatprep.subr.bf16.mxu0 %v4456
    %8829 = vmatpush2.bf16.msra.mxu0 %v4455
    %8830 = vmatprep.subr.bf16.mxu0 %v4444
    %8831 = vmatpush2.bf16.msra.mxu0 %v4443
    %8832 = vmatprep.subr.bf16.mxu0 %v4432
    %8833 = vmatpush2.bf16.msra.mxu0 %v4431
    %8834 = vmatprep.subr.bf16.mxu0 %v4420
    %8835 = vmatpush2.bf16.msra.mxu0 %v4419
    %8836 = vmatprep.subr.bf16.mxu0 %v4408
    %8837 = vmatpush2.bf16.msra.mxu0 %v4407
    %8838 = vmatprep.subr.bf16.mxu0 %v4396
    %8839 = vmatpush2.bf16.msra.mxu0 %v4395
    %8840 = vmatprep.mubr.bf16.mxu0 %v8602
    %8841 = vmatmul.mubr.bf16.gmra.mxu0 %v8601
    %v8842 = vpop.f32.mrf.mxu0
    %v8843 = vadd.f32 %v8802, %v8842
    %v8844 = vpop.f32.mrf.mxu0
    %v8845 = vadd.f32 %v8804, %v8844
    %v8846 = vpop.f32.mrf.mxu0
    %v8847 = vpop.f32.mrf.mxu0
    %8848 = vdwg.mxu0
    %8849 = vmatprep.subr.bf16.mxu0 %v4194
    %8850 = vmatpush1.bf16.msra.mxu0 %v4193
    %8851 = vmatprep.subr.bf16.mxu0 %v4182
    %8852 = vmatpush1.bf16.msra.mxu0 %v4181
    %8853 = vmatprep.subr.bf16.mxu0 %v4170
    %8854 = vmatpush1.bf16.msra.mxu0 %v4169
    %8855 = vmatprep.subr.bf16.mxu0 %v4158
    %8856 = vmatpush1.bf16.msra.mxu0 %v4157
    %8857 = vmatprep.subr.bf16.mxu0 %v4146
    %8858 = vmatpush1.bf16.msra.mxu0 %v4145
    %8859 = vmatprep.subr.bf16.mxu0 %v4134
    %8860 = vmatpush1.bf16.msra.mxu0 %v4133
    %8861 = vmatprep.subr.bf16.mxu0 %v4122
    %8862 = vmatpush1.bf16.msra.mxu0 %v4121
    %8863 = vmatprep.subr.bf16.mxu0 %v4110
    %8864 = vmatpush1.bf16.msra.mxu0 %v4109
    %8865 = vmatprep.subr.bf16.mxu0 %v4290
    %8866 = vmatpush2.bf16.msra.mxu0 %v4289
    %8867 = vmatprep.subr.bf16.mxu0 %v4278
    %8868 = vmatpush2.bf16.msra.mxu0 %v4277
    %8869 = vmatprep.subr.bf16.mxu0 %v4266
    %8870 = vmatpush2.bf16.msra.mxu0 %v4265
    %8871 = vmatprep.subr.bf16.mxu0 %v4254
    %8872 = vmatpush2.bf16.msra.mxu0 %v4253
    %8873 = vmatprep.subr.bf16.mxu0 %v4242
    %8874 = vmatpush2.bf16.msra.mxu0 %v4241
    %8875 = vmatprep.subr.bf16.mxu0 %v4230
    %8876 = vmatpush2.bf16.msra.mxu0 %v4229
    %8877 = vmatprep.subr.bf16.mxu0 %v4218
    %8878 = vmatpush2.bf16.msra.mxu0 %v4217
    %8879 = vmatprep.subr.bf16.mxu0 %v4206
    %8880 = vmatpush2.bf16.msra.mxu0 %v4205
    %8881 = vmatprep.mubr.bf16.mxu0 %v8600
    %8882 = vmatmul.mubr.bf16.gmra.mxu0 %v8599
    %v8883 = vpop.f32.mrf.mxu0
    %v8884 = vadd.f32 0.0, %v8883
    %v8885 = vpop.f32.mrf.mxu0
    %v8886 = vadd.f32 0.0, %v8885
    %v8887 = vpop.f32.mrf.mxu0
    %v8888 = vpop.f32.mrf.mxu0
    %8889 = vdwg.mxu0
    %8890 = vmatprep.subr.bf16.mxu0 %v4386
    %8891 = vmatpush1.bf16.msra.mxu0 %v4385
    %8892 = vmatprep.subr.bf16.mxu0 %v4374
    %8893 = vmatpush1.bf16.msra.mxu0 %v4373
    %8894 = vmatprep.subr.bf16.mxu0 %v4362
    %8895 = vmatpush1.bf16.msra.mxu0 %v4361
    %8896 = vmatprep.subr.bf16.mxu0 %v4350
    %8897 = vmatpush1.bf16.msra.mxu0 %v4349
    %8898 = vmatprep.subr.bf16.mxu0 %v4338
    %8899 = vmatpush1.bf16.msra.mxu0 %v4337
    %8900 = vmatprep.subr.bf16.mxu0 %v4326
    %8901 = vmatpush1.bf16.msra.mxu0 %v4325
    %8902 = vmatprep.subr.bf16.mxu0 %v4314
    %8903 = vmatpush1.bf16.msra.mxu0 %v4313
    %8904 = vmatprep.subr.bf16.mxu0 %v4302
    %8905 = vmatpush1.bf16.msra.mxu0 %v4301
    %8906 = vmatprep.subr.bf16.mxu0 %v4482
    %8907 = vmatpush2.bf16.msra.mxu0 %v4481
    %8908 = vmatprep.subr.bf16.mxu0 %v4470
    %8909 = vmatpush2.bf16.msra.mxu0 %v4469
    %8910 = vmatprep.subr.bf16.mxu0 %v4458
    %8911 = vmatpush2.bf16.msra.mxu0 %v4457
    %8912 = vmatprep.subr.bf16.mxu0 %v4446
    %8913 = vmatpush2.bf16.msra.mxu0 %v4445
    %8914 = vmatprep.subr.bf16.mxu0 %v4434
    %8915 = vmatpush2.bf16.msra.mxu0 %v4433
    %8916 = vmatprep.subr.bf16.mxu0 %v4422
    %8917 = vmatpush2.bf16.msra.mxu0 %v4421
    %8918 = vmatprep.subr.bf16.mxu0 %v4410
    %8919 = vmatpush2.bf16.msra.mxu0 %v4409
    %8920 = vmatprep.subr.bf16.mxu0 %v4398
    %8921 = vmatpush2.bf16.msra.mxu0 %v4397
    %8922 = vmatprep.mubr.bf16.mxu0 %v8602
    %8923 = vmatmul.mubr.bf16.gmra.mxu0 %v8601
    %v8924 = vpop.f32.mrf.mxu0
    %v8925 = vadd.f32 %v8884, %v8924
    %v8926 = vpop.f32.mrf.mxu0
    %v8927 = vadd.f32 %v8886, %v8926
    %v8928 = vpop.f32.mrf.mxu0
    %v8929 = vpop.f32.mrf.mxu0
    %8930 = vdwg.mxu0
    %8931 = vmatprep.subr.bf16.mxu0 %v4196
    %8932 = vmatpush1.bf16.msra.mxu0 %v4195
    %8933 = vmatprep.subr.bf16.mxu0 %v4184
    %8934 = vmatpush1.bf16.msra.mxu0 %v4183
    %8935 = vmatprep.subr.bf16.mxu0 %v4172
    %8936 = vmatpush1.bf16.msra.mxu0 %v4171
    %8937 = vmatprep.subr.bf16.mxu0 %v4160
    %8938 = vmatpush1.bf16.msra.mxu0 %v4159
    %8939 = vmatprep.subr.bf16.mxu0 %v4148
    %8940 = vmatpush1.bf16.msra.mxu0 %v4147
    %8941 = vmatprep.subr.bf16.mxu0 %v4136
    %8942 = vmatpush1.bf16.msra.mxu0 %v4135
    %8943 = vmatprep.subr.bf16.mxu0 %v4124
    %8944 = vmatpush1.bf16.msra.mxu0 %v4123
    %8945 = vmatprep.subr.bf16.mxu0 %v4112
    %8946 = vmatpush1.bf16.msra.mxu0 %v4111
    %8947 = vmatprep.subr.bf16.mxu0 %v4292
    %8948 = vmatpush2.bf16.msra.mxu0 %v4291
    %8949 = vmatprep.subr.bf16.mxu0 %v4280
    %8950 = vmatpush2.bf16.msra.mxu0 %v4279
    %8951 = vmatprep.subr.bf16.mxu0 %v4268
    %8952 = vmatpush2.bf16.msra.mxu0 %v4267
    %8953 = vmatprep.subr.bf16.mxu0 %v4256
    %8954 = vmatpush2.bf16.msra.mxu0 %v4255
    %8955 = vmatprep.subr.bf16.mxu0 %v4244
    %8956 = vmatpush2.bf16.msra.mxu0 %v4243
    %8957 = vmatprep.subr.bf16.mxu0 %v4232
    %8958 = vmatpush2.bf16.msra.mxu0 %v4231
    %8959 = vmatprep.subr.bf16.mxu0 %v4220
    %8960 = vmatpush2.bf16.msra.mxu0 %v4219
    %8961 = vmatprep.subr.bf16.mxu0 %v4208
    %8962 = vmatpush2.bf16.msra.mxu0 %v4207
    %8963 = vmatprep.mubr.bf16.mxu0 %v8600
    %8964 = vmatmul.mubr.bf16.gmra.mxu0 %v8599
    %v8965 = vpop.f32.mrf.mxu0
    %v8966 = vadd.f32 0.0, %v8965
    %v8967 = vpop.f32.mrf.mxu0
    %v8968 = vadd.f32 0.0, %v8967
    %v8969 = vpop.f32.mrf.mxu0
    %v8970 = vpop.f32.mrf.mxu0
    %8971 = vdwg.mxu0
    %8972 = vmatprep.subr.bf16.mxu0 %v4388
    %8973 = vmatpush1.bf16.msra.mxu0 %v4387
    %8974 = vmatprep.subr.bf16.mxu0 %v4376
    %8975 = vmatpush1.bf16.msra.mxu0 %v4375
    %8976 = vmatprep.subr.bf16.mxu0 %v4364
    %8977 = vmatpush1.bf16.msra.mxu0 %v4363
    %8978 = vmatprep.subr.bf16.mxu0 %v4352
    %8979 = vmatpush1.bf16.msra.mxu0 %v4351
    %8980 = vmatprep.subr.bf16.mxu0 %v4340
    %8981 = vmatpush1.bf16.msra.mxu0 %v4339
    %8982 = vmatprep.subr.bf16.mxu0 %v4328
    %8983 = vmatpush1.bf16.msra.mxu0 %v4327
    %8984 = vmatprep.subr.bf16.mxu0 %v4316
    %8985 = vmatpush1.bf16.msra.mxu0 %v4315
    %8986 = vmatprep.subr.bf16.mxu0 %v4304
    %8987 = vmatpush1.bf16.msra.mxu0 %v4303
    %8988 = vmatprep.subr.bf16.mxu0 %v4484
    %8989 = vmatpush2.bf16.msra.mxu0 %v4483
    %8990 = vmatprep.subr.bf16.mxu0 %v4472
    %8991 = vmatpush2.bf16.msra.mxu0 %v4471
    %8992 = vmatprep.subr.bf16.mxu0 %v4460
    %8993 = vmatpush2.bf16.msra.mxu0 %v4459
    %8994 = vmatprep.subr.bf16.mxu0 %v4448
    %8995 = vmatpush2.bf16.msra.mxu0 %v4447
    %8996 = vmatprep.subr.bf16.mxu0 %v4436
    %8997 = vmatpush2.bf16.msra.mxu0 %v4435
    %8998 = vmatprep.subr.bf16.mxu0 %v4424
    %8999 = vmatpush2.bf16.msra.mxu0 %v4423
    %9000 = vmatprep.subr.bf16.mxu0 %v4412
    %9001 = vmatpush2.bf16.msra.mxu0 %v4411
    %9002 = vmatprep.subr.bf16.mxu0 %v4400
    %9003 = vmatpush2.bf16.msra.mxu0 %v4399
    %9004 = vmatprep.mubr.bf16.mxu0 %v8602
    %9005 = vmatmul.mubr.bf16.gmra.mxu0 %v8601
    %v9006 = vpop.f32.mrf.mxu0
    %v9007 = vadd.f32 %v8966, %v9006
    %v9008 = vpop.f32.mrf.mxu0
    %v9009 = vadd.f32 %v8968, %v9008
    %v9010 = vpop.f32.mrf.mxu0
    %v9011 = vpop.f32.mrf.mxu0
    %9012 = vdwg.mxu0
    %9013 = vmatprep.subr.bf16.mxu0 %v4198
    %9014 = vmatpush1.bf16.msra.mxu0 %v4197
    %9015 = vmatprep.subr.bf16.mxu0 %v4186
    %9016 = vmatpush1.bf16.msra.mxu0 %v4185
    %9017 = vmatprep.subr.bf16.mxu0 %v4174
    %9018 = vmatpush1.bf16.msra.mxu0 %v4173
    %9019 = vmatprep.subr.bf16.mxu0 %v4162
    %9020 = vmatpush1.bf16.msra.mxu0 %v4161
    %9021 = vmatprep.subr.bf16.mxu0 %v4150
    %9022 = vmatpush1.bf16.msra.mxu0 %v4149
    %9023 = vmatprep.subr.bf16.mxu0 %v4138
    %9024 = vmatpush1.bf16.msra.mxu0 %v4137
    %9025 = vmatprep.subr.bf16.mxu0 %v4126
    %9026 = vmatpush1.bf16.msra.mxu0 %v4125
    %9027 = vmatprep.subr.bf16.mxu0 %v4114
    %9028 = vmatpush1.bf16.msra.mxu0 %v4113
    %9029 = vmatprep.subr.bf16.mxu0 %v4294
    %9030 = vmatpush2.bf16.msra.mxu0 %v4293
    %9031 = vmatprep.subr.bf16.mxu0 %v4282
    %9032 = vmatpush2.bf16.msra.mxu0 %v4281
    %9033 = vmatprep.subr.bf16.mxu0 %v4270
    %9034 = vmatpush2.bf16.msra.mxu0 %v4269
    %9035 = vmatprep.subr.bf16.mxu0 %v4258
    %9036 = vmatpush2.bf16.msra.mxu0 %v4257
    %9037 = vmatprep.subr.bf16.mxu0 %v4246
    %9038 = vmatpush2.bf16.msra.mxu0 %v4245
    %9039 = vmatprep.subr.bf16.mxu0 %v4234
    %9040 = vmatpush2.bf16.msra.mxu0 %v4233
    %9041 = vmatprep.subr.bf16.mxu0 %v4222
    %9042 = vmatpush2.bf16.msra.mxu0 %v4221
    %9043 = vmatprep.subr.bf16.mxu0 %v4210
    %9044 = vmatpush2.bf16.msra.mxu0 %v4209
    %9045 = vmatprep.mubr.bf16.mxu0 %v8600
    %9046 = vmatmul.mubr.bf16.gmra.mxu0 %v8599
    %v9047 = vpop.f32.mrf.mxu0
    %v9048 = vadd.f32 0.0, %v9047
    %v9049 = vpop.f32.mrf.mxu0
    %v9050 = vadd.f32 0.0, %v9049
    %v9051 = vpop.f32.mrf.mxu0
    %v9052 = vpop.f32.mrf.mxu0
    %9053 = vdwg.mxu0
    %9054 = vmatprep.subr.bf16.mxu0 %v4390
    %9055 = vmatpush1.bf16.msra.mxu0 %v4389
    %9056 = vmatprep.subr.bf16.mxu0 %v4378
    %9057 = vmatpush1.bf16.msra.mxu0 %v4377
    %9058 = vmatprep.subr.bf16.mxu0 %v4366
    %9059 = vmatpush1.bf16.msra.mxu0 %v4365
    %9060 = vmatprep.subr.bf16.mxu0 %v4354
    %9061 = vmatpush1.bf16.msra.mxu0 %v4353
    %9062 = vmatprep.subr.bf16.mxu0 %v4342
    %9063 = vmatpush1.bf16.msra.mxu0 %v4341
    %9064 = vmatprep.subr.bf16.mxu0 %v4330
    %9065 = vmatpush1.bf16.msra.mxu0 %v4329
    %9066 = vmatprep.subr.bf16.mxu0 %v4318
    %9067 = vmatpush1.bf16.msra.mxu0 %v4317
    %9068 = vmatprep.subr.bf16.mxu0 %v4306
    %9069 = vmatpush1.bf16.msra.mxu0 %v4305
    %9070 = vmatprep.subr.bf16.mxu0 %v4486
    %9071 = vmatpush2.bf16.msra.mxu0 %v4485
    %9072 = vmatprep.subr.bf16.mxu0 %v4474
    %9073 = vmatpush2.bf16.msra.mxu0 %v4473
    %9074 = vmatprep.subr.bf16.mxu0 %v4462
    %9075 = vmatpush2.bf16.msra.mxu0 %v4461
    %9076 = vmatprep.subr.bf16.mxu0 %v4450
    %9077 = vmatpush2.bf16.msra.mxu0 %v4449
    %9078 = vmatprep.subr.bf16.mxu0 %v4438
    %9079 = vmatpush2.bf16.msra.mxu0 %v4437
    %9080 = vmatprep.subr.bf16.mxu0 %v4426
    %9081 = vmatpush2.bf16.msra.mxu0 %v4425
    %9082 = vmatprep.subr.bf16.mxu0 %v4414
    %9083 = vmatpush2.bf16.msra.mxu0 %v4413
    %9084 = vmatprep.subr.bf16.mxu0 %v4402
    %9085 = vmatpush2.bf16.msra.mxu0 %v4401
    %9086 = vmatprep.mubr.bf16.mxu0 %v8602
    %9087 = vmatmul.mubr.bf16.gmra.mxu0 %v8601
    %v9088 = vpop.f32.mrf.mxu0
    %v9089 = vadd.f32 %v9048, %v9088
    %v9090 = vpop.f32.mrf.mxu0
    %v9091 = vadd.f32 %v9050, %v9090
    %v9092 = vpop.f32.mrf.mxu0
    %v9093 = vpop.f32.mrf.mxu0
    %9094 = vdwg.mxu0
    %v9095 = vld [vmem:[#allocation2 + $0x240] sm:$0xff]
    %v9096 = vld [vmem:[#allocation2 + $0x248] sm:$0xff]
    %v9097 = vld [vmem:[#allocation2 + $0x250] sm:$0xff]
    %v9098 = vld [vmem:[#allocation2 + $0x258] sm:$0xff]
    %v9099 = vld [vmem:[#allocation2 + $0x260] sm:$0xff]
    %v9100 = vld [vmem:[#allocation2 + $0x268] sm:$0xff]
    %v9101 = vld [vmem:[#allocation2 + $0x270] sm:$0xff]
    %v9102 = vld [vmem:[#allocation2 + $0x278] sm:$0xff]
    %v9103 = vld [vmem:[#allocation2 + $0x280] sm:$0xff]
    %v9104 = vld [vmem:[#allocation2 + $0x288] sm:$0xff]
    %v9105 = vld [vmem:[#allocation2 + $0x290] sm:$0xff]
    %v9106 = vld [vmem:[#allocation2 + $0x298] sm:$0xff]
    %v9107 = vadd.f32 %v9095, %v8679
    %v9108 = vadd.f32 %v9096, %v8681
    %v9109 = vadd.f32 %v9097, %v8761
    %v9110 = vadd.f32 %v9098, %v8763
    %v9111 = vxor.u32 %v9107, 2147483648
    %v9112 = vxor.u32 %v9108, 2147483648
    %v9113 = vxor.u32 %v9109, 2147483648
    %v9114 = vxor.u32 %v9110, 2147483648
    %v9115 = vmul.f32 %v9111, 1.442695
    %v9116 = vpow.pop %v9115
    %v9117 = vmul.f32 %v9112, 1.442695
    %v9118 = vpow.pop %v9117
    %v9119 = vmul.f32 %v9113, 1.442695
    %v9120 = vpow.pop %v9119
    %v9121 = vmul.f32 %v9114, 1.442695
    %v9122 = vpow.pop %v9121
    %v9123 = vadd.f32 %v9116, 1.0
    %v9124 = vadd.f32 %v9118, 1.0
    %v9125 = vadd.f32 %v9120, 1.0
    %v9126 = vadd.f32 %v9122, 1.0
    %v9127 = vrcp.pop %v9123
    %v9128 = vmul.f32 1.0, %v9127
    %v9129 = vrcp.pop %v9124
    %v9130 = vmul.f32 1.0, %v9129
    %v9131 = vrcp.pop %v9125
    %v9132 = vmul.f32 1.0, %v9131
    %v9133 = vrcp.pop %v9126
    %v9134 = vmul.f32 1.0, %v9133
    %v9135 = vadd.f32 %v9099, %v8843
    %v9136 = vadd.f32 %v9100, %v8845
    %v9137 = vadd.f32 %v9101, %v8925
    %v9138 = vadd.f32 %v9102, %v8927
    %v9139 = vxor.u32 %v9135, 2147483648
    %v9140 = vxor.u32 %v9136, 2147483648
    %v9141 = vxor.u32 %v9137, 2147483648
    %v9142 = vxor.u32 %v9138, 2147483648
    %v9143 = vmul.f32 %v9139, 1.442695
    %v9144 = vpow.pop %v9143
    %v9145 = vmul.f32 %v9140, 1.442695
    %v9146 = vpow.pop %v9145
    %v9147 = vmul.f32 %v9141, 1.442695
    %v9148 = vpow.pop %v9147
    %v9149 = vmul.f32 %v9142, 1.442695
    %v9150 = vpow.pop %v9149
    %v9151 = vadd.f32 %v9144, 1.0
    %v9152 = vadd.f32 %v9146, 1.0
    %v9153 = vadd.f32 %v9148, 1.0
    %v9154 = vadd.f32 %v9150, 1.0
    %v9155 = vrcp.pop %v9151
    %v9156 = vmul.f32 1.0, %v9155
    %v9157 = vrcp.pop %v9152
    %v9158 = vmul.f32 1.0, %v9157
    %v9159 = vrcp.pop %v9153
    %v9160 = vmul.f32 1.0, %v9159
    %v9161 = vrcp.pop %v9154
    %v9162 = vmul.f32 1.0, %v9161
    %v9163 = vadd.f32 %v9007, %v2926
    %v9164 = vadd.f32 %v9009, %v2930
    %v9165 = vadd.f32 %v9089, %v2934
    %v9166 = vadd.f32 %v9091, %v2938
    %v9167 = vmul.f32 %v9128, %v9163
    %v9168 = vmul.f32 %v9130, %v9164
    %v9169 = vmul.f32 %v9132, %v9165
    %v9170 = vmul.f32 %v9134, %v9166
    %v9171 = vadd.f32 %v9103, %v9167
    %v9172 = vadd.f32 %v9104, %v9168
    %v9173 = vadd.f32 %v9105, %v9169
    %v9174 = vadd.f32 %v9106, %v9170
    %v9175 = vtanh.pop %v9171
    %v9176 = vtanh.pop %v9172
    %v9177 = vtanh.pop %v9173
    %v9178 = vtanh.pop %v9174
    %v9179 = vsub.f32 1.0, %v9156
    %v9180 = vsub.f32 1.0, %v9158
    %v9181 = vsub.f32 1.0, %v9160
    %v9182 = vsub.f32 1.0, %v9162
    %v9183 = vmul.f32 %v9179, %v9175
    %v9184 = vmul.f32 %v9180, %v9176
    %v9185 = vmul.f32 %v9181, %v9177
    %v9186 = vmul.f32 %v9182, %v9178
    %v9187 = vmul.f32 %v9156, %v8595
    %v9188 = vmul.f32 %v9158, %v8596
    %v9189 = vmul.f32 %v9160, %v8597
    %v9190 = vmul.f32 %v9162, %v8598
    %v9191 = vadd.f32 %v9183, %v9187
    %v9192 = vadd.f32 %v9184, %v9188
    %v9193 = vadd.f32 %v9185, %v9189
    %v9194 = vadd.f32 %v9186, %v9190
    %9195 = vst [vmem:[#allocation3] sm:$0xff] %v9191
    %9196 = vst [vmem:[#allocation3 + $0x8] sm:$0xff] %v9192
    %9197 = vst [vmem:[#allocation3 + $0x10] sm:$0xff] %v9193
    %9198 = vst [vmem:[#allocation3 + $0x18] sm:$0xff] %v9194
    %v9199 = vpack.c.bf16 %v9191, %v9191
    %v9200 = vpack.c.bf16 %v9192, %v9192
    %v9201 = vpack.c.bf16 %v9193, %v9193
    %v9202 = vpack.c.bf16 %v9194, %v9194
    %v9207 = vunpack.c.l.b16 %v9199
    %v9208 = vunpack.c.l.b16 %v9200
    %v9209 = vunpack.c.l.b16 %v9201
    %v9210 = vunpack.c.l.b16 %v9202
    %v9211 = vpack.c.b16 %v9208, %v9207
    %v9212 = vpack.c.b16 %v9210, %v9209
    %9215 = vst [vmem:[#allocation15 + $0x60] sm:$0xff] %v9211
    %9216 = vst [vmem:[#allocation15 + $0x68] sm:$0xff] %v9212
    %v9217 = vld [vmem:[#allocation3] sm:$0xff]
    %v9218 = vld [vmem:[#allocation3 + $0x8] sm:$0xff]
    %v9219 = vld [vmem:[#allocation3 + $0x10] sm:$0xff]
    %v9220 = vld [vmem:[#allocation3 + $0x18] sm:$0xff]
    %v9221 = vpack.c.bf16 %v9217, %v9217
    %v9222 = vpack.c.bf16 %v9218, %v9218
    %v9223 = vpack.c.bf16 %v9219, %v9219
    %v9224 = vpack.c.bf16 %v9220, %v9220
    %9225 = vmatprep.subr.bf16.mxu0 %v4188
    %9226 = vmatpush1.bf16.msra.mxu0 %v4187
    %9227 = vmatprep.subr.bf16.mxu0 %v4176
    %9228 = vmatpush1.bf16.msra.mxu0 %v4175
    %9229 = vmatprep.subr.bf16.mxu0 %v4164
    %9230 = vmatpush1.bf16.msra.mxu0 %v4163
    %9231 = vmatprep.subr.bf16.mxu0 %v4152
    %9232 = vmatpush1.bf16.msra.mxu0 %v4151
    %9233 = vmatprep.subr.bf16.mxu0 %v4140
    %9234 = vmatpush1.bf16.msra.mxu0 %v4139
    %9235 = vmatprep.subr.bf16.mxu0 %v4128
    %9236 = vmatpush1.bf16.msra.mxu0 %v4127
    %9237 = vmatprep.subr.bf16.mxu0 %v4116
    %9238 = vmatpush1.bf16.msra.mxu0 %v4115
    %9239 = vmatprep.subr.bf16.mxu0 %v4104
    %9240 = vmatpush1.bf16.msra.mxu0 %v4103
    %9241 = vmatprep.subr.bf16.mxu0 %v4284
    %9242 = vmatpush2.bf16.msra.mxu0 %v4283
    %9243 = vmatprep.subr.bf16.mxu0 %v4272
    %9244 = vmatpush2.bf16.msra.mxu0 %v4271
    %9245 = vmatprep.subr.bf16.mxu0 %v4260
    %9246 = vmatpush2.bf16.msra.mxu0 %v4259
    %9247 = vmatprep.subr.bf16.mxu0 %v4248
    %9248 = vmatpush2.bf16.msra.mxu0 %v4247
    %9249 = vmatprep.subr.bf16.mxu0 %v4236
    %9250 = vmatpush2.bf16.msra.mxu0 %v4235
    %9251 = vmatprep.subr.bf16.mxu0 %v4224
    %9252 = vmatpush2.bf16.msra.mxu0 %v4223
    %9253 = vmatprep.subr.bf16.mxu0 %v4212
    %9254 = vmatpush2.bf16.msra.mxu0 %v4211
    %9255 = vmatprep.subr.bf16.mxu0 %v4200
    %9256 = vmatpush2.bf16.msra.mxu0 %v4199
    %9257 = vmatprep.mubr.bf16.mxu0 %v9222
    %9258 = vmatmul.mubr.bf16.gmra.mxu0 %v9221
    %v9259 = vpop.f32.mrf.mxu0
    %v9260 = vadd.f32 0.0, %v9259
    %v9261 = vpop.f32.mrf.mxu0
    %v9262 = vadd.f32 0.0, %v9261
    %v9263 = vpop.f32.mrf.mxu0
    %v9264 = vpop.f32.mrf.mxu0
    %9265 = vdwg.mxu0
    %9266 = vmatprep.subr.bf16.mxu0 %v4380
    %9267 = vmatpush1.bf16.msra.mxu0 %v4379
    %9268 = vmatprep.subr.bf16.mxu0 %v4368
    %9269 = vmatpush1.bf16.msra.mxu0 %v4367
    %9270 = vmatprep.subr.bf16.mxu0 %v4356
    %9271 = vmatpush1.bf16.msra.mxu0 %v4355
    %9272 = vmatprep.subr.bf16.mxu0 %v4344
    %9273 = vmatpush1.bf16.msra.mxu0 %v4343
    %9274 = vmatprep.subr.bf16.mxu0 %v4332
    %9275 = vmatpush1.bf16.msra.mxu0 %v4331
    %9276 = vmatprep.subr.bf16.mxu0 %v4320
    %9277 = vmatpush1.bf16.msra.mxu0 %v4319
    %9278 = vmatprep.subr.bf16.mxu0 %v4308
    %9279 = vmatpush1.bf16.msra.mxu0 %v4307
    %9280 = vmatprep.subr.bf16.mxu0 %v4296
    %9281 = vmatpush1.bf16.msra.mxu0 %v4295
    %9282 = vmatprep.subr.bf16.mxu0 %v4476
    %9283 = vmatpush2.bf16.msra.mxu0 %v4475
    %9284 = vmatprep.subr.bf16.mxu0 %v4464
    %9285 = vmatpush2.bf16.msra.mxu0 %v4463
    %9286 = vmatprep.subr.bf16.mxu0 %v4452
    %9287 = vmatpush2.bf16.msra.mxu0 %v4451
    %9288 = vmatprep.subr.bf16.mxu0 %v4440
    %9289 = vmatpush2.bf16.msra.mxu0 %v4439
    %9290 = vmatprep.subr.bf16.mxu0 %v4428
    %9291 = vmatpush2.bf16.msra.mxu0 %v4427
    %9292 = vmatprep.subr.bf16.mxu0 %v4416
    %9293 = vmatpush2.bf16.msra.mxu0 %v4415
    %9294 = vmatprep.subr.bf16.mxu0 %v4404
    %9295 = vmatpush2.bf16.msra.mxu0 %v4403
    %9296 = vmatprep.subr.bf16.mxu0 %v4392
    %9297 = vmatpush2.bf16.msra.mxu0 %v4391
    %9298 = vmatprep.mubr.bf16.mxu0 %v9224
    %9299 = vmatmul.mubr.bf16.gmra.mxu0 %v9223
    %v9300 = vpop.f32.mrf.mxu0
    %v9301 = vadd.f32 %v9260, %v9300
    %v9302 = vpop.f32.mrf.mxu0
    %v9303 = vadd.f32 %v9262, %v9302
    %v9304 = vpop.f32.mrf.mxu0
    %v9305 = vpop.f32.mrf.mxu0
    %9306 = vdwg.mxu0
    %9307 = vmatprep.subr.bf16.mxu0 %v4190
    %9308 = vmatpush1.bf16.msra.mxu0 %v4189
    %9309 = vmatprep.subr.bf16.mxu0 %v4178
    %9310 = vmatpush1.bf16.msra.mxu0 %v4177
    %9311 = vmatprep.subr.bf16.mxu0 %v4166
    %9312 = vmatpush1.bf16.msra.mxu0 %v4165
    %9313 = vmatprep.subr.bf16.mxu0 %v4154
    %9314 = vmatpush1.bf16.msra.mxu0 %v4153
    %9315 = vmatprep.subr.bf16.mxu0 %v4142
    %9316 = vmatpush1.bf16.msra.mxu0 %v4141
    %9317 = vmatprep.subr.bf16.mxu0 %v4130
    %9318 = vmatpush1.bf16.msra.mxu0 %v4129
    %9319 = vmatprep.subr.bf16.mxu0 %v4118
    %9320 = vmatpush1.bf16.msra.mxu0 %v4117
    %9321 = vmatprep.subr.bf16.mxu0 %v4106
    %9322 = vmatpush1.bf16.msra.mxu0 %v4105
    %9323 = vmatprep.subr.bf16.mxu0 %v4286
    %9324 = vmatpush2.bf16.msra.mxu0 %v4285
    %9325 = vmatprep.subr.bf16.mxu0 %v4274
    %9326 = vmatpush2.bf16.msra.mxu0 %v4273
    %9327 = vmatprep.subr.bf16.mxu0 %v4262
    %9328 = vmatpush2.bf16.msra.mxu0 %v4261
    %9329 = vmatprep.subr.bf16.mxu0 %v4250
    %9330 = vmatpush2.bf16.msra.mxu0 %v4249
    %9331 = vmatprep.subr.bf16.mxu0 %v4238
    %9332 = vmatpush2.bf16.msra.mxu0 %v4237
    %9333 = vmatprep.subr.bf16.mxu0 %v4226
    %9334 = vmatpush2.bf16.msra.mxu0 %v4225
    %9335 = vmatprep.subr.bf16.mxu0 %v4214
    %9336 = vmatpush2.bf16.msra.mxu0 %v4213
    %9337 = vmatprep.subr.bf16.mxu0 %v4202
    %9338 = vmatpush2.bf16.msra.mxu0 %v4201
    %9339 = vmatprep.mubr.bf16.mxu0 %v9222
    %9340 = vmatmul.mubr.bf16.gmra.mxu0 %v9221
    %v9341 = vpop.f32.mrf.mxu0
    %v9342 = vadd.f32 0.0, %v9341
    %v9343 = vpop.f32.mrf.mxu0
    %v9344 = vadd.f32 0.0, %v9343
    %v9345 = vpop.f32.mrf.mxu0
    %v9346 = vpop.f32.mrf.mxu0
    %9347 = vdwg.mxu0
    %9348 = vmatprep.subr.bf16.mxu0 %v4382
    %9349 = vmatpush1.bf16.msra.mxu0 %v4381
    %9350 = vmatprep.subr.bf16.mxu0 %v4370
    %9351 = vmatpush1.bf16.msra.mxu0 %v4369
    %9352 = vmatprep.subr.bf16.mxu0 %v4358
    %9353 = vmatpush1.bf16.msra.mxu0 %v4357
    %9354 = vmatprep.subr.bf16.mxu0 %v4346
    %9355 = vmatpush1.bf16.msra.mxu0 %v4345
    %9356 = vmatprep.subr.bf16.mxu0 %v4334
    %9357 = vmatpush1.bf16.msra.mxu0 %v4333
    %9358 = vmatprep.subr.bf16.mxu0 %v4322
    %9359 = vmatpush1.bf16.msra.mxu0 %v4321
    %9360 = vmatprep.subr.bf16.mxu0 %v4310
    %9361 = vmatpush1.bf16.msra.mxu0 %v4309
    %9362 = vmatprep.subr.bf16.mxu0 %v4298
    %9363 = vmatpush1.bf16.msra.mxu0 %v4297
    %9364 = vmatprep.subr.bf16.mxu0 %v4478
    %9365 = vmatpush2.bf16.msra.mxu0 %v4477
    %9366 = vmatprep.subr.bf16.mxu0 %v4466
    %9367 = vmatpush2.bf16.msra.mxu0 %v4465
    %9368 = vmatprep.subr.bf16.mxu0 %v4454
    %9369 = vmatpush2.bf16.msra.mxu0 %v4453
    %9370 = vmatprep.subr.bf16.mxu0 %v4442
    %9371 = vmatpush2.bf16.msra.mxu0 %v4441
    %9372 = vmatprep.subr.bf16.mxu0 %v4430
    %9373 = vmatpush2.bf16.msra.mxu0 %v4429
    %9374 = vmatprep.subr.bf16.mxu0 %v4418
    %9375 = vmatpush2.bf16.msra.mxu0 %v4417
    %9376 = vmatprep.subr.bf16.mxu0 %v4406
    %9377 = vmatpush2.bf16.msra.mxu0 %v4405
    %9378 = vmatprep.subr.bf16.mxu0 %v4394
    %9379 = vmatpush2.bf16.msra.mxu0 %v4393
    %9380 = vmatprep.mubr.bf16.mxu0 %v9224
    %9381 = vmatmul.mubr.bf16.gmra.mxu0 %v9223
    %v9382 = vpop.f32.mrf.mxu0
    %v9383 = vadd.f32 %v9342, %v9382
    %v9384 = vpop.f32.mrf.mxu0
    %v9385 = vadd.f32 %v9344, %v9384
    %v9386 = vpop.f32.mrf.mxu0
    %v9387 = vpop.f32.mrf.mxu0
    %9388 = vdwg.mxu0
    %9389 = vmatprep.subr.bf16.mxu0 %v4192
    %9390 = vmatpush1.bf16.msra.mxu0 %v4191
    %9391 = vmatprep.subr.bf16.mxu0 %v4180
    %9392 = vmatpush1.bf16.msra.mxu0 %v4179
    %9393 = vmatprep.subr.bf16.mxu0 %v4168
    %9394 = vmatpush1.bf16.msra.mxu0 %v4167
    %9395 = vmatprep.subr.bf16.mxu0 %v4156
    %9396 = vmatpush1.bf16.msra.mxu0 %v4155
    %9397 = vmatprep.subr.bf16.mxu0 %v4144
    %9398 = vmatpush1.bf16.msra.mxu0 %v4143
    %9399 = vmatprep.subr.bf16.mxu0 %v4132
    %9400 = vmatpush1.bf16.msra.mxu0 %v4131
    %9401 = vmatprep.subr.bf16.mxu0 %v4120
    %9402 = vmatpush1.bf16.msra.mxu0 %v4119
    %9403 = vmatprep.subr.bf16.mxu0 %v4108
    %9404 = vmatpush1.bf16.msra.mxu0 %v4107
    %9405 = vmatprep.subr.bf16.mxu0 %v4288
    %9406 = vmatpush2.bf16.msra.mxu0 %v4287
    %9407 = vmatprep.subr.bf16.mxu0 %v4276
    %9408 = vmatpush2.bf16.msra.mxu0 %v4275
    %9409 = vmatprep.subr.bf16.mxu0 %v4264
    %9410 = vmatpush2.bf16.msra.mxu0 %v4263
    %9411 = vmatprep.subr.bf16.mxu0 %v4252
    %9412 = vmatpush2.bf16.msra.mxu0 %v4251
    %9413 = vmatprep.subr.bf16.mxu0 %v4240
    %9414 = vmatpush2.bf16.msra.mxu0 %v4239
    %9415 = vmatprep.subr.bf16.mxu0 %v4228
    %9416 = vmatpush2.bf16.msra.mxu0 %v4227
    %9417 = vmatprep.subr.bf16.mxu0 %v4216
    %9418 = vmatpush2.bf16.msra.mxu0 %v4215
    %9419 = vmatprep.subr.bf16.mxu0 %v4204
    %9420 = vmatpush2.bf16.msra.mxu0 %v4203
    %9421 = vmatprep.mubr.bf16.mxu0 %v9222
    %9422 = vmatmul.mubr.bf16.gmra.mxu0 %v9221
    %v9423 = vpop.f32.mrf.mxu0
    %v9424 = vadd.f32 0.0, %v9423
    %v9425 = vpop.f32.mrf.mxu0
    %v9426 = vadd.f32 0.0, %v9425
    %v9427 = vpop.f32.mrf.mxu0
    %v9428 = vpop.f32.mrf.mxu0
    %9429 = vdwg.mxu0
    %9430 = vmatprep.subr.bf16.mxu0 %v4384
    %9431 = vmatpush1.bf16.msra.mxu0 %v4383
    %9432 = vmatprep.subr.bf16.mxu0 %v4372
    %9433 = vmatpush1.bf16.msra.mxu0 %v4371
    %9434 = vmatprep.subr.bf16.mxu0 %v4360
    %9435 = vmatpush1.bf16.msra.mxu0 %v4359
    %9436 = vmatprep.subr.bf16.mxu0 %v4348
    %9437 = vmatpush1.bf16.msra.mxu0 %v4347
    %9438 = vmatprep.subr.bf16.mxu0 %v4336
    %9439 = vmatpush1.bf16.msra.mxu0 %v4335
    %9440 = vmatprep.subr.bf16.mxu0 %v4324
    %9441 = vmatpush1.bf16.msra.mxu0 %v4323
    %9442 = vmatprep.subr.bf16.mxu0 %v4312
    %9443 = vmatpush1.bf16.msra.mxu0 %v4311
    %9444 = vmatprep.subr.bf16.mxu0 %v4300
    %9445 = vmatpush1.bf16.msra.mxu0 %v4299
    %9446 = vmatprep.subr.bf16.mxu0 %v4480
    %9447 = vmatpush2.bf16.msra.mxu0 %v4479
    %9448 = vmatprep.subr.bf16.mxu0 %v4468
    %9449 = vmatpush2.bf16.msra.mxu0 %v4467
    %9450 = vmatprep.subr.bf16.mxu0 %v4456
    %9451 = vmatpush2.bf16.msra.mxu0 %v4455
    %9452 = vmatprep.subr.bf16.mxu0 %v4444
    %9453 = vmatpush2.bf16.msra.mxu0 %v4443
    %9454 = vmatprep.subr.bf16.mxu0 %v4432
    %9455 = vmatpush2.bf16.msra.mxu0 %v4431
    %9456 = vmatprep.subr.bf16.mxu0 %v4420
    %9457 = vmatpush2.bf16.msra.mxu0 %v4419
    %9458 = vmatprep.subr.bf16.mxu0 %v4408
    %9459 = vmatpush2.bf16.msra.mxu0 %v4407
    %9460 = vmatprep.subr.bf16.mxu0 %v4396
    %9461 = vmatpush2.bf16.msra.mxu0 %v4395
    %9462 = vmatprep.mubr.bf16.mxu0 %v9224
    %9463 = vmatmul.mubr.bf16.gmra.mxu0 %v9223
    %v9464 = vpop.f32.mrf.mxu0
    %v9465 = vadd.f32 %v9424, %v9464
    %v9466 = vpop.f32.mrf.mxu0
    %v9467 = vadd.f32 %v9426, %v9466
    %v9468 = vpop.f32.mrf.mxu0
    %v9469 = vpop.f32.mrf.mxu0
    %9470 = vdwg.mxu0
    %9471 = vmatprep.subr.bf16.mxu0 %v4194
    %9472 = vmatpush1.bf16.msra.mxu0 %v4193
    %9473 = vmatprep.subr.bf16.mxu0 %v4182
    %9474 = vmatpush1.bf16.msra.mxu0 %v4181
    %9475 = vmatprep.subr.bf16.mxu0 %v4170
    %9476 = vmatpush1.bf16.msra.mxu0 %v4169
    %9477 = vmatprep.subr.bf16.mxu0 %v4158
    %9478 = vmatpush1.bf16.msra.mxu0 %v4157
    %9479 = vmatprep.subr.bf16.mxu0 %v4146
    %9480 = vmatpush1.bf16.msra.mxu0 %v4145
    %9481 = vmatprep.subr.bf16.mxu0 %v4134
    %9482 = vmatpush1.bf16.msra.mxu0 %v4133
    %9483 = vmatprep.subr.bf16.mxu0 %v4122
    %9484 = vmatpush1.bf16.msra.mxu0 %v4121
    %9485 = vmatprep.subr.bf16.mxu0 %v4110
    %9486 = vmatpush1.bf16.msra.mxu0 %v4109
    %9487 = vmatprep.subr.bf16.mxu0 %v4290
    %9488 = vmatpush2.bf16.msra.mxu0 %v4289
    %9489 = vmatprep.subr.bf16.mxu0 %v4278
    %9490 = vmatpush2.bf16.msra.mxu0 %v4277
    %9491 = vmatprep.subr.bf16.mxu0 %v4266
    %9492 = vmatpush2.bf16.msra.mxu0 %v4265
    %9493 = vmatprep.subr.bf16.mxu0 %v4254
    %9494 = vmatpush2.bf16.msra.mxu0 %v4253
    %9495 = vmatprep.subr.bf16.mxu0 %v4242
    %9496 = vmatpush2.bf16.msra.mxu0 %v4241
    %9497 = vmatprep.subr.bf16.mxu0 %v4230
    %9498 = vmatpush2.bf16.msra.mxu0 %v4229
    %9499 = vmatprep.subr.bf16.mxu0 %v4218
    %9500 = vmatpush2.bf16.msra.mxu0 %v4217
    %9501 = vmatprep.subr.bf16.mxu0 %v4206
    %9502 = vmatpush2.bf16.msra.mxu0 %v4205
    %9503 = vmatprep.mubr.bf16.mxu0 %v9222
    %9504 = vmatmul.mubr.bf16.gmra.mxu0 %v9221
    %v9505 = vpop.f32.mrf.mxu0
    %v9506 = vadd.f32 0.0, %v9505
    %v9507 = vpop.f32.mrf.mxu0
    %v9508 = vadd.f32 0.0, %v9507
    %v9509 = vpop.f32.mrf.mxu0
    %v9510 = vpop.f32.mrf.mxu0
    %9511 = vdwg.mxu0
    %9512 = vmatprep.subr.bf16.mxu0 %v4386
    %9513 = vmatpush1.bf16.msra.mxu0 %v4385
    %9514 = vmatprep.subr.bf16.mxu0 %v4374
    %9515 = vmatpush1.bf16.msra.mxu0 %v4373
    %9516 = vmatprep.subr.bf16.mxu0 %v4362
    %9517 = vmatpush1.bf16.msra.mxu0 %v4361
    %9518 = vmatprep.subr.bf16.mxu0 %v4350
    %9519 = vmatpush1.bf16.msra.mxu0 %v4349
    %9520 = vmatprep.subr.bf16.mxu0 %v4338
    %9521 = vmatpush1.bf16.msra.mxu0 %v4337
    %9522 = vmatprep.subr.bf16.mxu0 %v4326
    %9523 = vmatpush1.bf16.msra.mxu0 %v4325
    %9524 = vmatprep.subr.bf16.mxu0 %v4314
    %9525 = vmatpush1.bf16.msra.mxu0 %v4313
    %9526 = vmatprep.subr.bf16.mxu0 %v4302
    %9527 = vmatpush1.bf16.msra.mxu0 %v4301
    %9528 = vmatprep.subr.bf16.mxu0 %v4482
    %9529 = vmatpush2.bf16.msra.mxu0 %v4481
    %9530 = vmatprep.subr.bf16.mxu0 %v4470
    %9531 = vmatpush2.bf16.msra.mxu0 %v4469
    %9532 = vmatprep.subr.bf16.mxu0 %v4458
    %9533 = vmatpush2.bf16.msra.mxu0 %v4457
    %9534 = vmatprep.subr.bf16.mxu0 %v4446
    %9535 = vmatpush2.bf16.msra.mxu0 %v4445
    %9536 = vmatprep.subr.bf16.mxu0 %v4434
    %9537 = vmatpush2.bf16.msra.mxu0 %v4433
    %9538 = vmatprep.subr.bf16.mxu0 %v4422
    %9539 = vmatpush2.bf16.msra.mxu0 %v4421
    %9540 = vmatprep.subr.bf16.mxu0 %v4410
    %9541 = vmatpush2.bf16.msra.mxu0 %v4409
    %9542 = vmatprep.subr.bf16.mxu0 %v4398
    %9543 = vmatpush2.bf16.msra.mxu0 %v4397
    %9544 = vmatprep.mubr.bf16.mxu0 %v9224
    %9545 = vmatmul.mubr.bf16.gmra.mxu0 %v9223
    %v9546 = vpop.f32.mrf.mxu0
    %v9547 = vadd.f32 %v9506, %v9546
    %v9548 = vpop.f32.mrf.mxu0
    %v9549 = vadd.f32 %v9508, %v9548
    %v9550 = vpop.f32.mrf.mxu0
    %v9551 = vpop.f32.mrf.mxu0
    %9552 = vdwg.mxu0
    %9553 = vmatprep.subr.bf16.mxu0 %v4196
    %9554 = vmatpush1.bf16.msra.mxu0 %v4195
    %9555 = vmatprep.subr.bf16.mxu0 %v4184
    %9556 = vmatpush1.bf16.msra.mxu0 %v4183
    %9557 = vmatprep.subr.bf16.mxu0 %v4172
    %9558 = vmatpush1.bf16.msra.mxu0 %v4171
    %9559 = vmatprep.subr.bf16.mxu0 %v4160
    %9560 = vmatpush1.bf16.msra.mxu0 %v4159
    %9561 = vmatprep.subr.bf16.mxu0 %v4148
    %9562 = vmatpush1.bf16.msra.mxu0 %v4147
    %9563 = vmatprep.subr.bf16.mxu0 %v4136
    %9564 = vmatpush1.bf16.msra.mxu0 %v4135
    %9565 = vmatprep.subr.bf16.mxu0 %v4124
    %9566 = vmatpush1.bf16.msra.mxu0 %v4123
    %9567 = vmatprep.subr.bf16.mxu0 %v4112
    %9568 = vmatpush1.bf16.msra.mxu0 %v4111
    %9569 = vmatprep.subr.bf16.mxu0 %v4292
    %9570 = vmatpush2.bf16.msra.mxu0 %v4291
    %9571 = vmatprep.subr.bf16.mxu0 %v4280
    %9572 = vmatpush2.bf16.msra.mxu0 %v4279
    %9573 = vmatprep.subr.bf16.mxu0 %v4268
    %9574 = vmatpush2.bf16.msra.mxu0 %v4267
    %9575 = vmatprep.subr.bf16.mxu0 %v4256
    %9576 = vmatpush2.bf16.msra.mxu0 %v4255
    %9577 = vmatprep.subr.bf16.mxu0 %v4244
    %9578 = vmatpush2.bf16.msra.mxu0 %v4243
    %9579 = vmatprep.subr.bf16.mxu0 %v4232
    %9580 = vmatpush2.bf16.msra.mxu0 %v4231
    %9581 = vmatprep.subr.bf16.mxu0 %v4220
    %9582 = vmatpush2.bf16.msra.mxu0 %v4219
    %9583 = vmatprep.subr.bf16.mxu0 %v4208
    %9584 = vmatpush2.bf16.msra.mxu0 %v4207
    %9585 = vmatprep.mubr.bf16.mxu0 %v9222
    %9586 = vmatmul.mubr.bf16.gmra.mxu0 %v9221
    %v9587 = vpop.f32.mrf.mxu0
    %v9588 = vadd.f32 0.0, %v9587
    %v9589 = vpop.f32.mrf.mxu0
    %v9590 = vadd.f32 0.0, %v9589
    %v9591 = vpop.f32.mrf.mxu0
    %v9592 = vpop.f32.mrf.mxu0
    %9593 = vdwg.mxu0
    %9594 = vmatprep.subr.bf16.mxu0 %v4388
    %9595 = vmatpush1.bf16.msra.mxu0 %v4387
    %9596 = vmatprep.subr.bf16.mxu0 %v4376
    %9597 = vmatpush1.bf16.msra.mxu0 %v4375
    %9598 = vmatprep.subr.bf16.mxu0 %v4364
    %9599 = vmatpush1.bf16.msra.mxu0 %v4363
    %9600 = vmatprep.subr.bf16.mxu0 %v4352
    %9601 = vmatpush1.bf16.msra.mxu0 %v4351
    %9602 = vmatprep.subr.bf16.mxu0 %v4340
    %9603 = vmatpush1.bf16.msra.mxu0 %v4339
    %9604 = vmatprep.subr.bf16.mxu0 %v4328
    %9605 = vmatpush1.bf16.msra.mxu0 %v4327
    %9606 = vmatprep.subr.bf16.mxu0 %v4316
    %9607 = vmatpush1.bf16.msra.mxu0 %v4315
    %9608 = vmatprep.subr.bf16.mxu0 %v4304
    %9609 = vmatpush1.bf16.msra.mxu0 %v4303
    %9610 = vmatprep.subr.bf16.mxu0 %v4484
    %9611 = vmatpush2.bf16.msra.mxu0 %v4483
    %9612 = vmatprep.subr.bf16.mxu0 %v4472
    %9613 = vmatpush2.bf16.msra.mxu0 %v4471
    %9614 = vmatprep.subr.bf16.mxu0 %v4460
    %9615 = vmatpush2.bf16.msra.mxu0 %v4459
    %9616 = vmatprep.subr.bf16.mxu0 %v4448
    %9617 = vmatpush2.bf16.msra.mxu0 %v4447
    %9618 = vmatprep.subr.bf16.mxu0 %v4436
    %9619 = vmatpush2.bf16.msra.mxu0 %v4435
    %9620 = vmatprep.subr.bf16.mxu0 %v4424
    %9621 = vmatpush2.bf16.msra.mxu0 %v4423
    %9622 = vmatprep.subr.bf16.mxu0 %v4412
    %9623 = vmatpush2.bf16.msra.mxu0 %v4411
    %9624 = vmatprep.subr.bf16.mxu0 %v4400
    %9625 = vmatpush2.bf16.msra.mxu0 %v4399
    %9626 = vmatprep.mubr.bf16.mxu0 %v9224
    %9627 = vmatmul.mubr.bf16.gmra.mxu0 %v9223
    %v9628 = vpop.f32.mrf.mxu0
    %v9629 = vadd.f32 %v9588, %v9628
    %v9630 = vpop.f32.mrf.mxu0
    %v9631 = vadd.f32 %v9590, %v9630
    %v9632 = vpop.f32.mrf.mxu0
    %v9633 = vpop.f32.mrf.mxu0
    %9634 = vdwg.mxu0
    %9635 = vmatprep.subr.bf16.mxu0 %v4198
    %9636 = vmatpush1.bf16.msra.mxu0 %v4197
    %9637 = vmatprep.subr.bf16.mxu0 %v4186
    %9638 = vmatpush1.bf16.msra.mxu0 %v4185
    %9639 = vmatprep.subr.bf16.mxu0 %v4174
    %9640 = vmatpush1.bf16.msra.mxu0 %v4173
    %9641 = vmatprep.subr.bf16.mxu0 %v4162
    %9642 = vmatpush1.bf16.msra.mxu0 %v4161
    %9643 = vmatprep.subr.bf16.mxu0 %v4150
    %9644 = vmatpush1.bf16.msra.mxu0 %v4149
    %9645 = vmatprep.subr.bf16.mxu0 %v4138
    %9646 = vmatpush1.bf16.msra.mxu0 %v4137
    %9647 = vmatprep.subr.bf16.mxu0 %v4126
    %9648 = vmatpush1.bf16.msra.mxu0 %v4125
    %9649 = vmatprep.subr.bf16.mxu0 %v4114
    %9650 = vmatpush1.bf16.msra.mxu0 %v4113
    %9651 = vmatprep.subr.bf16.mxu0 %v4294
    %9652 = vmatpush2.bf16.msra.mxu0 %v4293
    %9653 = vmatprep.subr.bf16.mxu0 %v4282
    %9654 = vmatpush2.bf16.msra.mxu0 %v4281
    %9655 = vmatprep.subr.bf16.mxu0 %v4270
    %9656 = vmatpush2.bf16.msra.mxu0 %v4269
    %9657 = vmatprep.subr.bf16.mxu0 %v4258
    %9658 = vmatpush2.bf16.msra.mxu0 %v4257
    %9659 = vmatprep.subr.bf16.mxu0 %v4246
    %9660 = vmatpush2.bf16.msra.mxu0 %v4245
    %9661 = vmatprep.subr.bf16.mxu0 %v4234
    %9662 = vmatpush2.bf16.msra.mxu0 %v4233
    %9663 = vmatprep.subr.bf16.mxu0 %v4222
    %9664 = vmatpush2.bf16.msra.mxu0 %v4221
    %9665 = vmatprep.subr.bf16.mxu0 %v4210
    %9666 = vmatpush2.bf16.msra.mxu0 %v4209
    %9667 = vmatprep.mubr.bf16.mxu0 %v9222
    %9668 = vmatmul.mubr.bf16.gmra.mxu0 %v9221
    %v9669 = vpop.f32.mrf.mxu0
    %v9670 = vadd.f32 0.0, %v9669
    %v9671 = vpop.f32.mrf.mxu0
    %v9672 = vadd.f32 0.0, %v9671
    %v9673 = vpop.f32.mrf.mxu0
    %v9674 = vpop.f32.mrf.mxu0
    %9675 = vdwg.mxu0
    %9676 = vmatprep.subr.bf16.mxu0 %v4390
    %9677 = vmatpush1.bf16.msra.mxu0 %v4389
    %9678 = vmatprep.subr.bf16.mxu0 %v4378
    %9679 = vmatpush1.bf16.msra.mxu0 %v4377
    %9680 = vmatprep.subr.bf16.mxu0 %v4366
    %9681 = vmatpush1.bf16.msra.mxu0 %v4365
    %9682 = vmatprep.subr.bf16.mxu0 %v4354
    %9683 = vmatpush1.bf16.msra.mxu0 %v4353
    %9684 = vmatprep.subr.bf16.mxu0 %v4342
    %9685 = vmatpush1.bf16.msra.mxu0 %v4341
    %9686 = vmatprep.subr.bf16.mxu0 %v4330
    %9687 = vmatpush1.bf16.msra.mxu0 %v4329
    %9688 = vmatprep.subr.bf16.mxu0 %v4318
    %9689 = vmatpush1.bf16.msra.mxu0 %v4317
    %9690 = vmatprep.subr.bf16.mxu0 %v4306
    %9691 = vmatpush1.bf16.msra.mxu0 %v4305
    %9692 = vmatprep.subr.bf16.mxu0 %v4486
    %9693 = vmatpush2.bf16.msra.mxu0 %v4485
    %9694 = vmatprep.subr.bf16.mxu0 %v4474
    %9695 = vmatpush2.bf16.msra.mxu0 %v4473
    %9696 = vmatprep.subr.bf16.mxu0 %v4462
    %9697 = vmatpush2.bf16.msra.mxu0 %v4461
    %9698 = vmatprep.subr.bf16.mxu0 %v4450
    %9699 = vmatpush2.bf16.msra.mxu0 %v4449
    %9700 = vmatprep.subr.bf16.mxu0 %v4438
    %9701 = vmatpush2.bf16.msra.mxu0 %v4437
    %9702 = vmatprep.subr.bf16.mxu0 %v4426
    %9703 = vmatpush2.bf16.msra.mxu0 %v4425
    %9704 = vmatprep.subr.bf16.mxu0 %v4414
    %9705 = vmatpush2.bf16.msra.mxu0 %v4413
    %9706 = vmatprep.subr.bf16.mxu0 %v4402
    %9707 = vmatpush2.bf16.msra.mxu0 %v4401
    %9708 = vmatprep.mubr.bf16.mxu0 %v9224
    %9709 = vmatmul.mubr.bf16.gmra.mxu0 %v9223
    %v9710 = vpop.f32.mrf.mxu0
    %v9711 = vadd.f32 %v9670, %v9710
    %v9712 = vpop.f32.mrf.mxu0
    %v9713 = vadd.f32 %v9672, %v9712
    %v9714 = vpop.f32.mrf.mxu0
    %v9715 = vpop.f32.mrf.mxu0
    %9716 = vdwg.mxu0
    %v9717 = vld [vmem:[#allocation2 + $0x2a0] sm:$0xff]
    %v9718 = vld [vmem:[#allocation2 + $0x2a8] sm:$0xff]
    %v9719 = vld [vmem:[#allocation2 + $0x2b0] sm:$0xff]
    %v9720 = vld [vmem:[#allocation2 + $0x2b8] sm:$0xff]
    %v9721 = vld [vmem:[#allocation2 + $0x2c0] sm:$0xff]
    %v9722 = vld [vmem:[#allocation2 + $0x2c8] sm:$0xff]
    %v9723 = vld [vmem:[#allocation2 + $0x2d0] sm:$0xff]
    %v9724 = vld [vmem:[#allocation2 + $0x2d8] sm:$0xff]
    %v9725 = vld [vmem:[#allocation2 + $0x2e0] sm:$0xff]
    %v9726 = vld [vmem:[#allocation2 + $0x2e8] sm:$0xff]
    %v9727 = vld [vmem:[#allocation2 + $0x2f0] sm:$0xff]
    %v9728 = vld [vmem:[#allocation2 + $0x2f8] sm:$0xff]
    %v9729 = vadd.f32 %v9717, %v9301
    %v9730 = vadd.f32 %v9718, %v9303
    %v9731 = vadd.f32 %v9719, %v9383
    %v9732 = vadd.f32 %v9720, %v9385
    %v9733 = vxor.u32 %v9729, 2147483648
    %v9734 = vxor.u32 %v9730, 2147483648
    %v9735 = vxor.u32 %v9731, 2147483648
    %v9736 = vxor.u32 %v9732, 2147483648
    %v9737 = vmul.f32 %v9733, 1.442695
    %v9738 = vpow.pop %v9737
    %v9739 = vmul.f32 %v9734, 1.442695
    %v9740 = vpow.pop %v9739
    %v9741 = vmul.f32 %v9735, 1.442695
    %v9742 = vpow.pop %v9741
    %v9743 = vmul.f32 %v9736, 1.442695
    %v9744 = vpow.pop %v9743
    %v9745 = vadd.f32 %v9738, 1.0
    %v9746 = vadd.f32 %v9740, 1.0
    %v9747 = vadd.f32 %v9742, 1.0
    %v9748 = vadd.f32 %v9744, 1.0
    %v9749 = vrcp.pop %v9745
    %v9750 = vmul.f32 1.0, %v9749
    %v9751 = vrcp.pop %v9746
    %v9752 = vmul.f32 1.0, %v9751
    %v9753 = vrcp.pop %v9747
    %v9754 = vmul.f32 1.0, %v9753
    %v9755 = vrcp.pop %v9748
    %v9756 = vmul.f32 1.0, %v9755
    %v9757 = vadd.f32 %v9721, %v9465
    %v9758 = vadd.f32 %v9722, %v9467
    %v9759 = vadd.f32 %v9723, %v9547
    %v9760 = vadd.f32 %v9724, %v9549
    %v9761 = vxor.u32 %v9757, 2147483648
    %v9762 = vxor.u32 %v9758, 2147483648
    %v9763 = vxor.u32 %v9759, 2147483648
    %v9764 = vxor.u32 %v9760, 2147483648
    %v9765 = vmul.f32 %v9761, 1.442695
    %v9766 = vpow.pop %v9765
    %v9767 = vmul.f32 %v9762, 1.442695
    %v9768 = vpow.pop %v9767
    %v9769 = vmul.f32 %v9763, 1.442695
    %v9770 = vpow.pop %v9769
    %v9771 = vmul.f32 %v9764, 1.442695
    %v9772 = vpow.pop %v9771
    %v9773 = vadd.f32 %v9766, 1.0
    %v9774 = vadd.f32 %v9768, 1.0
    %v9775 = vadd.f32 %v9770, 1.0
    %v9776 = vadd.f32 %v9772, 1.0
    %v9777 = vrcp.pop %v9773
    %v9778 = vmul.f32 1.0, %v9777
    %v9779 = vrcp.pop %v9774
    %v9780 = vmul.f32 1.0, %v9779
    %v9781 = vrcp.pop %v9775
    %v9782 = vmul.f32 1.0, %v9781
    %v9783 = vrcp.pop %v9776
    %v9784 = vmul.f32 1.0, %v9783
    %v9785 = vadd.f32 %v9629, %v2926
    %v9786 = vadd.f32 %v9631, %v2930
    %v9787 = vadd.f32 %v9711, %v2934
    %v9788 = vadd.f32 %v9713, %v2938
    %v9789 = vmul.f32 %v9750, %v9785
    %v9790 = vmul.f32 %v9752, %v9786
    %v9791 = vmul.f32 %v9754, %v9787
    %v9792 = vmul.f32 %v9756, %v9788
    %v9793 = vadd.f32 %v9725, %v9789
    %v9794 = vadd.f32 %v9726, %v9790
    %v9795 = vadd.f32 %v9727, %v9791
    %v9796 = vadd.f32 %v9728, %v9792
    %v9797 = vtanh.pop %v9793
    %v9798 = vtanh.pop %v9794
    %v9799 = vtanh.pop %v9795
    %v9800 = vtanh.pop %v9796
    %v9801 = vsub.f32 1.0, %v9778
    %v9802 = vsub.f32 1.0, %v9780
    %v9803 = vsub.f32 1.0, %v9782
    %v9804 = vsub.f32 1.0, %v9784
    %v9805 = vmul.f32 %v9801, %v9797
    %v9806 = vmul.f32 %v9802, %v9798
    %v9807 = vmul.f32 %v9803, %v9799
    %v9808 = vmul.f32 %v9804, %v9800
    %v9809 = vmul.f32 %v9778, %v9217
    %v9810 = vmul.f32 %v9780, %v9218
    %v9811 = vmul.f32 %v9782, %v9219
    %v9812 = vmul.f32 %v9784, %v9220
    %v9813 = vadd.f32 %v9805, %v9809
    %v9814 = vadd.f32 %v9806, %v9810
    %v9815 = vadd.f32 %v9807, %v9811
    %v9816 = vadd.f32 %v9808, %v9812
    %9817 = vst [vmem:[#allocation3] sm:$0xff] %v9813
    %9818 = vst [vmem:[#allocation3 + $0x8] sm:$0xff] %v9814
    %9819 = vst [vmem:[#allocation3 + $0x10] sm:$0xff] %v9815
    %9820 = vst [vmem:[#allocation3 + $0x18] sm:$0xff] %v9816
    %v9821 = vpack.c.bf16 %v9813, %v9813
    %v9822 = vpack.c.bf16 %v9814, %v9814
    %v9823 = vpack.c.bf16 %v9815, %v9815
    %v9824 = vpack.c.bf16 %v9816, %v9816
    %v9829 = vunpack.c.l.b16 %v9821
    %v9830 = vunpack.c.l.b16 %v9822
    %v9831 = vunpack.c.l.b16 %v9823
    %v9832 = vunpack.c.l.b16 %v9824
    %v9833 = vpack.c.b16 %v9830, %v9829
    %v9834 = vpack.c.b16 %v9832, %v9831
    %9837 = vst [vmem:[#allocation15 + $0x70] sm:$0xff] %v9833
    %9838 = vst [vmem:[#allocation15 + $0x78] sm:$0xff] %v9834
    // Predicated region
    $region54: #{tpu_custom_call.1} parent=1 // pred_check
      %p9839 = pneg %p104
    $region55: #{tpu_custom_call.1} parent=1 // pred_check_branch
      %9841 = sbr.rel (%p9839) target = $region57
    $region56: #{tpu_custom_call.1} parent=1 // pred_region
      %v9842 = vld [vmem:[#allocation3] sm:$0xff]
      %v9843 = vld [vmem:[#allocation3 + $0x8] sm:$0xff]
      %v9844 = vld [vmem:[#allocation3 + $0x10] sm:$0xff]
      %v9845 = vld [vmem:[#allocation3 + $0x18] sm:$0xff]
      %9846 = vst [vmem:[#allocation16] sm:$0xff] %v9842
      %9847 = vst [vmem:[#allocation16 + $0x8] sm:$0xff] %v9843
      %9848 = vst [vmem:[#allocation16 + $0x10] sm:$0xff] %v9844
      %9849 = vst [vmem:[#allocation16 + $0x18] sm:$0xff] %v9845
    $region57: #{tpu_custom_call.1} parent=1 // pred_fallthru
      _
    // Predicated region
    $region58: #{tpu_custom_call.1} parent=1 // pred_check
      _
    $region59: #{tpu_custom_call.1} parent=1 // pred_check_branch
      %9851 = sbr.rel (0) target = $region61
    $region60: #{tpu_custom_call.1} parent=1 // pred_region
      %s9853 = ssub.s32 2048, 2048
      %9854 = vsyncadd [#allocation6], %s9853
      %s9855 = sshll.u32 [#allocation15], 4
      %s9856 = int_to_ptr.vmem [resolvable:$true] %s9855
      %9861 = dma.vmem_to_hbm [thread:$0]  %s9856, 2048, %s6, [#allocation6], 256, 256, 16
    $region61: #{tpu_custom_call.1} parent=1 // pred_fallthru
      _
    // Predicated region
    $region62: #{tpu_custom_call.1} parent=1 // pred_check
      _
    $region63: #{tpu_custom_call.1} parent=1 // pred_check_branch
      %9863 = sbr.rel (0) target = $region65
    $region64: #{tpu_custom_call.1} parent=1 // pred_region
      %s9865 = ssub.s32 512, 512
      %9866 = vsyncadd [#allocation17], %s9865
      %s9868 = sshll.u32 [#allocation16], 4
      %s9869 = int_to_ptr.vmem [resolvable:$true] %s9868
      %9871 = dma.vmem_to_hbm [thread:$0]  %s9869, 512, %s7, [#allocation17]
    $region65: #{tpu_custom_call.1} parent=1 // pred_fallthru
      _
    // Predicated region
    $region66: #{tpu_custom_call.1} parent=1 // pred_check
      _
    $region67: #{tpu_custom_call.1} parent=1 // pred_check_branch
      %9873 = sbr.rel (0) target = $region69
    $region68: #{tpu_custom_call.1} parent=1 // pred_region
      %9874 = dma.done [#allocation6], 2048
    $region69: #{tpu_custom_call.1} parent=1 // pred_fallthru
      _
    // Predicated region
    $region70: #{tpu_custom_call.1} parent=1 // pred_check
      _
    $region71: #{tpu_custom_call.1} parent=1 // pred_check_branch
      %9876 = sbr.rel (0) target = $region73
    $region72: #{tpu_custom_call.1} parent=1 // pred_region
      %9877 = dma.done [#allocation17], 512
    $region73: #{tpu_custom_call.1} parent=1 // pred_fallthru
      _
    %9878 = vsyncpa [#allocation5], 1
    %9879 = vsyncpa [#allocation8], 1
    %9880 = vsyncpa [#allocation11], 1
    %9881 = vsyncpa [#allocation14], 1
    %9882 = vsyncpa [#allocation6], 1
    %9883 = vsyncpa [#allocation17], 1

</llo_original>
